<compile_context>
chip_gen: v5e
topology: v5e:2x2
jax: 0.10.0
libtpu: 0.0.40
codegen_flags: <defaults>
</compile_context>

<pallas_src>
import math

import jax
import jax.numpy as jnp
from jax.experimental import pallas as pl
from jax.experimental.pallas import tpu as pltpu

SQRT2 = 1.4142135623730951


# ------------------------------ fused kernel --------------------------------

def _fused_block_kernel(
    ll_ref, lh_ref, hl_ref, hh_ref,            # (1, H, W, C) IDWT sub-bands
    n0_ref, n1_ref,                            # (1, H2*W2, 1) noise maps
    w1_ref, w2_ref, wimg_ref,                  # (9C, Co), (9Co, Co), (Co, 12) weights
    s1_ref, d1_ref, s2_ref, d2_ref, simg_ref,  # (1, 1, Cx) per-sample mod / demod
    b1_ref, b2_ref, bimg_ref,                  # (1, Cx) biases
    nw_ref,                                    # (1, 2) SMEM noise strengths
    hid_ref, img_ref,                          # (1, H2*W2, Co), (1, H2*W2, 12)
    x1p_ref, x2p_ref,                          # VMEM padded scratch
):
    H, W, C = ll_ref.shape[1], ll_ref.shape[2], ll_ref.shape[3]
    H2, W2 = 2 * H, 2 * W
    P = H2 * W2
    Co = w1_ref.shape[1]

    # ---- IDWT upsample (inverse Haar / db1, zero mode), fused in-kernel --------
    ll, lh, hl, hh = ll_ref[0], lh_ref[0], hl_ref[0], hh_ref[0]
    y00 = 0.5 * (ll - lh - hl + hh)
    y01 = 0.5 * (ll - lh + hl - hh)
    y10 = 0.5 * (ll + lh - hl - hh)
    y11 = 0.5 * (ll + lh + hl + hh)
    # interleave phases: x_up[2i+r, 2j+s, c] = y_rs[i, j, c]
    row0 = jnp.stack([y00, y01], axis=2).reshape(H, W2, C)
    row1 = jnp.stack([y10, y11], axis=2).reshape(H, W2, C)
    x_up = jnp.stack([row0, row1], axis=1).reshape(H2, W2, C)

    # ---- conv1: modulate, zero-pad into VMEM scratch, single im2col matmul -----
    x1p_ref[...] = jnp.zeros_like(x1p_ref)
    x1p_ref[1:H2 + 1, 1:W2 + 1, :] = x_up * s1_ref[0]          # style modulation

    cols = [x1p_ref[kh:kh + H2, kw:kw + W2, :].reshape(P, C)
            for kh in range(3) for kw in range(3)]
    col1 = jnp.concatenate(cols, axis=1)                        # (P, 9C)
    y1 = jnp.dot(col1, w1_ref[...], preferred_element_type=jnp.float32)
    y1 = y1 * d1_ref[0]                                         # demodulation
    y1 = y1 + nw_ref[0, 0] * n0_ref[0]                          # noise injection
    y1 = y1 + b1_ref[...]                                       # fused leaky relu
    y1 = jnp.where(y1 >= 0.0, y1, 0.2 * y1) * SQRT2             # (P, Co)

    # ---- conv2: same, activation stays resident in VMEM ------------------------
    x2p_ref[...] = jnp.zeros_like(x2p_ref)
    x2p_ref[1:H2 + 1, 1:W2 + 1, :] = y1.reshape(H2, W2, Co) * s2_ref[0]

    cols = [x2p_ref[kh:kh + H2, kw:kw + W2, :].reshape(P, Co)
            for kh in range(3) for kw in range(3)]
    col2 = jnp.concatenate(cols, axis=1)                        # (P, 9Co)
    y2 = jnp.dot(col2, w2_ref[...], preferred_element_type=jnp.float32)
    y2 = y2 * d2_ref[0]
    y2 = y2 + nw_ref[0, 1] * n1_ref[0]
    y2 = y2 + b2_ref[...]
    y2 = jnp.where(y2 >= 0.0, y2, 0.2 * y2) * SQRT2             # (P, Co)

    hid_ref[0] = y2                                             # contiguous slab store

    # ---- to_img: modulated 1x1 conv (no demod) + bias --------------------------
    yimg = jnp.dot(y2 * simg_ref[0], wimg_ref[...],
                   preferred_element_type=jnp.float32)
    img_ref[0] = yimg + bimg_ref[...]


# --------------------------------- wrapper ----------------------------------

def _equal_linear(x, w, b):
    # EqualLinear(style_dim -> Cin), lr_mul=1, bias_init=1 (tiny matmul; XLA glue).
    scale = 1.0 / math.sqrt(w.shape[1])
    return x @ (w * scale).T + b


def _conv3x3_prep(p):
    # Returns (im2col weight (9*Cin, Cout), per-channel squared-weight sums (Cin, Cout)).
    cout, cin = p["weight"].shape[0], p["weight"].shape[1]
    scale = 1.0 / math.sqrt(cin * 9)
    w = jnp.transpose(p["weight"] * scale, (2, 3, 1, 0))        # (3, 3, Cin, Cout)
    return w.reshape(9 * cin, cout), jnp.sum(w * w, axis=(0, 1))


def mobile_synthesis_block(params, hidden, style, noise=(None, None)):
    """hidden: (N, channels_in, H, W) NCHW; style: (N, style_dim) or (N, >=3, style_dim);
    noise: two (N, 1, 2H, 2W) maps (or None). Returns (hidden_out, img) in NCHW."""
    N, C4, H, W = hidden.shape
    C = C4 // 4
    H2, W2 = 2 * H, 2 * W
    P = H2 * W2

    if style.ndim == 2:
        s_w = (style, style, style)
    else:
        s_w = (style[:, 0, :], style[:, 1, :], style[:, 2, :])

    hidden = hidden.astype(jnp.float32)
    ll = hidden[:, :C]
    high = hidden[:, C:].reshape(N, C, 3, H, W)

    def nhwc(a):
        return jnp.transpose(a, (0, 2, 3, 1))

    ll, lh, hl, hh = nhwc(ll), nhwc(high[:, :, 0]), nhwc(high[:, :, 1]), nhwc(high[:, :, 2])

    def prep_noise(nz):
        if nz is None:
            # TODO(synk): PyTorch NoiseInjection draws fresh randn when noise is None;
            # zeros substituted here (pass explicit noise for exact parity).
            return jnp.zeros((N, P, 1), jnp.float32)
        return nz.astype(jnp.float32).reshape(N, P, 1)

    n0, n1 = prep_noise(noise[0]), prep_noise(noise[1])

    p1, p2, pimg = params["conv1"], params["conv2"], params["to_img"]
    Co = p1["weight"].shape[0]
    Cimg = pimg["weight"].shape[0]

    # Per-sample modulation + precomputed demodulation (hoisted out of the kernel).
    w1, wsq1 = _conv3x3_prep(p1)
    w2, wsq2 = _conv3x3_prep(p2)
    s1 = _equal_linear(s_w[0], p1["mod_w"], p1["mod_b"])          # (N, C)
    s2 = _equal_linear(s_w[1], p2["mod_w"], p2["mod_b"])          # (N, Co)
    simg = _equal_linear(s_w[2], pimg["mod_w"], pimg["mod_b"])    # (N, Co)
    d1 = jax.lax.rsqrt((s1 * s1) @ wsq1 + 1e-8)                   # (N, Co)
    d2 = jax.lax.rsqrt((s2 * s2) @ wsq2 + 1e-8)                   # (N, Co)

    wimg = (pimg["weight"].reshape(Cimg, Co) * (1.0 / math.sqrt(Co))).T   # (Co, 12)

    b1 = p1["act_bias"].reshape(1, Co).astype(jnp.float32)
    b2 = p2["act_bias"].reshape(1, Co).astype(jnp.float32)
    bimg = pimg["bias"].reshape(1, Cimg).astype(jnp.float32)
    nw = jnp.stack([p1["noise_w"], p2["noise_w"]]).reshape(1, 2).astype(jnp.float32)

    def per_sample(a):
        return a.reshape(N, 1, a.shape[-1]).astype(jnp.float32)

    sub_spec = pl.BlockSpec((1, H, W, C), lambda n: (n, 0, 0, 0))
    noise_spec = pl.BlockSpec((1, P, 1), lambda n: (n, 0, 0))

    hid_flat, img_flat = pl.pallas_call(
        _fused_block_kernel,
        out_shape=(
            jax.ShapeDtypeStruct((N, P, Co), jnp.float32),
            jax.ShapeDtypeStruct((N, P, Cimg), jnp.float32),
        ),
        grid=(N,),
        in_specs=[
            sub_spec, sub_spec, sub_spec, sub_spec,
            noise_spec, noise_spec,
            pl.BlockSpec((9 * C, Co), lambda n: (0, 0)),
            pl.BlockSpec((9 * Co, Co), lambda n: (0, 0)),
            pl.BlockSpec((Co, Cimg), lambda n: (0, 0)),
            pl.BlockSpec((1, 1, C), lambda n: (n, 0, 0)),
            pl.BlockSpec((1, 1, Co), lambda n: (n, 0, 0)),
            pl.BlockSpec((1, 1, Co), lambda n: (n, 0, 0)),
            pl.BlockSpec((1, 1, Co), lambda n: (n, 0, 0)),
            pl.BlockSpec((1, 1, Co), lambda n: (n, 0, 0)),
            pl.BlockSpec((1, Co), lambda n: (0, 0)),
            pl.BlockSpec((1, Co), lambda n: (0, 0)),
            pl.BlockSpec((1, Cimg), lambda n: (0, 0)),
            pl.BlockSpec((1, 2), lambda n: (0, 0),
                         memory_space=pltpu.MemorySpace.SMEM),
        ],
        out_specs=(
            pl.BlockSpec((1, P, Co), lambda n: (n, 0, 0)),
            pl.BlockSpec((1, P, Cimg), lambda n: (n, 0, 0)),
        ),
        scratch_shapes=[
            pltpu.VMEM((H2 + 2, W2 + 2, C), jnp.float32),
            pltpu.VMEM((H2 + 2, W2 + 2, Co), jnp.float32),
        ],
        compiler_params=pltpu.CompilerParams(
            dimension_semantics=("parallel",)),
    )(ll, lh, hl, hh, n0, n1, w1, w2, wimg,
      per_sample(s1), per_sample(d1), per_sample(s2), per_sample(d2),
      per_sample(simg), b1, b2, bimg, nw)

    hidden_out = jnp.transpose(hid_flat.reshape(N, H2, W2, Co), (0, 3, 1, 2))
    img = jnp.transpose(img_flat.reshape(N, H2, W2, Cimg), (0, 3, 1, 2))
    return hidden_out, img


# --------------------------- deterministic params ---------------------------

def init_params(key, channels_in, channels_out, style_dim):
    cin1 = channels_in // 4
    ks = jax.random.split(key, 9)

    def styled_conv_params(kw, km, kb, cin, cout, ksz):
        return dict(
            weight=jax.random.normal(kw, (cout, cin, ksz, ksz), jnp.float32),
            mod_w=jax.random.normal(km, (cin, style_dim), jnp.float32),
            mod_b=jnp.ones((cin,), jnp.float32),        # EqualLinear bias_init=1
            noise_w=jnp.float32(0.1),                   # NoiseInjection strength
            act_bias=0.1 * jax.random.normal(kb, (cout,), jnp.float32),
        )

    return dict(
        conv1=styled_conv_params(ks[0], ks[1], ks[2], cin1, channels_out, 3),
        conv2=styled_conv_params(ks[3], ks[4], ks[5], channels_out, channels_out, 3),
        to_img=dict(
            weight=jax.random.normal(ks[6], (12, channels_out, 1, 1), jnp.float32),
            mod_w=jax.random.normal(ks[7], (channels_out, style_dim), jnp.float32),
            mod_b=jnp.ones((channels_out,), jnp.float32),
            bias=0.1 * jax.random.normal(ks[8], (12,), jnp.float32),
        ),
    )


if __name__ == "__main__":
    channels_in, channels_out, style_dim = 16, 8, 16
    N, H, W = 2, 8, 8

    key = jax.random.PRNGKey(0)
    kp, kh, ks, kn0, kn1 = jax.random.split(key, 5)
    params = init_params(kp, channels_in, channels_out, style_dim)

    hidden = jax.random.normal(kh, (N, channels_in, H, W), jnp.float32)
    style = jax.random.normal(ks, (N, 3, style_dim), jnp.float32)   # wsize() == 3
    noise0 = jax.random.normal(kn0, (N, 1, 2 * H, 2 * W), jnp.float32)
    noise1 = jax.random.normal(kn1, (N, 1, 2 * H, 2 * W), jnp.float32)

    hidden_out, img = mobile_synthesis_block(params, hidden, style, [noise0, noise1])
    jax.block_until_ready((hidden_out, img))

    assert hidden_out.shape == (N, channels_out, 2 * H, 2 * W)
    assert img.shape == (N, 12, 2 * H, 2 * W)
    print("KERNEL_OK")
</pallas_src>

<mosaic_0001>
module attributes {stable_mosaic.version = 11 : i64} {
  func.func @_fused_block_kernel(%arg0: i32, %arg1: memref<1x8x8x4xf32, #tpu.memory_space<vmem>>, %arg2: memref<1x8x8x4xf32, #tpu.memory_space<vmem>>, %arg3: memref<1x8x8x4xf32, #tpu.memory_space<vmem>>, %arg4: memref<1x8x8x4xf32, #tpu.memory_space<vmem>>, %arg5: memref<1x256x1xf32, #tpu.memory_space<vmem>>, %arg6: memref<1x256x1xf32, #tpu.memory_space<vmem>>, %arg7: memref<36x8xf32, #tpu.memory_space<vmem>>, %arg8: memref<72x8xf32, #tpu.memory_space<vmem>>, %arg9: memref<8x12xf32, #tpu.memory_space<vmem>>, %arg10: memref<1x1x4xf32, #tpu.memory_space<vmem>>, %arg11: memref<1x1x8xf32, #tpu.memory_space<vmem>>, %arg12: memref<1x1x8xf32, #tpu.memory_space<vmem>>, %arg13: memref<1x1x8xf32, #tpu.memory_space<vmem>>, %arg14: memref<1x1x8xf32, #tpu.memory_space<vmem>>, %arg15: memref<1x8xf32, #tpu.memory_space<vmem>>, %arg16: memref<1x8xf32, #tpu.memory_space<vmem>>, %arg17: memref<1x12xf32, #tpu.memory_space<vmem>>, %arg18: memref<1x2xf32, #tpu.memory_space<smem>>, %arg19: memref<1x256x8xf32, #tpu.memory_space<vmem>>, %arg20: memref<1x256x12xf32, #tpu.memory_space<vmem>>, %arg21: memref<18x18x4xf32, #tpu.memory_space<vmem>>, %arg22: memref<18x18x8xf32, #tpu.memory_space<vmem>>) attributes {dimension_semantics = [#tpu.dimension_semantics<parallel>], iteration_bounds = array<i64: 2>, scalar_prefetch = 0 : i64, scratch_operands = 2 : i64, tpu.core_type = #tpu.core_type<tc>, window_params = [{transform_indices = @transform_0, window_bounds = array<i64: 1, 8, 8, 4>}, {transform_indices = @transform_1, window_bounds = array<i64: 1, 8, 8, 4>}, {transform_indices = @transform_2, window_bounds = array<i64: 1, 8, 8, 4>}, {transform_indices = @transform_3, window_bounds = array<i64: 1, 8, 8, 4>}, {transform_indices = @transform_4, window_bounds = array<i64: 1, 256, 1>}, {transform_indices = @transform_5, window_bounds = array<i64: 1, 256, 1>}, {pipeline_mode = #tpu.pipeline_mode<synchronous>, transform_indices = @transform_6, window_bounds = array<i64: 36, 8>}, {pipeline_mode = #tpu.pipeline_mode<synchronous>, transform_indices = @transform_7, window_bounds = array<i64: 72, 8>}, {pipeline_mode = #tpu.pipeline_mode<synchronous>, transform_indices = @transform_8, window_bounds = array<i64: 8, 12>}, {transform_indices = @transform_9, window_bounds = array<i64: 1, 1, 4>}, {transform_indices = @transform_10, window_bounds = array<i64: 1, 1, 8>}, {transform_indices = @transform_11, window_bounds = array<i64: 1, 1, 8>}, {transform_indices = @transform_12, window_bounds = array<i64: 1, 1, 8>}, {transform_indices = @transform_13, window_bounds = array<i64: 1, 1, 8>}, {pipeline_mode = #tpu.pipeline_mode<synchronous>, transform_indices = @transform_14, window_bounds = array<i64: 1, 8>}, {pipeline_mode = #tpu.pipeline_mode<synchronous>, transform_indices = @transform_15, window_bounds = array<i64: 1, 8>}, {pipeline_mode = #tpu.pipeline_mode<synchronous>, transform_indices = @transform_16, window_bounds = array<i64: 1, 12>}, {transform_indices = @transform_17, window_bounds = array<i64: 1, 2>}, {transform_indices = @transform_18, window_bounds = array<i64: 1, 256, 8>}, {transform_indices = @transform_19, window_bounds = array<i64: 1, 256, 12>}]} {
    %c0 = arith.constant 0 : index
    %c0_0 = arith.constant 0 : index
    %c0_1 = arith.constant 0 : index
    %c0_2 = arith.constant 0 : index
    %0 = vector.load %arg1[%c0, %c0_0, %c0_1, %c0_2] : memref<1x8x8x4xf32, #tpu.memory_space<vmem>>, vector<1x8x8x4xf32>
    %1 = vector.shape_cast %0 : vector<1x8x8x4xf32> to vector<8x8x4xf32>
    %c0_3 = arith.constant 0 : index
    %c0_4 = arith.constant 0 : index
    %c0_5 = arith.constant 0 : index
    %c0_6 = arith.constant 0 : index
    %2 = vector.load %arg2[%c0_3, %c0_4, %c0_5, %c0_6] : memref<1x8x8x4xf32, #tpu.memory_space<vmem>>, vector<1x8x8x4xf32>
    %3 = vector.shape_cast %2 : vector<1x8x8x4xf32> to vector<8x8x4xf32>
    %c0_7 = arith.constant 0 : index
    %c0_8 = arith.constant 0 : index
    %c0_9 = arith.constant 0 : index
    %c0_10 = arith.constant 0 : index
    %4 = vector.load %arg3[%c0_7, %c0_8, %c0_9, %c0_10] : memref<1x8x8x4xf32, #tpu.memory_space<vmem>>, vector<1x8x8x4xf32>
    %5 = vector.shape_cast %4 : vector<1x8x8x4xf32> to vector<8x8x4xf32>
    %c0_11 = arith.constant 0 : index
    %c0_12 = arith.constant 0 : index
    %c0_13 = arith.constant 0 : index
    %c0_14 = arith.constant 0 : index
    %6 = vector.load %arg4[%c0_11, %c0_12, %c0_13, %c0_14] : memref<1x8x8x4xf32, #tpu.memory_space<vmem>>, vector<1x8x8x4xf32>
    %7 = vector.shape_cast %6 : vector<1x8x8x4xf32> to vector<8x8x4xf32>
    %8 = arith.subf %1, %3 : vector<8x8x4xf32>
    %9 = arith.subf %8, %5 : vector<8x8x4xf32>
    %10 = arith.addf %9, %7 : vector<8x8x4xf32>
    %cst = arith.constant 5.000000e-01 : f32
    %11 = vector.broadcast %cst : f32 to vector<8x8x4xf32>
    %12 = arith.mulf %11, %10 : vector<8x8x4xf32>
    %13 = arith.subf %1, %3 : vector<8x8x4xf32>
    %14 = arith.addf %13, %5 : vector<8x8x4xf32>
    %15 = arith.subf %14, %7 : vector<8x8x4xf32>
    %cst_15 = arith.constant 5.000000e-01 : f32
    %16 = vector.broadcast %cst_15 : f32 to vector<8x8x4xf32>
    %17 = arith.mulf %16, %15 : vector<8x8x4xf32>
    %18 = arith.addf %1, %3 : vector<8x8x4xf32>
    %19 = arith.subf %18, %5 : vector<8x8x4xf32>
    %20 = arith.subf %19, %7 : vector<8x8x4xf32>
    %cst_16 = arith.constant 5.000000e-01 : f32
    %21 = vector.broadcast %cst_16 : f32 to vector<8x8x4xf32>
    %22 = arith.mulf %21, %20 : vector<8x8x4xf32>
    %23 = arith.addf %1, %3 : vector<8x8x4xf32>
    %24 = arith.addf %23, %5 : vector<8x8x4xf32>
    %25 = arith.addf %24, %7 : vector<8x8x4xf32>
    %cst_17 = arith.constant 5.000000e-01 : f32
    %26 = vector.broadcast %cst_17 : f32 to vector<8x8x4xf32>
    %27 = arith.mulf %26, %25 : vector<8x8x4xf32>
    %28 = vector.shape_cast %12 : vector<8x8x4xf32> to vector<8x8x1x4xf32>
    %29 = vector.shape_cast %17 : vector<8x8x4xf32> to vector<8x8x1x4xf32>
    %30 = tpu.concatenate %28, %29 in 2 : vector<8x8x1x4xf32>, vector<8x8x1x4xf32> -> vector<8x8x2x4xf32>
    %31 = vector.shape_cast %30 : vector<8x8x2x4xf32> to vector<8x16x4xf32>
    %32 = vector.shape_cast %22 : vector<8x8x4xf32> to vector<8x8x1x4xf32>
    %33 = vector.shape_cast %27 : vector<8x8x4xf32> to vector<8x8x1x4xf32>
    %34 = tpu.concatenate %32, %33 in 2 : vector<8x8x1x4xf32>, vector<8x8x1x4xf32> -> vector<8x8x2x4xf32>
    %35 = vector.shape_cast %34 : vector<8x8x2x4xf32> to vector<8x16x4xf32>
    %36 = vector.shape_cast %31 : vector<8x16x4xf32> to vector<8x1x16x4xf32>
    %37 = vector.shape_cast %35 : vector<8x16x4xf32> to vector<8x1x16x4xf32>
    %38 = tpu.concatenate %36, %37 in 1 : vector<8x1x16x4xf32>, vector<8x1x16x4xf32> -> vector<8x2x16x4xf32>
    %39 = vector.shape_cast %38 : vector<8x2x16x4xf32> to vector<16x16x4xf32>
    %cst_18 = arith.constant 0.000000e+00 : f32
    %40 = vector.broadcast %cst_18 : f32 to vector<18x18x4xf32>
    %c0_19 = arith.constant 0 : index
    %c0_20 = arith.constant 0 : index
    %c0_21 = arith.constant 0 : index
    %41 = vector.load %arg21[%c0_19, %c0_20, %c0_21] : memref<18x18x4xf32, #tpu.memory_space<vmem>>, vector<18x18x4xf32>
    tpu.vector_store %arg21[%c0_19, %c0_20, %c0_21], %40 {strides = array<i32>} : memref<18x18x4xf32, #tpu.memory_space<vmem>>, vector<18x18x4xf32>,
    %c0_22 = arith.constant 0 : index
    %c0_23 = arith.constant 0 : index
    %c0_24 = arith.constant 0 : index
    %42 = vector.load %arg10[%c0_22, %c0_23, %c0_24] : memref<1x1x4xf32, #tpu.memory_space<vmem>>, vector<1x1x4xf32>
    %43 = vector.shape_cast %42 : vector<1x1x4xf32> to vector<1x4xf32>
    %44 = vector.shape_cast %43 : vector<1x4xf32> to vector<1x1x4xf32>
    %45 = vector.broadcast %44 : vector<1x1x4xf32> to vector<16x16x4xf32>
    %46 = arith.mulf %39, %45 : vector<16x16x4xf32>
    %c1 = arith.constant 1 : index
    %c1_25 = arith.constant 1 : index
    %c0_26 = arith.constant 0 : index
    %47 = vector.load %arg21[%c1, %c1_25, %c0_26] : memref<18x18x4xf32, #tpu.memory_space<vmem>>, vector<16x16x4xf32>
    tpu.vector_store %arg21[%c1, %c1_25, %c0_26], %46 {strides = array<i32>} : memref<18x18x4xf32, #tpu.memory_space<vmem>>, vector<16x16x4xf32>,
    %c0_27 = arith.constant 0 : index
    %c0_28 = arith.constant 0 : index
    %c0_29 = arith.constant 0 : index
    %48 = vector.load %arg21[%c0_27, %c0_28, %c0_29] : memref<18x18x4xf32, #tpu.memory_space<vmem>>, vector<16x16x4xf32>
    %49 = vector.shape_cast %48 : vector<16x16x4xf32> to vector<256x4xf32>
    %c0_30 = arith.constant 0 : index
    %c1_31 = arith.constant 1 : index
    %c0_32 = arith.constant 0 : index
    %50 = vector.load %arg21[%c0_30, %c1_31, %c0_32] : memref<18x18x4xf32, #tpu.memory_space<vmem>>, vector<16x16x4xf32>
    %51 = vector.shape_cast %50 : vector<16x16x4xf32> to vector<256x4xf32>
    %c0_33 = arith.constant 0 : index
    %c2 = arith.constant 2 : index
    %c0_34 = arith.constant 0 : index
    %52 = vector.load %arg21[%c0_33, %c2, %c0_34] : memref<18x18x4xf32, #tpu.memory_space<vmem>>, vector<16x16x4xf32>
    %53 = vector.shape_cast %52 : vector<16x16x4xf32> to vector<256x4xf32>
    %c1_35 = arith.constant 1 : index
    %c0_36 = arith.constant 0 : index
    %c0_37 = arith.constant 0 : index
    %54 = vector.load %arg21[%c1_35, %c0_36, %c0_37] : memref<18x18x4xf32, #tpu.memory_space<vmem>>, vector<16x16x4xf32>
    %55 = vector.shape_cast %54 : vector<16x16x4xf32> to vector<256x4xf32>
    %c1_38 = arith.constant 1 : index
    %c1_39 = arith.constant 1 : index
    %c0_40 = arith.constant 0 : index
    %56 = vector.load %arg21[%c1_38, %c1_39, %c0_40] : memref<18x18x4xf32, #tpu.memory_space<vmem>>, vector<16x16x4xf32>
    %57 = vector.shape_cast %56 : vector<16x16x4xf32> to vector<256x4xf32>
    %c1_41 = arith.constant 1 : index
    %c2_42 = arith.constant 2 : index
    %c0_43 = arith.constant 0 : index
    %58 = vector.load %arg21[%c1_41, %c2_42, %c0_43] : memref<18x18x4xf32, #tpu.memory_space<vmem>>, vector<16x16x4xf32>
    %59 = vector.shape_cast %58 : vector<16x16x4xf32> to vector<256x4xf32>
    %c2_44 = arith.constant 2 : index
    %c0_45 = arith.constant 0 : index
    %c0_46 = arith.constant 0 : index
    %60 = vector.load %arg21[%c2_44, %c0_45, %c0_46] : memref<18x18x4xf32, #tpu.memory_space<vmem>>, vector<16x16x4xf32>
    %61 = vector.shape_cast %60 : vector<16x16x4xf32> to vector<256x4xf32>
    %c2_47 = arith.constant 2 : index
    %c1_48 = arith.constant 1 : index
    %c0_49 = arith.constant 0 : index
    %62 = vector.load %arg21[%c2_47, %c1_48, %c0_49] : memref<18x18x4xf32, #tpu.memory_space<vmem>>, vector<16x16x4xf32>
    %63 = vector.shape_cast %62 : vector<16x16x4xf32> to vector<256x4xf32>
    %c2_50 = arith.constant 2 : index
    %c2_51 = arith.constant 2 : index
    %c0_52 = arith.constant 0 : index
    %64 = vector.load %arg21[%c2_50, %c2_51, %c0_52] : memref<18x18x4xf32, #tpu.memory_space<vmem>>, vector<16x16x4xf32>
    %65 = vector.shape_cast %64 : vector<16x16x4xf32> to vector<256x4xf32>
    %66 = tpu.concatenate %49, %51, %53, %55, %57, %59, %61, %63, %65 in 1 : vector<256x4xf32>, vector<256x4xf32>, vector<256x4xf32>, vector<256x4xf32>, vector<256x4xf32>, vector<256x4xf32>, vector<256x4xf32>, vector<256x4xf32>, vector<256x4xf32> -> vector<256x36xf32>
    %c0_53 = arith.constant 0 : index
    %c0_54 = arith.constant 0 : index
    %67 = vector.load %arg7[%c0_53, %c0_54] : memref<36x8xf32, #tpu.memory_space<vmem>>, vector<36x8xf32>
    %cst_55 = arith.constant dense<0.000000e+00> : vector<256x8xf32>
    %68 = tpu.matmul %66, %67, %cst_55 {dimension_numbers = #tpu.dot_dimension_numbers<[1], [0], [0], [1], [0, 0, 1, 1], [], []>} : vector<256x36xf32>, vector<36x8xf32>, vector<256x8xf32> -> vector<256x8xf32>
    %c0_56 = arith.constant 0 : index
    %c0_57 = arith.constant 0 : index
    %c0_58 = arith.constant 0 : index
    %69 = vector.load %arg11[%c0_56, %c0_57, %c0_58] : memref<1x1x8xf32, #tpu.memory_space<vmem>>, vector<1x1x8xf32>
    %70 = vector.shape_cast %69 : vector<1x1x8xf32> to vector<1x8xf32>
    %71 = vector.broadcast %70 : vector<1x8xf32> to vector<256x8xf32>
    %72 = arith.mulf %68, %71 : vector<256x8xf32>
    %c0_59 = arith.constant 0 : index
    %c0_60 = arith.constant 0 : index
    %73 = memref.load %arg18[%c0_59, %c0_60] : memref<1x2xf32, #tpu.memory_space<smem>>
    %c0_61 = arith.constant 0 : index
    %c0_62 = arith.constant 0 : index
    %c0_63 = arith.constant 0 : index
    %74 = vector.load %arg5[%c0_61, %c0_62, %c0_63] : memref<1x256x1xf32, #tpu.memory_space<vmem>>, vector<1x256x1xf32>
    %75 = vector.shape_cast %74 : vector<1x256x1xf32> to vector<256x1xf32>
    %76 = vector.broadcast %73 : f32 to vector<256x1xf32>
    %77 = arith.mulf %76, %75 : vector<256x1xf32>
    %78 = vector.broadcast %77 : vector<256x1xf32> to vector<256x8xf32>
    %79 = arith.addf %72, %78 : vector<256x8xf32>
    %c0_64 = arith.constant 0 : index
    %c0_65 = arith.constant 0 : index
    %80 = vector.load %arg15[%c0_64, %c0_65] : memref<1x8xf32, #tpu.memory_space<vmem>>, vector<1x8xf32>
    %81 = vector.broadcast %80 : vector<1x8xf32> to vector<256x8xf32>
    %82 = arith.addf %79, %81 : vector<256x8xf32>
    %cst_66 = arith.constant 0.000000e+00 : f32
    %83 = vector.broadcast %cst_66 : f32 to vector<256x8xf32>
    %84 = arith.cmpf oge, %82, %83 : vector<256x8xf32>
    %cst_67 = arith.constant 2.000000e-01 : f32
    %85 = vector.broadcast %cst_67 : f32 to vector<256x8xf32>
    %86 = arith.mulf %85, %82 : vector<256x8xf32>
    %87 = arith.select %84, %82, %86 : vector<256x8xi1>, vector<256x8xf32>
    %cst_68 = arith.constant 1.41421354 : f32
    %88 = vector.broadcast %cst_68 : f32 to vector<256x8xf32>
    %89 = arith.mulf %87, %88 : vector<256x8xf32>
    %cst_69 = arith.constant 0.000000e+00 : f32
    %90 = vector.broadcast %cst_69 : f32 to vector<18x18x8xf32>
    %c0_70 = arith.constant 0 : index
    %c0_71 = arith.constant 0 : index
    %c0_72 = arith.constant 0 : index
    %91 = vector.load %arg22[%c0_70, %c0_71, %c0_72] : memref<18x18x8xf32, #tpu.memory_space<vmem>>, vector<18x18x8xf32>
    tpu.vector_store %arg22[%c0_70, %c0_71, %c0_72], %90 {strides = array<i32>} : memref<18x18x8xf32, #tpu.memory_space<vmem>>, vector<18x18x8xf32>,
    %92 = vector.shape_cast %89 : vector<256x8xf32> to vector<16x16x8xf32>
    %c0_73 = arith.constant 0 : index
    %c0_74 = arith.constant 0 : index
    %c0_75 = arith.constant 0 : index
    %93 = vector.load %arg12[%c0_73, %c0_74, %c0_75] : memref<1x1x8xf32, #tpu.memory_space<vmem>>, vector<1x1x8xf32>
    %94 = vector.shape_cast %93 : vector<1x1x8xf32> to vector<1x8xf32>
    %95 = vector.shape_cast %94 : vector<1x8xf32> to vector<1x1x8xf32>
    %96 = vector.broadcast %95 : vector<1x1x8xf32> to vector<16x16x8xf32>
    %97 = arith.mulf %92, %96 : vector<16x16x8xf32>
    %c1_76 = arith.constant 1 : index
    %c1_77 = arith.constant 1 : index
    %c0_78 = arith.constant 0 : index
    %98 = vector.load %arg22[%c1_76, %c1_77, %c0_78] : memref<18x18x8xf32, #tpu.memory_space<vmem>>, vector<16x16x8xf32>
    tpu.vector_store %arg22[%c1_76, %c1_77, %c0_78], %97 {strides = array<i32>} : memref<18x18x8xf32, #tpu.memory_space<vmem>>, vector<16x16x8xf32>,
    %c0_79 = arith.constant 0 : index
    %c0_80 = arith.constant 0 : index
    %c0_81 = arith.constant 0 : index
    %99 = vector.load %arg22[%c0_79, %c0_80, %c0_81] : memref<18x18x8xf32, #tpu.memory_space<vmem>>, vector<16x16x8xf32>
    %100 = vector.shape_cast %99 : vector<16x16x8xf32> to vector<256x8xf32>
    %c0_82 = arith.constant 0 : index
    %c1_83 = arith.constant 1 : index
    %c0_84 = arith.constant 0 : index
    %101 = vector.load %arg22[%c0_82, %c1_83, %c0_84] : memref<18x18x8xf32, #tpu.memory_space<vmem>>, vector<16x16x8xf32>
    %102 = vector.shape_cast %101 : vector<16x16x8xf32> to vector<256x8xf32>
    %c0_85 = arith.constant 0 : index
    %c2_86 = arith.constant 2 : index
    %c0_87 = arith.constant 0 : index
    %103 = vector.load %arg22[%c0_85, %c2_86, %c0_87] : memref<18x18x8xf32, #tpu.memory_space<vmem>>, vector<16x16x8xf32>
    %104 = vector.shape_cast %103 : vector<16x16x8xf32> to vector<256x8xf32>
    %c1_88 = arith.constant 1 : index
    %c0_89 = arith.constant 0 : index
    %c0_90 = arith.constant 0 : index
    %105 = vector.load %arg22[%c1_88, %c0_89, %c0_90] : memref<18x18x8xf32, #tpu.memory_space<vmem>>, vector<16x16x8xf32>
    %106 = vector.shape_cast %105 : vector<16x16x8xf32> to vector<256x8xf32>
    %c1_91 = arith.constant 1 : index
    %c1_92 = arith.constant 1 : index
    %c0_93 = arith.constant 0 : index
    %107 = vector.load %arg22[%c1_91, %c1_92, %c0_93] : memref<18x18x8xf32, #tpu.memory_space<vmem>>, vector<16x16x8xf32>
    %108 = vector.shape_cast %107 : vector<16x16x8xf32> to vector<256x8xf32>
    %c1_94 = arith.constant 1 : index
    %c2_95 = arith.constant 2 : index
    %c0_96 = arith.constant 0 : index
    %109 = vector.load %arg22[%c1_94, %c2_95, %c0_96] : memref<18x18x8xf32, #tpu.memory_space<vmem>>, vector<16x16x8xf32>
    %110 = vector.shape_cast %109 : vector<16x16x8xf32> to vector<256x8xf32>
    %c2_97 = arith.constant 2 : index
    %c0_98 = arith.constant 0 : index
    %c0_99 = arith.constant 0 : index
    %111 = vector.load %arg22[%c2_97, %c0_98, %c0_99] : memref<18x18x8xf32, #tpu.memory_space<vmem>>, vector<16x16x8xf32>
    %112 = vector.shape_cast %111 : vector<16x16x8xf32> to vector<256x8xf32>
    %c2_100 = arith.constant 2 : index
    %c1_101 = arith.constant 1 : index
    %c0_102 = arith.constant 0 : index
    %113 = vector.load %arg22[%c2_100, %c1_101, %c0_102] : memref<18x18x8xf32, #tpu.memory_space<vmem>>, vector<16x16x8xf32>
    %114 = vector.shape_cast %113 : vector<16x16x8xf32> to vector<256x8xf32>
    %c2_103 = arith.constant 2 : index
    %c2_104 = arith.constant 2 : index
    %c0_105 = arith.constant 0 : index
    %115 = vector.load %arg22[%c2_103, %c2_104, %c0_105] : memref<18x18x8xf32, #tpu.memory_space<vmem>>, vector<16x16x8xf32>
    %116 = vector.shape_cast %115 : vector<16x16x8xf32> to vector<256x8xf32>
    %117 = tpu.concatenate %100, %102, %104, %106, %108, %110, %112, %114, %116 in 1 : vector<256x8xf32>, vector<256x8xf32>, vector<256x8xf32>, vector<256x8xf32>, vector<256x8xf32>, vector<256x8xf32>, vector<256x8xf32>, vector<256x8xf32>, vector<256x8xf32> -> vector<256x72xf32>
    %c0_106 = arith.constant 0 : index
    %c0_107 = arith.constant 0 : index
    %118 = vector.load %arg8[%c0_106, %c0_107] : memref<72x8xf32, #tpu.memory_space<vmem>>, vector<72x8xf32>
    %cst_108 = arith.constant dense<0.000000e+00> : vector<256x8xf32>
    %119 = tpu.matmul %117, %118, %cst_108 {dimension_numbers = #tpu.dot_dimension_numbers<[1], [0], [0], [1], [0, 0, 1, 1], [], []>} : vector<256x72xf32>, vector<72x8xf32>, vector<256x8xf32> -> vector<256x8xf32>
    %c0_109 = arith.constant 0 : index
    %c0_110 = arith.constant 0 : index
    %c0_111 = arith.constant 0 : index
    %120 = vector.load %arg13[%c0_109, %c0_110, %c0_111] : memref<1x1x8xf32, #tpu.memory_space<vmem>>, vector<1x1x8xf32>
    %121 = vector.shape_cast %120 : vector<1x1x8xf32> to vector<1x8xf32>
    %122 = vector.broadcast %121 : vector<1x8xf32> to vector<256x8xf32>
    %123 = arith.mulf %119, %122 : vector<256x8xf32>
    %c0_112 = arith.constant 0 : index
    %c1_113 = arith.constant 1 : index
    %124 = memref.load %arg18[%c0_112, %c1_113] : memref<1x2xf32, #tpu.memory_space<smem>>
    %c0_114 = arith.constant 0 : index
    %c0_115 = arith.constant 0 : index
    %c0_116 = arith.constant 0 : index
    %125 = vector.load %arg6[%c0_114, %c0_115, %c0_116] : memref<1x256x1xf32, #tpu.memory_space<vmem>>, vector<1x256x1xf32>
    %126 = vector.shape_cast %125 : vector<1x256x1xf32> to vector<256x1xf32>
    %127 = vector.broadcast %124 : f32 to vector<256x1xf32>
    %128 = arith.mulf %127, %126 : vector<256x1xf32>
    %129 = vector.broadcast %128 : vector<256x1xf32> to vector<256x8xf32>
    %130 = arith.addf %123, %129 : vector<256x8xf32>
    %c0_117 = arith.constant 0 : index
    %c0_118 = arith.constant 0 : index
    %131 = vector.load %arg16[%c0_117, %c0_118] : memref<1x8xf32, #tpu.memory_space<vmem>>, vector<1x8xf32>
    %132 = vector.broadcast %131 : vector<1x8xf32> to vector<256x8xf32>
    %133 = arith.addf %130, %132 : vector<256x8xf32>
    %cst_119 = arith.constant 0.000000e+00 : f32
    %134 = vector.broadcast %cst_119 : f32 to vector<256x8xf32>
    %135 = arith.cmpf oge, %133, %134 : vector<256x8xf32>
    %cst_120 = arith.constant 2.000000e-01 : f32
    %136 = vector.broadcast %cst_120 : f32 to vector<256x8xf32>
    %137 = arith.mulf %136, %133 : vector<256x8xf32>
    %138 = arith.select %135, %133, %137 : vector<256x8xi1>, vector<256x8xf32>
    %cst_121 = arith.constant 1.41421354 : f32
    %139 = vector.broadcast %cst_121 : f32 to vector<256x8xf32>
    %140 = arith.mulf %138, %139 : vector<256x8xf32>
    %c0_122 = arith.constant 0 : index
    %c0_123 = arith.constant 0 : index
    %c0_124 = arith.constant 0 : index
    %141 = vector.load %arg19[%c0_122, %c0_123, %c0_124] : memref<1x256x8xf32, #tpu.memory_space<vmem>>, vector<1x256x8xf32>
    %142 = vector.shape_cast %141 : vector<1x256x8xf32> to vector<256x8xf32>
    %143 = vector.shape_cast %140 : vector<256x8xf32> to vector<1x256x8xf32>
    tpu.vector_store %arg19[%c0_122, %c0_123, %c0_124], %143 {strides = array<i32>} : memref<1x256x8xf32, #tpu.memory_space<vmem>>, vector<1x256x8xf32>,
    %c0_125 = arith.constant 0 : index
    %c0_126 = arith.constant 0 : index
    %c0_127 = arith.constant 0 : index
    %144 = vector.load %arg14[%c0_125, %c0_126, %c0_127] : memref<1x1x8xf32, #tpu.memory_space<vmem>>, vector<1x1x8xf32>
    %145 = vector.shape_cast %144 : vector<1x1x8xf32> to vector<1x8xf32>
    %146 = vector.broadcast %145 : vector<1x8xf32> to vector<256x8xf32>
    %147 = arith.mulf %140, %146 : vector<256x8xf32>
    %c0_128 = arith.constant 0 : index
    %c0_129 = arith.constant 0 : index
    %148 = vector.load %arg9[%c0_128, %c0_129] : memref<8x12xf32, #tpu.memory_space<vmem>>, vector<8x12xf32>
    %cst_130 = arith.constant dense<0.000000e+00> : vector<256x12xf32>
    %149 = tpu.matmul %147, %148, %cst_130 {dimension_numbers = #tpu.dot_dimension_numbers<[1], [0], [0], [1], [0, 0, 1, 1], [], []>} : vector<256x8xf32>, vector<8x12xf32>, vector<256x12xf32> -> vector<256x12xf32>
    %c0_131 = arith.constant 0 : index
    %c0_132 = arith.constant 0 : index
    %150 = vector.load %arg17[%c0_131, %c0_132] : memref<1x12xf32, #tpu.memory_space<vmem>>, vector<1x12xf32>
    %151 = vector.broadcast %150 : vector<1x12xf32> to vector<256x12xf32>
    %152 = arith.addf %149, %151 : vector<256x12xf32>
    %c0_133 = arith.constant 0 : index
    %c0_134 = arith.constant 0 : index
    %c0_135 = arith.constant 0 : index
    %153 = vector.load %arg20[%c0_133, %c0_134, %c0_135] : memref<1x256x12xf32, #tpu.memory_space<vmem>>, vector<1x256x12xf32>
    %154 = vector.shape_cast %153 : vector<1x256x12xf32> to vector<256x12xf32>
    %155 = vector.shape_cast %152 : vector<256x12xf32> to vector<1x256x12xf32>
    tpu.vector_store %arg20[%c0_133, %c0_134, %c0_135], %155 {strides = array<i32>} : memref<1x256x12xf32, #tpu.memory_space<vmem>>, vector<1x256x12xf32>,
    return
  }
  func.func @transform_0(%arg0: i32) -> (i32, i32, i32, i32) {
    %c0_i32 = arith.constant 0 : i32
    %c0_i32_0 = arith.constant 0 : i32
    %c0_i32_1 = arith.constant 0 : i32
    %c0_i32_2 = arith.constant 0 : i32
    return %arg0, %c0_i32, %c0_i32_0, %c0_i32_1 : i32, i32, i32, i32
  }
  func.func @transform_1(%arg0: i32) -> (i32, i32, i32, i32) {
    %c0_i32 = arith.constant 0 : i32
    %c0_i32_0 = arith.constant 0 : i32
    %c0_i32_1 = arith.constant 0 : i32
    %c0_i32_2 = arith.constant 0 : i32
    return %arg0, %c0_i32, %c0_i32_0, %c0_i32_1 : i32, i32, i32, i32
  }
  func.func @transform_2(%arg0: i32) -> (i32, i32, i32, i32) {
    %c0_i32 = arith.constant 0 : i32
    %c0_i32_0 = arith.constant 0 : i32
    %c0_i32_1 = arith.constant 0 : i32
    %c0_i32_2 = arith.constant 0 : i32
    return %arg0, %c0_i32, %c0_i32_0, %c0_i32_1 : i32, i32, i32, i32
  }
  func.func @transform_3(%arg0: i32) -> (i32, i32, i32, i32) {
    %c0_i32 = arith.constant 0 : i32
    %c0_i32_0 = arith.constant 0 : i32
    %c0_i32_1 = arith.constant 0 : i32
    %c0_i32_2 = arith.constant 0 : i32
    return %arg0, %c0_i32, %c0_i32_0, %c0_i32_1 : i32, i32, i32, i32
  }
  func.func @transform_4(%arg0: i32) -> (i32, i32, i32) {
    %c0_i32 = arith.constant 0 : i32
    %c0_i32_0 = arith.constant 0 : i32
    %c0_i32_1 = arith.constant 0 : i32
    return %arg0, %c0_i32, %c0_i32_0 : i32, i32, i32
  }
  func.func @transform_5(%arg0: i32) -> (i32, i32, i32) {
    %c0_i32 = arith.constant 0 : i32
    %c0_i32_0 = arith.constant 0 : i32
    %c0_i32_1 = arith.constant 0 : i32
    return %arg0, %c0_i32, %c0_i32_0 : i32, i32, i32
  }
  func.func @transform_6(%arg0: i32) -> (i32, i32) {
    %c0_i32 = arith.constant 0 : i32
    %c0_i32_0 = arith.constant 0 : i32
    %c0_i32_1 = arith.constant 0 : i32
    return %c0_i32, %c0_i32_0 : i32, i32
  }
  func.func @transform_7(%arg0: i32) -> (i32, i32) {
    %c0_i32 = arith.constant 0 : i32
    %c0_i32_0 = arith.constant 0 : i32
    %c0_i32_1 = arith.constant 0 : i32
    return %c0_i32, %c0_i32_0 : i32, i32
  }
  func.func @transform_8(%arg0: i32) -> (i32, i32) {
    %c0_i32 = arith.constant 0 : i32
    %c0_i32_0 = arith.constant 0 : i32
    %c0_i32_1 = arith.constant 0 : i32
    return %c0_i32, %c0_i32_0 : i32, i32
  }
  func.func @transform_9(%arg0: i32) -> (i32, i32, i32) {
    %c0_i32 = arith.constant 0 : i32
    %c0_i32_0 = arith.constant 0 : i32
    %c0_i32_1 = arith.constant 0 : i32
    return %arg0, %c0_i32, %c0_i32_0 : i32, i32, i32
  }
  func.func @transform_10(%arg0: i32) -> (i32, i32, i32) {
    %c0_i32 = arith.constant 0 : i32
    %c0_i32_0 = arith.constant 0 : i32
    %c0_i32_1 = arith.constant 0 : i32
    return %arg0, %c0_i32, %c0_i32_0 : i32, i32, i32
  }
  func.func @transform_11(%arg0: i32) -> (i32, i32, i32) {
    %c0_i32 = arith.constant 0 : i32
    %c0_i32_0 = arith.constant 0 : i32
    %c0_i32_1 = arith.constant 0 : i32
    return %arg0, %c0_i32, %c0_i32_0 : i32, i32, i32
  }
  func.func @transform_12(%arg0: i32) -> (i32, i32, i32) {
    %c0_i32 = arith.constant 0 : i32
    %c0_i32_0 = arith.constant 0 : i32
    %c0_i32_1 = arith.constant 0 : i32
    return %arg0, %c0_i32, %c0_i32_0 : i32, i32, i32
  }
  func.func @transform_13(%arg0: i32) -> (i32, i32, i32) {
    %c0_i32 = arith.constant 0 : i32
    %c0_i32_0 = arith.constant 0 : i32
    %c0_i32_1 = arith.constant 0 : i32
    return %arg0, %c0_i32, %c0_i32_0 : i32, i32, i32
  }
  func.func @transform_14(%arg0: i32) -> (i32, i32) {
    %c0_i32 = arith.constant 0 : i32
    %c0_i32_0 = arith.constant 0 : i32
    %c0_i32_1 = arith.constant 0 : i32
    return %c0_i32, %c0_i32_0 : i32, i32
  }
  func.func @transform_15(%arg0: i32) -> (i32, i32) {
    %c0_i32 = arith.constant 0 : i32
    %c0_i32_0 = arith.constant 0 : i32
    %c0_i32_1 = arith.constant 0 : i32
    return %c0_i32, %c0_i32_0 : i32, i32
  }
  func.func @transform_16(%arg0: i32) -> (i32, i32) {
    %c0_i32 = arith.constant 0 : i32
    %c0_i32_0 = arith.constant 0 : i32
    %c0_i32_1 = arith.constant 0 : i32
    return %c0_i32, %c0_i32_0 : i32, i32
  }
  func.func @transform_17(%arg0: i32) -> (i32, i32) {
    %c0_i32 = arith.constant 0 : i32
    %c0_i32_0 = arith.constant 0 : i32
    %c0_i32_1 = arith.constant 0 : i32
    return %c0_i32, %c0_i32_0 : i32, i32
  }
  func.func @transform_18(%arg0: i32) -> (i32, i32, i32) {
    %c0_i32 = arith.constant 0 : i32
    %c0_i32_0 = arith.constant 0 : i32
    %c0_i32_1 = arith.constant 0 : i32
    return %arg0, %c0_i32, %c0_i32_0 : i32, i32, i32
  }
  func.func @transform_19(%arg0: i32) -> (i32, i32, i32) {
    %c0_i32 = arith.constant 0 : i32
    %c0_i32_0 = arith.constant 0 : i32
    %c0_i32_1 = arith.constant 0 : i32
    return %arg0, %c0_i32, %c0_i32_0 : i32, i32, i32
  }
}

</mosaic_0001>

<llo_original>
// kernel: tpu_custom_call.1
$region0: #{tpu_custom_call.1}
  #allocation0 [shape = 'u32[]', space=smem, size = 0x4, offset = 0x4, fixed_abs, tag = 'smem constant byte address 0x4 - core index']
  #allocation1 [shape = 'u32[72,128]{1,0:T(1,128)}', space=vmem, size = 0x9000, scoped, tag = 'internal scratch']
  #allocation2 [shape = 'f32[18,18,4]{2,1,0:T(8,128)}', space=vmem, size = 0x36000, scoped, tag = 'scratch operand']
  #allocation3 [shape = 'f32[18,18,8]{2,1,0:T(8,128)}', space=vmem, size = 0x36000, scoped, tag = 'scratch operand']
  %s0 = inlined_call_operand.vmem [shape: f32[2,8,8,4], index: 0, kind: input, shape index: {}]
  %s1 = inlined_call_operand.vmem [shape: f32[2,8,8,4], index: 1, kind: input, shape index: {}]
  %s2 = inlined_call_operand.vmem [shape: f32[2,8,8,4], index: 2, kind: input, shape index: {}]
  %s3 = inlined_call_operand.vmem [shape: f32[2,8,8,4], index: 3, kind: input, shape index: {}]
  %s4 = inlined_call_operand.vmem [shape: f32[2,256,1], index: 4, kind: input, shape index: {}]
  %s5 = inlined_call_operand.vmem [shape: f32[2,256,1], index: 5, kind: input, shape index: {}]
  %s6 = inlined_call_operand.vmem [shape: f32[36,8], index: 6, kind: input, shape index: {}]
  %s7 = inlined_call_operand.vmem [shape: f32[72,8], index: 7, kind: input, shape index: {}]
  %s8 = inlined_call_operand.vmem [shape: f32[8,12], index: 8, kind: input, shape index: {}]
  %s9 = inlined_call_operand.vmem [shape: f32[2,1,4], index: 9, kind: input, shape index: {}]
  %s10 = inlined_call_operand.vmem [shape: f32[2,1,8], index: 10, kind: input, shape index: {}]
  %s11 = inlined_call_operand.vmem [shape: f32[2,1,8], index: 11, kind: input, shape index: {}]
  %s12 = inlined_call_operand.vmem [shape: f32[2,1,8], index: 12, kind: input, shape index: {}]
  %s13 = inlined_call_operand.vmem [shape: f32[2,1,8], index: 13, kind: input, shape index: {}]
  %s14 = inlined_call_operand.vmem [shape: f32[1,8], index: 14, kind: input, shape index: {}]
  %s15 = inlined_call_operand.vmem [shape: f32[1,8], index: 15, kind: input, shape index: {}]
  %s16 = inlined_call_operand.vmem [shape: f32[1,12], index: 16, kind: input, shape index: {}]
  %s17 = inlined_call_operand.vmem [shape: f32[1,2], index: 17, kind: input, shape index: {}]
  %s18 = inlined_call_operand.vmem [shape: f32[2,256,8], index: 18, kind: output, shape index: {0}]
  %s19 = inlined_call_operand.vmem [shape: f32[2,256,12], index: 19, kind: output, shape index: {1}]
  %20 = xla_tuple %s18, %s19
  %s21 = sld [smem:[#allocation0]]
  $region117: #{tpu_custom_call.1} parent=0
    _
  %s23 = ssub.s32 1, %s21
  %s24 = scalar_select 0, %s23, %s21
  $region1: #{tpu_custom_call.1} parent=0
    #allocation4 [shape = 'u8[512]{0}', space=smem, size = 0x200, scoped, tag = 'input window, operand 17, single buffered']
    #allocation5 [shape = 's32[2]{0}', space=sflag, size = 0x8, scoped, tag = 'scoped memory for tpu_custom_call.1']
    %25 = vsyncpa [#allocation5], 0
    loop: start=0, step=1, limit=4
    $region2: #{tpu_custom_call.1} parent=1 // loop_pre_header
      _
    $region3: #{tpu_custom_call.1} parent=1 // loop_header
      %s27 = sphi 0, %s31
      %p28 = scmp.ge.s32.totalorder %s27, 4
      %s37 = sphi 0, %s39
      %s40 = sphi 0, %s37
      %s41 = sphi 0, %s40
      %s57 = sphi 0, %s41
      %s63 = sphi 0, %s65
      %s66 = sphi 0, %s63
      %s67 = sphi 0, %s66
      %s83 = sphi 0, %s67
      %s89 = sphi 0, %s91
      %s92 = sphi 0, %s89
      %s93 = sphi 0, %s92
      %s109 = sphi 0, %s93
      %s115 = sphi 0, %s117
      %s118 = sphi 0, %s115
      %s119 = sphi 0, %s118
      %s135 = sphi 0, %s119
      %s141 = sphi 0, %s143
      %s144 = sphi 0, %s141
      %s145 = sphi 0, %s144
      %s161 = sphi 0, %s145
      %s167 = sphi 0, %s169
      %s170 = sphi 0, %s167
      %s171 = sphi 0, %s170
      %s187 = sphi 0, %s171
      %s191 = sphi 0, %s191
      %s193 = sphi 0, %s191
      %s194 = sphi 0, %s193
      %s208 = sphi 0, %s194
      %s212 = sphi 0, %s212
      %s214 = sphi 0, %s212
      %s215 = sphi 0, %s214
      %s229 = sphi 0, %s215
      %s233 = sphi 0, %s233
      %s235 = sphi 0, %s233
      %s236 = sphi 0, %s235
      %s250 = sphi 0, %s236
      %s256 = sphi 0, %s258
      %s259 = sphi 0, %s256
      %s260 = sphi 0, %s259
      %s276 = sphi 0, %s260
      %s282 = sphi 0, %s284
      %s285 = sphi 0, %s282
      %s286 = sphi 0, %s285
      %s302 = sphi 0, %s286
      %s308 = sphi 0, %s310
      %s311 = sphi 0, %s308
      %s312 = sphi 0, %s311
      %s328 = sphi 0, %s312
      %s334 = sphi 0, %s336
      %s337 = sphi 0, %s334
      %s338 = sphi 0, %s337
      %s354 = sphi 0, %s338
      %s360 = sphi 0, %s362
      %s363 = sphi 0, %s360
      %s364 = sphi 0, %s363
      %s380 = sphi 0, %s364
      %s384 = sphi 0, %s384
      %s386 = sphi 0, %s384
      %s387 = sphi 0, %s386
      %s401 = sphi 0, %s387
      %s405 = sphi 0, %s405
      %s407 = sphi 0, %s405
      %s408 = sphi 0, %s407
      %s422 = sphi 0, %s408
      %s426 = sphi 0, %s426
      %s428 = sphi 0, %s426
      %s429 = sphi 0, %s428
      %s443 = sphi 0, %s429
      %s447 = sphi 0, %s447
      %s449 = sphi 0, %s447
      %s450 = sphi 0, %s449
      %s464 = sphi 0, %s450
      %s470 = sphi 0, %s472
      %s473 = sphi 0, %s470
      %s474 = sphi 0, %s473
      %s490 = sphi 0, %s474
      %s496 = sphi 0, %s498
      %s499 = sphi 0, %s496
      %s500 = sphi 0, %s499
      %s516 = sphi 0, %s500
    $region4: #{tpu_custom_call.1} parent=1 // loop_header_branch
      %30 = sbr.rel (%p28) target = $region8
    $region5: #{tpu_custom_call.1} parent=1 // loop_body
      %s32 = ssub.s32 %s27, 1
      %s33 = ssub.s32 %s27, 2
      %s34 = sadd.s32 %s27, 1
      %s35 = ssub.s32 %s27, %s34
      %p36 = scmp.eq.s32.totalorder %s35, 0
      %s38 = sadd.s32 %s37, 1
      %s39 = scalar_select %p36, %s37, %s38
      %p42 = pneg %p36
      %p43 = scmp.eq.s32.totalorder %s27, 1
      %p44 = por %p42, %p43
      %p45 = scmp.ne.s32.totalorder %s37, %s40
      %p46 = scmp.eq.s32.totalorder %s27, 0
      %p47 = por %p45, %p46
      %p48 = scmp.ne.s32.totalorder %s37, %s40
      %p49 = scmp.eq.s32.totalorder %s32, 1
      %p50 = por %p48, %p49
      %p51 = scmp.ne.s32.totalorder %s40, %s41
      %p52 = scmp.eq.s32.totalorder %s32, 0
      %p53 = por %p51, %p52
      %p54 = scmp.ne.s32.totalorder %s40, %s41
      %p55 = scmp.eq.s32.totalorder %s33, 1
      %p56 = por %p54, %p55
      %p58 = scmp.ne.s32.totalorder %s41, %s57
      %p59 = scmp.eq.s32.totalorder %s33, 0
      %p60 = por %p58, %p59
      %s61 = ssub.s32 %s27, %s34
      %p62 = scmp.eq.s32.totalorder %s61, 0
      %s64 = sadd.s32 %s63, 1
      %s65 = scalar_select %p62, %s63, %s64
      %p68 = pneg %p62
      %p69 = scmp.eq.s32.totalorder %s27, 1
      %p70 = por %p68, %p69
      %p71 = scmp.ne.s32.totalorder %s63, %s66
      %p72 = scmp.eq.s32.totalorder %s27, 0
      %p73 = por %p71, %p72
      %p74 = scmp.ne.s32.totalorder %s63, %s66
      %p75 = scmp.eq.s32.totalorder %s32, 1
      %p76 = por %p74, %p75
      %p77 = scmp.ne.s32.totalorder %s66, %s67
      %p78 = scmp.eq.s32.totalorder %s32, 0
      %p79 = por %p77, %p78
      %p80 = scmp.ne.s32.totalorder %s66, %s67
      %p81 = scmp.eq.s32.totalorder %s33, 1
      %p82 = por %p80, %p81
      %p84 = scmp.ne.s32.totalorder %s67, %s83
      %p85 = scmp.eq.s32.totalorder %s33, 0
      %p86 = por %p84, %p85
      %s87 = ssub.s32 %s27, %s34
      %p88 = scmp.eq.s32.totalorder %s87, 0
      %s90 = sadd.s32 %s89, 1
      %s91 = scalar_select %p88, %s89, %s90
      %p94 = pneg %p88
      %p95 = scmp.eq.s32.totalorder %s27, 1
      %p96 = por %p94, %p95
      %p97 = scmp.ne.s32.totalorder %s89, %s92
      %p98 = scmp.eq.s32.totalorder %s27, 0
      %p99 = por %p97, %p98
      %p100 = scmp.ne.s32.totalorder %s89, %s92
      %p101 = scmp.eq.s32.totalorder %s32, 1
      %p102 = por %p100, %p101
      %p103 = scmp.ne.s32.totalorder %s92, %s93
      %p104 = scmp.eq.s32.totalorder %s32, 0
      %p105 = por %p103, %p104
      %p106 = scmp.ne.s32.totalorder %s92, %s93
      %p107 = scmp.eq.s32.totalorder %s33, 1
      %p108 = por %p106, %p107
      %p110 = scmp.ne.s32.totalorder %s93, %s109
      %p111 = scmp.eq.s32.totalorder %s33, 0
      %p112 = por %p110, %p111
      %s113 = ssub.s32 %s27, %s34
      %p114 = scmp.eq.s32.totalorder %s113, 0
      %s116 = sadd.s32 %s115, 1
      %s117 = scalar_select %p114, %s115, %s116
      %p120 = pneg %p114
      %p121 = scmp.eq.s32.totalorder %s27, 1
      %p122 = por %p120, %p121
      %p123 = scmp.ne.s32.totalorder %s115, %s118
      %p124 = scmp.eq.s32.totalorder %s27, 0
      %p125 = por %p123, %p124
      %p126 = scmp.ne.s32.totalorder %s115, %s118
      %p127 = scmp.eq.s32.totalorder %s32, 1
      %p128 = por %p126, %p127
      %p129 = scmp.ne.s32.totalorder %s118, %s119
      %p130 = scmp.eq.s32.totalorder %s32, 0
      %p131 = por %p129, %p130
      %p132 = scmp.ne.s32.totalorder %s118, %s119
      %p133 = scmp.eq.s32.totalorder %s33, 1
      %p134 = por %p132, %p133
      %p136 = scmp.ne.s32.totalorder %s119, %s135
      %p137 = scmp.eq.s32.totalorder %s33, 0
      %p138 = por %p136, %p137
      %s139 = ssub.s32 %s27, %s34
      %p140 = scmp.eq.s32.totalorder %s139, 0
      %s142 = sadd.s32 %s141, 1
      %s143 = scalar_select %p140, %s141, %s142
      %p146 = pneg %p140
      %p147 = scmp.eq.s32.totalorder %s27, 1
      %p148 = por %p146, %p147
      %p149 = scmp.ne.s32.totalorder %s141, %s144
      %p150 = scmp.eq.s32.totalorder %s27, 0
      %p151 = por %p149, %p150
      %p152 = scmp.ne.s32.totalorder %s141, %s144
      %p153 = scmp.eq.s32.totalorder %s32, 1
      %p154 = por %p152, %p153
      %p155 = scmp.ne.s32.totalorder %s144, %s145
      %p156 = scmp.eq.s32.totalorder %s32, 0
      %p157 = por %p155, %p156
      %p158 = scmp.ne.s32.totalorder %s144, %s145
      %p159 = scmp.eq.s32.totalorder %s33, 1
      %p160 = por %p158, %p159
      %p162 = scmp.ne.s32.totalorder %s145, %s161
      %p163 = scmp.eq.s32.totalorder %s33, 0
      %p164 = por %p162, %p163
      %s165 = ssub.s32 %s27, %s34
      %p166 = scmp.eq.s32.totalorder %s165, 0
      %s168 = sadd.s32 %s167, 1
      %s169 = scalar_select %p166, %s167, %s168
      %p172 = pneg %p166
      %p173 = scmp.eq.s32.totalorder %s27, 1
      %p174 = por %p172, %p173
      %p175 = scmp.ne.s32.totalorder %s167, %s170
      %p176 = scmp.eq.s32.totalorder %s27, 0
      %p177 = por %p175, %p176
      %p178 = scmp.ne.s32.totalorder %s167, %s170
      %p179 = scmp.eq.s32.totalorder %s32, 1
      %p180 = por %p178, %p179
      %p181 = scmp.ne.s32.totalorder %s170, %s171
      %p182 = scmp.eq.s32.totalorder %s32, 0
      %p183 = por %p181, %p182
      %p184 = scmp.ne.s32.totalorder %s170, %s171
      %p185 = scmp.eq.s32.totalorder %s33, 1
      %p186 = por %p184, %p185
      %p188 = scmp.ne.s32.totalorder %s171, %s187
      %p189 = scmp.eq.s32.totalorder %s33, 0
      %p190 = por %p188, %p189
      %s192 = sadd.s32 %s191, 1
      %p195 = scmp.eq.s32.totalorder %s27, 1
      %p196 = scmp.ne.s32.totalorder %s191, %s193
      %p197 = scmp.eq.s32.totalorder %s27, 0
      %p198 = por %p196, %p197
      %p199 = scmp.ne.s32.totalorder %s191, %s193
      %p200 = scmp.eq.s32.totalorder %s32, 1
      %p201 = por %p199, %p200
      %p202 = scmp.ne.s32.totalorder %s193, %s194
      %p203 = scmp.eq.s32.totalorder %s32, 0
      %p204 = por %p202, %p203
      %p205 = scmp.ne.s32.totalorder %s193, %s194
      %p206 = scmp.eq.s32.totalorder %s33, 1
      %p207 = por %p205, %p206
      %p209 = scmp.ne.s32.totalorder %s194, %s208
      %p210 = scmp.eq.s32.totalorder %s33, 0
      %p211 = por %p209, %p210
      %s213 = sadd.s32 %s212, 1
      %p216 = scmp.eq.s32.totalorder %s27, 1
      %p217 = scmp.ne.s32.totalorder %s212, %s214
      %p218 = scmp.eq.s32.totalorder %s27, 0
      %p219 = por %p217, %p218
      %p220 = scmp.ne.s32.totalorder %s212, %s214
      %p221 = scmp.eq.s32.totalorder %s32, 1
      %p222 = por %p220, %p221
      %p223 = scmp.ne.s32.totalorder %s214, %s215
      %p224 = scmp.eq.s32.totalorder %s32, 0
      %p225 = por %p223, %p224
      %p226 = scmp.ne.s32.totalorder %s214, %s215
      %p227 = scmp.eq.s32.totalorder %s33, 1
      %p228 = por %p226, %p227
      %p230 = scmp.ne.s32.totalorder %s215, %s229
      %p231 = scmp.eq.s32.totalorder %s33, 0
      %p232 = por %p230, %p231
      %s234 = sadd.s32 %s233, 1
      %p237 = scmp.eq.s32.totalorder %s27, 1
      %p238 = scmp.ne.s32.totalorder %s233, %s235
      %p239 = scmp.eq.s32.totalorder %s27, 0
      %p240 = por %p238, %p239
      %p241 = scmp.ne.s32.totalorder %s233, %s235
      %p242 = scmp.eq.s32.totalorder %s32, 1
      %p243 = por %p241, %p242
      %p244 = scmp.ne.s32.totalorder %s235, %s236
      %p245 = scmp.eq.s32.totalorder %s32, 0
      %p246 = por %p244, %p245
      %p247 = scmp.ne.s32.totalorder %s235, %s236
      %p248 = scmp.eq.s32.totalorder %s33, 1
      %p249 = por %p247, %p248
      %p251 = scmp.ne.s32.totalorder %s236, %s250
      %p252 = scmp.eq.s32.totalorder %s33, 0
      %p253 = por %p251, %p252
      %s254 = ssub.s32 %s27, %s34
      %p255 = scmp.eq.s32.totalorder %s254, 0
      %s257 = sadd.s32 %s256, 1
      %s258 = scalar_select %p255, %s256, %s257
      %p261 = pneg %p255
      %p262 = scmp.eq.s32.totalorder %s27, 1
      %p263 = por %p261, %p262
      %p264 = scmp.ne.s32.totalorder %s256, %s259
      %p265 = scmp.eq.s32.totalorder %s27, 0
      %p266 = por %p264, %p265
      %p267 = scmp.ne.s32.totalorder %s256, %s259
      %p268 = scmp.eq.s32.totalorder %s32, 1
      %p269 = por %p267, %p268
      %p270 = scmp.ne.s32.totalorder %s259, %s260
      %p271 = scmp.eq.s32.totalorder %s32, 0
      %p272 = por %p270, %p271
      %p273 = scmp.ne.s32.totalorder %s259, %s260
      %p274 = scmp.eq.s32.totalorder %s33, 1
      %p275 = por %p273, %p274
      %p277 = scmp.ne.s32.totalorder %s260, %s276
      %p278 = scmp.eq.s32.totalorder %s33, 0
      %p279 = por %p277, %p278
      %s280 = ssub.s32 %s27, %s34
      %p281 = scmp.eq.s32.totalorder %s280, 0
      %s283 = sadd.s32 %s282, 1
      %s284 = scalar_select %p281, %s282, %s283
      %p287 = pneg %p281
      %p288 = scmp.eq.s32.totalorder %s27, 1
      %p289 = por %p287, %p288
      %p290 = scmp.ne.s32.totalorder %s282, %s285
      %p291 = scmp.eq.s32.totalorder %s27, 0
      %p292 = por %p290, %p291
      %p293 = scmp.ne.s32.totalorder %s282, %s285
      %p294 = scmp.eq.s32.totalorder %s32, 1
      %p295 = por %p293, %p294
      %p296 = scmp.ne.s32.totalorder %s285, %s286
      %p297 = scmp.eq.s32.totalorder %s32, 0
      %p298 = por %p296, %p297
      %p299 = scmp.ne.s32.totalorder %s285, %s286
      %p300 = scmp.eq.s32.totalorder %s33, 1
      %p301 = por %p299, %p300
      %p303 = scmp.ne.s32.totalorder %s286, %s302
      %p304 = scmp.eq.s32.totalorder %s33, 0
      %p305 = por %p303, %p304
      %s306 = ssub.s32 %s27, %s34
      %p307 = scmp.eq.s32.totalorder %s306, 0
      %s309 = sadd.s32 %s308, 1
      %s310 = scalar_select %p307, %s308, %s309
      %p313 = pneg %p307
      %p314 = scmp.eq.s32.totalorder %s27, 1
      %p315 = por %p313, %p314
      %p316 = scmp.ne.s32.totalorder %s308, %s311
      %p317 = scmp.eq.s32.totalorder %s27, 0
      %p318 = por %p316, %p317
      %p319 = scmp.ne.s32.totalorder %s308, %s311
      %p320 = scmp.eq.s32.totalorder %s32, 1
      %p321 = por %p319, %p320
      %p322 = scmp.ne.s32.totalorder %s311, %s312
      %p323 = scmp.eq.s32.totalorder %s32, 0
      %p324 = por %p322, %p323
      %p325 = scmp.ne.s32.totalorder %s311, %s312
      %p326 = scmp.eq.s32.totalorder %s33, 1
      %p327 = por %p325, %p326
      %p329 = scmp.ne.s32.totalorder %s312, %s328
      %p330 = scmp.eq.s32.totalorder %s33, 0
      %p331 = por %p329, %p330
      %s332 = ssub.s32 %s27, %s34
      %p333 = scmp.eq.s32.totalorder %s332, 0
      %s335 = sadd.s32 %s334, 1
      %s336 = scalar_select %p333, %s334, %s335
      %p339 = pneg %p333
      %p340 = scmp.eq.s32.totalorder %s27, 1
      %p341 = por %p339, %p340
      %p342 = scmp.ne.s32.totalorder %s334, %s337
      %p343 = scmp.eq.s32.totalorder %s27, 0
      %p344 = por %p342, %p343
      %p345 = scmp.ne.s32.totalorder %s334, %s337
      %p346 = scmp.eq.s32.totalorder %s32, 1
      %p347 = por %p345, %p346
      %p348 = scmp.ne.s32.totalorder %s337, %s338
      %p349 = scmp.eq.s32.totalorder %s32, 0
      %p350 = por %p348, %p349
      %p351 = scmp.ne.s32.totalorder %s337, %s338
      %p352 = scmp.eq.s32.totalorder %s33, 1
      %p353 = por %p351, %p352
      %p355 = scmp.ne.s32.totalorder %s338, %s354
      %p356 = scmp.eq.s32.totalorder %s33, 0
      %p357 = por %p355, %p356
      %s358 = ssub.s32 %s27, %s34
      %p359 = scmp.eq.s32.totalorder %s358, 0
      %s361 = sadd.s32 %s360, 1
      %s362 = scalar_select %p359, %s360, %s361
      %p365 = pneg %p359
      %p366 = scmp.eq.s32.totalorder %s27, 1
      %p367 = por %p365, %p366
      %p368 = scmp.ne.s32.totalorder %s360, %s363
      %p369 = scmp.eq.s32.totalorder %s27, 0
      %p370 = por %p368, %p369
      %p371 = scmp.ne.s32.totalorder %s360, %s363
      %p372 = scmp.eq.s32.totalorder %s32, 1
      %p373 = por %p371, %p372
      %p374 = scmp.ne.s32.totalorder %s363, %s364
      %p375 = scmp.eq.s32.totalorder %s32, 0
      %p376 = por %p374, %p375
      %p377 = scmp.ne.s32.totalorder %s363, %s364
      %p378 = scmp.eq.s32.totalorder %s33, 1
      %p379 = por %p377, %p378
      %p381 = scmp.ne.s32.totalorder %s364, %s380
      %p382 = scmp.eq.s32.totalorder %s33, 0
      %p383 = por %p381, %p382
      %s385 = sadd.s32 %s384, 1
      %p388 = scmp.eq.s32.totalorder %s27, 1
      %p389 = scmp.ne.s32.totalorder %s384, %s386
      %p390 = scmp.eq.s32.totalorder %s27, 0
      %p391 = por %p389, %p390
      %p392 = scmp.ne.s32.totalorder %s384, %s386
      %p393 = scmp.eq.s32.totalorder %s32, 1
      %p394 = por %p392, %p393
      %p395 = scmp.ne.s32.totalorder %s386, %s387
      %p396 = scmp.eq.s32.totalorder %s32, 0
      %p397 = por %p395, %p396
      %p398 = scmp.ne.s32.totalorder %s386, %s387
      %p399 = scmp.eq.s32.totalorder %s33, 1
      %p400 = por %p398, %p399
      %p402 = scmp.ne.s32.totalorder %s387, %s401
      %p403 = scmp.eq.s32.totalorder %s33, 0
      %p404 = por %p402, %p403
      %s406 = sadd.s32 %s405, 1
      %p409 = scmp.eq.s32.totalorder %s27, 1
      %p410 = scmp.ne.s32.totalorder %s405, %s407
      %p411 = scmp.eq.s32.totalorder %s27, 0
      %p412 = por %p410, %p411
      %p413 = scmp.ne.s32.totalorder %s405, %s407
      %p414 = scmp.eq.s32.totalorder %s32, 1
      %p415 = por %p413, %p414
      %p416 = scmp.ne.s32.totalorder %s407, %s408
      %p417 = scmp.eq.s32.totalorder %s32, 0
      %p418 = por %p416, %p417
      %p419 = scmp.ne.s32.totalorder %s407, %s408
      %p420 = scmp.eq.s32.totalorder %s33, 1
      %p421 = por %p419, %p420
      %p423 = scmp.ne.s32.totalorder %s408, %s422
      %p424 = scmp.eq.s32.totalorder %s33, 0
      %p425 = por %p423, %p424
      %s427 = sadd.s32 %s426, 1
      %p430 = scmp.eq.s32.totalorder %s27, 1
      %p431 = scmp.ne.s32.totalorder %s426, %s428
      %p432 = scmp.eq.s32.totalorder %s27, 0
      %p433 = por %p431, %p432
      %p434 = scmp.ne.s32.totalorder %s426, %s428
      %p435 = scmp.eq.s32.totalorder %s32, 1
      %p436 = por %p434, %p435
      %p437 = scmp.ne.s32.totalorder %s428, %s429
      %p438 = scmp.eq.s32.totalorder %s32, 0
      %p439 = por %p437, %p438
      %p440 = scmp.ne.s32.totalorder %s428, %s429
      %p441 = scmp.eq.s32.totalorder %s33, 1
      %p442 = por %p440, %p441
      %p444 = scmp.ne.s32.totalorder %s429, %s443
      %p445 = scmp.eq.s32.totalorder %s33, 0
      %p446 = por %p444, %p445
      %s448 = sadd.s32 %s447, 1
      %p451 = scmp.eq.s32.totalorder %s27, 1
      %p452 = scmp.ne.s32.totalorder %s447, %s449
      %p453 = scmp.eq.s32.totalorder %s27, 0
      %p454 = por %p452, %p453
      %p455 = scmp.ne.s32.totalorder %s447, %s449
      %p456 = scmp.eq.s32.totalorder %s32, 1
      %p457 = por %p455, %p456
      %p458 = scmp.ne.s32.totalorder %s449, %s450
      %p459 = scmp.eq.s32.totalorder %s32, 0
      %p460 = por %p458, %p459
      %p461 = scmp.ne.s32.totalorder %s449, %s450
      %p462 = scmp.eq.s32.totalorder %s33, 1
      %p463 = por %p461, %p462
      %p465 = scmp.ne.s32.totalorder %s450, %s464
      %p466 = scmp.eq.s32.totalorder %s33, 0
      %p467 = por %p465, %p466
      %s468 = ssub.s32 %s27, %s34
      %p469 = scmp.eq.s32.totalorder %s468, 0
      %s471 = sadd.s32 %s470, 1
      %s472 = scalar_select %p469, %s470, %s471
      %p475 = pneg %p469
      %p476 = scmp.eq.s32.totalorder %s27, 1
      %p477 = por %p475, %p476
      %p478 = scmp.ne.s32.totalorder %s470, %s473
      %p479 = scmp.eq.s32.totalorder %s27, 0
      %p480 = por %p478, %p479
      %p481 = scmp.ne.s32.totalorder %s470, %s473
      %p482 = scmp.eq.s32.totalorder %s32, 1
      %p483 = por %p481, %p482
      %p484 = scmp.ne.s32.totalorder %s473, %s474
      %p485 = scmp.eq.s32.totalorder %s32, 0
      %p486 = por %p484, %p485
      %p487 = scmp.ne.s32.totalorder %s473, %s474
      %p488 = scmp.eq.s32.totalorder %s33, 1
      %p489 = por %p487, %p488
      %p491 = scmp.ne.s32.totalorder %s474, %s490
      %p492 = scmp.eq.s32.totalorder %s33, 0
      %p493 = por %p491, %p492
      %s494 = ssub.s32 %s27, %s34
      %p495 = scmp.eq.s32.totalorder %s494, 0
      %s497 = sadd.s32 %s496, 1
      %s498 = scalar_select %p495, %s496, %s497
      %p501 = pneg %p495
      %p502 = scmp.eq.s32.totalorder %s27, 1
      %p503 = por %p501, %p502
      %p504 = scmp.ne.s32.totalorder %s496, %s499
      %p505 = scmp.eq.s32.totalorder %s27, 0
      %p506 = por %p504, %p505
      %p507 = scmp.ne.s32.totalorder %s496, %s499
      %p508 = scmp.eq.s32.totalorder %s32, 1
      %p509 = por %p507, %p508
      %p510 = scmp.ne.s32.totalorder %s499, %s500
      %p511 = scmp.eq.s32.totalorder %s32, 0
      %p512 = por %p510, %p511
      %p513 = scmp.ne.s32.totalorder %s499, %s500
      %p514 = scmp.eq.s32.totalorder %s33, 1
      %p515 = por %p513, %p514
      %p517 = scmp.ne.s32.totalorder %s500, %s516
      %p518 = scmp.eq.s32.totalorder %s33, 0
      %p519 = por %p517, %p518
      %p520 = scmp.le.s32.totalorder 1, %s27
      %p521 = scmp.lt.s32.totalorder %s27, 3
      %p522 = pnand %p520, %p521
      %p523 = pneg %p522
      // Predicated region
      $region9: #{tpu_custom_call.1} parent=5 // pred_check
        _
      $region10: #{tpu_custom_call.1} parent=5 // pred_check_branch
        %525 = sbr.rel (%p522) target = $region12
      $region11: #{tpu_custom_call.1} parent=5 // pred_region
        %s526 = ssub.s32 %s27, 1
        // Predicated region
        $region13: #{tpu_custom_call.1} parent=11 // pred_check
          %p527 = pneg %p204
        $region14: #{tpu_custom_call.1} parent=11 // pred_check_branch
          %529 = sbr.rel (%p527) target = $region16
        $region15: #{tpu_custom_call.1} parent=11 // pred_region
          _
        $region16: #{tpu_custom_call.1} parent=11 // pred_fallthru
          _
        // Predicated region
        $region17: #{tpu_custom_call.1} parent=11 // pred_check
          %p530 = pneg %p225
        $region18: #{tpu_custom_call.1} parent=11 // pred_check_branch
          %532 = sbr.rel (%p530) target = $region20
        $region19: #{tpu_custom_call.1} parent=11 // pred_region
          _
        $region20: #{tpu_custom_call.1} parent=11 // pred_fallthru
          _
        // Predicated region
        $region21: #{tpu_custom_call.1} parent=11 // pred_check
          %p533 = pneg %p246
        $region22: #{tpu_custom_call.1} parent=11 // pred_check_branch
          %535 = sbr.rel (%p533) target = $region24
        $region23: #{tpu_custom_call.1} parent=11 // pred_region
          _
        $region24: #{tpu_custom_call.1} parent=11 // pred_fallthru
          _
        // Predicated region
        $region25: #{tpu_custom_call.1} parent=11 // pred_check
          %p536 = pneg %p397
        $region26: #{tpu_custom_call.1} parent=11 // pred_check_branch
          %538 = sbr.rel (%p536) target = $region28
        $region27: #{tpu_custom_call.1} parent=11 // pred_region
          _
        $region28: #{tpu_custom_call.1} parent=11 // pred_fallthru
          _
        // Predicated region
        $region29: #{tpu_custom_call.1} parent=11 // pred_check
          %p539 = pneg %p418
        $region30: #{tpu_custom_call.1} parent=11 // pred_check_branch
          %541 = sbr.rel (%p539) target = $region32
        $region31: #{tpu_custom_call.1} parent=11 // pred_region
          _
        $region32: #{tpu_custom_call.1} parent=11 // pred_fallthru
          _
        // Predicated region
        $region33: #{tpu_custom_call.1} parent=11 // pred_check
          %p542 = pneg %p439
        $region34: #{tpu_custom_call.1} parent=11 // pred_check_branch
          %544 = sbr.rel (%p542) target = $region36
        $region35: #{tpu_custom_call.1} parent=11 // pred_region
          _
        $region36: #{tpu_custom_call.1} parent=11 // pred_fallthru
          _
        // Predicated region
        $region37: #{tpu_custom_call.1} parent=11 // pred_check
          %p545 = pneg %p460
        $region38: #{tpu_custom_call.1} parent=11 // pred_check_branch
          %547 = sbr.rel (%p545) target = $region40
        $region39: #{tpu_custom_call.1} parent=11 // pred_region
          %549 = vsyncadd [#allocation5], 0
          %s551 = sshll.u32 %s17, 4
          %s552 = int_to_ptr.vmem [resolvable:$true] %s551
          %554 = dma.vmem_to_smem %s552, 16, [#allocation4], [#allocation5]
        $region40: #{tpu_custom_call.1} parent=11 // pred_fallthru
          _
      $region12: #{tpu_custom_call.1} parent=5 // pred_fallthru
        _
      %p555 = scmp.lt.s32.totalorder %s27, 2
      // Predicated region
      $region41: #{tpu_custom_call.1} parent=5 // pred_check
        %p556 = pneg %p555
      $region42: #{tpu_custom_call.1} parent=5 // pred_check_branch
        %558 = sbr.rel (%p556) target = $region44
      $region43: #{tpu_custom_call.1} parent=5 // pred_region
        // Predicated region
        $region45: #{tpu_custom_call.1} parent=43 // pred_check
          %p559 = pneg %p47
        $region46: #{tpu_custom_call.1} parent=43 // pred_check_branch
          %561 = sbr.rel (%p559) target = $region48
        $region47: #{tpu_custom_call.1} parent=43 // pred_region
          %p562 = scmp.lt.s32.totalorder %s27, 1
          %s563 = scalar_select %p562, %s27, 1
          %s564 = smul.addr %s563, 8
          %s565 = smul.addr %s564, 8
          %s566 = scalar_lea.vmem %s0, %s565
        $region48: #{tpu_custom_call.1} parent=43 // pred_fallthru
          _
        // Predicated region
        $region49: #{tpu_custom_call.1} parent=43 // pred_check
          %p567 = pneg %p73
        $region50: #{tpu_custom_call.1} parent=43 // pred_check_branch
          %569 = sbr.rel (%p567) target = $region52
        $region51: #{tpu_custom_call.1} parent=43 // pred_region
          %p570 = scmp.lt.s32.totalorder %s27, 1
          %s571 = scalar_select %p570, %s27, 1
          %s572 = smul.addr %s571, 8
          %s573 = smul.addr %s572, 8
          %s574 = scalar_lea.vmem %s1, %s573
        $region52: #{tpu_custom_call.1} parent=43 // pred_fallthru
          _
        // Predicated region
        $region53: #{tpu_custom_call.1} parent=43 // pred_check
          %p575 = pneg %p99
        $region54: #{tpu_custom_call.1} parent=43 // pred_check_branch
          %577 = sbr.rel (%p575) target = $region56
        $region55: #{tpu_custom_call.1} parent=43 // pred_region
          %p578 = scmp.lt.s32.totalorder %s27, 1
          %s579 = scalar_select %p578, %s27, 1
          %s580 = smul.addr %s579, 8
          %s581 = smul.addr %s580, 8
          %s582 = scalar_lea.vmem %s2, %s581
        $region56: #{tpu_custom_call.1} parent=43 // pred_fallthru
          _
        // Predicated region
        $region57: #{tpu_custom_call.1} parent=43 // pred_check
          %p583 = pneg %p125
        $region58: #{tpu_custom_call.1} parent=43 // pred_check_branch
          %585 = sbr.rel (%p583) target = $region60
        $region59: #{tpu_custom_call.1} parent=43 // pred_region
          %p586 = scmp.lt.s32.totalorder %s27, 1
          %s587 = scalar_select %p586, %s27, 1
          %s588 = smul.addr %s587, 8
          %s589 = smul.addr %s588, 8
          %s590 = scalar_lea.vmem %s3, %s589
        $region60: #{tpu_custom_call.1} parent=43 // pred_fallthru
          _
        // Predicated region
        $region61: #{tpu_custom_call.1} parent=43 // pred_check
          %p591 = pneg %p151
        $region62: #{tpu_custom_call.1} parent=43 // pred_check_branch
          %593 = sbr.rel (%p591) target = $region64
        $region63: #{tpu_custom_call.1} parent=43 // pred_region
          %p594 = scmp.lt.s32.totalorder %s27, 1
          %s595 = scalar_select %p594, %s27, 1
          %s596 = smul.addr %s595, 32
          %s597 = smul.addr %s596, 8
          %s598 = scalar_lea.vmem %s4, %s597
        $region64: #{tpu_custom_call.1} parent=43 // pred_fallthru
          _
        // Predicated region
        $region65: #{tpu_custom_call.1} parent=43 // pred_check
          %p599 = pneg %p177
        $region66: #{tpu_custom_call.1} parent=43 // pred_check_branch
          %601 = sbr.rel (%p599) target = $region68
        $region67: #{tpu_custom_call.1} parent=43 // pred_region
          %p602 = scmp.lt.s32.totalorder %s27, 1
          %s603 = scalar_select %p602, %s27, 1
          %s604 = smul.addr %s603, 32
          %s605 = smul.addr %s604, 8
          %s606 = scalar_lea.vmem %s5, %s605
        $region68: #{tpu_custom_call.1} parent=43 // pred_fallthru
          _
        // Predicated region
        $region69: #{tpu_custom_call.1} parent=43 // pred_check
          %p607 = pneg %p266
        $region70: #{tpu_custom_call.1} parent=43 // pred_check_branch
          %609 = sbr.rel (%p607) target = $region72
        $region71: #{tpu_custom_call.1} parent=43 // pred_region
          %p610 = scmp.lt.s32.totalorder %s27, 1
          %s611 = scalar_select %p610, %s27, 1
          %s612 = scalar_lea.vmem %s9, %s611
        $region72: #{tpu_custom_call.1} parent=43 // pred_fallthru
          _
        // Predicated region
        $region73: #{tpu_custom_call.1} parent=43 // pred_check
          %p613 = pneg %p292
        $region74: #{tpu_custom_call.1} parent=43 // pred_check_branch
          %615 = sbr.rel (%p613) target = $region76
        $region75: #{tpu_custom_call.1} parent=43 // pred_region
          %p616 = scmp.lt.s32.totalorder %s27, 1
          %s617 = scalar_select %p616, %s27, 1
          %s618 = scalar_lea.vmem %s10, %s617
        $region76: #{tpu_custom_call.1} parent=43 // pred_fallthru
          _
        // Predicated region
        $region77: #{tpu_custom_call.1} parent=43 // pred_check
          %p619 = pneg %p318
        $region78: #{tpu_custom_call.1} parent=43 // pred_check_branch
          %621 = sbr.rel (%p619) target = $region80
        $region79: #{tpu_custom_call.1} parent=43 // pred_region
          %p622 = scmp.lt.s32.totalorder %s27, 1
          %s623 = scalar_select %p622, %s27, 1
          %s624 = scalar_lea.vmem %s11, %s623
        $region80: #{tpu_custom_call.1} parent=43 // pred_fallthru
          _
        // Predicated region
        $region81: #{tpu_custom_call.1} parent=43 // pred_check
          %p625 = pneg %p344
        $region82: #{tpu_custom_call.1} parent=43 // pred_check_branch
          %627 = sbr.rel (%p625) target = $region84
        $region83: #{tpu_custom_call.1} parent=43 // pred_region
          %p628 = scmp.lt.s32.totalorder %s27, 1
          %s629 = scalar_select %p628, %s27, 1
          %s630 = scalar_lea.vmem %s12, %s629
        $region84: #{tpu_custom_call.1} parent=43 // pred_fallthru
          _
        // Predicated region
        $region85: #{tpu_custom_call.1} parent=43 // pred_check
          %p631 = pneg %p370
        $region86: #{tpu_custom_call.1} parent=43 // pred_check_branch
          %633 = sbr.rel (%p631) target = $region88
        $region87: #{tpu_custom_call.1} parent=43 // pred_region
          %p634 = scmp.lt.s32.totalorder %s27, 1
          %s635 = scalar_select %p634, %s27, 1
          %s636 = scalar_lea.vmem %s13, %s635
        $region88: #{tpu_custom_call.1} parent=43 // pred_fallthru
          _
      $region44: #{tpu_custom_call.1} parent=5 // pred_fallthru
        _
      %p637 = scmp.le.s32.totalorder 1, %s27
      %p638 = scmp.lt.s32.totalorder %s27, 3
      %p639 = pnand %p637, %p638
      %p640 = pneg %p639
      // Predicated region
      $region89: #{tpu_custom_call.1} parent=5 // pred_check
        _
      $region90: #{tpu_custom_call.1} parent=5 // pred_check_branch
        %642 = sbr.rel (%p639) target = $region92
      $region91: #{tpu_custom_call.1} parent=5 // pred_region
        %s643 = ssub.s32 %s27, 1
        // Predicated region
        $region93: #{tpu_custom_call.1} parent=91 // pred_check
          %p644 = pneg %p460
        $region94: #{tpu_custom_call.1} parent=91 // pred_check_branch
          %646 = sbr.rel (%p644) target = $region96
        $region95: #{tpu_custom_call.1} parent=91 // pred_region
          %648 = dma.done [#allocation5], 16
        $region96: #{tpu_custom_call.1} parent=91 // pred_fallthru
          _
        %649 = sfence
        %p650 = scmp.lt.s32.totalorder %s32, 1
        %s651 = scalar_select %p650, %s32, 1
        %s652 = smul.addr %s651, 8
        %s653 = smul.addr %s652, 8
        %s654 = scalar_lea.vmem %s0, %s653
        %p655 = pneg %p53
        %p656 = pneg %p50
        %p657 = scmp.lt.s32.totalorder %s32, 1
        %s658 = scalar_select %p657, %s32, 1
        %s659 = smul.addr %s658, 8
        %s660 = smul.addr %s659, 8
        %s661 = scalar_lea.vmem %s1, %s660
        %p662 = pneg %p79
        %p663 = pneg %p76
        %p664 = scmp.lt.s32.totalorder %s32, 1
        %s665 = scalar_select %p664, %s32, 1
        %s666 = smul.addr %s665, 8
        %s667 = smul.addr %s666, 8
        %s668 = scalar_lea.vmem %s2, %s667
        %p669 = pneg %p105
        %p670 = pneg %p102
        %p671 = scmp.lt.s32.totalorder %s32, 1
        %s672 = scalar_select %p671, %s32, 1
        %s673 = smul.addr %s672, 8
        %s674 = smul.addr %s673, 8
        %s675 = scalar_lea.vmem %s3, %s674
        %p676 = pneg %p131
        %p677 = pneg %p128
        %p678 = scmp.lt.s32.totalorder %s32, 1
        %s679 = scalar_select %p678, %s32, 1
        %s680 = smul.addr %s679, 32
        %s681 = smul.addr %s680, 8
        %s682 = scalar_lea.vmem %s4, %s681
        %p683 = pneg %p157
        %p684 = pneg %p154
        %p685 = scmp.lt.s32.totalorder %s32, 1
        %s686 = scalar_select %p685, %s32, 1
        %s687 = smul.addr %s686, 32
        %s688 = smul.addr %s687, 8
        %s689 = scalar_lea.vmem %s5, %s688
        %p690 = pneg %p183
        %p691 = pneg %p180
        %p692 = pneg %p204
        %p693 = pneg %p201
        %p694 = pneg %p225
        %p695 = pneg %p222
        %p696 = pneg %p246
        %p697 = pneg %p243
        %p698 = scmp.lt.s32.totalorder %s32, 1
        %s699 = scalar_select %p698, %s32, 1
        %s700 = scalar_lea.vmem %s9, %s699
        %p701 = pneg %p272
        %p702 = pneg %p269
        %p703 = scmp.lt.s32.totalorder %s32, 1
        %s704 = scalar_select %p703, %s32, 1
        %s705 = scalar_lea.vmem %s10, %s704
        %p706 = pneg %p298
        %p707 = pneg %p295
        %p708 = scmp.lt.s32.totalorder %s32, 1
        %s709 = scalar_select %p708, %s32, 1
        %s710 = scalar_lea.vmem %s11, %s709
        %p711 = pneg %p324
        %p712 = pneg %p321
        %p713 = scmp.lt.s32.totalorder %s32, 1
        %s714 = scalar_select %p713, %s32, 1
        %s715 = scalar_lea.vmem %s12, %s714
        %p716 = pneg %p350
        %p717 = pneg %p347
        %p718 = scmp.lt.s32.totalorder %s32, 1
        %s719 = scalar_select %p718, %s32, 1
        %s720 = scalar_lea.vmem %s13, %s719
        %p721 = pneg %p376
        %p722 = pneg %p373
        %p723 = pneg %p397
        %p724 = pneg %p394
        %p725 = pneg %p418
        %p726 = pneg %p415
        %p727 = pneg %p439
        %p728 = pneg %p436
        %p729 = pneg %p460
        %p730 = pneg %p457
        %p731 = pneg %p486
        %p732 = pneg %p483
        %p733 = scmp.lt.s32.totalorder %s32, 1
        %s734 = scalar_select %p733, %s32, 1
        %s735 = smul.addr %s734, 32
        %s736 = smul.addr %s735, 8
        %s737 = scalar_lea.vmem %s18, %s736
        %p738 = pneg %p512
        %p739 = pneg %p509
        %p740 = scmp.lt.s32.totalorder %s32, 1
        %s741 = scalar_select %p740, %s32, 1
        %s742 = smul.addr %s741, 32
        %s743 = smul.addr %s742, 8
        %s744 = scalar_lea.vmem %s19, %s743
        %p745 = scmp.lt.s32.totalorder %s32, 1
        %s746 = scalar_select %p745, %s32, 1
        %s747 = smul.addr %s746, 8
        %s748 = smul.addr %s747, 8
        %s749 = scalar_lea.vmem %s0, %s748
        %p750 = scmp.lt.s32.totalorder %s32, 1
        %s751 = scalar_select %p750, %s32, 1
        %s752 = smul.addr %s751, 8
        %s753 = smul.addr %s752, 8
        %s754 = scalar_lea.vmem %s1, %s753
        %p755 = scmp.lt.s32.totalorder %s32, 1
        %s756 = scalar_select %p755, %s32, 1
        %s757 = smul.addr %s756, 8
        %s758 = smul.addr %s757, 8
        %s759 = scalar_lea.vmem %s2, %s758
        %p760 = scmp.lt.s32.totalorder %s32, 1
        %s761 = scalar_select %p760, %s32, 1
        %s762 = smul.addr %s761, 8
        %s763 = smul.addr %s762, 8
        %s764 = scalar_lea.vmem %s3, %s763
        %p765 = scmp.lt.s32.totalorder %s32, 1
        %s766 = scalar_select %p765, %s32, 1
        %s767 = smul.addr %s766, 32
        %s768 = smul.addr %s767, 8
        %s769 = scalar_lea.vmem %s4, %s768
        %p770 = scmp.lt.s32.totalorder %s32, 1
        %s771 = scalar_select %p770, %s32, 1
        %s772 = smul.addr %s771, 32
        %s773 = smul.addr %s772, 8
        %s774 = scalar_lea.vmem %s5, %s773
        %p775 = scmp.lt.s32.totalorder %s32, 1
        %s776 = scalar_select %p775, %s32, 1
        %s777 = scalar_lea.vmem %s9, %s776
        %p778 = scmp.lt.s32.totalorder %s32, 1
        %s779 = scalar_select %p778, %s32, 1
        %s780 = scalar_lea.vmem %s10, %s779
        %p781 = scmp.lt.s32.totalorder %s32, 1
        %s782 = scalar_select %p781, %s32, 1
        %s783 = scalar_lea.vmem %s11, %s782
        %p784 = scmp.lt.s32.totalorder %s32, 1
        %s785 = scalar_select %p784, %s32, 1
        %s786 = scalar_lea.vmem %s12, %s785
        %p787 = scmp.lt.s32.totalorder %s32, 1
        %s788 = scalar_select %p787, %s32, 1
        %s789 = scalar_lea.vmem %s13, %s788
        %p790 = scmp.lt.s32.totalorder %s32, 1
        %s791 = scalar_select %p790, %s32, 1
        %s792 = smul.addr %s791, 32
        %s793 = smul.addr %s792, 8
        %s794 = scalar_lea.vmem %s18, %s793
        %p795 = scmp.lt.s32.totalorder %s32, 1
        %s796 = scalar_select %p795, %s32, 1
        %s797 = smul.addr %s796, 32
        %s798 = smul.addr %s797, 8
        %s799 = scalar_lea.vmem %s19, %s798
        %v800 = vld [vmem:[%s749] sm:$0xff]
        %v801 = vld [vmem:[%s749 + $0x8] sm:$0xff]
        %v802 = vld [vmem:[%s749 + $0x10] sm:$0xff]
        %v803 = vld [vmem:[%s749 + $0x18] sm:$0xff]
        %v804 = vld [vmem:[%s749 + $0x20] sm:$0xff]
        %v805 = vld [vmem:[%s749 + $0x28] sm:$0xff]
        %v806 = vld [vmem:[%s749 + $0x30] sm:$0xff]
        %v807 = vld [vmem:[%s749 + $0x38] sm:$0xff]
        %v808 = vld [vmem:[%s754] sm:$0xff]
        %v809 = vld [vmem:[%s754 + $0x8] sm:$0xff]
        %v810 = vld [vmem:[%s754 + $0x10] sm:$0xff]
        %v811 = vld [vmem:[%s754 + $0x18] sm:$0xff]
        %v812 = vld [vmem:[%s754 + $0x20] sm:$0xff]
        %v813 = vld [vmem:[%s754 + $0x28] sm:$0xff]
        %v814 = vld [vmem:[%s754 + $0x30] sm:$0xff]
        %v815 = vld [vmem:[%s754 + $0x38] sm:$0xff]
        %v816 = vld [vmem:[%s759] sm:$0xff]
        %v817 = vld [vmem:[%s759 + $0x8] sm:$0xff]
        %v818 = vld [vmem:[%s759 + $0x10] sm:$0xff]
        %v819 = vld [vmem:[%s759 + $0x18] sm:$0xff]
        %v820 = vld [vmem:[%s759 + $0x20] sm:$0xff]
        %v821 = vld [vmem:[%s759 + $0x28] sm:$0xff]
        %v822 = vld [vmem:[%s759 + $0x30] sm:$0xff]
        %v823 = vld [vmem:[%s759 + $0x38] sm:$0xff]
        %v824 = vld [vmem:[%s764] sm:$0xff]
        %v825 = vld [vmem:[%s764 + $0x8] sm:$0xff]
        %v826 = vld [vmem:[%s764 + $0x10] sm:$0xff]
        %v827 = vld [vmem:[%s764 + $0x18] sm:$0xff]
        %v828 = vld [vmem:[%s764 + $0x20] sm:$0xff]
        %v829 = vld [vmem:[%s764 + $0x28] sm:$0xff]
        %v830 = vld [vmem:[%s764 + $0x30] sm:$0xff]
        %v831 = vld [vmem:[%s764 + $0x38] sm:$0xff]
        %v832 = vsub.f32 %v800, %v808
        %v833 = vsub.f32 %v801, %v809
        %v834 = vsub.f32 %v802, %v810
        %v835 = vsub.f32 %v803, %v811
        %v836 = vsub.f32 %v804, %v812
        %v837 = vsub.f32 %v805, %v813
        %v838 = vsub.f32 %v806, %v814
        %v839 = vsub.f32 %v807, %v815
        %v840 = vsub.f32 %v832, %v816
        %v841 = vsub.f32 %v833, %v817
        %v842 = vsub.f32 %v834, %v818
        %v843 = vsub.f32 %v835, %v819
        %v844 = vsub.f32 %v836, %v820
        %v845 = vsub.f32 %v837, %v821
        %v846 = vsub.f32 %v838, %v822
        %v847 = vsub.f32 %v839, %v823
        %v848 = vadd.f32 %v840, %v824
        %v849 = vadd.f32 %v841, %v825
        %v850 = vadd.f32 %v842, %v826
        %v851 = vadd.f32 %v843, %v827
        %v852 = vadd.f32 %v844, %v828
        %v853 = vadd.f32 %v845, %v829
        %v854 = vadd.f32 %v846, %v830
        %v855 = vadd.f32 %v847, %v831
        %v856 = vmul.f32 %v848, 0.5
        %v857 = vmul.f32 %v849, 0.5
        %v858 = vmul.f32 %v850, 0.5
        %v859 = vmul.f32 %v851, 0.5
        %v860 = vmul.f32 %v852, 0.5
        %v861 = vmul.f32 %v853, 0.5
        %v862 = vmul.f32 %v854, 0.5
        %v863 = vmul.f32 %v855, 0.5
        %v864 = vadd.f32 %v832, %v816
        %v865 = vadd.f32 %v833, %v817
        %v866 = vadd.f32 %v834, %v818
        %v867 = vadd.f32 %v835, %v819
        %v868 = vadd.f32 %v836, %v820
        %v869 = vadd.f32 %v837, %v821
        %v870 = vadd.f32 %v838, %v822
        %v871 = vadd.f32 %v839, %v823
        %v872 = vsub.f32 %v864, %v824
        %v873 = vsub.f32 %v865, %v825
        %v874 = vsub.f32 %v866, %v826
        %v875 = vsub.f32 %v867, %v827
        %v876 = vsub.f32 %v868, %v828
        %v877 = vsub.f32 %v869, %v829
        %v878 = vsub.f32 %v870, %v830
        %v879 = vsub.f32 %v871, %v831
        %v880 = vmul.f32 %v872, 0.5
        %v881 = vmul.f32 %v873, 0.5
        %v882 = vmul.f32 %v874, 0.5
        %v883 = vmul.f32 %v875, 0.5
        %v884 = vmul.f32 %v876, 0.5
        %v885 = vmul.f32 %v877, 0.5
        %v886 = vmul.f32 %v878, 0.5
        %v887 = vmul.f32 %v879, 0.5
        %v888 = vadd.f32 %v800, %v808
        %v889 = vadd.f32 %v801, %v809
        %v890 = vadd.f32 %v802, %v810
        %v891 = vadd.f32 %v803, %v811
        %v892 = vadd.f32 %v804, %v812
        %v893 = vadd.f32 %v805, %v813
        %v894 = vadd.f32 %v806, %v814
        %v895 = vadd.f32 %v807, %v815
        %v896 = vsub.f32 %v888, %v816
        %v897 = vsub.f32 %v889, %v817
        %v898 = vsub.f32 %v890, %v818
        %v899 = vsub.f32 %v891, %v819
        %v900 = vsub.f32 %v892, %v820
        %v901 = vsub.f32 %v893, %v821
        %v902 = vsub.f32 %v894, %v822
        %v903 = vsub.f32 %v895, %v823
        %v904 = vsub.f32 %v896, %v824
        %v905 = vsub.f32 %v897, %v825
        %v906 = vsub.f32 %v898, %v826
        %v907 = vsub.f32 %v899, %v827
        %v908 = vsub.f32 %v900, %v828
        %v909 = vsub.f32 %v901, %v829
        %v910 = vsub.f32 %v902, %v830
        %v911 = vsub.f32 %v903, %v831
        %v912 = vmul.f32 %v904, 0.5
        %v913 = vmul.f32 %v905, 0.5
        %v914 = vmul.f32 %v906, 0.5
        %v915 = vmul.f32 %v907, 0.5
        %v916 = vmul.f32 %v908, 0.5
        %v917 = vmul.f32 %v909, 0.5
        %v918 = vmul.f32 %v910, 0.5
        %v919 = vmul.f32 %v911, 0.5
        %v920 = vadd.f32 %v888, %v816
        %v921 = vadd.f32 %v889, %v817
        %v922 = vadd.f32 %v890, %v818
        %v923 = vadd.f32 %v891, %v819
        %v924 = vadd.f32 %v892, %v820
        %v925 = vadd.f32 %v893, %v821
        %v926 = vadd.f32 %v894, %v822
        %v927 = vadd.f32 %v895, %v823
        %v928 = vadd.f32 %v920, %v824
        %v929 = vadd.f32 %v921, %v825
        %v930 = vadd.f32 %v922, %v826
        %v931 = vadd.f32 %v923, %v827
        %v932 = vadd.f32 %v924, %v828
        %v933 = vadd.f32 %v925, %v829
        %v934 = vadd.f32 %v926, %v830
        %v935 = vadd.f32 %v927, %v831
        %v936 = vmul.f32 %v928, 0.5
        %v937 = vmul.f32 %v929, 0.5
        %v938 = vmul.f32 %v930, 0.5
        %v939 = vmul.f32 %v931, 0.5
        %v940 = vmul.f32 %v932, 0.5
        %v941 = vmul.f32 %v933, 0.5
        %v942 = vmul.f32 %v934, 0.5
        %v943 = vmul.f32 %v935, 0.5
        %v952 = vrot.slane %v856, 1
        %v953 = vrot.slane %v856, 2
        %v954 = vrot.slane %v856, 3
        %v955 = vrot.slane %v856, 4
        %v956 = vrot.slane %v856, 5
        %v957 = vrot.slane %v856, 6
        %v958 = vrot.slane %v856, 7
        %v959 = vrot.slane %v857, 1
        %v960 = vrot.slane %v857, 2
        %v961 = vrot.slane %v857, 3
        %v962 = vrot.slane %v857, 4
        %v963 = vrot.slane %v857, 5
        %v964 = vrot.slane %v857, 6
        %v965 = vrot.slane %v857, 7
        %v966 = vrot.slane %v858, 1
        %v967 = vrot.slane %v858, 2
        %v968 = vrot.slane %v858, 3
        %v969 = vrot.slane %v858, 4
        %v970 = vrot.slane %v858, 5
        %v971 = vrot.slane %v858, 6
        %v972 = vrot.slane %v858, 7
        %v973 = vrot.slane %v859, 1
        %v974 = vrot.slane %v859, 2
        %v975 = vrot.slane %v859, 3
        %v976 = vrot.slane %v859, 4
        %v977 = vrot.slane %v859, 5
        %v978 = vrot.slane %v859, 6
        %v979 = vrot.slane %v859, 7
        %v980 = vrot.slane %v860, 1
        %v981 = vrot.slane %v860, 2
        %v982 = vrot.slane %v860, 3
        %v983 = vrot.slane %v860, 4
        %v984 = vrot.slane %v860, 5
        %v985 = vrot.slane %v860, 6
        %v986 = vrot.slane %v860, 7
        %v987 = vrot.slane %v861, 1
        %v988 = vrot.slane %v861, 2
        %v989 = vrot.slane %v861, 3
        %v990 = vrot.slane %v861, 4
        %v991 = vrot.slane %v861, 5
        %v992 = vrot.slane %v861, 6
        %v993 = vrot.slane %v861, 7
        %v994 = vrot.slane %v862, 1
        %v995 = vrot.slane %v862, 2
        %v996 = vrot.slane %v862, 3
        %v997 = vrot.slane %v862, 4
        %v998 = vrot.slane %v862, 5
        %v999 = vrot.slane %v862, 6
        %v1000 = vrot.slane %v862, 7
        %v1001 = vrot.slane %v863, 1
        %v1002 = vrot.slane %v863, 2
        %v1003 = vrot.slane %v863, 3
        %v1004 = vrot.slane %v863, 4
        %v1005 = vrot.slane %v863, 5
        %v1006 = vrot.slane %v863, 6
        %v1007 = vrot.slane %v863, 7
        %v1072 = vrot.slane %v880, 1
        %v1073 = vrot.slane %v880, 2
        %v1074 = vrot.slane %v880, 3
        %v1075 = vrot.slane %v880, 4
        %v1076 = vrot.slane %v880, 5
        %v1077 = vrot.slane %v880, 6
        %v1078 = vrot.slane %v880, 7
        %v1079 = vrot.slane %v881, 1
        %v1080 = vrot.slane %v881, 2
        %v1081 = vrot.slane %v881, 3
        %v1082 = vrot.slane %v881, 4
        %v1083 = vrot.slane %v881, 5
        %v1084 = vrot.slane %v881, 6
        %v1085 = vrot.slane %v881, 7
        %v1086 = vrot.slane %v882, 1
        %v1087 = vrot.slane %v882, 2
        %v1088 = vrot.slane %v882, 3
        %v1089 = vrot.slane %v882, 4
        %v1090 = vrot.slane %v882, 5
        %v1091 = vrot.slane %v882, 6
        %v1092 = vrot.slane %v882, 7
        %v1093 = vrot.slane %v883, 1
        %v1094 = vrot.slane %v883, 2
        %v1095 = vrot.slane %v883, 3
        %v1096 = vrot.slane %v883, 4
        %v1097 = vrot.slane %v883, 5
        %v1098 = vrot.slane %v883, 6
        %v1099 = vrot.slane %v883, 7
        %v1100 = vrot.slane %v884, 1
        %v1101 = vrot.slane %v884, 2
        %v1102 = vrot.slane %v884, 3
        %v1103 = vrot.slane %v884, 4
        %v1104 = vrot.slane %v884, 5
        %v1105 = vrot.slane %v884, 6
        %v1106 = vrot.slane %v884, 7
        %v1107 = vrot.slane %v885, 1
        %v1108 = vrot.slane %v885, 2
        %v1109 = vrot.slane %v885, 3
        %v1110 = vrot.slane %v885, 4
        %v1111 = vrot.slane %v885, 5
        %v1112 = vrot.slane %v885, 6
        %v1113 = vrot.slane %v885, 7
        %v1114 = vrot.slane %v886, 1
        %v1115 = vrot.slane %v886, 2
        %v1116 = vrot.slane %v886, 3
        %v1117 = vrot.slane %v886, 4
        %v1118 = vrot.slane %v886, 5
        %v1119 = vrot.slane %v886, 6
        %v1120 = vrot.slane %v886, 7
        %v1121 = vrot.slane %v887, 1
        %v1122 = vrot.slane %v887, 2
        %v1123 = vrot.slane %v887, 3
        %v1124 = vrot.slane %v887, 4
        %v1125 = vrot.slane %v887, 5
        %v1126 = vrot.slane %v887, 6
        %v1127 = vrot.slane %v887, 7
        %v1128 = vperm.slane %v880, 0
        %v1129 = vperm.slane %v1072, 0
        %v1130 = vperm.slane %v1073, 0
        %v1131 = vperm.slane %v1074, 0
        %v1132 = vperm.slane %v1075, 0
        %v1133 = vperm.slane %v1076, 0
        %v1134 = vperm.slane %v1077, 0
        %v1135 = vperm.slane %v1078, 0
        %v1136 = vperm.slane %v881, 0
        %v1137 = vperm.slane %v1079, 0
        %v1138 = vperm.slane %v1080, 0
        %v1139 = vperm.slane %v1081, 0
        %v1140 = vperm.slane %v1082, 0
        %v1141 = vperm.slane %v1083, 0
        %v1142 = vperm.slane %v1084, 0
        %v1143 = vperm.slane %v1085, 0
        %v1144 = vperm.slane %v882, 0
        %v1145 = vperm.slane %v1086, 0
        %v1146 = vperm.slane %v1087, 0
        %v1147 = vperm.slane %v1088, 0
        %v1148 = vperm.slane %v1089, 0
        %v1149 = vperm.slane %v1090, 0
        %v1150 = vperm.slane %v1091, 0
        %v1151 = vperm.slane %v1092, 0
        %v1152 = vperm.slane %v883, 0
        %v1153 = vperm.slane %v1093, 0
        %v1154 = vperm.slane %v1094, 0
        %v1155 = vperm.slane %v1095, 0
        %v1156 = vperm.slane %v1096, 0
        %v1157 = vperm.slane %v1097, 0
        %v1158 = vperm.slane %v1098, 0
        %v1159 = vperm.slane %v1099, 0
        %v1160 = vperm.slane %v884, 0
        %v1161 = vperm.slane %v1100, 0
        %v1162 = vperm.slane %v1101, 0
        %v1163 = vperm.slane %v1102, 0
        %v1164 = vperm.slane %v1103, 0
        %v1165 = vperm.slane %v1104, 0
        %v1166 = vperm.slane %v1105, 0
        %v1167 = vperm.slane %v1106, 0
        %v1168 = vperm.slane %v885, 0
        %v1169 = vperm.slane %v1107, 0
        %v1170 = vperm.slane %v1108, 0
        %v1171 = vperm.slane %v1109, 0
        %v1172 = vperm.slane %v1110, 0
        %v1173 = vperm.slane %v1111, 0
        %v1174 = vperm.slane %v1112, 0
        %v1175 = vperm.slane %v1113, 0
        %v1176 = vperm.slane %v886, 0
        %v1177 = vperm.slane %v1114, 0
        %v1178 = vperm.slane %v1115, 0
        %v1179 = vperm.slane %v1116, 0
        %v1180 = vperm.slane %v1117, 0
        %v1181 = vperm.slane %v1118, 0
        %v1182 = vperm.slane %v1119, 0
        %v1183 = vperm.slane %v1120, 0
        %v1184 = vperm.slane %v887, 0
        %v1185 = vperm.slane %v1121, 0
        %v1186 = vperm.slane %v1122, 0
        %v1187 = vperm.slane %v1123, 0
        %v1188 = vperm.slane %v1124, 0
        %v1189 = vperm.slane %v1125, 0
        %v1190 = vperm.slane %v1126, 0
        %v1191 = vperm.slane %v1127, 0
        %vm1256 = vcmask 1040384
        %v1257 = vsel %vm1256, %v856, %v1128
        %v1258 = vsel %vm1256, %v952, %v1129
        %v1259 = vsel %vm1256, %v953, %v1130
        %v1260 = vsel %vm1256, %v954, %v1131
        %v1261 = vsel %vm1256, %v955, %v1132
        %v1262 = vsel %vm1256, %v956, %v1133
        %v1263 = vsel %vm1256, %v957, %v1134
        %v1264 = vsel %vm1256, %v958, %v1135
        %v1265 = vsel %vm1256, %v857, %v1136
        %v1266 = vsel %vm1256, %v959, %v1137
        %v1267 = vsel %vm1256, %v960, %v1138
        %v1268 = vsel %vm1256, %v961, %v1139
        %v1269 = vsel %vm1256, %v962, %v1140
        %v1270 = vsel %vm1256, %v963, %v1141
        %v1271 = vsel %vm1256, %v964, %v1142
        %v1272 = vsel %vm1256, %v965, %v1143
        %v1273 = vsel %vm1256, %v858, %v1144
        %v1274 = vsel %vm1256, %v966, %v1145
        %v1275 = vsel %vm1256, %v967, %v1146
        %v1276 = vsel %vm1256, %v968, %v1147
        %v1277 = vsel %vm1256, %v969, %v1148
        %v1278 = vsel %vm1256, %v970, %v1149
        %v1279 = vsel %vm1256, %v971, %v1150
        %v1280 = vsel %vm1256, %v972, %v1151
        %v1281 = vsel %vm1256, %v859, %v1152
        %v1282 = vsel %vm1256, %v973, %v1153
        %v1283 = vsel %vm1256, %v974, %v1154
        %v1284 = vsel %vm1256, %v975, %v1155
        %v1285 = vsel %vm1256, %v976, %v1156
        %v1286 = vsel %vm1256, %v977, %v1157
        %v1287 = vsel %vm1256, %v978, %v1158
        %v1288 = vsel %vm1256, %v979, %v1159
        %v1289 = vsel %vm1256, %v860, %v1160
        %v1290 = vsel %vm1256, %v980, %v1161
        %v1291 = vsel %vm1256, %v981, %v1162
        %v1292 = vsel %vm1256, %v982, %v1163
        %v1293 = vsel %vm1256, %v983, %v1164
        %v1294 = vsel %vm1256, %v984, %v1165
        %v1295 = vsel %vm1256, %v985, %v1166
        %v1296 = vsel %vm1256, %v986, %v1167
        %v1297 = vsel %vm1256, %v861, %v1168
        %v1298 = vsel %vm1256, %v987, %v1169
        %v1299 = vsel %vm1256, %v988, %v1170
        %v1300 = vsel %vm1256, %v989, %v1171
        %v1301 = vsel %vm1256, %v990, %v1172
        %v1302 = vsel %vm1256, %v991, %v1173
        %v1303 = vsel %vm1256, %v992, %v1174
        %v1304 = vsel %vm1256, %v993, %v1175
        %v1305 = vsel %vm1256, %v862, %v1176
        %v1306 = vsel %vm1256, %v994, %v1177
        %v1307 = vsel %vm1256, %v995, %v1178
        %v1308 = vsel %vm1256, %v996, %v1179
        %v1309 = vsel %vm1256, %v997, %v1180
        %v1310 = vsel %vm1256, %v998, %v1181
        %v1311 = vsel %vm1256, %v999, %v1182
        %v1312 = vsel %vm1256, %v1000, %v1183
        %v1313 = vsel %vm1256, %v863, %v1184
        %v1314 = vsel %vm1256, %v1001, %v1185
        %v1315 = vsel %vm1256, %v1002, %v1186
        %v1316 = vsel %vm1256, %v1003, %v1187
        %v1317 = vsel %vm1256, %v1004, %v1188
        %v1318 = vsel %vm1256, %v1005, %v1189
        %v1319 = vsel %vm1256, %v1006, %v1190
        %v1320 = vsel %vm1256, %v1007, %v1191
        %v1329 = vrot.slane %v912, 1
        %v1330 = vrot.slane %v912, 2
        %v1331 = vrot.slane %v912, 3
        %v1332 = vrot.slane %v912, 4
        %v1333 = vrot.slane %v912, 5
        %v1334 = vrot.slane %v912, 6
        %v1335 = vrot.slane %v912, 7
        %v1336 = vrot.slane %v913, 1
        %v1337 = vrot.slane %v913, 2
        %v1338 = vrot.slane %v913, 3
        %v1339 = vrot.slane %v913, 4
        %v1340 = vrot.slane %v913, 5
        %v1341 = vrot.slane %v913, 6
        %v1342 = vrot.slane %v913, 7
        %v1343 = vrot.slane %v914, 1
        %v1344 = vrot.slane %v914, 2
        %v1345 = vrot.slane %v914, 3
        %v1346 = vrot.slane %v914, 4
        %v1347 = vrot.slane %v914, 5
        %v1348 = vrot.slane %v914, 6
        %v1349 = vrot.slane %v914, 7
        %v1350 = vrot.slane %v915, 1
        %v1351 = vrot.slane %v915, 2
        %v1352 = vrot.slane %v915, 3
        %v1353 = vrot.slane %v915, 4
        %v1354 = vrot.slane %v915, 5
        %v1355 = vrot.slane %v915, 6
        %v1356 = vrot.slane %v915, 7
        %v1357 = vrot.slane %v916, 1
        %v1358 = vrot.slane %v916, 2
        %v1359 = vrot.slane %v916, 3
        %v1360 = vrot.slane %v916, 4
        %v1361 = vrot.slane %v916, 5
        %v1362 = vrot.slane %v916, 6
        %v1363 = vrot.slane %v916, 7
        %v1364 = vrot.slane %v917, 1
        %v1365 = vrot.slane %v917, 2
        %v1366 = vrot.slane %v917, 3
        %v1367 = vrot.slane %v917, 4
        %v1368 = vrot.slane %v917, 5
        %v1369 = vrot.slane %v917, 6
        %v1370 = vrot.slane %v917, 7
        %v1371 = vrot.slane %v918, 1
        %v1372 = vrot.slane %v918, 2
        %v1373 = vrot.slane %v918, 3
        %v1374 = vrot.slane %v918, 4
        %v1375 = vrot.slane %v918, 5
        %v1376 = vrot.slane %v918, 6
        %v1377 = vrot.slane %v918, 7
        %v1378 = vrot.slane %v919, 1
        %v1379 = vrot.slane %v919, 2
        %v1380 = vrot.slane %v919, 3
        %v1381 = vrot.slane %v919, 4
        %v1382 = vrot.slane %v919, 5
        %v1383 = vrot.slane %v919, 6
        %v1384 = vrot.slane %v919, 7
        %v1449 = vrot.slane %v936, 1
        %v1450 = vrot.slane %v936, 2
        %v1451 = vrot.slane %v936, 3
        %v1452 = vrot.slane %v936, 4
        %v1453 = vrot.slane %v936, 5
        %v1454 = vrot.slane %v936, 6
        %v1455 = vrot.slane %v936, 7
        %v1456 = vrot.slane %v937, 1
        %v1457 = vrot.slane %v937, 2
        %v1458 = vrot.slane %v937, 3
        %v1459 = vrot.slane %v937, 4
        %v1460 = vrot.slane %v937, 5
        %v1461 = vrot.slane %v937, 6
        %v1462 = vrot.slane %v937, 7
        %v1463 = vrot.slane %v938, 1
        %v1464 = vrot.slane %v938, 2
        %v1465 = vrot.slane %v938, 3
        %v1466 = vrot.slane %v938, 4
        %v1467 = vrot.slane %v938, 5
        %v1468 = vrot.slane %v938, 6
        %v1469 = vrot.slane %v938, 7
        %v1470 = vrot.slane %v939, 1
        %v1471 = vrot.slane %v939, 2
        %v1472 = vrot.slane %v939, 3
        %v1473 = vrot.slane %v939, 4
        %v1474 = vrot.slane %v939, 5
        %v1475 = vrot.slane %v939, 6
        %v1476 = vrot.slane %v939, 7
        %v1477 = vrot.slane %v940, 1
        %v1478 = vrot.slane %v940, 2
        %v1479 = vrot.slane %v940, 3
        %v1480 = vrot.slane %v940, 4
        %v1481 = vrot.slane %v940, 5
        %v1482 = vrot.slane %v940, 6
        %v1483 = vrot.slane %v940, 7
        %v1484 = vrot.slane %v941, 1
        %v1485 = vrot.slane %v941, 2
        %v1486 = vrot.slane %v941, 3
        %v1487 = vrot.slane %v941, 4
        %v1488 = vrot.slane %v941, 5
        %v1489 = vrot.slane %v941, 6
        %v1490 = vrot.slane %v941, 7
        %v1491 = vrot.slane %v942, 1
        %v1492 = vrot.slane %v942, 2
        %v1493 = vrot.slane %v942, 3
        %v1494 = vrot.slane %v942, 4
        %v1495 = vrot.slane %v942, 5
        %v1496 = vrot.slane %v942, 6
        %v1497 = vrot.slane %v942, 7
        %v1498 = vrot.slane %v943, 1
        %v1499 = vrot.slane %v943, 2
        %v1500 = vrot.slane %v943, 3
        %v1501 = vrot.slane %v943, 4
        %v1502 = vrot.slane %v943, 5
        %v1503 = vrot.slane %v943, 6
        %v1504 = vrot.slane %v943, 7
        %v1505 = vperm.slane %v936, 0
        %v1506 = vperm.slane %v1449, 0
        %v1507 = vperm.slane %v1450, 0
        %v1508 = vperm.slane %v1451, 0
        %v1509 = vperm.slane %v1452, 0
        %v1510 = vperm.slane %v1453, 0
        %v1511 = vperm.slane %v1454, 0
        %v1512 = vperm.slane %v1455, 0
        %v1513 = vperm.slane %v937, 0
        %v1514 = vperm.slane %v1456, 0
        %v1515 = vperm.slane %v1457, 0
        %v1516 = vperm.slane %v1458, 0
        %v1517 = vperm.slane %v1459, 0
        %v1518 = vperm.slane %v1460, 0
        %v1519 = vperm.slane %v1461, 0
        %v1520 = vperm.slane %v1462, 0
        %v1521 = vperm.slane %v938, 0
        %v1522 = vperm.slane %v1463, 0
        %v1523 = vperm.slane %v1464, 0
        %v1524 = vperm.slane %v1465, 0
        %v1525 = vperm.slane %v1466, 0
        %v1526 = vperm.slane %v1467, 0
        %v1527 = vperm.slane %v1468, 0
        %v1528 = vperm.slane %v1469, 0
        %v1529 = vperm.slane %v939, 0
        %v1530 = vperm.slane %v1470, 0
        %v1531 = vperm.slane %v1471, 0
        %v1532 = vperm.slane %v1472, 0
        %v1533 = vperm.slane %v1473, 0
        %v1534 = vperm.slane %v1474, 0
        %v1535 = vperm.slane %v1475, 0
        %v1536 = vperm.slane %v1476, 0
        %v1537 = vperm.slane %v940, 0
        %v1538 = vperm.slane %v1477, 0
        %v1539 = vperm.slane %v1478, 0
        %v1540 = vperm.slane %v1479, 0
        %v1541 = vperm.slane %v1480, 0
        %v1542 = vperm.slane %v1481, 0
        %v1543 = vperm.slane %v1482, 0
        %v1544 = vperm.slane %v1483, 0
        %v1545 = vperm.slane %v941, 0
        %v1546 = vperm.slane %v1484, 0
        %v1547 = vperm.slane %v1485, 0
        %v1548 = vperm.slane %v1486, 0
        %v1549 = vperm.slane %v1487, 0
        %v1550 = vperm.slane %v1488, 0
        %v1551 = vperm.slane %v1489, 0
        %v1552 = vperm.slane %v1490, 0
        %v1553 = vperm.slane %v942, 0
        %v1554 = vperm.slane %v1491, 0
        %v1555 = vperm.slane %v1492, 0
        %v1556 = vperm.slane %v1493, 0
        %v1557 = vperm.slane %v1494, 0
        %v1558 = vperm.slane %v1495, 0
        %v1559 = vperm.slane %v1496, 0
        %v1560 = vperm.slane %v1497, 0
        %v1561 = vperm.slane %v943, 0
        %v1562 = vperm.slane %v1498, 0
        %v1563 = vperm.slane %v1499, 0
        %v1564 = vperm.slane %v1500, 0
        %v1565 = vperm.slane %v1501, 0
        %v1566 = vperm.slane %v1502, 0
        %v1567 = vperm.slane %v1503, 0
        %v1568 = vperm.slane %v1504, 0
        %v1633 = vsel %vm1256, %v912, %v1505
        %v1634 = vsel %vm1256, %v1329, %v1506
        %v1635 = vsel %vm1256, %v1330, %v1507
        %v1636 = vsel %vm1256, %v1331, %v1508
        %v1637 = vsel %vm1256, %v1332, %v1509
        %v1638 = vsel %vm1256, %v1333, %v1510
        %v1639 = vsel %vm1256, %v1334, %v1511
        %v1640 = vsel %vm1256, %v1335, %v1512
        %v1641 = vsel %vm1256, %v913, %v1513
        %v1642 = vsel %vm1256, %v1336, %v1514
        %v1643 = vsel %vm1256, %v1337, %v1515
        %v1644 = vsel %vm1256, %v1338, %v1516
        %v1645 = vsel %vm1256, %v1339, %v1517
        %v1646 = vsel %vm1256, %v1340, %v1518
        %v1647 = vsel %vm1256, %v1341, %v1519
        %v1648 = vsel %vm1256, %v1342, %v1520
        %v1649 = vsel %vm1256, %v914, %v1521
        %v1650 = vsel %vm1256, %v1343, %v1522
        %v1651 = vsel %vm1256, %v1344, %v1523
        %v1652 = vsel %vm1256, %v1345, %v1524
        %v1653 = vsel %vm1256, %v1346, %v1525
        %v1654 = vsel %vm1256, %v1347, %v1526
        %v1655 = vsel %vm1256, %v1348, %v1527
        %v1656 = vsel %vm1256, %v1349, %v1528
        %v1657 = vsel %vm1256, %v915, %v1529
        %v1658 = vsel %vm1256, %v1350, %v1530
        %v1659 = vsel %vm1256, %v1351, %v1531
        %v1660 = vsel %vm1256, %v1352, %v1532
        %v1661 = vsel %vm1256, %v1353, %v1533
        %v1662 = vsel %vm1256, %v1354, %v1534
        %v1663 = vsel %vm1256, %v1355, %v1535
        %v1664 = vsel %vm1256, %v1356, %v1536
        %v1665 = vsel %vm1256, %v916, %v1537
        %v1666 = vsel %vm1256, %v1357, %v1538
        %v1667 = vsel %vm1256, %v1358, %v1539
        %v1668 = vsel %vm1256, %v1359, %v1540
        %v1669 = vsel %vm1256, %v1360, %v1541
        %v1670 = vsel %vm1256, %v1361, %v1542
        %v1671 = vsel %vm1256, %v1362, %v1543
        %v1672 = vsel %vm1256, %v1363, %v1544
        %v1673 = vsel %vm1256, %v917, %v1545
        %v1674 = vsel %vm1256, %v1364, %v1546
        %v1675 = vsel %vm1256, %v1365, %v1547
        %v1676 = vsel %vm1256, %v1366, %v1548
        %v1677 = vsel %vm1256, %v1367, %v1549
        %v1678 = vsel %vm1256, %v1368, %v1550
        %v1679 = vsel %vm1256, %v1369, %v1551
        %v1680 = vsel %vm1256, %v1370, %v1552
        %v1681 = vsel %vm1256, %v918, %v1553
        %v1682 = vsel %vm1256, %v1371, %v1554
        %v1683 = vsel %vm1256, %v1372, %v1555
        %v1684 = vsel %vm1256, %v1373, %v1556
        %v1685 = vsel %vm1256, %v1374, %v1557
        %v1686 = vsel %vm1256, %v1375, %v1558
        %v1687 = vsel %vm1256, %v1376, %v1559
        %v1688 = vsel %vm1256, %v1377, %v1560
        %v1689 = vsel %vm1256, %v919, %v1561
        %v1690 = vsel %vm1256, %v1378, %v1562
        %v1691 = vsel %vm1256, %v1379, %v1563
        %v1692 = vsel %vm1256, %v1380, %v1564
        %v1693 = vsel %vm1256, %v1381, %v1565
        %v1694 = vsel %vm1256, %v1382, %v1566
        %v1695 = vsel %vm1256, %v1383, %v1567
        %v1696 = vsel %vm1256, %v1384, %v1568
        %vm1697 = vcmask 31744
        %1698 = vst.msk [vmem:[#allocation2] sm:$0xff] %vm1697, 0.0
        %1699 = vst.msk [vmem:[#allocation2 + $0x8] sm:$0xff] %vm1697, 0.0
        %vm1700 = vcmask 25600
        %1701 = vst.msk [vmem:[#allocation2 + $0x10] sm:$0x3] %vm1700, 0.0
        %1702 = vst.msk [vmem:[#allocation2 + $0x18] sm:$0xff] %vm1697, 0.0
        %1703 = vst.msk [vmem:[#allocation2 + $0x20] sm:$0xff] %vm1697, 0.0
        %1704 = vst.msk [vmem:[#allocation2 + $0x28] sm:$0x3] %vm1700, 0.0
        %1705 = vst.msk [vmem:[#allocation2 + $0x30] sm:$0xff] %vm1697, 0.0
        %1706 = vst.msk [vmem:[#allocation2 + $0x38] sm:$0xff] %vm1697, 0.0
        %1707 = vst.msk [vmem:[#allocation2 + $0x40] sm:$0x3] %vm1700, 0.0
        %1708 = vst.msk [vmem:[#allocation2 + $0x48] sm:$0xff] %vm1697, 0.0
        %1709 = vst.msk [vmem:[#allocation2 + $0x50] sm:$0xff] %vm1697, 0.0
        %1710 = vst.msk [vmem:[#allocation2 + $0x58] sm:$0x3] %vm1700, 0.0
        %1711 = vst.msk [vmem:[#allocation2 + $0x60] sm:$0xff] %vm1697, 0.0
        %1712 = vst.msk [vmem:[#allocation2 + $0x68] sm:$0xff] %vm1697, 0.0
        %1713 = vst.msk [vmem:[#allocation2 + $0x70] sm:$0x3] %vm1700, 0.0
        %1714 = vst.msk [vmem:[#allocation2 + $0x78] sm:$0xff] %vm1697, 0.0
        %1715 = vst.msk [vmem:[#allocation2 + $0x80] sm:$0xff] %vm1697, 0.0
        %1716 = vst.msk [vmem:[#allocation2 + $0x88] sm:$0x3] %vm1700, 0.0
        %1717 = vst.msk [vmem:[#allocation2 + $0x90] sm:$0xff] %vm1697, 0.0
        %1718 = vst.msk [vmem:[#allocation2 + $0x98] sm:$0xff] %vm1697, 0.0
        %1719 = vst.msk [vmem:[#allocation2 + $0xa0] sm:$0x3] %vm1700, 0.0
        %1720 = vst.msk [vmem:[#allocation2 + $0xa8] sm:$0xff] %vm1697, 0.0
        %1721 = vst.msk [vmem:[#allocation2 + $0xb0] sm:$0xff] %vm1697, 0.0
        %1722 = vst.msk [vmem:[#allocation2 + $0xb8] sm:$0x3] %vm1700, 0.0
        %1723 = vst.msk [vmem:[#allocation2 + $0xc0] sm:$0xff] %vm1697, 0.0
        %1724 = vst.msk [vmem:[#allocation2 + $0xc8] sm:$0xff] %vm1697, 0.0
        %1725 = vst.msk [vmem:[#allocation2 + $0xd0] sm:$0x3] %vm1700, 0.0
        %1726 = vst.msk [vmem:[#allocation2 + $0xd8] sm:$0xff] %vm1697, 0.0
        %1727 = vst.msk [vmem:[#allocation2 + $0xe0] sm:$0xff] %vm1697, 0.0
        %1728 = vst.msk [vmem:[#allocation2 + $0xe8] sm:$0x3] %vm1700, 0.0
        %1729 = vst.msk [vmem:[#allocation2 + $0xf0] sm:$0xff] %vm1697, 0.0
        %1730 = vst.msk [vmem:[#allocation2 + $0xf8] sm:$0xff] %vm1697, 0.0
        %1731 = vst.msk [vmem:[#allocation2 + $0x100] sm:$0x3] %vm1700, 0.0
        %1732 = vst.msk [vmem:[#allocation2 + $0x108] sm:$0xff] %vm1697, 0.0
        %1733 = vst.msk [vmem:[#allocation2 + $0x110] sm:$0xff] %vm1697, 0.0
        %1734 = vst.msk [vmem:[#allocation2 + $0x118] sm:$0x3] %vm1700, 0.0
        %1735 = vst.msk [vmem:[#allocation2 + $0x120] sm:$0xff] %vm1697, 0.0
        %1736 = vst.msk [vmem:[#allocation2 + $0x128] sm:$0xff] %vm1697, 0.0
        %1737 = vst.msk [vmem:[#allocation2 + $0x130] sm:$0x3] %vm1700, 0.0
        %1738 = vst.msk [vmem:[#allocation2 + $0x138] sm:$0xff] %vm1697, 0.0
        %1739 = vst.msk [vmem:[#allocation2 + $0x140] sm:$0xff] %vm1697, 0.0
        %1740 = vst.msk [vmem:[#allocation2 + $0x148] sm:$0x3] %vm1700, 0.0
        %1741 = vst.msk [vmem:[#allocation2 + $0x150] sm:$0xff] %vm1697, 0.0
        %1742 = vst.msk [vmem:[#allocation2 + $0x158] sm:$0xff] %vm1697, 0.0
        %1743 = vst.msk [vmem:[#allocation2 + $0x160] sm:$0x3] %vm1700, 0.0
        %1744 = vst.msk [vmem:[#allocation2 + $0x168] sm:$0xff] %vm1697, 0.0
        %1745 = vst.msk [vmem:[#allocation2 + $0x170] sm:$0xff] %vm1697, 0.0
        %1746 = vst.msk [vmem:[#allocation2 + $0x178] sm:$0x3] %vm1700, 0.0
        %1747 = vst.msk [vmem:[#allocation2 + $0x180] sm:$0xff] %vm1697, 0.0
        %1748 = vst.msk [vmem:[#allocation2 + $0x188] sm:$0xff] %vm1697, 0.0
        %1749 = vst.msk [vmem:[#allocation2 + $0x190] sm:$0x3] %vm1700, 0.0
        %1750 = vst.msk [vmem:[#allocation2 + $0x198] sm:$0xff] %vm1697, 0.0
        %1751 = vst.msk [vmem:[#allocation2 + $0x1a0] sm:$0xff] %vm1697, 0.0
        %1752 = vst.msk [vmem:[#allocation2 + $0x1a8] sm:$0x3] %vm1700, 0.0
        %v1753 = vld [vmem:[%s777] sm:$0x1]
        %v1755 = vperm.slane %v1753, 0
        %v1757 = vrot.slane %v1755, 2
        %v1758 = vrot.slane %v1755, 4
        %v1759 = vrot.slane %v1755, 6
        %v1763 = vmul.f32 %v1257, %v1755
        %v1764 = vmul.f32 %v1258, %v1757
        %v1765 = vmul.f32 %v1259, %v1758
        %v1766 = vmul.f32 %v1260, %v1759
        %v1767 = vmul.f32 %v1261, %v1755
        %v1768 = vmul.f32 %v1262, %v1757
        %v1769 = vmul.f32 %v1263, %v1758
        %v1770 = vmul.f32 %v1264, %v1759
        %v1771 = vmul.f32 %v1633, %v1755
        %v1772 = vmul.f32 %v1634, %v1757
        %v1773 = vmul.f32 %v1635, %v1758
        %v1774 = vmul.f32 %v1636, %v1759
        %v1775 = vmul.f32 %v1637, %v1755
        %v1776 = vmul.f32 %v1638, %v1757
        %v1777 = vmul.f32 %v1639, %v1758
        %v1778 = vmul.f32 %v1640, %v1759
        %v1779 = vmul.f32 %v1265, %v1755
        %v1780 = vmul.f32 %v1266, %v1757
        %v1781 = vmul.f32 %v1267, %v1758
        %v1782 = vmul.f32 %v1268, %v1759
        %v1783 = vmul.f32 %v1269, %v1755
        %v1784 = vmul.f32 %v1270, %v1757
        %v1785 = vmul.f32 %v1271, %v1758
        %v1786 = vmul.f32 %v1272, %v1759
        %v1787 = vmul.f32 %v1641, %v1755
        %v1788 = vmul.f32 %v1642, %v1757
        %v1789 = vmul.f32 %v1643, %v1758
        %v1790 = vmul.f32 %v1644, %v1759
        %v1791 = vmul.f32 %v1645, %v1755
        %v1792 = vmul.f32 %v1646, %v1757
        %v1793 = vmul.f32 %v1647, %v1758
        %v1794 = vmul.f32 %v1648, %v1759
        %v1795 = vmul.f32 %v1273, %v1755
        %v1796 = vmul.f32 %v1274, %v1757
        %v1797 = vmul.f32 %v1275, %v1758
        %v1798 = vmul.f32 %v1276, %v1759
        %v1799 = vmul.f32 %v1277, %v1755
        %v1800 = vmul.f32 %v1278, %v1757
        %v1801 = vmul.f32 %v1279, %v1758
        %v1802 = vmul.f32 %v1280, %v1759
        %v1803 = vmul.f32 %v1649, %v1755
        %v1804 = vmul.f32 %v1650, %v1757
        %v1805 = vmul.f32 %v1651, %v1758
        %v1806 = vmul.f32 %v1652, %v1759
        %v1807 = vmul.f32 %v1653, %v1755
        %v1808 = vmul.f32 %v1654, %v1757
        %v1809 = vmul.f32 %v1655, %v1758
        %v1810 = vmul.f32 %v1656, %v1759
        %v1811 = vmul.f32 %v1281, %v1755
        %v1812 = vmul.f32 %v1282, %v1757
        %v1813 = vmul.f32 %v1283, %v1758
        %v1814 = vmul.f32 %v1284, %v1759
        %v1815 = vmul.f32 %v1285, %v1755
        %v1816 = vmul.f32 %v1286, %v1757
        %v1817 = vmul.f32 %v1287, %v1758
        %v1818 = vmul.f32 %v1288, %v1759
        %v1819 = vmul.f32 %v1657, %v1755
        %v1820 = vmul.f32 %v1658, %v1757
        %v1821 = vmul.f32 %v1659, %v1758
        %v1822 = vmul.f32 %v1660, %v1759
        %v1823 = vmul.f32 %v1661, %v1755
        %v1824 = vmul.f32 %v1662, %v1757
        %v1825 = vmul.f32 %v1663, %v1758
        %v1826 = vmul.f32 %v1664, %v1759
        %v1827 = vmul.f32 %v1289, %v1755
        %v1828 = vmul.f32 %v1290, %v1757
        %v1829 = vmul.f32 %v1291, %v1758
        %v1830 = vmul.f32 %v1292, %v1759
        %v1831 = vmul.f32 %v1293, %v1755
        %v1832 = vmul.f32 %v1294, %v1757
        %v1833 = vmul.f32 %v1295, %v1758
        %v1834 = vmul.f32 %v1296, %v1759
        %v1835 = vmul.f32 %v1665, %v1755
        %v1836 = vmul.f32 %v1666, %v1757
        %v1837 = vmul.f32 %v1667, %v1758
        %v1838 = vmul.f32 %v1668, %v1759
        %v1839 = vmul.f32 %v1669, %v1755
        %v1840 = vmul.f32 %v1670, %v1757
        %v1841 = vmul.f32 %v1671, %v1758
        %v1842 = vmul.f32 %v1672, %v1759
        %v1843 = vmul.f32 %v1297, %v1755
        %v1844 = vmul.f32 %v1298, %v1757
        %v1845 = vmul.f32 %v1299, %v1758
        %v1846 = vmul.f32 %v1300, %v1759
        %v1847 = vmul.f32 %v1301, %v1755
        %v1848 = vmul.f32 %v1302, %v1757
        %v1849 = vmul.f32 %v1303, %v1758
        %v1850 = vmul.f32 %v1304, %v1759
        %v1851 = vmul.f32 %v1673, %v1755
        %v1852 = vmul.f32 %v1674, %v1757
        %v1853 = vmul.f32 %v1675, %v1758
        %v1854 = vmul.f32 %v1676, %v1759
        %v1855 = vmul.f32 %v1677, %v1755
        %v1856 = vmul.f32 %v1678, %v1757
        %v1857 = vmul.f32 %v1679, %v1758
        %v1858 = vmul.f32 %v1680, %v1759
        %v1859 = vmul.f32 %v1305, %v1755
        %v1860 = vmul.f32 %v1306, %v1757
        %v1861 = vmul.f32 %v1307, %v1758
        %v1862 = vmul.f32 %v1308, %v1759
        %v1863 = vmul.f32 %v1309, %v1755
        %v1864 = vmul.f32 %v1310, %v1757
        %v1865 = vmul.f32 %v1311, %v1758
        %v1866 = vmul.f32 %v1312, %v1759
        %v1867 = vmul.f32 %v1681, %v1755
        %v1868 = vmul.f32 %v1682, %v1757
        %v1869 = vmul.f32 %v1683, %v1758
        %v1870 = vmul.f32 %v1684, %v1759
        %v1871 = vmul.f32 %v1685, %v1755
        %v1872 = vmul.f32 %v1686, %v1757
        %v1873 = vmul.f32 %v1687, %v1758
        %v1874 = vmul.f32 %v1688, %v1759
        %v1875 = vmul.f32 %v1313, %v1755
        %v1876 = vmul.f32 %v1314, %v1757
        %v1877 = vmul.f32 %v1315, %v1758
        %v1878 = vmul.f32 %v1316, %v1759
        %v1879 = vmul.f32 %v1317, %v1755
        %v1880 = vmul.f32 %v1318, %v1757
        %v1881 = vmul.f32 %v1319, %v1758
        %v1882 = vmul.f32 %v1320, %v1759
        %v1883 = vmul.f32 %v1689, %v1755
        %v1884 = vmul.f32 %v1690, %v1757
        %v1885 = vmul.f32 %v1691, %v1758
        %v1886 = vmul.f32 %v1692, %v1759
        %v1887 = vmul.f32 %v1693, %v1755
        %v1888 = vmul.f32 %v1694, %v1757
        %v1889 = vmul.f32 %v1695, %v1758
        %v1890 = vmul.f32 %v1696, %v1759
        %2019 = vst [vmem:[#allocation1] ss:$4 sm:$0xff] %v1763
        %s2020 = scalar_lea.vmem [#allocation1], 1
        %2021 = vst [vmem:[%s2020] ss:$4 sm:$0xff] %v1764
        %s2022 = scalar_lea.vmem [#allocation1], 2
        %2023 = vst [vmem:[%s2022] ss:$4 sm:$0xff] %v1765
        %s2024 = scalar_lea.vmem [#allocation1], 3
        %2025 = vst [vmem:[%s2024] ss:$4 sm:$0xff] %v1766
        %s2026 = scalar_lea.vmem [#allocation1], 32
        %2027 = vst [vmem:[%s2026] ss:$4 sm:$0xff] %v1767
        %s2028 = scalar_lea.vmem [#allocation1], 33
        %2029 = vst [vmem:[%s2028] ss:$4 sm:$0xff] %v1768
        %s2030 = scalar_lea.vmem [#allocation1], 34
        %2031 = vst [vmem:[%s2030] ss:$4 sm:$0xff] %v1769
        %s2032 = scalar_lea.vmem [#allocation1], 35
        %2033 = vst [vmem:[%s2032] ss:$4 sm:$0xff] %v1770
        %v2034 = vld.sshfl [vmem:[#allocation1] sm:$0xff pattern:$0x73625140]
        %v2035 = vld.sshfl [vmem:[#allocation1 + $0x20] sm:$0xff pattern:$0x73625140]
        %2036 = vst [vmem:[#allocation1] ss:$4 sm:$0xff] %v1771
        %2037 = vst [vmem:[%s2020] ss:$4 sm:$0xff] %v1772
        %2038 = vst [vmem:[%s2022] ss:$4 sm:$0xff] %v1773
        %2039 = vst [vmem:[%s2024] ss:$4 sm:$0xff] %v1774
        %2040 = vst [vmem:[%s2026] ss:$4 sm:$0xff] %v1775
        %2041 = vst [vmem:[%s2028] ss:$4 sm:$0xff] %v1776
        %2042 = vst [vmem:[%s2030] ss:$4 sm:$0xff] %v1777
        %2043 = vst [vmem:[%s2032] ss:$4 sm:$0xff] %v1778
        %v2044 = vld.sshfl [vmem:[#allocation1] sm:$0xff pattern:$0x73625140]
        %v2045 = vld.sshfl [vmem:[#allocation1 + $0x20] sm:$0xff pattern:$0x73625140]
        %2046 = vst [vmem:[#allocation1] ss:$4 sm:$0xff] %v1779
        %2047 = vst [vmem:[%s2020] ss:$4 sm:$0xff] %v1780
        %2048 = vst [vmem:[%s2022] ss:$4 sm:$0xff] %v1781
        %2049 = vst [vmem:[%s2024] ss:$4 sm:$0xff] %v1782
        %2050 = vst [vmem:[%s2026] ss:$4 sm:$0xff] %v1783
        %2051 = vst [vmem:[%s2028] ss:$4 sm:$0xff] %v1784
        %2052 = vst [vmem:[%s2030] ss:$4 sm:$0xff] %v1785
        %2053 = vst [vmem:[%s2032] ss:$4 sm:$0xff] %v1786
        %v2054 = vld.sshfl [vmem:[#allocation1] sm:$0xff pattern:$0x73625140]
        %v2055 = vld.sshfl [vmem:[#allocation1 + $0x20] sm:$0xff pattern:$0x73625140]
        %2056 = vst [vmem:[#allocation1] ss:$4 sm:$0xff] %v1787
        %2057 = vst [vmem:[%s2020] ss:$4 sm:$0xff] %v1788
        %2058 = vst [vmem:[%s2022] ss:$4 sm:$0xff] %v1789
        %2059 = vst [vmem:[%s2024] ss:$4 sm:$0xff] %v1790
        %2060 = vst [vmem:[%s2026] ss:$4 sm:$0xff] %v1791
        %2061 = vst [vmem:[%s2028] ss:$4 sm:$0xff] %v1792
        %2062 = vst [vmem:[%s2030] ss:$4 sm:$0xff] %v1793
        %2063 = vst [vmem:[%s2032] ss:$4 sm:$0xff] %v1794
        %v2064 = vld.sshfl [vmem:[#allocation1] sm:$0xff pattern:$0x73625140]
        %v2065 = vld.sshfl [vmem:[#allocation1 + $0x20] sm:$0xff pattern:$0x73625140]
        %2066 = vst [vmem:[#allocation1] ss:$4 sm:$0xff] %v1795
        %2067 = vst [vmem:[%s2020] ss:$4 sm:$0xff] %v1796
        %2068 = vst [vmem:[%s2022] ss:$4 sm:$0xff] %v1797
        %2069 = vst [vmem:[%s2024] ss:$4 sm:$0xff] %v1798
        %2070 = vst [vmem:[%s2026] ss:$4 sm:$0xff] %v1799
        %2071 = vst [vmem:[%s2028] ss:$4 sm:$0xff] %v1800
        %2072 = vst [vmem:[%s2030] ss:$4 sm:$0xff] %v1801
        %2073 = vst [vmem:[%s2032] ss:$4 sm:$0xff] %v1802
        %v2074 = vld.sshfl [vmem:[#allocation1] sm:$0xff pattern:$0x73625140]
        %v2075 = vld.sshfl [vmem:[#allocation1 + $0x20] sm:$0xff pattern:$0x73625140]
        %2076 = vst [vmem:[#allocation1] ss:$4 sm:$0xff] %v1803
        %2077 = vst [vmem:[%s2020] ss:$4 sm:$0xff] %v1804
        %2078 = vst [vmem:[%s2022] ss:$4 sm:$0xff] %v1805
        %2079 = vst [vmem:[%s2024] ss:$4 sm:$0xff] %v1806
        %2080 = vst [vmem:[%s2026] ss:$4 sm:$0xff] %v1807
        %2081 = vst [vmem:[%s2028] ss:$4 sm:$0xff] %v1808
        %2082 = vst [vmem:[%s2030] ss:$4 sm:$0xff] %v1809
        %2083 = vst [vmem:[%s2032] ss:$4 sm:$0xff] %v1810
        %v2084 = vld.sshfl [vmem:[#allocation1] sm:$0xff pattern:$0x73625140]
        %v2085 = vld.sshfl [vmem:[#allocation1 + $0x20] sm:$0xff pattern:$0x73625140]
        %2086 = vst [vmem:[#allocation1] ss:$4 sm:$0xff] %v1811
        %2087 = vst [vmem:[%s2020] ss:$4 sm:$0xff] %v1812
        %2088 = vst [vmem:[%s2022] ss:$4 sm:$0xff] %v1813
        %2089 = vst [vmem:[%s2024] ss:$4 sm:$0xff] %v1814
        %2090 = vst [vmem:[%s2026] ss:$4 sm:$0xff] %v1815
        %2091 = vst [vmem:[%s2028] ss:$4 sm:$0xff] %v1816
        %2092 = vst [vmem:[%s2030] ss:$4 sm:$0xff] %v1817
        %2093 = vst [vmem:[%s2032] ss:$4 sm:$0xff] %v1818
        %v2094 = vld.sshfl [vmem:[#allocation1] sm:$0xff pattern:$0x73625140]
        %v2095 = vld.sshfl [vmem:[#allocation1 + $0x20] sm:$0xff pattern:$0x73625140]
        %2096 = vst [vmem:[#allocation1] ss:$4 sm:$0xff] %v1819
        %2097 = vst [vmem:[%s2020] ss:$4 sm:$0xff] %v1820
        %2098 = vst [vmem:[%s2022] ss:$4 sm:$0xff] %v1821
        %2099 = vst [vmem:[%s2024] ss:$4 sm:$0xff] %v1822
        %2100 = vst [vmem:[%s2026] ss:$4 sm:$0xff] %v1823
        %2101 = vst [vmem:[%s2028] ss:$4 sm:$0xff] %v1824
        %2102 = vst [vmem:[%s2030] ss:$4 sm:$0xff] %v1825
        %2103 = vst [vmem:[%s2032] ss:$4 sm:$0xff] %v1826
        %v2104 = vld.sshfl [vmem:[#allocation1] sm:$0xff pattern:$0x73625140]
        %v2105 = vld.sshfl [vmem:[#allocation1 + $0x20] sm:$0xff pattern:$0x73625140]
        %2106 = vst [vmem:[#allocation1] ss:$4 sm:$0xff] %v1827
        %2107 = vst [vmem:[%s2020] ss:$4 sm:$0xff] %v1828
        %2108 = vst [vmem:[%s2022] ss:$4 sm:$0xff] %v1829
        %2109 = vst [vmem:[%s2024] ss:$4 sm:$0xff] %v1830
        %2110 = vst [vmem:[%s2026] ss:$4 sm:$0xff] %v1831
        %2111 = vst [vmem:[%s2028] ss:$4 sm:$0xff] %v1832
        %2112 = vst [vmem:[%s2030] ss:$4 sm:$0xff] %v1833
        %2113 = vst [vmem:[%s2032] ss:$4 sm:$0xff] %v1834
        %v2114 = vld.sshfl [vmem:[#allocation1] sm:$0xff pattern:$0x73625140]
        %v2115 = vld.sshfl [vmem:[#allocation1 + $0x20] sm:$0xff pattern:$0x73625140]
        %2116 = vst [vmem:[#allocation1] ss:$4 sm:$0xff] %v1835
        %2117 = vst [vmem:[%s2020] ss:$4 sm:$0xff] %v1836
        %2118 = vst [vmem:[%s2022] ss:$4 sm:$0xff] %v1837
        %2119 = vst [vmem:[%s2024] ss:$4 sm:$0xff] %v1838
        %2120 = vst [vmem:[%s2026] ss:$4 sm:$0xff] %v1839
        %2121 = vst [vmem:[%s2028] ss:$4 sm:$0xff] %v1840
        %2122 = vst [vmem:[%s2030] ss:$4 sm:$0xff] %v1841
        %2123 = vst [vmem:[%s2032] ss:$4 sm:$0xff] %v1842
        %v2124 = vld.sshfl [vmem:[#allocation1] sm:$0xff pattern:$0x73625140]
        %v2125 = vld.sshfl [vmem:[#allocation1 + $0x20] sm:$0xff pattern:$0x73625140]
        %2126 = vst [vmem:[#allocation1] ss:$4 sm:$0xff] %v1843
        %2127 = vst [vmem:[%s2020] ss:$4 sm:$0xff] %v1844
        %2128 = vst [vmem:[%s2022] ss:$4 sm:$0xff] %v1845
        %2129 = vst [vmem:[%s2024] ss:$4 sm:$0xff] %v1846
        %2130 = vst [vmem:[%s2026] ss:$4 sm:$0xff] %v1847
        %2131 = vst [vmem:[%s2028] ss:$4 sm:$0xff] %v1848
        %2132 = vst [vmem:[%s2030] ss:$4 sm:$0xff] %v1849
        %2133 = vst [vmem:[%s2032] ss:$4 sm:$0xff] %v1850
        %v2134 = vld.sshfl [vmem:[#allocation1] sm:$0xff pattern:$0x73625140]
        %v2135 = vld.sshfl [vmem:[#allocation1 + $0x20] sm:$0xff pattern:$0x73625140]
        %2136 = vst [vmem:[#allocation1] ss:$4 sm:$0xff] %v1851
        %2137 = vst [vmem:[%s2020] ss:$4 sm:$0xff] %v1852
        %2138 = vst [vmem:[%s2022] ss:$4 sm:$0xff] %v1853
        %2139 = vst [vmem:[%s2024] ss:$4 sm:$0xff] %v1854
        %2140 = vst [vmem:[%s2026] ss:$4 sm:$0xff] %v1855
        %2141 = vst [vmem:[%s2028] ss:$4 sm:$0xff] %v1856
        %2142 = vst [vmem:[%s2030] ss:$4 sm:$0xff] %v1857
        %2143 = vst [vmem:[%s2032] ss:$4 sm:$0xff] %v1858
        %v2144 = vld.sshfl [vmem:[#allocation1] sm:$0xff pattern:$0x73625140]
        %v2145 = vld.sshfl [vmem:[#allocation1 + $0x20] sm:$0xff pattern:$0x73625140]
        %2146 = vst [vmem:[#allocation1] ss:$4 sm:$0xff] %v1859
        %2147 = vst [vmem:[%s2020] ss:$4 sm:$0xff] %v1860
        %2148 = vst [vmem:[%s2022] ss:$4 sm:$0xff] %v1861
        %2149 = vst [vmem:[%s2024] ss:$4 sm:$0xff] %v1862
        %2150 = vst [vmem:[%s2026] ss:$4 sm:$0xff] %v1863
        %2151 = vst [vmem:[%s2028] ss:$4 sm:$0xff] %v1864
        %2152 = vst [vmem:[%s2030] ss:$4 sm:$0xff] %v1865
        %2153 = vst [vmem:[%s2032] ss:$4 sm:$0xff] %v1866
        %v2154 = vld.sshfl [vmem:[#allocation1] sm:$0xff pattern:$0x73625140]
        %v2155 = vld.sshfl [vmem:[#allocation1 + $0x20] sm:$0xff pattern:$0x73625140]
        %2156 = vst [vmem:[#allocation1] ss:$4 sm:$0xff] %v1867
        %2157 = vst [vmem:[%s2020] ss:$4 sm:$0xff] %v1868
        %2158 = vst [vmem:[%s2022] ss:$4 sm:$0xff] %v1869
        %2159 = vst [vmem:[%s2024] ss:$4 sm:$0xff] %v1870
        %2160 = vst [vmem:[%s2026] ss:$4 sm:$0xff] %v1871
        %2161 = vst [vmem:[%s2028] ss:$4 sm:$0xff] %v1872
        %2162 = vst [vmem:[%s2030] ss:$4 sm:$0xff] %v1873
        %2163 = vst [vmem:[%s2032] ss:$4 sm:$0xff] %v1874
        %v2164 = vld.sshfl [vmem:[#allocation1] sm:$0xff pattern:$0x73625140]
        %v2165 = vld.sshfl [vmem:[#allocation1 + $0x20] sm:$0xff pattern:$0x73625140]
        %2166 = vst [vmem:[#allocation1] ss:$4 sm:$0xff] %v1875
        %2167 = vst [vmem:[%s2020] ss:$4 sm:$0xff] %v1876
        %2168 = vst [vmem:[%s2022] ss:$4 sm:$0xff] %v1877
        %2169 = vst [vmem:[%s2024] ss:$4 sm:$0xff] %v1878
        %2170 = vst [vmem:[%s2026] ss:$4 sm:$0xff] %v1879
        %2171 = vst [vmem:[%s2028] ss:$4 sm:$0xff] %v1880
        %2172 = vst [vmem:[%s2030] ss:$4 sm:$0xff] %v1881
        %2173 = vst [vmem:[%s2032] ss:$4 sm:$0xff] %v1882
        %v2174 = vld.sshfl [vmem:[#allocation1] sm:$0xff pattern:$0x73625140]
        %v2175 = vld.sshfl [vmem:[#allocation1 + $0x20] sm:$0xff pattern:$0x73625140]
        %2176 = vst [vmem:[#allocation1] ss:$4 sm:$0xff] %v1883
        %2177 = vst [vmem:[%s2020] ss:$4 sm:$0xff] %v1884
        %2178 = vst [vmem:[%s2022] ss:$4 sm:$0xff] %v1885
        %2179 = vst [vmem:[%s2024] ss:$4 sm:$0xff] %v1886
        %2180 = vst [vmem:[%s2026] ss:$4 sm:$0xff] %v1887
        %2181 = vst [vmem:[%s2028] ss:$4 sm:$0xff] %v1888
        %2182 = vst [vmem:[%s2030] ss:$4 sm:$0xff] %v1889
        %2183 = vst [vmem:[%s2032] ss:$4 sm:$0xff] %v1890
        %v2184 = vld.sshfl [vmem:[#allocation1] sm:$0xff pattern:$0x73625140]
        %v2185 = vld.sshfl [vmem:[#allocation1 + $0x20] sm:$0xff pattern:$0x73625140]
        %s2218 = scalar_lea.vmem [#allocation2], 24
        %2219 = vst.msk [vmem:[%s2218 + $0x1] sm:$0xff] %vm1697, %v2034
        %2220 = vst.msk [vmem:[%s2218 + $0x9] sm:$0xff] %vm1697, %v2035
        %2221 = vst.msk [vmem:[%s2218 + $0x19] sm:$0xff] %vm1697, %v2044
        %2222 = vst.msk [vmem:[%s2218 + $0x21] sm:$0xff] %vm1697, %v2045
        %2223 = vst.msk [vmem:[%s2218 + $0x31] sm:$0xff] %vm1697, %v2054
        %2224 = vst.msk [vmem:[%s2218 + $0x39] sm:$0xff] %vm1697, %v2055
        %2225 = vst.msk [vmem:[%s2218 + $0x49] sm:$0xff] %vm1697, %v2064
        %2226 = vst.msk [vmem:[%s2218 + $0x51] sm:$0xff] %vm1697, %v2065
        %2227 = vst.msk [vmem:[%s2218 + $0x61] sm:$0xff] %vm1697, %v2074
        %2228 = vst.msk [vmem:[%s2218 + $0x69] sm:$0xff] %vm1697, %v2075
        %2229 = vst.msk [vmem:[%s2218 + $0x79] sm:$0xff] %vm1697, %v2084
        %2230 = vst.msk [vmem:[%s2218 + $0x81] sm:$0xff] %vm1697, %v2085
        %2231 = vst.msk [vmem:[%s2218 + $0x91] sm:$0xff] %vm1697, %v2094
        %2232 = vst.msk [vmem:[%s2218 + $0x99] sm:$0xff] %vm1697, %v2095
        %2233 = vst.msk [vmem:[%s2218 + $0xa9] sm:$0xff] %vm1697, %v2104
        %2234 = vst.msk [vmem:[%s2218 + $0xb1] sm:$0xff] %vm1697, %v2105
        %2235 = vst.msk [vmem:[%s2218 + $0xc1] sm:$0xff] %vm1697, %v2114
        %2236 = vst.msk [vmem:[%s2218 + $0xc9] sm:$0xff] %vm1697, %v2115
        %2237 = vst.msk [vmem:[%s2218 + $0xd9] sm:$0xff] %vm1697, %v2124
        %2238 = vst.msk [vmem:[%s2218 + $0xe1] sm:$0xff] %vm1697, %v2125
        %2239 = vst.msk [vmem:[%s2218 + $0xf1] sm:$0xff] %vm1697, %v2134
        %2240 = vst.msk [vmem:[%s2218 + $0xf9] sm:$0xff] %vm1697, %v2135
        %2241 = vst.msk [vmem:[%s2218 + $0x109] sm:$0xff] %vm1697, %v2144
        %2242 = vst.msk [vmem:[%s2218 + $0x111] sm:$0xff] %vm1697, %v2145
        %2243 = vst.msk [vmem:[%s2218 + $0x121] sm:$0xff] %vm1697, %v2154
        %2244 = vst.msk [vmem:[%s2218 + $0x129] sm:$0xff] %vm1697, %v2155
        %2245 = vst.msk [vmem:[%s2218 + $0x139] sm:$0xff] %vm1697, %v2164
        %2246 = vst.msk [vmem:[%s2218 + $0x141] sm:$0xff] %vm1697, %v2165
        %2247 = vst.msk [vmem:[%s2218 + $0x151] sm:$0xff] %vm1697, %v2174
        %2248 = vst.msk [vmem:[%s2218 + $0x159] sm:$0xff] %vm1697, %v2175
        %2249 = vst.msk [vmem:[%s2218 + $0x169] sm:$0xff] %vm1697, %v2184
        %2250 = vst.msk [vmem:[%s2218 + $0x171] sm:$0xff] %vm1697, %v2185
        %v2251 = vld [vmem:[#allocation2] sm:$0xff]
        %v2252 = vld [vmem:[#allocation2 + $0x8] sm:$0xff]
        %v2253 = vld [vmem:[#allocation2 + $0x18] sm:$0xff]
        %v2254 = vld [vmem:[#allocation2 + $0x20] sm:$0xff]
        %v2255 = vld [vmem:[#allocation2 + $0x30] sm:$0xff]
        %v2256 = vld [vmem:[#allocation2 + $0x38] sm:$0xff]
        %v2257 = vld [vmem:[#allocation2 + $0x48] sm:$0xff]
        %v2258 = vld [vmem:[#allocation2 + $0x50] sm:$0xff]
        %v2259 = vld [vmem:[#allocation2 + $0x60] sm:$0xff]
        %v2260 = vld [vmem:[#allocation2 + $0x68] sm:$0xff]
        %v2261 = vld [vmem:[#allocation2 + $0x78] sm:$0xff]
        %v2262 = vld [vmem:[#allocation2 + $0x80] sm:$0xff]
        %v2263 = vld [vmem:[#allocation2 + $0x90] sm:$0xff]
        %v2264 = vld [vmem:[#allocation2 + $0x98] sm:$0xff]
        %v2265 = vld [vmem:[#allocation2 + $0xa8] sm:$0xff]
        %v2266 = vld [vmem:[#allocation2 + $0xb0] sm:$0xff]
        %v2267 = vld [vmem:[#allocation2 + $0xc0] sm:$0xff]
        %v2268 = vld [vmem:[#allocation2 + $0xc8] sm:$0xff]
        %v2269 = vld [vmem:[#allocation2 + $0xd8] sm:$0xff]
        %v2270 = vld [vmem:[#allocation2 + $0xe0] sm:$0xff]
        %v2271 = vld [vmem:[#allocation2 + $0xf0] sm:$0xff]
        %v2272 = vld [vmem:[#allocation2 + $0xf8] sm:$0xff]
        %v2273 = vld [vmem:[#allocation2 + $0x108] sm:$0xff]
        %v2274 = vld [vmem:[#allocation2 + $0x110] sm:$0xff]
        %v2275 = vld [vmem:[#allocation2 + $0x120] sm:$0xff]
        %v2276 = vld [vmem:[#allocation2 + $0x128] sm:$0xff]
        %v2277 = vld [vmem:[#allocation2 + $0x138] sm:$0xff]
        %v2278 = vld [vmem:[#allocation2 + $0x140] sm:$0xff]
        %v2279 = vld [vmem:[#allocation2 + $0x150] sm:$0xff]
        %v2280 = vld [vmem:[#allocation2 + $0x158] sm:$0xff]
        %v2281 = vld [vmem:[#allocation2 + $0x168] sm:$0xff]
        %v2282 = vld [vmem:[#allocation2 + $0x170] sm:$0xff]
        %v2283 = vld [vmem:[#allocation2 + $0x1] sm:$0xff]
        %v2284 = vld [vmem:[#allocation2 + $0x9] sm:$0xff]
        %v2285 = vld [vmem:[#allocation2 + $0x19] sm:$0xff]
        %v2286 = vld [vmem:[#allocation2 + $0x21] sm:$0xff]
        %v2287 = vld [vmem:[#allocation2 + $0x31] sm:$0xff]
        %v2288 = vld [vmem:[#allocation2 + $0x39] sm:$0xff]
        %v2289 = vld [vmem:[#allocation2 + $0x49] sm:$0xff]
        %v2290 = vld [vmem:[#allocation2 + $0x51] sm:$0xff]
        %v2291 = vld [vmem:[#allocation2 + $0x61] sm:$0xff]
        %v2292 = vld [vmem:[#allocation2 + $0x69] sm:$0xff]
        %v2293 = vld [vmem:[#allocation2 + $0x79] sm:$0xff]
        %v2294 = vld [vmem:[#allocation2 + $0x81] sm:$0xff]
        %v2295 = vld [vmem:[#allocation2 + $0x91] sm:$0xff]
        %v2296 = vld [vmem:[#allocation2 + $0x99] sm:$0xff]
        %v2297 = vld [vmem:[#allocation2 + $0xa9] sm:$0xff]
        %v2298 = vld [vmem:[#allocation2 + $0xb1] sm:$0xff]
        %v2299 = vld [vmem:[#allocation2 + $0xc1] sm:$0xff]
        %v2300 = vld [vmem:[#allocation2 + $0xc9] sm:$0xff]
        %v2301 = vld [vmem:[#allocation2 + $0xd9] sm:$0xff]
        %v2302 = vld [vmem:[#allocation2 + $0xe1] sm:$0xff]
        %v2303 = vld [vmem:[#allocation2 + $0xf1] sm:$0xff]
        %v2304 = vld [vmem:[#allocation2 + $0xf9] sm:$0xff]
        %v2305 = vld [vmem:[#allocation2 + $0x109] sm:$0xff]
        %v2306 = vld [vmem:[#allocation2 + $0x111] sm:$0xff]
        %v2307 = vld [vmem:[#allocation2 + $0x121] sm:$0xff]
        %v2308 = vld [vmem:[#allocation2 + $0x129] sm:$0xff]
        %v2309 = vld [vmem:[#allocation2 + $0x139] sm:$0xff]
        %v2310 = vld [vmem:[#allocation2 + $0x141] sm:$0xff]
        %v2311 = vld [vmem:[#allocation2 + $0x151] sm:$0xff]
        %v2312 = vld [vmem:[#allocation2 + $0x159] sm:$0xff]
        %v2313 = vld [vmem:[#allocation2 + $0x169] sm:$0xff]
        %v2314 = vld [vmem:[#allocation2 + $0x171] sm:$0xff]
        %v2315 = vld [vmem:[#allocation2 + $0x2] sm:$0xff]
        %v2316 = vld [vmem:[#allocation2 + $0xa] sm:$0xff]
        %v2317 = vld [vmem:[#allocation2 + $0x1a] sm:$0xff]
        %v2318 = vld [vmem:[#allocation2 + $0x22] sm:$0xff]
        %v2319 = vld [vmem:[#allocation2 + $0x32] sm:$0xff]
        %v2320 = vld [vmem:[#allocation2 + $0x3a] sm:$0xff]
        %v2321 = vld [vmem:[#allocation2 + $0x4a] sm:$0xff]
        %v2322 = vld [vmem:[#allocation2 + $0x52] sm:$0xff]
        %v2323 = vld [vmem:[#allocation2 + $0x62] sm:$0xff]
        %v2324 = vld [vmem:[#allocation2 + $0x6a] sm:$0xff]
        %v2325 = vld [vmem:[#allocation2 + $0x7a] sm:$0xff]
        %v2326 = vld [vmem:[#allocation2 + $0x82] sm:$0xff]
        %v2327 = vld [vmem:[#allocation2 + $0x92] sm:$0xff]
        %v2328 = vld [vmem:[#allocation2 + $0x9a] sm:$0xff]
        %v2329 = vld [vmem:[#allocation2 + $0xaa] sm:$0xff]
        %v2330 = vld [vmem:[#allocation2 + $0xb2] sm:$0xff]
        %v2331 = vld [vmem:[#allocation2 + $0xc2] sm:$0xff]
        %v2332 = vld [vmem:[#allocation2 + $0xca] sm:$0xff]
        %v2333 = vld [vmem:[#allocation2 + $0xda] sm:$0xff]
        %v2334 = vld [vmem:[#allocation2 + $0xe2] sm:$0xff]
        %v2335 = vld [vmem:[#allocation2 + $0xf2] sm:$0xff]
        %v2336 = vld [vmem:[#allocation2 + $0xfa] sm:$0xff]
        %v2337 = vld [vmem:[#allocation2 + $0x10a] sm:$0xff]
        %v2338 = vld [vmem:[#allocation2 + $0x112] sm:$0xff]
        %v2339 = vld [vmem:[#allocation2 + $0x122] sm:$0xff]
        %v2340 = vld [vmem:[#allocation2 + $0x12a] sm:$0xff]
        %v2341 = vld [vmem:[#allocation2 + $0x13a] sm:$0xff]
        %v2342 = vld [vmem:[#allocation2 + $0x142] sm:$0xff]
        %v2343 = vld [vmem:[#allocation2 + $0x152] sm:$0xff]
        %v2344 = vld [vmem:[#allocation2 + $0x15a] sm:$0xff]
        %v2345 = vld [vmem:[#allocation2 + $0x16a] sm:$0xff]
        %v2346 = vld [vmem:[#allocation2 + $0x172] sm:$0xff]
        %v2347 = vld [vmem:[%s2218] sm:$0xff]
        %v2348 = vld [vmem:[%s2218 + $0x8] sm:$0xff]
        %v2349 = vld [vmem:[%s2218 + $0x18] sm:$0xff]
        %v2350 = vld [vmem:[%s2218 + $0x20] sm:$0xff]
        %v2351 = vld [vmem:[%s2218 + $0x30] sm:$0xff]
        %v2352 = vld [vmem:[%s2218 + $0x38] sm:$0xff]
        %v2353 = vld [vmem:[%s2218 + $0x48] sm:$0xff]
        %v2354 = vld [vmem:[%s2218 + $0x50] sm:$0xff]
        %v2355 = vld [vmem:[%s2218 + $0x60] sm:$0xff]
        %v2356 = vld [vmem:[%s2218 + $0x68] sm:$0xff]
        %v2357 = vld [vmem:[%s2218 + $0x78] sm:$0xff]
        %v2358 = vld [vmem:[%s2218 + $0x80] sm:$0xff]
        %v2359 = vld [vmem:[%s2218 + $0x90] sm:$0xff]
        %v2360 = vld [vmem:[%s2218 + $0x98] sm:$0xff]
        %v2361 = vld [vmem:[%s2218 + $0xa8] sm:$0xff]
        %v2362 = vld [vmem:[%s2218 + $0xb0] sm:$0xff]
        %v2363 = vld [vmem:[%s2218 + $0xc0] sm:$0xff]
        %v2364 = vld [vmem:[%s2218 + $0xc8] sm:$0xff]
        %v2365 = vld [vmem:[%s2218 + $0xd8] sm:$0xff]
        %v2366 = vld [vmem:[%s2218 + $0xe0] sm:$0xff]
        %v2367 = vld [vmem:[%s2218 + $0xf0] sm:$0xff]
        %v2368 = vld [vmem:[%s2218 + $0xf8] sm:$0xff]
        %v2369 = vld [vmem:[%s2218 + $0x108] sm:$0xff]
        %v2370 = vld [vmem:[%s2218 + $0x110] sm:$0xff]
        %v2371 = vld [vmem:[%s2218 + $0x120] sm:$0xff]
        %v2372 = vld [vmem:[%s2218 + $0x128] sm:$0xff]
        %v2373 = vld [vmem:[%s2218 + $0x138] sm:$0xff]
        %v2374 = vld [vmem:[%s2218 + $0x140] sm:$0xff]
        %v2375 = vld [vmem:[%s2218 + $0x150] sm:$0xff]
        %v2376 = vld [vmem:[%s2218 + $0x158] sm:$0xff]
        %v2377 = vld [vmem:[%s2218 + $0x168] sm:$0xff]
        %v2378 = vld [vmem:[%s2218 + $0x170] sm:$0xff]
        %v2379 = vld [vmem:[%s2218 + $0x1] sm:$0xff]
        %v2380 = vld [vmem:[%s2218 + $0x9] sm:$0xff]
        %v2381 = vld [vmem:[%s2218 + $0x19] sm:$0xff]
        %v2382 = vld [vmem:[%s2218 + $0x21] sm:$0xff]
        %v2383 = vld [vmem:[%s2218 + $0x31] sm:$0xff]
        %v2384 = vld [vmem:[%s2218 + $0x39] sm:$0xff]
        %v2385 = vld [vmem:[%s2218 + $0x49] sm:$0xff]
        %v2386 = vld [vmem:[%s2218 + $0x51] sm:$0xff]
        %v2387 = vld [vmem:[%s2218 + $0x61] sm:$0xff]
        %v2388 = vld [vmem:[%s2218 + $0x69] sm:$0xff]
        %v2389 = vld [vmem:[%s2218 + $0x79] sm:$0xff]
        %v2390 = vld [vmem:[%s2218 + $0x81] sm:$0xff]
        %v2391 = vld [vmem:[%s2218 + $0x91] sm:$0xff]
        %v2392 = vld [vmem:[%s2218 + $0x99] sm:$0xff]
        %v2393 = vld [vmem:[%s2218 + $0xa9] sm:$0xff]
        %v2394 = vld [vmem:[%s2218 + $0xb1] sm:$0xff]
        %v2395 = vld [vmem:[%s2218 + $0xc1] sm:$0xff]
        %v2396 = vld [vmem:[%s2218 + $0xc9] sm:$0xff]
        %v2397 = vld [vmem:[%s2218 + $0xd9] sm:$0xff]
        %v2398 = vld [vmem:[%s2218 + $0xe1] sm:$0xff]
        %v2399 = vld [vmem:[%s2218 + $0xf1] sm:$0xff]
        %v2400 = vld [vmem:[%s2218 + $0xf9] sm:$0xff]
        %v2401 = vld [vmem:[%s2218 + $0x109] sm:$0xff]
        %v2402 = vld [vmem:[%s2218 + $0x111] sm:$0xff]
        %v2403 = vld [vmem:[%s2218 + $0x121] sm:$0xff]
        %v2404 = vld [vmem:[%s2218 + $0x129] sm:$0xff]
        %v2405 = vld [vmem:[%s2218 + $0x139] sm:$0xff]
        %v2406 = vld [vmem:[%s2218 + $0x141] sm:$0xff]
        %v2407 = vld [vmem:[%s2218 + $0x151] sm:$0xff]
        %v2408 = vld [vmem:[%s2218 + $0x159] sm:$0xff]
        %v2409 = vld [vmem:[%s2218 + $0x169] sm:$0xff]
        %v2410 = vld [vmem:[%s2218 + $0x171] sm:$0xff]
        %v2411 = vld [vmem:[%s2218 + $0x2] sm:$0xff]
        %v2412 = vld [vmem:[%s2218 + $0xa] sm:$0xff]
        %v2413 = vld [vmem:[%s2218 + $0x1a] sm:$0xff]
        %v2414 = vld [vmem:[%s2218 + $0x22] sm:$0xff]
        %v2415 = vld [vmem:[%s2218 + $0x32] sm:$0xff]
        %v2416 = vld [vmem:[%s2218 + $0x3a] sm:$0xff]
        %v2417 = vld [vmem:[%s2218 + $0x4a] sm:$0xff]
        %v2418 = vld [vmem:[%s2218 + $0x52] sm:$0xff]
        %v2419 = vld [vmem:[%s2218 + $0x62] sm:$0xff]
        %v2420 = vld [vmem:[%s2218 + $0x6a] sm:$0xff]
        %v2421 = vld [vmem:[%s2218 + $0x7a] sm:$0xff]
        %v2422 = vld [vmem:[%s2218 + $0x82] sm:$0xff]
        %v2423 = vld [vmem:[%s2218 + $0x92] sm:$0xff]
        %v2424 = vld [vmem:[%s2218 + $0x9a] sm:$0xff]
        %v2425 = vld [vmem:[%s2218 + $0xaa] sm:$0xff]
        %v2426 = vld [vmem:[%s2218 + $0xb2] sm:$0xff]
        %v2427 = vld [vmem:[%s2218 + $0xc2] sm:$0xff]
        %v2428 = vld [vmem:[%s2218 + $0xca] sm:$0xff]
        %v2429 = vld [vmem:[%s2218 + $0xda] sm:$0xff]
        %v2430 = vld [vmem:[%s2218 + $0xe2] sm:$0xff]
        %v2431 = vld [vmem:[%s2218 + $0xf2] sm:$0xff]
        %v2432 = vld [vmem:[%s2218 + $0xfa] sm:$0xff]
        %v2433 = vld [vmem:[%s2218 + $0x10a] sm:$0xff]
        %v2434 = vld [vmem:[%s2218 + $0x112] sm:$0xff]
        %v2435 = vld [vmem:[%s2218 + $0x122] sm:$0xff]
        %v2436 = vld [vmem:[%s2218 + $0x12a] sm:$0xff]
        %v2437 = vld [vmem:[%s2218 + $0x13a] sm:$0xff]
        %v2438 = vld [vmem:[%s2218 + $0x142] sm:$0xff]
        %v2439 = vld [vmem:[%s2218 + $0x152] sm:$0xff]
        %v2440 = vld [vmem:[%s2218 + $0x15a] sm:$0xff]
        %v2441 = vld [vmem:[%s2218 + $0x16a] sm:$0xff]
        %v2442 = vld [vmem:[%s2218 + $0x172] sm:$0xff]
        %s2443 = scalar_lea.vmem [#allocation2], 48
        %v2444 = vld [vmem:[%s2443] sm:$0xff]
        %v2445 = vld [vmem:[%s2443 + $0x8] sm:$0xff]
        %v2446 = vld [vmem:[%s2443 + $0x18] sm:$0xff]
        %v2447 = vld [vmem:[%s2443 + $0x20] sm:$0xff]
        %v2448 = vld [vmem:[%s2443 + $0x30] sm:$0xff]
        %v2449 = vld [vmem:[%s2443 + $0x38] sm:$0xff]
        %v2450 = vld [vmem:[%s2443 + $0x48] sm:$0xff]
        %v2451 = vld [vmem:[%s2443 + $0x50] sm:$0xff]
        %v2452 = vld [vmem:[%s2443 + $0x60] sm:$0xff]
        %v2453 = vld [vmem:[%s2443 + $0x68] sm:$0xff]
        %v2454 = vld [vmem:[%s2443 + $0x78] sm:$0xff]
        %v2455 = vld [vmem:[%s2443 + $0x80] sm:$0xff]
        %v2456 = vld [vmem:[%s2443 + $0x90] sm:$0xff]
        %v2457 = vld [vmem:[%s2443 + $0x98] sm:$0xff]
        %v2458 = vld [vmem:[%s2443 + $0xa8] sm:$0xff]
        %v2459 = vld [vmem:[%s2443 + $0xb0] sm:$0xff]
        %v2460 = vld [vmem:[%s2443 + $0xc0] sm:$0xff]
        %v2461 = vld [vmem:[%s2443 + $0xc8] sm:$0xff]
        %v2462 = vld [vmem:[%s2443 + $0xd8] sm:$0xff]
        %v2463 = vld [vmem:[%s2443 + $0xe0] sm:$0xff]
        %v2464 = vld [vmem:[%s2443 + $0xf0] sm:$0xff]
        %v2465 = vld [vmem:[%s2443 + $0xf8] sm:$0xff]
        %v2466 = vld [vmem:[%s2443 + $0x108] sm:$0xff]
        %v2467 = vld [vmem:[%s2443 + $0x110] sm:$0xff]
        %v2468 = vld [vmem:[%s2443 + $0x120] sm:$0xff]
        %v2469 = vld [vmem:[%s2443 + $0x128] sm:$0xff]
        %v2470 = vld [vmem:[%s2443 + $0x138] sm:$0xff]
        %v2471 = vld [vmem:[%s2443 + $0x140] sm:$0xff]
        %v2472 = vld [vmem:[%s2443 + $0x150] sm:$0xff]
        %v2473 = vld [vmem:[%s2443 + $0x158] sm:$0xff]
        %v2474 = vld [vmem:[%s2443 + $0x168] sm:$0xff]
        %v2475 = vld [vmem:[%s2443 + $0x170] sm:$0xff]
        %v2476 = vld [vmem:[%s2443 + $0x1] sm:$0xff]
        %v2477 = vld [vmem:[%s2443 + $0x9] sm:$0xff]
        %v2478 = vld [vmem:[%s2443 + $0x19] sm:$0xff]
        %v2479 = vld [vmem:[%s2443 + $0x21] sm:$0xff]
        %v2480 = vld [vmem:[%s2443 + $0x31] sm:$0xff]
        %v2481 = vld [vmem:[%s2443 + $0x39] sm:$0xff]
        %v2482 = vld [vmem:[%s2443 + $0x49] sm:$0xff]
        %v2483 = vld [vmem:[%s2443 + $0x51] sm:$0xff]
        %v2484 = vld [vmem:[%s2443 + $0x61] sm:$0xff]
        %v2485 = vld [vmem:[%s2443 + $0x69] sm:$0xff]
        %v2486 = vld [vmem:[%s2443 + $0x79] sm:$0xff]
        %v2487 = vld [vmem:[%s2443 + $0x81] sm:$0xff]
        %v2488 = vld [vmem:[%s2443 + $0x91] sm:$0xff]
        %v2489 = vld [vmem:[%s2443 + $0x99] sm:$0xff]
        %v2490 = vld [vmem:[%s2443 + $0xa9] sm:$0xff]
        %v2491 = vld [vmem:[%s2443 + $0xb1] sm:$0xff]
        %v2492 = vld [vmem:[%s2443 + $0xc1] sm:$0xff]
        %v2493 = vld [vmem:[%s2443 + $0xc9] sm:$0xff]
        %v2494 = vld [vmem:[%s2443 + $0xd9] sm:$0xff]
        %v2495 = vld [vmem:[%s2443 + $0xe1] sm:$0xff]
        %v2496 = vld [vmem:[%s2443 + $0xf1] sm:$0xff]
        %v2497 = vld [vmem:[%s2443 + $0xf9] sm:$0xff]
        %v2498 = vld [vmem:[%s2443 + $0x109] sm:$0xff]
        %v2499 = vld [vmem:[%s2443 + $0x111] sm:$0xff]
        %v2500 = vld [vmem:[%s2443 + $0x121] sm:$0xff]
        %v2501 = vld [vmem:[%s2443 + $0x129] sm:$0xff]
        %v2502 = vld [vmem:[%s2443 + $0x139] sm:$0xff]
        %v2503 = vld [vmem:[%s2443 + $0x141] sm:$0xff]
        %v2504 = vld [vmem:[%s2443 + $0x151] sm:$0xff]
        %v2505 = vld [vmem:[%s2443 + $0x159] sm:$0xff]
        %v2506 = vld [vmem:[%s2443 + $0x169] sm:$0xff]
        %v2507 = vld [vmem:[%s2443 + $0x171] sm:$0xff]
        %v2508 = vld [vmem:[%s2443 + $0x2] sm:$0xff]
        %v2509 = vld [vmem:[%s2443 + $0xa] sm:$0xff]
        %v2510 = vld [vmem:[%s2443 + $0x1a] sm:$0xff]
        %v2511 = vld [vmem:[%s2443 + $0x22] sm:$0xff]
        %v2512 = vld [vmem:[%s2443 + $0x32] sm:$0xff]
        %v2513 = vld [vmem:[%s2443 + $0x3a] sm:$0xff]
        %v2514 = vld [vmem:[%s2443 + $0x4a] sm:$0xff]
        %v2515 = vld [vmem:[%s2443 + $0x52] sm:$0xff]
        %v2516 = vld [vmem:[%s2443 + $0x62] sm:$0xff]
        %v2517 = vld [vmem:[%s2443 + $0x6a] sm:$0xff]
        %v2518 = vld [vmem:[%s2443 + $0x7a] sm:$0xff]
        %v2519 = vld [vmem:[%s2443 + $0x82] sm:$0xff]
        %v2520 = vld [vmem:[%s2443 + $0x92] sm:$0xff]
        %v2521 = vld [vmem:[%s2443 + $0x9a] sm:$0xff]
        %v2522 = vld [vmem:[%s2443 + $0xaa] sm:$0xff]
        %v2523 = vld [vmem:[%s2443 + $0xb2] sm:$0xff]
        %v2524 = vld [vmem:[%s2443 + $0xc2] sm:$0xff]
        %v2525 = vld [vmem:[%s2443 + $0xca] sm:$0xff]
        %v2526 = vld [vmem:[%s2443 + $0xda] sm:$0xff]
        %v2527 = vld [vmem:[%s2443 + $0xe2] sm:$0xff]
        %v2528 = vld [vmem:[%s2443 + $0xf2] sm:$0xff]
        %v2529 = vld [vmem:[%s2443 + $0xfa] sm:$0xff]
        %v2530 = vld [vmem:[%s2443 + $0x10a] sm:$0xff]
        %v2531 = vld [vmem:[%s2443 + $0x112] sm:$0xff]
        %v2532 = vld [vmem:[%s2443 + $0x122] sm:$0xff]
        %v2533 = vld [vmem:[%s2443 + $0x12a] sm:$0xff]
        %v2534 = vld [vmem:[%s2443 + $0x13a] sm:$0xff]
        %v2535 = vld [vmem:[%s2443 + $0x142] sm:$0xff]
        %v2536 = vld [vmem:[%s2443 + $0x152] sm:$0xff]
        %v2537 = vld [vmem:[%s2443 + $0x15a] sm:$0xff]
        %v2538 = vld [vmem:[%s2443 + $0x16a] sm:$0xff]
        %v2539 = vld [vmem:[%s2443 + $0x172] sm:$0xff]
        %2572 = vrot.lane.b32.xlu0 %v2283, 4
        %v2573 = vpop.permute.xlu0 %2572
        %2574 = vrot.lane.b32.xlu0 %v2284, 4
        %v2575 = vpop.permute.xlu0 %2574
        %2576 = vrot.lane.b32.xlu0 %v2285, 4
        %v2577 = vpop.permute.xlu0 %2576
        %2578 = vrot.lane.b32.xlu0 %v2286, 4
        %v2579 = vpop.permute.xlu0 %2578
        %2580 = vrot.lane.b32.xlu0 %v2287, 4
        %v2581 = vpop.permute.xlu0 %2580
        %2582 = vrot.lane.b32.xlu0 %v2288, 4
        %v2583 = vpop.permute.xlu0 %2582
        %2584 = vrot.lane.b32.xlu0 %v2289, 4
        %v2585 = vpop.permute.xlu0 %2584
        %2586 = vrot.lane.b32.xlu0 %v2290, 4
        %v2587 = vpop.permute.xlu0 %2586
        %2588 = vrot.lane.b32.xlu0 %v2291, 4
        %v2589 = vpop.permute.xlu0 %2588
        %2590 = vrot.lane.b32.xlu0 %v2292, 4
        %v2591 = vpop.permute.xlu0 %2590
        %2592 = vrot.lane.b32.xlu0 %v2293, 4
        %v2593 = vpop.permute.xlu0 %2592
        %2594 = vrot.lane.b32.xlu0 %v2294, 4
        %v2595 = vpop.permute.xlu0 %2594
        %2596 = vrot.lane.b32.xlu0 %v2295, 4
        %v2597 = vpop.permute.xlu0 %2596
        %2598 = vrot.lane.b32.xlu0 %v2296, 4
        %v2599 = vpop.permute.xlu0 %2598
        %2600 = vrot.lane.b32.xlu0 %v2297, 4
        %v2601 = vpop.permute.xlu0 %2600
        %2602 = vrot.lane.b32.xlu0 %v2298, 4
        %v2603 = vpop.permute.xlu0 %2602
        %2604 = vrot.lane.b32.xlu0 %v2299, 4
        %v2605 = vpop.permute.xlu0 %2604
        %2606 = vrot.lane.b32.xlu0 %v2300, 4
        %v2607 = vpop.permute.xlu0 %2606
        %2608 = vrot.lane.b32.xlu0 %v2301, 4
        %v2609 = vpop.permute.xlu0 %2608
        %2610 = vrot.lane.b32.xlu0 %v2302, 4
        %v2611 = vpop.permute.xlu0 %2610
        %2612 = vrot.lane.b32.xlu0 %v2303, 4
        %v2613 = vpop.permute.xlu0 %2612
        %2614 = vrot.lane.b32.xlu0 %v2304, 4
        %v2615 = vpop.permute.xlu0 %2614
        %2616 = vrot.lane.b32.xlu0 %v2305, 4
        %v2617 = vpop.permute.xlu0 %2616
        %2618 = vrot.lane.b32.xlu0 %v2306, 4
        %v2619 = vpop.permute.xlu0 %2618
        %2620 = vrot.lane.b32.xlu0 %v2307, 4
        %v2621 = vpop.permute.xlu0 %2620
        %2622 = vrot.lane.b32.xlu0 %v2308, 4
        %v2623 = vpop.permute.xlu0 %2622
        %2624 = vrot.lane.b32.xlu0 %v2309, 4
        %v2625 = vpop.permute.xlu0 %2624
        %2626 = vrot.lane.b32.xlu0 %v2310, 4
        %v2627 = vpop.permute.xlu0 %2626
        %2628 = vrot.lane.b32.xlu0 %v2311, 4
        %v2629 = vpop.permute.xlu0 %2628
        %2630 = vrot.lane.b32.xlu0 %v2312, 4
        %v2631 = vpop.permute.xlu0 %2630
        %2632 = vrot.lane.b32.xlu0 %v2313, 4
        %v2633 = vpop.permute.xlu0 %2632
        %2634 = vrot.lane.b32.xlu0 %v2314, 4
        %v2635 = vpop.permute.xlu0 %2634
        %2700 = vrot.lane.b32.xlu0 %v2315, 8
        %v2701 = vpop.permute.xlu0 %2700
        %2702 = vrot.lane.b32.xlu0 %v2316, 8
        %v2703 = vpop.permute.xlu0 %2702
        %2704 = vrot.lane.b32.xlu0 %v2317, 8
        %v2705 = vpop.permute.xlu0 %2704
        %2706 = vrot.lane.b32.xlu0 %v2318, 8
        %v2707 = vpop.permute.xlu0 %2706
        %2708 = vrot.lane.b32.xlu0 %v2319, 8
        %v2709 = vpop.permute.xlu0 %2708
        %2710 = vrot.lane.b32.xlu0 %v2320, 8
        %v2711 = vpop.permute.xlu0 %2710
        %2712 = vrot.lane.b32.xlu0 %v2321, 8
        %v2713 = vpop.permute.xlu0 %2712
        %2714 = vrot.lane.b32.xlu0 %v2322, 8
        %v2715 = vpop.permute.xlu0 %2714
        %2716 = vrot.lane.b32.xlu0 %v2323, 8
        %v2717 = vpop.permute.xlu0 %2716
        %2718 = vrot.lane.b32.xlu0 %v2324, 8
        %v2719 = vpop.permute.xlu0 %2718
        %2720 = vrot.lane.b32.xlu0 %v2325, 8
        %v2721 = vpop.permute.xlu0 %2720
        %2722 = vrot.lane.b32.xlu0 %v2326, 8
        %v2723 = vpop.permute.xlu0 %2722
        %2724 = vrot.lane.b32.xlu0 %v2327, 8
        %v2725 = vpop.permute.xlu0 %2724
        %2726 = vrot.lane.b32.xlu0 %v2328, 8
        %v2727 = vpop.permute.xlu0 %2726
        %2728 = vrot.lane.b32.xlu0 %v2329, 8
        %v2729 = vpop.permute.xlu0 %2728
        %2730 = vrot.lane.b32.xlu0 %v2330, 8
        %v2731 = vpop.permute.xlu0 %2730
        %2732 = vrot.lane.b32.xlu0 %v2331, 8
        %v2733 = vpop.permute.xlu0 %2732
        %2734 = vrot.lane.b32.xlu0 %v2332, 8
        %v2735 = vpop.permute.xlu0 %2734
        %2736 = vrot.lane.b32.xlu0 %v2333, 8
        %v2737 = vpop.permute.xlu0 %2736
        %2738 = vrot.lane.b32.xlu0 %v2334, 8
        %v2739 = vpop.permute.xlu0 %2738
        %2740 = vrot.lane.b32.xlu0 %v2335, 8
        %v2741 = vpop.permute.xlu0 %2740
        %2742 = vrot.lane.b32.xlu0 %v2336, 8
        %v2743 = vpop.permute.xlu0 %2742
        %2744 = vrot.lane.b32.xlu0 %v2337, 8
        %v2745 = vpop.permute.xlu0 %2744
        %2746 = vrot.lane.b32.xlu0 %v2338, 8
        %v2747 = vpop.permute.xlu0 %2746
        %2748 = vrot.lane.b32.xlu0 %v2339, 8
        %v2749 = vpop.permute.xlu0 %2748
        %2750 = vrot.lane.b32.xlu0 %v2340, 8
        %v2751 = vpop.permute.xlu0 %2750
        %2752 = vrot.lane.b32.xlu0 %v2341, 8
        %v2753 = vpop.permute.xlu0 %2752
        %2754 = vrot.lane.b32.xlu0 %v2342, 8
        %v2755 = vpop.permute.xlu0 %2754
        %2756 = vrot.lane.b32.xlu0 %v2343, 8
        %v2757 = vpop.permute.xlu0 %2756
        %2758 = vrot.lane.b32.xlu0 %v2344, 8
        %v2759 = vpop.permute.xlu0 %2758
        %2760 = vrot.lane.b32.xlu0 %v2345, 8
        %v2761 = vpop.permute.xlu0 %2760
        %2762 = vrot.lane.b32.xlu0 %v2346, 8
        %v2763 = vpop.permute.xlu0 %2762
        %2828 = vrot.lane.b32.xlu0 %v2347, 12
        %v2829 = vpop.permute.xlu0 %2828
        %2830 = vrot.lane.b32.xlu0 %v2348, 12
        %v2831 = vpop.permute.xlu0 %2830
        %2832 = vrot.lane.b32.xlu0 %v2349, 12
        %v2833 = vpop.permute.xlu0 %2832
        %2834 = vrot.lane.b32.xlu0 %v2350, 12
        %v2835 = vpop.permute.xlu0 %2834
        %2836 = vrot.lane.b32.xlu0 %v2351, 12
        %v2837 = vpop.permute.xlu0 %2836
        %2838 = vrot.lane.b32.xlu0 %v2352, 12
        %v2839 = vpop.permute.xlu0 %2838
        %2840 = vrot.lane.b32.xlu0 %v2353, 12
        %v2841 = vpop.permute.xlu0 %2840
        %2842 = vrot.lane.b32.xlu0 %v2354, 12
        %v2843 = vpop.permute.xlu0 %2842
        %2844 = vrot.lane.b32.xlu0 %v2355, 12
        %v2845 = vpop.permute.xlu0 %2844
        %2846 = vrot.lane.b32.xlu0 %v2356, 12
        %v2847 = vpop.permute.xlu0 %2846
        %2848 = vrot.lane.b32.xlu0 %v2357, 12
        %v2849 = vpop.permute.xlu0 %2848
        %2850 = vrot.lane.b32.xlu0 %v2358, 12
        %v2851 = vpop.permute.xlu0 %2850
        %2852 = vrot.lane.b32.xlu0 %v2359, 12
        %v2853 = vpop.permute.xlu0 %2852
        %2854 = vrot.lane.b32.xlu0 %v2360, 12
        %v2855 = vpop.permute.xlu0 %2854
        %2856 = vrot.lane.b32.xlu0 %v2361, 12
        %v2857 = vpop.permute.xlu0 %2856
        %2858 = vrot.lane.b32.xlu0 %v2362, 12
        %v2859 = vpop.permute.xlu0 %2858
        %2860 = vrot.lane.b32.xlu0 %v2363, 12
        %v2861 = vpop.permute.xlu0 %2860
        %2862 = vrot.lane.b32.xlu0 %v2364, 12
        %v2863 = vpop.permute.xlu0 %2862
        %2864 = vrot.lane.b32.xlu0 %v2365, 12
        %v2865 = vpop.permute.xlu0 %2864
        %2866 = vrot.lane.b32.xlu0 %v2366, 12
        %v2867 = vpop.permute.xlu0 %2866
        %2868 = vrot.lane.b32.xlu0 %v2367, 12
        %v2869 = vpop.permute.xlu0 %2868
        %2870 = vrot.lane.b32.xlu0 %v2368, 12
        %v2871 = vpop.permute.xlu0 %2870
        %2872 = vrot.lane.b32.xlu0 %v2369, 12
        %v2873 = vpop.permute.xlu0 %2872
        %2874 = vrot.lane.b32.xlu0 %v2370, 12
        %v2875 = vpop.permute.xlu0 %2874
        %2876 = vrot.lane.b32.xlu0 %v2371, 12
        %v2877 = vpop.permute.xlu0 %2876
        %2878 = vrot.lane.b32.xlu0 %v2372, 12
        %v2879 = vpop.permute.xlu0 %2878
        %2880 = vrot.lane.b32.xlu0 %v2373, 12
        %v2881 = vpop.permute.xlu0 %2880
        %2882 = vrot.lane.b32.xlu0 %v2374, 12
        %v2883 = vpop.permute.xlu0 %2882
        %2884 = vrot.lane.b32.xlu0 %v2375, 12
        %v2885 = vpop.permute.xlu0 %2884
        %2886 = vrot.lane.b32.xlu0 %v2376, 12
        %v2887 = vpop.permute.xlu0 %2886
        %2888 = vrot.lane.b32.xlu0 %v2377, 12
        %v2889 = vpop.permute.xlu0 %2888
        %2890 = vrot.lane.b32.xlu0 %v2378, 12
        %v2891 = vpop.permute.xlu0 %2890
        %2956 = vrot.lane.b32.xlu0 %v2379, 16
        %v2957 = vpop.permute.xlu0 %2956
        %2958 = vrot.lane.b32.xlu0 %v2380, 16
        %v2959 = vpop.permute.xlu0 %2958
        %2960 = vrot.lane.b32.xlu0 %v2381, 16
        %v2961 = vpop.permute.xlu0 %2960
        %2962 = vrot.lane.b32.xlu0 %v2382, 16
        %v2963 = vpop.permute.xlu0 %2962
        %2964 = vrot.lane.b32.xlu0 %v2383, 16
        %v2965 = vpop.permute.xlu0 %2964
        %2966 = vrot.lane.b32.xlu0 %v2384, 16
        %v2967 = vpop.permute.xlu0 %2966
        %2968 = vrot.lane.b32.xlu0 %v2385, 16
        %v2969 = vpop.permute.xlu0 %2968
        %2970 = vrot.lane.b32.xlu0 %v2386, 16
        %v2971 = vpop.permute.xlu0 %2970
        %2972 = vrot.lane.b32.xlu0 %v2387, 16
        %v2973 = vpop.permute.xlu0 %2972
        %2974 = vrot.lane.b32.xlu0 %v2388, 16
        %v2975 = vpop.permute.xlu0 %2974
        %2976 = vrot.lane.b32.xlu0 %v2389, 16
        %v2977 = vpop.permute.xlu0 %2976
        %2978 = vrot.lane.b32.xlu0 %v2390, 16
        %v2979 = vpop.permute.xlu0 %2978
        %2980 = vrot.lane.b32.xlu0 %v2391, 16
        %v2981 = vpop.permute.xlu0 %2980
        %2982 = vrot.lane.b32.xlu0 %v2392, 16
        %v2983 = vpop.permute.xlu0 %2982
        %2984 = vrot.lane.b32.xlu0 %v2393, 16
        %v2985 = vpop.permute.xlu0 %2984
        %2986 = vrot.lane.b32.xlu0 %v2394, 16
        %v2987 = vpop.permute.xlu0 %2986
        %2988 = vrot.lane.b32.xlu0 %v2395, 16
        %v2989 = vpop.permute.xlu0 %2988
        %2990 = vrot.lane.b32.xlu0 %v2396, 16
        %v2991 = vpop.permute.xlu0 %2990
        %2992 = vrot.lane.b32.xlu0 %v2397, 16
        %v2993 = vpop.permute.xlu0 %2992
        %2994 = vrot.lane.b32.xlu0 %v2398, 16
        %v2995 = vpop.permute.xlu0 %2994
        %2996 = vrot.lane.b32.xlu0 %v2399, 16
        %v2997 = vpop.permute.xlu0 %2996
        %2998 = vrot.lane.b32.xlu0 %v2400, 16
        %v2999 = vpop.permute.xlu0 %2998
        %3000 = vrot.lane.b32.xlu0 %v2401, 16
        %v3001 = vpop.permute.xlu0 %3000
        %3002 = vrot.lane.b32.xlu0 %v2402, 16
        %v3003 = vpop.permute.xlu0 %3002
        %3004 = vrot.lane.b32.xlu0 %v2403, 16
        %v3005 = vpop.permute.xlu0 %3004
        %3006 = vrot.lane.b32.xlu0 %v2404, 16
        %v3007 = vpop.permute.xlu0 %3006
        %3008 = vrot.lane.b32.xlu0 %v2405, 16
        %v3009 = vpop.permute.xlu0 %3008
        %3010 = vrot.lane.b32.xlu0 %v2406, 16
        %v3011 = vpop.permute.xlu0 %3010
        %3012 = vrot.lane.b32.xlu0 %v2407, 16
        %v3013 = vpop.permute.xlu0 %3012
        %3014 = vrot.lane.b32.xlu0 %v2408, 16
        %v3015 = vpop.permute.xlu0 %3014
        %3016 = vrot.lane.b32.xlu0 %v2409, 16
        %v3017 = vpop.permute.xlu0 %3016
        %3018 = vrot.lane.b32.xlu0 %v2410, 16
        %v3019 = vpop.permute.xlu0 %3018
        %3084 = vrot.lane.b32.xlu0 %v2411, 20
        %v3085 = vpop.permute.xlu0 %3084
        %3086 = vrot.lane.b32.xlu0 %v2412, 20
        %v3087 = vpop.permute.xlu0 %3086
        %3088 = vrot.lane.b32.xlu0 %v2413, 20
        %v3089 = vpop.permute.xlu0 %3088
        %3090 = vrot.lane.b32.xlu0 %v2414, 20
        %v3091 = vpop.permute.xlu0 %3090
        %3092 = vrot.lane.b32.xlu0 %v2415, 20
        %v3093 = vpop.permute.xlu0 %3092
        %3094 = vrot.lane.b32.xlu0 %v2416, 20
        %v3095 = vpop.permute.xlu0 %3094
        %3096 = vrot.lane.b32.xlu0 %v2417, 20
        %v3097 = vpop.permute.xlu0 %3096
        %3098 = vrot.lane.b32.xlu0 %v2418, 20
        %v3099 = vpop.permute.xlu0 %3098
        %3100 = vrot.lane.b32.xlu0 %v2419, 20
        %v3101 = vpop.permute.xlu0 %3100
        %3102 = vrot.lane.b32.xlu0 %v2420, 20
        %v3103 = vpop.permute.xlu0 %3102
        %3104 = vrot.lane.b32.xlu0 %v2421, 20
        %v3105 = vpop.permute.xlu0 %3104
        %3106 = vrot.lane.b32.xlu0 %v2422, 20
        %v3107 = vpop.permute.xlu0 %3106
        %3108 = vrot.lane.b32.xlu0 %v2423, 20
        %v3109 = vpop.permute.xlu0 %3108
        %3110 = vrot.lane.b32.xlu0 %v2424, 20
        %v3111 = vpop.permute.xlu0 %3110
        %3112 = vrot.lane.b32.xlu0 %v2425, 20
        %v3113 = vpop.permute.xlu0 %3112
        %3114 = vrot.lane.b32.xlu0 %v2426, 20
        %v3115 = vpop.permute.xlu0 %3114
        %3116 = vrot.lane.b32.xlu0 %v2427, 20
        %v3117 = vpop.permute.xlu0 %3116
        %3118 = vrot.lane.b32.xlu0 %v2428, 20
        %v3119 = vpop.permute.xlu0 %3118
        %3120 = vrot.lane.b32.xlu0 %v2429, 20
        %v3121 = vpop.permute.xlu0 %3120
        %3122 = vrot.lane.b32.xlu0 %v2430, 20
        %v3123 = vpop.permute.xlu0 %3122
        %3124 = vrot.lane.b32.xlu0 %v2431, 20
        %v3125 = vpop.permute.xlu0 %3124
        %3126 = vrot.lane.b32.xlu0 %v2432, 20
        %v3127 = vpop.permute.xlu0 %3126
        %3128 = vrot.lane.b32.xlu0 %v2433, 20
        %v3129 = vpop.permute.xlu0 %3128
        %3130 = vrot.lane.b32.xlu0 %v2434, 20
        %v3131 = vpop.permute.xlu0 %3130
        %3132 = vrot.lane.b32.xlu0 %v2435, 20
        %v3133 = vpop.permute.xlu0 %3132
        %3134 = vrot.lane.b32.xlu0 %v2436, 20
        %v3135 = vpop.permute.xlu0 %3134
        %3136 = vrot.lane.b32.xlu0 %v2437, 20
        %v3137 = vpop.permute.xlu0 %3136
        %3138 = vrot.lane.b32.xlu0 %v2438, 20
        %v3139 = vpop.permute.xlu0 %3138
        %3140 = vrot.lane.b32.xlu0 %v2439, 20
        %v3141 = vpop.permute.xlu0 %3140
        %3142 = vrot.lane.b32.xlu0 %v2440, 20
        %v3143 = vpop.permute.xlu0 %3142
        %3144 = vrot.lane.b32.xlu0 %v2441, 20
        %v3145 = vpop.permute.xlu0 %3144
        %3146 = vrot.lane.b32.xlu0 %v2442, 20
        %v3147 = vpop.permute.xlu0 %3146
        %3212 = vrot.lane.b32.xlu0 %v2444, 24
        %v3213 = vpop.permute.xlu0 %3212
        %3214 = vrot.lane.b32.xlu0 %v2445, 24
        %v3215 = vpop.permute.xlu0 %3214
        %3216 = vrot.lane.b32.xlu0 %v2446, 24
        %v3217 = vpop.permute.xlu0 %3216
        %3218 = vrot.lane.b32.xlu0 %v2447, 24
        %v3219 = vpop.permute.xlu0 %3218
        %3220 = vrot.lane.b32.xlu0 %v2448, 24
        %v3221 = vpop.permute.xlu0 %3220
        %3222 = vrot.lane.b32.xlu0 %v2449, 24
        %v3223 = vpop.permute.xlu0 %3222
        %3224 = vrot.lane.b32.xlu0 %v2450, 24
        %v3225 = vpop.permute.xlu0 %3224
        %3226 = vrot.lane.b32.xlu0 %v2451, 24
        %v3227 = vpop.permute.xlu0 %3226
        %3228 = vrot.lane.b32.xlu0 %v2452, 24
        %v3229 = vpop.permute.xlu0 %3228
        %3230 = vrot.lane.b32.xlu0 %v2453, 24
        %v3231 = vpop.permute.xlu0 %3230
        %3232 = vrot.lane.b32.xlu0 %v2454, 24
        %v3233 = vpop.permute.xlu0 %3232
        %3234 = vrot.lane.b32.xlu0 %v2455, 24
        %v3235 = vpop.permute.xlu0 %3234
        %3236 = vrot.lane.b32.xlu0 %v2456, 24
        %v3237 = vpop.permute.xlu0 %3236
        %3238 = vrot.lane.b32.xlu0 %v2457, 24
        %v3239 = vpop.permute.xlu0 %3238
        %3240 = vrot.lane.b32.xlu0 %v2458, 24
        %v3241 = vpop.permute.xlu0 %3240
        %3242 = vrot.lane.b32.xlu0 %v2459, 24
        %v3243 = vpop.permute.xlu0 %3242
        %3244 = vrot.lane.b32.xlu0 %v2460, 24
        %v3245 = vpop.permute.xlu0 %3244
        %3246 = vrot.lane.b32.xlu0 %v2461, 24
        %v3247 = vpop.permute.xlu0 %3246
        %3248 = vrot.lane.b32.xlu0 %v2462, 24
        %v3249 = vpop.permute.xlu0 %3248
        %3250 = vrot.lane.b32.xlu0 %v2463, 24
        %v3251 = vpop.permute.xlu0 %3250
        %3252 = vrot.lane.b32.xlu0 %v2464, 24
        %v3253 = vpop.permute.xlu0 %3252
        %3254 = vrot.lane.b32.xlu0 %v2465, 24
        %v3255 = vpop.permute.xlu0 %3254
        %3256 = vrot.lane.b32.xlu0 %v2466, 24
        %v3257 = vpop.permute.xlu0 %3256
        %3258 = vrot.lane.b32.xlu0 %v2467, 24
        %v3259 = vpop.permute.xlu0 %3258
        %3260 = vrot.lane.b32.xlu0 %v2468, 24
        %v3261 = vpop.permute.xlu0 %3260
        %3262 = vrot.lane.b32.xlu0 %v2469, 24
        %v3263 = vpop.permute.xlu0 %3262
        %3264 = vrot.lane.b32.xlu0 %v2470, 24
        %v3265 = vpop.permute.xlu0 %3264
        %3266 = vrot.lane.b32.xlu0 %v2471, 24
        %v3267 = vpop.permute.xlu0 %3266
        %3268 = vrot.lane.b32.xlu0 %v2472, 24
        %v3269 = vpop.permute.xlu0 %3268
        %3270 = vrot.lane.b32.xlu0 %v2473, 24
        %v3271 = vpop.permute.xlu0 %3270
        %3272 = vrot.lane.b32.xlu0 %v2474, 24
        %v3273 = vpop.permute.xlu0 %3272
        %3274 = vrot.lane.b32.xlu0 %v2475, 24
        %v3275 = vpop.permute.xlu0 %3274
        %3340 = vrot.lane.b32.xlu0 %v2476, 28
        %v3341 = vpop.permute.xlu0 %3340
        %3342 = vrot.lane.b32.xlu0 %v2477, 28
        %v3343 = vpop.permute.xlu0 %3342
        %3344 = vrot.lane.b32.xlu0 %v2478, 28
        %v3345 = vpop.permute.xlu0 %3344
        %3346 = vrot.lane.b32.xlu0 %v2479, 28
        %v3347 = vpop.permute.xlu0 %3346
        %3348 = vrot.lane.b32.xlu0 %v2480, 28
        %v3349 = vpop.permute.xlu0 %3348
        %3350 = vrot.lane.b32.xlu0 %v2481, 28
        %v3351 = vpop.permute.xlu0 %3350
        %3352 = vrot.lane.b32.xlu0 %v2482, 28
        %v3353 = vpop.permute.xlu0 %3352
        %3354 = vrot.lane.b32.xlu0 %v2483, 28
        %v3355 = vpop.permute.xlu0 %3354
        %3356 = vrot.lane.b32.xlu0 %v2484, 28
        %v3357 = vpop.permute.xlu0 %3356
        %3358 = vrot.lane.b32.xlu0 %v2485, 28
        %v3359 = vpop.permute.xlu0 %3358
        %3360 = vrot.lane.b32.xlu0 %v2486, 28
        %v3361 = vpop.permute.xlu0 %3360
        %3362 = vrot.lane.b32.xlu0 %v2487, 28
        %v3363 = vpop.permute.xlu0 %3362
        %3364 = vrot.lane.b32.xlu0 %v2488, 28
        %v3365 = vpop.permute.xlu0 %3364
        %3366 = vrot.lane.b32.xlu0 %v2489, 28
        %v3367 = vpop.permute.xlu0 %3366
        %3368 = vrot.lane.b32.xlu0 %v2490, 28
        %v3369 = vpop.permute.xlu0 %3368
        %3370 = vrot.lane.b32.xlu0 %v2491, 28
        %v3371 = vpop.permute.xlu0 %3370
        %3372 = vrot.lane.b32.xlu0 %v2492, 28
        %v3373 = vpop.permute.xlu0 %3372
        %3374 = vrot.lane.b32.xlu0 %v2493, 28
        %v3375 = vpop.permute.xlu0 %3374
        %3376 = vrot.lane.b32.xlu0 %v2494, 28
        %v3377 = vpop.permute.xlu0 %3376
        %3378 = vrot.lane.b32.xlu0 %v2495, 28
        %v3379 = vpop.permute.xlu0 %3378
        %3380 = vrot.lane.b32.xlu0 %v2496, 28
        %v3381 = vpop.permute.xlu0 %3380
        %3382 = vrot.lane.b32.xlu0 %v2497, 28
        %v3383 = vpop.permute.xlu0 %3382
        %3384 = vrot.lane.b32.xlu0 %v2498, 28
        %v3385 = vpop.permute.xlu0 %3384
        %3386 = vrot.lane.b32.xlu0 %v2499, 28
        %v3387 = vpop.permute.xlu0 %3386
        %3388 = vrot.lane.b32.xlu0 %v2500, 28
        %v3389 = vpop.permute.xlu0 %3388
        %3390 = vrot.lane.b32.xlu0 %v2501, 28
        %v3391 = vpop.permute.xlu0 %3390
        %3392 = vrot.lane.b32.xlu0 %v2502, 28
        %v3393 = vpop.permute.xlu0 %3392
        %3394 = vrot.lane.b32.xlu0 %v2503, 28
        %v3395 = vpop.permute.xlu0 %3394
        %3396 = vrot.lane.b32.xlu0 %v2504, 28
        %v3397 = vpop.permute.xlu0 %3396
        %3398 = vrot.lane.b32.xlu0 %v2505, 28
        %v3399 = vpop.permute.xlu0 %3398
        %3400 = vrot.lane.b32.xlu0 %v2506, 28
        %v3401 = vpop.permute.xlu0 %3400
        %3402 = vrot.lane.b32.xlu0 %v2507, 28
        %v3403 = vpop.permute.xlu0 %3402
        %3468 = vrot.lane.b32.xlu0 %v2508, 32
        %v3469 = vpop.permute.xlu0 %3468
        %3470 = vrot.lane.b32.xlu0 %v2509, 32
        %v3471 = vpop.permute.xlu0 %3470
        %3472 = vrot.lane.b32.xlu0 %v2510, 32
        %v3473 = vpop.permute.xlu0 %3472
        %3474 = vrot.lane.b32.xlu0 %v2511, 32
        %v3475 = vpop.permute.xlu0 %3474
        %3476 = vrot.lane.b32.xlu0 %v2512, 32
        %v3477 = vpop.permute.xlu0 %3476
        %3478 = vrot.lane.b32.xlu0 %v2513, 32
        %v3479 = vpop.permute.xlu0 %3478
        %3480 = vrot.lane.b32.xlu0 %v2514, 32
        %v3481 = vpop.permute.xlu0 %3480
        %3482 = vrot.lane.b32.xlu0 %v2515, 32
        %v3483 = vpop.permute.xlu0 %3482
        %3484 = vrot.lane.b32.xlu0 %v2516, 32
        %v3485 = vpop.permute.xlu0 %3484
        %3486 = vrot.lane.b32.xlu0 %v2517, 32
        %v3487 = vpop.permute.xlu0 %3486
        %3488 = vrot.lane.b32.xlu0 %v2518, 32
        %v3489 = vpop.permute.xlu0 %3488
        %3490 = vrot.lane.b32.xlu0 %v2519, 32
        %v3491 = vpop.permute.xlu0 %3490
        %3492 = vrot.lane.b32.xlu0 %v2520, 32
        %v3493 = vpop.permute.xlu0 %3492
        %3494 = vrot.lane.b32.xlu0 %v2521, 32
        %v3495 = vpop.permute.xlu0 %3494
        %3496 = vrot.lane.b32.xlu0 %v2522, 32
        %v3497 = vpop.permute.xlu0 %3496
        %3498 = vrot.lane.b32.xlu0 %v2523, 32
        %v3499 = vpop.permute.xlu0 %3498
        %3500 = vrot.lane.b32.xlu0 %v2524, 32
        %v3501 = vpop.permute.xlu0 %3500
        %3502 = vrot.lane.b32.xlu0 %v2525, 32
        %v3503 = vpop.permute.xlu0 %3502
        %3504 = vrot.lane.b32.xlu0 %v2526, 32
        %v3505 = vpop.permute.xlu0 %3504
        %3506 = vrot.lane.b32.xlu0 %v2527, 32
        %v3507 = vpop.permute.xlu0 %3506
        %3508 = vrot.lane.b32.xlu0 %v2528, 32
        %v3509 = vpop.permute.xlu0 %3508
        %3510 = vrot.lane.b32.xlu0 %v2529, 32
        %v3511 = vpop.permute.xlu0 %3510
        %3512 = vrot.lane.b32.xlu0 %v2530, 32
        %v3513 = vpop.permute.xlu0 %3512
        %3514 = vrot.lane.b32.xlu0 %v2531, 32
        %v3515 = vpop.permute.xlu0 %3514
        %3516 = vrot.lane.b32.xlu0 %v2532, 32
        %v3517 = vpop.permute.xlu0 %3516
        %3518 = vrot.lane.b32.xlu0 %v2533, 32
        %v3519 = vpop.permute.xlu0 %3518
        %3520 = vrot.lane.b32.xlu0 %v2534, 32
        %v3521 = vpop.permute.xlu0 %3520
        %3522 = vrot.lane.b32.xlu0 %v2535, 32
        %v3523 = vpop.permute.xlu0 %3522
        %3524 = vrot.lane.b32.xlu0 %v2536, 32
        %v3525 = vpop.permute.xlu0 %3524
        %3526 = vrot.lane.b32.xlu0 %v2537, 32
        %v3527 = vpop.permute.xlu0 %3526
        %3528 = vrot.lane.b32.xlu0 %v2538, 32
        %v3529 = vpop.permute.xlu0 %3528
        %3530 = vrot.lane.b32.xlu0 %v2539, 32
        %v3531 = vpop.permute.xlu0 %3530
        %v3564 = vsel %vm1697, %v2251, %v2573
        %v3565 = vsel %vm1697, %v2252, %v2575
        %v3566 = vsel %vm1697, %v2253, %v2577
        %v3567 = vsel %vm1697, %v2254, %v2579
        %v3568 = vsel %vm1697, %v2255, %v2581
        %v3569 = vsel %vm1697, %v2256, %v2583
        %v3570 = vsel %vm1697, %v2257, %v2585
        %v3571 = vsel %vm1697, %v2258, %v2587
        %v3572 = vsel %vm1697, %v2259, %v2589
        %v3573 = vsel %vm1697, %v2260, %v2591
        %v3574 = vsel %vm1697, %v2261, %v2593
        %v3575 = vsel %vm1697, %v2262, %v2595
        %v3576 = vsel %vm1697, %v2263, %v2597
        %v3577 = vsel %vm1697, %v2264, %v2599
        %v3578 = vsel %vm1697, %v2265, %v2601
        %v3579 = vsel %vm1697, %v2266, %v2603
        %v3580 = vsel %vm1697, %v2267, %v2605
        %v3581 = vsel %vm1697, %v2268, %v2607
        %v3582 = vsel %vm1697, %v2269, %v2609
        %v3583 = vsel %vm1697, %v2270, %v2611
        %v3584 = vsel %vm1697, %v2271, %v2613
        %v3585 = vsel %vm1697, %v2272, %v2615
        %v3586 = vsel %vm1697, %v2273, %v2617
        %v3587 = vsel %vm1697, %v2274, %v2619
        %v3588 = vsel %vm1697, %v2275, %v2621
        %v3589 = vsel %vm1697, %v2276, %v2623
        %v3590 = vsel %vm1697, %v2277, %v2625
        %v3591 = vsel %vm1697, %v2278, %v2627
        %v3592 = vsel %vm1697, %v2279, %v2629
        %v3593 = vsel %vm1697, %v2280, %v2631
        %v3594 = vsel %vm1697, %v2281, %v2633
        %v3595 = vsel %vm1697, %v2282, %v2635
        %vm3596 = vcmask 64512
        %v3597 = vsel %vm3596, %v3564, %v2701
        %v3598 = vsel %vm3596, %v3565, %v2703
        %v3599 = vsel %vm3596, %v3566, %v2705
        %v3600 = vsel %vm3596, %v3567, %v2707
        %v3601 = vsel %vm3596, %v3568, %v2709
        %v3602 = vsel %vm3596, %v3569, %v2711
        %v3603 = vsel %vm3596, %v3570, %v2713
        %v3604 = vsel %vm3596, %v3571, %v2715
        %v3605 = vsel %vm3596, %v3572, %v2717
        %v3606 = vsel %vm3596, %v3573, %v2719
        %v3607 = vsel %vm3596, %v3574, %v2721
        %v3608 = vsel %vm3596, %v3575, %v2723
        %v3609 = vsel %vm3596, %v3576, %v2725
        %v3610 = vsel %vm3596, %v3577, %v2727
        %v3611 = vsel %vm3596, %v3578, %v2729
        %v3612 = vsel %vm3596, %v3579, %v2731
        %v3613 = vsel %vm3596, %v3580, %v2733
        %v3614 = vsel %vm3596, %v3581, %v2735
        %v3615 = vsel %vm3596, %v3582, %v2737
        %v3616 = vsel %vm3596, %v3583, %v2739
        %v3617 = vsel %vm3596, %v3584, %v2741
        %v3618 = vsel %vm3596, %v3585, %v2743
        %v3619 = vsel %vm3596, %v3586, %v2745
        %v3620 = vsel %vm3596, %v3587, %v2747
        %v3621 = vsel %vm3596, %v3588, %v2749
        %v3622 = vsel %vm3596, %v3589, %v2751
        %v3623 = vsel %vm3596, %v3590, %v2753
        %v3624 = vsel %vm3596, %v3591, %v2755
        %v3625 = vsel %vm3596, %v3592, %v2757
        %v3626 = vsel %vm3596, %v3593, %v2759
        %v3627 = vsel %vm3596, %v3594, %v2761
        %v3628 = vsel %vm3596, %v3595, %v2763
        %vm3629 = vcmask 97280
        %v3630 = vsel %vm3629, %v3597, %v2829
        %v3631 = vsel %vm3629, %v3598, %v2831
        %v3632 = vsel %vm3629, %v3599, %v2833
        %v3633 = vsel %vm3629, %v3600, %v2835
        %v3634 = vsel %vm3629, %v3601, %v2837
        %v3635 = vsel %vm3629, %v3602, %v2839
        %v3636 = vsel %vm3629, %v3603, %v2841
        %v3637 = vsel %vm3629, %v3604, %v2843
        %v3638 = vsel %vm3629, %v3605, %v2845
        %v3639 = vsel %vm3629, %v3606, %v2847
        %v3640 = vsel %vm3629, %v3607, %v2849
        %v3641 = vsel %vm3629, %v3608, %v2851
        %v3642 = vsel %vm3629, %v3609, %v2853
        %v3643 = vsel %vm3629, %v3610, %v2855
        %v3644 = vsel %vm3629, %v3611, %v2857
        %v3645 = vsel %vm3629, %v3612, %v2859
        %v3646 = vsel %vm3629, %v3613, %v2861
        %v3647 = vsel %vm3629, %v3614, %v2863
        %v3648 = vsel %vm3629, %v3615, %v2865
        %v3649 = vsel %vm3629, %v3616, %v2867
        %v3650 = vsel %vm3629, %v3617, %v2869
        %v3651 = vsel %vm3629, %v3618, %v2871
        %v3652 = vsel %vm3629, %v3619, %v2873
        %v3653 = vsel %vm3629, %v3620, %v2875
        %v3654 = vsel %vm3629, %v3621, %v2877
        %v3655 = vsel %vm3629, %v3622, %v2879
        %v3656 = vsel %vm3629, %v3623, %v2881
        %v3657 = vsel %vm3629, %v3624, %v2883
        %v3658 = vsel %vm3629, %v3625, %v2885
        %v3659 = vsel %vm3629, %v3626, %v2887
        %v3660 = vsel %vm3629, %v3627, %v2889
        %v3661 = vsel %vm3629, %v3628, %v2891
        %vm3662 = vcmask 130048
        %v3663 = vsel %vm3662, %v3630, %v2957
        %v3664 = vsel %vm3662, %v3631, %v2959
        %v3665 = vsel %vm3662, %v3632, %v2961
        %v3666 = vsel %vm3662, %v3633, %v2963
        %v3667 = vsel %vm3662, %v3634, %v2965
        %v3668 = vsel %vm3662, %v3635, %v2967
        %v3669 = vsel %vm3662, %v3636, %v2969
        %v3670 = vsel %vm3662, %v3637, %v2971
        %v3671 = vsel %vm3662, %v3638, %v2973
        %v3672 = vsel %vm3662, %v3639, %v2975
        %v3673 = vsel %vm3662, %v3640, %v2977
        %v3674 = vsel %vm3662, %v3641, %v2979
        %v3675 = vsel %vm3662, %v3642, %v2981
        %v3676 = vsel %vm3662, %v3643, %v2983
        %v3677 = vsel %vm3662, %v3644, %v2985
        %v3678 = vsel %vm3662, %v3645, %v2987
        %v3679 = vsel %vm3662, %v3646, %v2989
        %v3680 = vsel %vm3662, %v3647, %v2991
        %v3681 = vsel %vm3662, %v3648, %v2993
        %v3682 = vsel %vm3662, %v3649, %v2995
        %v3683 = vsel %vm3662, %v3650, %v2997
        %v3684 = vsel %vm3662, %v3651, %v2999
        %v3685 = vsel %vm3662, %v3652, %v3001
        %v3686 = vsel %vm3662, %v3653, %v3003
        %v3687 = vsel %vm3662, %v3654, %v3005
        %v3688 = vsel %vm3662, %v3655, %v3007
        %v3689 = vsel %vm3662, %v3656, %v3009
        %v3690 = vsel %vm3662, %v3657, %v3011
        %v3691 = vsel %vm3662, %v3658, %v3013
        %v3692 = vsel %vm3662, %v3659, %v3015
        %v3693 = vsel %vm3662, %v3660, %v3017
        %v3694 = vsel %vm3662, %v3661, %v3019
        %vm3695 = vcmask 162816
        %v3696 = vsel %vm3695, %v3663, %v3085
        %v3697 = vsel %vm3695, %v3664, %v3087
        %v3698 = vsel %vm3695, %v3665, %v3089
        %v3699 = vsel %vm3695, %v3666, %v3091
        %v3700 = vsel %vm3695, %v3667, %v3093
        %v3701 = vsel %vm3695, %v3668, %v3095
        %v3702 = vsel %vm3695, %v3669, %v3097
        %v3703 = vsel %vm3695, %v3670, %v3099
        %v3704 = vsel %vm3695, %v3671, %v3101
        %v3705 = vsel %vm3695, %v3672, %v3103
        %v3706 = vsel %vm3695, %v3673, %v3105
        %v3707 = vsel %vm3695, %v3674, %v3107
        %v3708 = vsel %vm3695, %v3675, %v3109
        %v3709 = vsel %vm3695, %v3676, %v3111
        %v3710 = vsel %vm3695, %v3677, %v3113
        %v3711 = vsel %vm3695, %v3678, %v3115
        %v3712 = vsel %vm3695, %v3679, %v3117
        %v3713 = vsel %vm3695, %v3680, %v3119
        %v3714 = vsel %vm3695, %v3681, %v3121
        %v3715 = vsel %vm3695, %v3682, %v3123
        %v3716 = vsel %vm3695, %v3683, %v3125
        %v3717 = vsel %vm3695, %v3684, %v3127
        %v3718 = vsel %vm3695, %v3685, %v3129
        %v3719 = vsel %vm3695, %v3686, %v3131
        %v3720 = vsel %vm3695, %v3687, %v3133
        %v3721 = vsel %vm3695, %v3688, %v3135
        %v3722 = vsel %vm3695, %v3689, %v3137
        %v3723 = vsel %vm3695, %v3690, %v3139
        %v3724 = vsel %vm3695, %v3691, %v3141
        %v3725 = vsel %vm3695, %v3692, %v3143
        %v3726 = vsel %vm3695, %v3693, %v3145
        %v3727 = vsel %vm3695, %v3694, %v3147
        %vm3728 = vcmask 195584
        %v3729 = vsel %vm3728, %v3696, %v3213
        %v3730 = vsel %vm3728, %v3697, %v3215
        %v3731 = vsel %vm3728, %v3698, %v3217
        %v3732 = vsel %vm3728, %v3699, %v3219
        %v3733 = vsel %vm3728, %v3700, %v3221
        %v3734 = vsel %vm3728, %v3701, %v3223
        %v3735 = vsel %vm3728, %v3702, %v3225
        %v3736 = vsel %vm3728, %v3703, %v3227
        %v3737 = vsel %vm3728, %v3704, %v3229
        %v3738 = vsel %vm3728, %v3705, %v3231
        %v3739 = vsel %vm3728, %v3706, %v3233
        %v3740 = vsel %vm3728, %v3707, %v3235
        %v3741 = vsel %vm3728, %v3708, %v3237
        %v3742 = vsel %vm3728, %v3709, %v3239
        %v3743 = vsel %vm3728, %v3710, %v3241
        %v3744 = vsel %vm3728, %v3711, %v3243
        %v3745 = vsel %vm3728, %v3712, %v3245
        %v3746 = vsel %vm3728, %v3713, %v3247
        %v3747 = vsel %vm3728, %v3714, %v3249
        %v3748 = vsel %vm3728, %v3715, %v3251
        %v3749 = vsel %vm3728, %v3716, %v3253
        %v3750 = vsel %vm3728, %v3717, %v3255
        %v3751 = vsel %vm3728, %v3718, %v3257
        %v3752 = vsel %vm3728, %v3719, %v3259
        %v3753 = vsel %vm3728, %v3720, %v3261
        %v3754 = vsel %vm3728, %v3721, %v3263
        %v3755 = vsel %vm3728, %v3722, %v3265
        %v3756 = vsel %vm3728, %v3723, %v3267
        %v3757 = vsel %vm3728, %v3724, %v3269
        %v3758 = vsel %vm3728, %v3725, %v3271
        %v3759 = vsel %vm3728, %v3726, %v3273
        %v3760 = vsel %vm3728, %v3727, %v3275
        %vm3761 = vcmask 228352
        %v3762 = vsel %vm3761, %v3729, %v3341
        %v3763 = vsel %vm3761, %v3730, %v3343
        %v3764 = vsel %vm3761, %v3731, %v3345
        %v3765 = vsel %vm3761, %v3732, %v3347
        %v3766 = vsel %vm3761, %v3733, %v3349
        %v3767 = vsel %vm3761, %v3734, %v3351
        %v3768 = vsel %vm3761, %v3735, %v3353
        %v3769 = vsel %vm3761, %v3736, %v3355
        %v3770 = vsel %vm3761, %v3737, %v3357
        %v3771 = vsel %vm3761, %v3738, %v3359
        %v3772 = vsel %vm3761, %v3739, %v3361
        %v3773 = vsel %vm3761, %v3740, %v3363
        %v3774 = vsel %vm3761, %v3741, %v3365
        %v3775 = vsel %vm3761, %v3742, %v3367
        %v3776 = vsel %vm3761, %v3743, %v3369
        %v3777 = vsel %vm3761, %v3744, %v3371
        %v3778 = vsel %vm3761, %v3745, %v3373
        %v3779 = vsel %vm3761, %v3746, %v3375
        %v3780 = vsel %vm3761, %v3747, %v3377
        %v3781 = vsel %vm3761, %v3748, %v3379
        %v3782 = vsel %vm3761, %v3749, %v3381
        %v3783 = vsel %vm3761, %v3750, %v3383
        %v3784 = vsel %vm3761, %v3751, %v3385
        %v3785 = vsel %vm3761, %v3752, %v3387
        %v3786 = vsel %vm3761, %v3753, %v3389
        %v3787 = vsel %vm3761, %v3754, %v3391
        %v3788 = vsel %vm3761, %v3755, %v3393
        %v3789 = vsel %vm3761, %v3756, %v3395
        %v3790 = vsel %vm3761, %v3757, %v3397
        %v3791 = vsel %vm3761, %v3758, %v3399
        %v3792 = vsel %vm3761, %v3759, %v3401
        %v3793 = vsel %vm3761, %v3760, %v3403
        %vm3794 = vcmask 261120
        %v3795 = vsel %vm3794, %v3762, %v3469
        %v3796 = vsel %vm3794, %v3763, %v3471
        %v3797 = vsel %vm3794, %v3764, %v3473
        %v3798 = vsel %vm3794, %v3765, %v3475
        %v3799 = vsel %vm3794, %v3766, %v3477
        %v3800 = vsel %vm3794, %v3767, %v3479
        %v3801 = vsel %vm3794, %v3768, %v3481
        %v3802 = vsel %vm3794, %v3769, %v3483
        %v3803 = vsel %vm3794, %v3770, %v3485
        %v3804 = vsel %vm3794, %v3771, %v3487
        %v3805 = vsel %vm3794, %v3772, %v3489
        %v3806 = vsel %vm3794, %v3773, %v3491
        %v3807 = vsel %vm3794, %v3774, %v3493
        %v3808 = vsel %vm3794, %v3775, %v3495
        %v3809 = vsel %vm3794, %v3776, %v3497
        %v3810 = vsel %vm3794, %v3777, %v3499
        %v3811 = vsel %vm3794, %v3778, %v3501
        %v3812 = vsel %vm3794, %v3779, %v3503
        %v3813 = vsel %vm3794, %v3780, %v3505
        %v3814 = vsel %vm3794, %v3781, %v3507
        %v3815 = vsel %vm3794, %v3782, %v3509
        %v3816 = vsel %vm3794, %v3783, %v3511
        %v3817 = vsel %vm3794, %v3784, %v3513
        %v3818 = vsel %vm3794, %v3785, %v3515
        %v3819 = vsel %vm3794, %v3786, %v3517
        %v3820 = vsel %vm3794, %v3787, %v3519
        %v3821 = vsel %vm3794, %v3788, %v3521
        %v3822 = vsel %vm3794, %v3789, %v3523
        %v3823 = vsel %vm3794, %v3790, %v3525
        %v3824 = vsel %vm3794, %v3791, %v3527
        %v3825 = vsel %vm3794, %v3792, %v3529
        %v3826 = vsel %vm3794, %v3793, %v3531
        %v3827 = vld [vmem:[%s6] sm:$0xff]
        %v3828 = vld [vmem:[%s6 + $0x8] sm:$0xff]
        %v3829 = vld [vmem:[%s6 + $0x10] sm:$0xff]
        %v3830 = vld [vmem:[%s6 + $0x18] sm:$0xff]
        %v3831 = vld [vmem:[%s6 + $0x20] sm:$0xf]
        %vm3832 = vcmask 293888
        %v3834 = vsel %vm3832, %v3795, 0
        %v3837 = vsel %vm3832, %v3796, 0
        %v3840 = vsel %vm3832, %v3797, 0
        %v3843 = vsel %vm3832, %v3798, 0
        %v3846 = vsel %vm3832, %v3799, 0
        %v3849 = vsel %vm3832, %v3800, 0
        %v3852 = vsel %vm3832, %v3801, 0
        %v3855 = vsel %vm3832, %v3802, 0
        %v3858 = vsel %vm3832, %v3803, 0
        %v3861 = vsel %vm3832, %v3804, 0
        %v3864 = vsel %vm3832, %v3805, 0
        %v3867 = vsel %vm3832, %v3806, 0
        %v3870 = vsel %vm3832, %v3807, 0
        %v3873 = vsel %vm3832, %v3808, 0
        %v3876 = vsel %vm3832, %v3809, 0
        %v3879 = vsel %vm3832, %v3810, 0
        %v3882 = vsel %vm3832, %v3811, 0
        %v3885 = vsel %vm3832, %v3812, 0
        %v3888 = vsel %vm3832, %v3813, 0
        %v3891 = vsel %vm3832, %v3814, 0
        %v3894 = vsel %vm3832, %v3815, 0
        %v3897 = vsel %vm3832, %v3816, 0
        %v3900 = vsel %vm3832, %v3817, 0
        %v3903 = vsel %vm3832, %v3818, 0
        %v3906 = vsel %vm3832, %v3819, 0
        %v3909 = vsel %vm3832, %v3820, 0
        %v3912 = vsel %vm3832, %v3821, 0
        %v3915 = vsel %vm3832, %v3822, 0
        %v3918 = vsel %vm3832, %v3823, 0
        %v3921 = vsel %vm3832, %v3824, 0
        %v3924 = vsel %vm3832, %v3825, 0
        %v3927 = vsel %vm3832, %v3826, 0
        %vm3929 = vcmask 1043456
        %v3931 = vsel %vm3929, %v3831, 0
        %3933 = vmatpush.msra.mxu0 0.0
        %3934 = vmatpush.msra.mxu0 0.0
        %3935 = vmatpush.msra.mxu0 0.0
        %3936 = vmatpush.msra.mxu0 0.0
        %3937 = vmatpush.msra.mxu0 0.0
        %3938 = vmatpush.msra.mxu0 0.0
        %3939 = vmatpush.msra.mxu0 0.0
        %3940 = vmatpush.msra.mxu0 0.0
        %3941 = vmatpush.msra.mxu0 0.0
        %3942 = vmatpush.msra.mxu0 0.0
        %3943 = vmatpush.msra.mxu0 0.0
        %3944 = vmatpush.msra.mxu0 %v3931
        %3945 = vmatpush.msra.mxu0 %v3830
        %3946 = vmatpush.msra.mxu0 %v3829
        %3947 = vmatpush.msra.mxu0 %v3828
        %3948 = vmatpush.msra.mxu0 %v3827
        %3949 = vmatmul.f32.gmra.mxu0 %v3834
        %v3950 = vpop.f32.mrf.mxu0
        %v3951 = vadd.f32 0.0, %v3950
        %3952 = vmatmul.f32.gmra.mxu0 %v3837
        %v3953 = vpop.f32.mrf.mxu0
        %v3954 = vadd.f32 0.0, %v3953
        %3955 = vmatmul.f32.gmra.mxu0 %v3840
        %v3956 = vpop.f32.mrf.mxu0
        %v3957 = vadd.f32 0.0, %v3956
        %3958 = vmatmul.f32.gmra.mxu0 %v3843
        %v3959 = vpop.f32.mrf.mxu0
        %v3960 = vadd.f32 0.0, %v3959
        %3961 = vmatmul.f32.gmra.mxu0 %v3846
        %v3962 = vpop.f32.mrf.mxu0
        %v3963 = vadd.f32 0.0, %v3962
        %3964 = vmatmul.f32.gmra.mxu0 %v3849
        %v3965 = vpop.f32.mrf.mxu0
        %v3966 = vadd.f32 0.0, %v3965
        %3967 = vmatmul.f32.gmra.mxu0 %v3852
        %v3968 = vpop.f32.mrf.mxu0
        %v3969 = vadd.f32 0.0, %v3968
        %3970 = vmatmul.f32.gmra.mxu0 %v3855
        %v3971 = vpop.f32.mrf.mxu0
        %v3972 = vadd.f32 0.0, %v3971
        %3973 = vmatmul.f32.gmra.mxu0 %v3858
        %v3974 = vpop.f32.mrf.mxu0
        %v3975 = vadd.f32 0.0, %v3974
        %3976 = vmatmul.f32.gmra.mxu0 %v3861
        %v3977 = vpop.f32.mrf.mxu0
        %v3978 = vadd.f32 0.0, %v3977
        %3979 = vmatmul.f32.gmra.mxu0 %v3864
        %v3980 = vpop.f32.mrf.mxu0
        %v3981 = vadd.f32 0.0, %v3980
        %3982 = vmatmul.f32.gmra.mxu0 %v3867
        %v3983 = vpop.f32.mrf.mxu0
        %v3984 = vadd.f32 0.0, %v3983
        %3985 = vmatmul.f32.gmra.mxu0 %v3870
        %v3986 = vpop.f32.mrf.mxu0
        %v3987 = vadd.f32 0.0, %v3986
        %3988 = vmatmul.f32.gmra.mxu0 %v3873
        %v3989 = vpop.f32.mrf.mxu0
        %v3990 = vadd.f32 0.0, %v3989
        %3991 = vmatmul.f32.gmra.mxu0 %v3876
        %v3992 = vpop.f32.mrf.mxu0
        %v3993 = vadd.f32 0.0, %v3992
        %3994 = vmatmul.f32.gmra.mxu0 %v3879
        %v3995 = vpop.f32.mrf.mxu0
        %v3996 = vadd.f32 0.0, %v3995
        %3997 = vmatmul.f32.gmra.mxu0 %v3882
        %v3998 = vpop.f32.mrf.mxu0
        %v3999 = vadd.f32 0.0, %v3998
        %4000 = vmatmul.f32.gmra.mxu0 %v3885
        %v4001 = vpop.f32.mrf.mxu0
        %v4002 = vadd.f32 0.0, %v4001
        %4003 = vmatmul.f32.gmra.mxu0 %v3888
        %v4004 = vpop.f32.mrf.mxu0
        %v4005 = vadd.f32 0.0, %v4004
        %4006 = vmatmul.f32.gmra.mxu0 %v3891
        %v4007 = vpop.f32.mrf.mxu0
        %v4008 = vadd.f32 0.0, %v4007
        %4009 = vmatmul.f32.gmra.mxu0 %v3894
        %v4010 = vpop.f32.mrf.mxu0
        %v4011 = vadd.f32 0.0, %v4010
        %4012 = vmatmul.f32.gmra.mxu0 %v3897
        %v4013 = vpop.f32.mrf.mxu0
        %v4014 = vadd.f32 0.0, %v4013
        %4015 = vmatmul.f32.gmra.mxu0 %v3900
        %v4016 = vpop.f32.mrf.mxu0
        %v4017 = vadd.f32 0.0, %v4016
        %4018 = vmatmul.f32.gmra.mxu0 %v3903
        %v4019 = vpop.f32.mrf.mxu0
        %v4020 = vadd.f32 0.0, %v4019
        %4021 = vmatmul.f32.gmra.mxu0 %v3906
        %v4022 = vpop.f32.mrf.mxu0
        %v4023 = vadd.f32 0.0, %v4022
        %4024 = vmatmul.f32.gmra.mxu0 %v3909
        %v4025 = vpop.f32.mrf.mxu0
        %v4026 = vadd.f32 0.0, %v4025
        %4027 = vmatmul.f32.gmra.mxu0 %v3912
        %v4028 = vpop.f32.mrf.mxu0
        %v4029 = vadd.f32 0.0, %v4028
        %4030 = vmatmul.f32.gmra.mxu0 %v3915
        %v4031 = vpop.f32.mrf.mxu0
        %v4032 = vadd.f32 0.0, %v4031
        %4033 = vmatmul.f32.gmra.mxu0 %v3918
        %v4034 = vpop.f32.mrf.mxu0
        %v4035 = vadd.f32 0.0, %v4034
        %4036 = vmatmul.f32.gmra.mxu0 %v3921
        %v4037 = vpop.f32.mrf.mxu0
        %v4038 = vadd.f32 0.0, %v4037
        %4039 = vmatmul.f32.gmra.mxu0 %v3924
        %v4040 = vpop.f32.mrf.mxu0
        %v4041 = vadd.f32 0.0, %v4040
        %4042 = vmatmul.f32.gmra.mxu0 %v3927
        %v4043 = vpop.f32.mrf.mxu0
        %v4044 = vadd.f32 0.0, %v4043
        %4045 = vdwg.mxu0
        %v4046 = vld [vmem:[%s780] sm:$0x1]
        %v4048 = vperm.slane %v4046, 0
        %v4050 = vmul.f32 %v3951, %v4048
        %v4051 = vmul.f32 %v3954, %v4048
        %v4052 = vmul.f32 %v3957, %v4048
        %v4053 = vmul.f32 %v3960, %v4048
        %v4054 = vmul.f32 %v3963, %v4048
        %v4055 = vmul.f32 %v3966, %v4048
        %v4056 = vmul.f32 %v3969, %v4048
        %v4057 = vmul.f32 %v3972, %v4048
        %v4058 = vmul.f32 %v3975, %v4048
        %v4059 = vmul.f32 %v3978, %v4048
        %v4060 = vmul.f32 %v3981, %v4048
        %v4061 = vmul.f32 %v3984, %v4048
        %v4062 = vmul.f32 %v3987, %v4048
        %v4063 = vmul.f32 %v3990, %v4048
        %v4064 = vmul.f32 %v3993, %v4048
        %v4065 = vmul.f32 %v3996, %v4048
        %v4066 = vmul.f32 %v3999, %v4048
        %v4067 = vmul.f32 %v4002, %v4048
        %v4068 = vmul.f32 %v4005, %v4048
        %v4069 = vmul.f32 %v4008, %v4048
        %v4070 = vmul.f32 %v4011, %v4048
        %v4071 = vmul.f32 %v4014, %v4048
        %v4072 = vmul.f32 %v4017, %v4048
        %v4073 = vmul.f32 %v4020, %v4048
        %v4074 = vmul.f32 %v4023, %v4048
        %v4075 = vmul.f32 %v4026, %v4048
        %v4076 = vmul.f32 %v4029, %v4048
        %v4077 = vmul.f32 %v4032, %v4048
        %v4078 = vmul.f32 %v4035, %v4048
        %v4079 = vmul.f32 %v4038, %v4048
        %v4080 = vmul.f32 %v4041, %v4048
        %v4081 = vmul.f32 %v4044, %v4048
        %s4082 = sld [smem:[#allocation4]]
        %v4083 = vld [vmem:[%s769] sm:$0xff]
        %v4084 = vld [vmem:[%s769 + $0x8] sm:$0xff]
        %v4085 = vld [vmem:[%s769 + $0x10] sm:$0xff]
        %v4086 = vld [vmem:[%s769 + $0x18] sm:$0xff]
        %v4087 = vld [vmem:[%s769 + $0x20] sm:$0xff]
        %v4088 = vld [vmem:[%s769 + $0x28] sm:$0xff]
        %v4089 = vld [vmem:[%s769 + $0x30] sm:$0xff]
        %v4090 = vld [vmem:[%s769 + $0x38] sm:$0xff]
        %v4091 = vld [vmem:[%s769 + $0x40] sm:$0xff]
        %v4092 = vld [vmem:[%s769 + $0x48] sm:$0xff]
        %v4093 = vld [vmem:[%s769 + $0x50] sm:$0xff]
        %v4094 = vld [vmem:[%s769 + $0x58] sm:$0xff]
        %v4095 = vld [vmem:[%s769 + $0x60] sm:$0xff]
        %v4096 = vld [vmem:[%s769 + $0x68] sm:$0xff]
        %v4097 = vld [vmem:[%s769 + $0x70] sm:$0xff]
        %v4098 = vld [vmem:[%s769 + $0x78] sm:$0xff]
        %v4099 = vld [vmem:[%s769 + $0x80] sm:$0xff]
        %v4100 = vld [vmem:[%s769 + $0x88] sm:$0xff]
        %v4101 = vld [vmem:[%s769 + $0x90] sm:$0xff]
        %v4102 = vld [vmem:[%s769 + $0x98] sm:$0xff]
        %v4103 = vld [vmem:[%s769 + $0xa0] sm:$0xff]
        %v4104 = vld [vmem:[%s769 + $0xa8] sm:$0xff]
        %v4105 = vld [vmem:[%s769 + $0xb0] sm:$0xff]
        %v4106 = vld [vmem:[%s769 + $0xb8] sm:$0xff]
        %v4107 = vld [vmem:[%s769 + $0xc0] sm:$0xff]
        %v4108 = vld [vmem:[%s769 + $0xc8] sm:$0xff]
        %v4109 = vld [vmem:[%s769 + $0xd0] sm:$0xff]
        %v4110 = vld [vmem:[%s769 + $0xd8] sm:$0xff]
        %v4111 = vld [vmem:[%s769 + $0xe0] sm:$0xff]
        %v4112 = vld [vmem:[%s769 + $0xe8] sm:$0xff]
        %v4113 = vld [vmem:[%s769 + $0xf0] sm:$0xff]
        %v4114 = vld [vmem:[%s769 + $0xf8] sm:$0xff]
        %v4115 = vstv %s4082
        %v4116 = vmul.f32 %v4115, %v4083
        %v4117 = vmul.f32 %v4115, %v4084
        %v4118 = vmul.f32 %v4115, %v4085
        %v4119 = vmul.f32 %v4115, %v4086
        %v4120 = vmul.f32 %v4115, %v4087
        %v4121 = vmul.f32 %v4115, %v4088
        %v4122 = vmul.f32 %v4115, %v4089
        %v4123 = vmul.f32 %v4115, %v4090
        %v4124 = vmul.f32 %v4115, %v4091
        %v4125 = vmul.f32 %v4115, %v4092
        %v4126 = vmul.f32 %v4115, %v4093
        %v4127 = vmul.f32 %v4115, %v4094
        %v4128 = vmul.f32 %v4115, %v4095
        %v4129 = vmul.f32 %v4115, %v4096
        %v4130 = vmul.f32 %v4115, %v4097
        %v4131 = vmul.f32 %v4115, %v4098
        %v4132 = vmul.f32 %v4115, %v4099
        %v4133 = vmul.f32 %v4115, %v4100
        %v4134 = vmul.f32 %v4115, %v4101
        %v4135 = vmul.f32 %v4115, %v4102
        %v4136 = vmul.f32 %v4115, %v4103
        %v4137 = vmul.f32 %v4115, %v4104
        %v4138 = vmul.f32 %v4115, %v4105
        %v4139 = vmul.f32 %v4115, %v4106
        %v4140 = vmul.f32 %v4115, %v4107
        %v4141 = vmul.f32 %v4115, %v4108
        %v4142 = vmul.f32 %v4115, %v4109
        %v4143 = vmul.f32 %v4115, %v4110
        %v4144 = vmul.f32 %v4115, %v4111
        %v4145 = vmul.f32 %v4115, %v4112
        %v4146 = vmul.f32 %v4115, %v4113
        %v4147 = vmul.f32 %v4115, %v4114
        %4149 = vset.pattern.permute.xlu0 0
        %4150 = vperm.xlu0 %4149, %v4116
        %v4151 = vpop.permute.xlu0 %4150
        %4154 = vset.pattern.permute.xlu0 0
        %4155 = vperm.xlu0 %4154, %v4117
        %v4156 = vpop.permute.xlu0 %4155
        %4159 = vset.pattern.permute.xlu0 0
        %4160 = vperm.xlu0 %4159, %v4118
        %v4161 = vpop.permute.xlu0 %4160
        %4164 = vset.pattern.permute.xlu0 0
        %4165 = vperm.xlu0 %4164, %v4119
        %v4166 = vpop.permute.xlu0 %4165
        %4169 = vset.pattern.permute.xlu0 0
        %4170 = vperm.xlu0 %4169, %v4120
        %v4171 = vpop.permute.xlu0 %4170
        %4174 = vset.pattern.permute.xlu0 0
        %4175 = vperm.xlu0 %4174, %v4121
        %v4176 = vpop.permute.xlu0 %4175
        %4179 = vset.pattern.permute.xlu0 0
        %4180 = vperm.xlu0 %4179, %v4122
        %v4181 = vpop.permute.xlu0 %4180
        %4184 = vset.pattern.permute.xlu0 0
        %4185 = vperm.xlu0 %4184, %v4123
        %v4186 = vpop.permute.xlu0 %4185
        %4189 = vset.pattern.permute.xlu0 0
        %4190 = vperm.xlu0 %4189, %v4124
        %v4191 = vpop.permute.xlu0 %4190
        %4194 = vset.pattern.permute.xlu0 0
        %4195 = vperm.xlu0 %4194, %v4125
        %v4196 = vpop.permute.xlu0 %4195
        %4199 = vset.pattern.permute.xlu0 0
        %4200 = vperm.xlu0 %4199, %v4126
        %v4201 = vpop.permute.xlu0 %4200
        %4204 = vset.pattern.permute.xlu0 0
        %4205 = vperm.xlu0 %4204, %v4127
        %v4206 = vpop.permute.xlu0 %4205
        %4209 = vset.pattern.permute.xlu0 0
        %4210 = vperm.xlu0 %4209, %v4128
        %v4211 = vpop.permute.xlu0 %4210
        %4214 = vset.pattern.permute.xlu0 0
        %4215 = vperm.xlu0 %4214, %v4129
        %v4216 = vpop.permute.xlu0 %4215
        %4219 = vset.pattern.permute.xlu0 0
        %4220 = vperm.xlu0 %4219, %v4130
        %v4221 = vpop.permute.xlu0 %4220
        %4224 = vset.pattern.permute.xlu0 0
        %4225 = vperm.xlu0 %4224, %v4131
        %v4226 = vpop.permute.xlu0 %4225
        %4229 = vset.pattern.permute.xlu0 0
        %4230 = vperm.xlu0 %4229, %v4132
        %v4231 = vpop.permute.xlu0 %4230
        %4234 = vset.pattern.permute.xlu0 0
        %4235 = vperm.xlu0 %4234, %v4133
        %v4236 = vpop.permute.xlu0 %4235
        %4239 = vset.pattern.permute.xlu0 0
        %4240 = vperm.xlu0 %4239, %v4134
        %v4241 = vpop.permute.xlu0 %4240
        %4244 = vset.pattern.permute.xlu0 0
        %4245 = vperm.xlu0 %4244, %v4135
        %v4246 = vpop.permute.xlu0 %4245
        %4249 = vset.pattern.permute.xlu0 0
        %4250 = vperm.xlu0 %4249, %v4136
        %v4251 = vpop.permute.xlu0 %4250
        %4254 = vset.pattern.permute.xlu0 0
        %4255 = vperm.xlu0 %4254, %v4137
        %v4256 = vpop.permute.xlu0 %4255
        %4259 = vset.pattern.permute.xlu0 0
        %4260 = vperm.xlu0 %4259, %v4138
        %v4261 = vpop.permute.xlu0 %4260
        %4264 = vset.pattern.permute.xlu0 0
        %4265 = vperm.xlu0 %4264, %v4139
        %v4266 = vpop.permute.xlu0 %4265
        %4269 = vset.pattern.permute.xlu0 0
        %4270 = vperm.xlu0 %4269, %v4140
        %v4271 = vpop.permute.xlu0 %4270
        %4274 = vset.pattern.permute.xlu0 0
        %4275 = vperm.xlu0 %4274, %v4141
        %v4276 = vpop.permute.xlu0 %4275
        %4279 = vset.pattern.permute.xlu0 0
        %4280 = vperm.xlu0 %4279, %v4142
        %v4281 = vpop.permute.xlu0 %4280
        %4284 = vset.pattern.permute.xlu0 0
        %4285 = vperm.xlu0 %4284, %v4143
        %v4286 = vpop.permute.xlu0 %4285
        %4289 = vset.pattern.permute.xlu0 0
        %4290 = vperm.xlu0 %4289, %v4144
        %v4291 = vpop.permute.xlu0 %4290
        %4294 = vset.pattern.permute.xlu0 0
        %4295 = vperm.xlu0 %4294, %v4145
        %v4296 = vpop.permute.xlu0 %4295
        %4299 = vset.pattern.permute.xlu0 0
        %4300 = vperm.xlu0 %4299, %v4146
        %v4301 = vpop.permute.xlu0 %4300
        %4304 = vset.pattern.permute.xlu0 0
        %4305 = vperm.xlu0 %4304, %v4147
        %v4306 = vpop.permute.xlu0 %4305
        %v4308 = vadd.f32 %v4050, %v4151
        %v4309 = vadd.f32 %v4051, %v4156
        %v4310 = vadd.f32 %v4052, %v4161
        %v4311 = vadd.f32 %v4053, %v4166
        %v4312 = vadd.f32 %v4054, %v4171
        %v4313 = vadd.f32 %v4055, %v4176
        %v4314 = vadd.f32 %v4056, %v4181
        %v4315 = vadd.f32 %v4057, %v4186
        %v4316 = vadd.f32 %v4058, %v4191
        %v4317 = vadd.f32 %v4059, %v4196
        %v4318 = vadd.f32 %v4060, %v4201
        %v4319 = vadd.f32 %v4061, %v4206
        %v4320 = vadd.f32 %v4062, %v4211
        %v4321 = vadd.f32 %v4063, %v4216
        %v4322 = vadd.f32 %v4064, %v4221
        %v4323 = vadd.f32 %v4065, %v4226
        %v4324 = vadd.f32 %v4066, %v4231
        %v4325 = vadd.f32 %v4067, %v4236
        %v4326 = vadd.f32 %v4068, %v4241
        %v4327 = vadd.f32 %v4069, %v4246
        %v4328 = vadd.f32 %v4070, %v4251
        %v4329 = vadd.f32 %v4071, %v4256
        %v4330 = vadd.f32 %v4072, %v4261
        %v4331 = vadd.f32 %v4073, %v4266
        %v4332 = vadd.f32 %v4074, %v4271
        %v4333 = vadd.f32 %v4075, %v4276
        %v4334 = vadd.f32 %v4076, %v4281
        %v4335 = vadd.f32 %v4077, %v4286
        %v4336 = vadd.f32 %v4078, %v4291
        %v4337 = vadd.f32 %v4079, %v4296
        %v4338 = vadd.f32 %v4080, %v4301
        %v4339 = vadd.f32 %v4081, %v4306
        %v4340 = vld [vmem:[%s14] sm:$0x1]
        %v4342 = vperm.slane %v4340, 0
        %v4344 = vadd.f32 %v4308, %v4342
        %v4345 = vadd.f32 %v4309, %v4342
        %v4346 = vadd.f32 %v4310, %v4342
        %v4347 = vadd.f32 %v4311, %v4342
        %v4348 = vadd.f32 %v4312, %v4342
        %v4349 = vadd.f32 %v4313, %v4342
        %v4350 = vadd.f32 %v4314, %v4342
        %v4351 = vadd.f32 %v4315, %v4342
        %v4352 = vadd.f32 %v4316, %v4342
        %v4353 = vadd.f32 %v4317, %v4342
        %v4354 = vadd.f32 %v4318, %v4342
        %v4355 = vadd.f32 %v4319, %v4342
        %v4356 = vadd.f32 %v4320, %v4342
        %v4357 = vadd.f32 %v4321, %v4342
        %v4358 = vadd.f32 %v4322, %v4342
        %v4359 = vadd.f32 %v4323, %v4342
        %v4360 = vadd.f32 %v4324, %v4342
        %v4361 = vadd.f32 %v4325, %v4342
        %v4362 = vadd.f32 %v4326, %v4342
        %v4363 = vadd.f32 %v4327, %v4342
        %v4364 = vadd.f32 %v4328, %v4342
        %v4365 = vadd.f32 %v4329, %v4342
        %v4366 = vadd.f32 %v4330, %v4342
        %v4367 = vadd.f32 %v4331, %v4342
        %v4368 = vadd.f32 %v4332, %v4342
        %v4369 = vadd.f32 %v4333, %v4342
        %v4370 = vadd.f32 %v4334, %v4342
        %v4371 = vadd.f32 %v4335, %v4342
        %v4372 = vadd.f32 %v4336, %v4342
        %v4373 = vadd.f32 %v4337, %v4342
        %v4374 = vadd.f32 %v4338, %v4342
        %v4375 = vadd.f32 %v4339, %v4342
        %vm4376 = vcmp.ge.f32.partialorder %v4344, 0.0
        %vm4377 = vcmp.ge.f32.partialorder %v4345, 0.0
        %vm4378 = vcmp.ge.f32.partialorder %v4346, 0.0
        %vm4379 = vcmp.ge.f32.partialorder %v4347, 0.0
        %vm4380 = vcmp.ge.f32.partialorder %v4348, 0.0
        %vm4381 = vcmp.ge.f32.partialorder %v4349, 0.0
        %vm4382 = vcmp.ge.f32.partialorder %v4350, 0.0
        %vm4383 = vcmp.ge.f32.partialorder %v4351, 0.0
        %vm4384 = vcmp.ge.f32.partialorder %v4352, 0.0
        %vm4385 = vcmp.ge.f32.partialorder %v4353, 0.0
        %vm4386 = vcmp.ge.f32.partialorder %v4354, 0.0
        %vm4387 = vcmp.ge.f32.partialorder %v4355, 0.0
        %vm4388 = vcmp.ge.f32.partialorder %v4356, 0.0
        %vm4389 = vcmp.ge.f32.partialorder %v4357, 0.0
        %vm4390 = vcmp.ge.f32.partialorder %v4358, 0.0
        %vm4391 = vcmp.ge.f32.partialorder %v4359, 0.0
        %vm4392 = vcmp.ge.f32.partialorder %v4360, 0.0
        %vm4393 = vcmp.ge.f32.partialorder %v4361, 0.0
        %vm4394 = vcmp.ge.f32.partialorder %v4362, 0.0
        %vm4395 = vcmp.ge.f32.partialorder %v4363, 0.0
        %vm4396 = vcmp.ge.f32.partialorder %v4364, 0.0
        %vm4397 = vcmp.ge.f32.partialorder %v4365, 0.0
        %vm4398 = vcmp.ge.f32.partialorder %v4366, 0.0
        %vm4399 = vcmp.ge.f32.partialorder %v4367, 0.0
        %vm4400 = vcmp.ge.f32.partialorder %v4368, 0.0
        %vm4401 = vcmp.ge.f32.partialorder %v4369, 0.0
        %vm4402 = vcmp.ge.f32.partialorder %v4370, 0.0
        %vm4403 = vcmp.ge.f32.partialorder %v4371, 0.0
        %vm4404 = vcmp.ge.f32.partialorder %v4372, 0.0
        %vm4405 = vcmp.ge.f32.partialorder %v4373, 0.0
        %vm4406 = vcmp.ge.f32.partialorder %v4374, 0.0
        %vm4407 = vcmp.ge.f32.partialorder %v4375, 0.0
        %v4408 = vmul.f32 %v4344, 0.2
        %v4409 = vmul.f32 %v4345, 0.2
        %v4410 = vmul.f32 %v4346, 0.2
        %v4411 = vmul.f32 %v4347, 0.2
        %v4412 = vmul.f32 %v4348, 0.2
        %v4413 = vmul.f32 %v4349, 0.2
        %v4414 = vmul.f32 %v4350, 0.2
        %v4415 = vmul.f32 %v4351, 0.2
        %v4416 = vmul.f32 %v4352, 0.2
        %v4417 = vmul.f32 %v4353, 0.2
        %v4418 = vmul.f32 %v4354, 0.2
        %v4419 = vmul.f32 %v4355, 0.2
        %v4420 = vmul.f32 %v4356, 0.2
        %v4421 = vmul.f32 %v4357, 0.2
        %v4422 = vmul.f32 %v4358, 0.2
        %v4423 = vmul.f32 %v4359, 0.2
        %v4424 = vmul.f32 %v4360, 0.2
        %v4425 = vmul.f32 %v4361, 0.2
        %v4426 = vmul.f32 %v4362, 0.2
        %v4427 = vmul.f32 %v4363, 0.2
        %v4428 = vmul.f32 %v4364, 0.2
        %v4429 = vmul.f32 %v4365, 0.2
        %v4430 = vmul.f32 %v4366, 0.2
        %v4431 = vmul.f32 %v4367, 0.2
        %v4432 = vmul.f32 %v4368, 0.2
        %v4433 = vmul.f32 %v4369, 0.2
        %v4434 = vmul.f32 %v4370, 0.2
        %v4435 = vmul.f32 %v4371, 0.2
        %v4436 = vmul.f32 %v4372, 0.2
        %v4437 = vmul.f32 %v4373, 0.2
        %v4438 = vmul.f32 %v4374, 0.2
        %v4439 = vmul.f32 %v4375, 0.2
        %v4440 = vsel %vm4376, %v4344, %v4408
        %v4441 = vsel %vm4377, %v4345, %v4409
        %v4442 = vsel %vm4378, %v4346, %v4410
        %v4443 = vsel %vm4379, %v4347, %v4411
        %v4444 = vsel %vm4380, %v4348, %v4412
        %v4445 = vsel %vm4381, %v4349, %v4413
        %v4446 = vsel %vm4382, %v4350, %v4414
        %v4447 = vsel %vm4383, %v4351, %v4415
        %v4448 = vsel %vm4384, %v4352, %v4416
        %v4449 = vsel %vm4385, %v4353, %v4417
        %v4450 = vsel %vm4386, %v4354, %v4418
        %v4451 = vsel %vm4387, %v4355, %v4419
        %v4452 = vsel %vm4388, %v4356, %v4420
        %v4453 = vsel %vm4389, %v4357, %v4421
        %v4454 = vsel %vm4390, %v4358, %v4422
        %v4455 = vsel %vm4391, %v4359, %v4423
        %v4456 = vsel %vm4392, %v4360, %v4424
        %v4457 = vsel %vm4393, %v4361, %v4425
        %v4458 = vsel %vm4394, %v4362, %v4426
        %v4459 = vsel %vm4395, %v4363, %v4427
        %v4460 = vsel %vm4396, %v4364, %v4428
        %v4461 = vsel %vm4397, %v4365, %v4429
        %v4462 = vsel %vm4398, %v4366, %v4430
        %v4463 = vsel %vm4399, %v4367, %v4431
        %v4464 = vsel %vm4400, %v4368, %v4432
        %v4465 = vsel %vm4401, %v4369, %v4433
        %v4466 = vsel %vm4402, %v4370, %v4434
        %v4467 = vsel %vm4403, %v4371, %v4435
        %v4468 = vsel %vm4404, %v4372, %v4436
        %v4469 = vsel %vm4405, %v4373, %v4437
        %v4470 = vsel %vm4406, %v4374, %v4438
        %v4471 = vsel %vm4407, %v4375, %v4439
        %v4472 = vmul.f32 %v4440, 1.4142135
        %v4473 = vmul.f32 %v4441, 1.4142135
        %v4474 = vmul.f32 %v4442, 1.4142135
        %v4475 = vmul.f32 %v4443, 1.4142135
        %v4476 = vmul.f32 %v4444, 1.4142135
        %v4477 = vmul.f32 %v4445, 1.4142135
        %v4478 = vmul.f32 %v4446, 1.4142135
        %v4479 = vmul.f32 %v4447, 1.4142135
        %v4480 = vmul.f32 %v4448, 1.4142135
        %v4481 = vmul.f32 %v4449, 1.4142135
        %v4482 = vmul.f32 %v4450, 1.4142135
        %v4483 = vmul.f32 %v4451, 1.4142135
        %v4484 = vmul.f32 %v4452, 1.4142135
        %v4485 = vmul.f32 %v4453, 1.4142135
        %v4486 = vmul.f32 %v4454, 1.4142135
        %v4487 = vmul.f32 %v4455, 1.4142135
        %v4488 = vmul.f32 %v4456, 1.4142135
        %v4489 = vmul.f32 %v4457, 1.4142135
        %v4490 = vmul.f32 %v4458, 1.4142135
        %v4491 = vmul.f32 %v4459, 1.4142135
        %v4492 = vmul.f32 %v4460, 1.4142135
        %v4493 = vmul.f32 %v4461, 1.4142135
        %v4494 = vmul.f32 %v4462, 1.4142135
        %v4495 = vmul.f32 %v4463, 1.4142135
        %v4496 = vmul.f32 %v4464, 1.4142135
        %v4497 = vmul.f32 %v4465, 1.4142135
        %v4498 = vmul.f32 %v4466, 1.4142135
        %v4499 = vmul.f32 %v4467, 1.4142135
        %v4500 = vmul.f32 %v4468, 1.4142135
        %v4501 = vmul.f32 %v4469, 1.4142135
        %v4502 = vmul.f32 %v4470, 1.4142135
        %v4503 = vmul.f32 %v4471, 1.4142135
        %4504 = vst.msk [vmem:[#allocation3] sm:$0xff] %vm3596, 0.0
        %4505 = vst.msk [vmem:[#allocation3 + $0x8] sm:$0xff] %vm3596, 0.0
        %vm4506 = vcmask 58368
        %4507 = vst.msk [vmem:[#allocation3 + $0x10] sm:$0x3] %vm4506, 0.0
        %4508 = vst.msk [vmem:[#allocation3 + $0x18] sm:$0xff] %vm3596, 0.0
        %4509 = vst.msk [vmem:[#allocation3 + $0x20] sm:$0xff] %vm3596, 0.0
        %4510 = vst.msk [vmem:[#allocation3 + $0x28] sm:$0x3] %vm4506, 0.0
        %4511 = vst.msk [vmem:[#allocation3 + $0x30] sm:$0xff] %vm3596, 0.0
        %4512 = vst.msk [vmem:[#allocation3 + $0x38] sm:$0xff] %vm3596, 0.0
        %4513 = vst.msk [vmem:[#allocation3 + $0x40] sm:$0x3] %vm4506, 0.0
        %4514 = vst.msk [vmem:[#allocation3 + $0x48] sm:$0xff] %vm3596, 0.0
        %4515 = vst.msk [vmem:[#allocation3 + $0x50] sm:$0xff] %vm3596, 0.0
        %4516 = vst.msk [vmem:[#allocation3 + $0x58] sm:$0x3] %vm4506, 0.0
        %4517 = vst.msk [vmem:[#allocation3 + $0x60] sm:$0xff] %vm3596, 0.0
        %4518 = vst.msk [vmem:[#allocation3 + $0x68] sm:$0xff] %vm3596, 0.0
        %4519 = vst.msk [vmem:[#allocation3 + $0x70] sm:$0x3] %vm4506, 0.0
        %4520 = vst.msk [vmem:[#allocation3 + $0x78] sm:$0xff] %vm3596, 0.0
        %4521 = vst.msk [vmem:[#allocation3 + $0x80] sm:$0xff] %vm3596, 0.0
        %4522 = vst.msk [vmem:[#allocation3 + $0x88] sm:$0x3] %vm4506, 0.0
        %4523 = vst.msk [vmem:[#allocation3 + $0x90] sm:$0xff] %vm3596, 0.0
        %4524 = vst.msk [vmem:[#allocation3 + $0x98] sm:$0xff] %vm3596, 0.0
        %4525 = vst.msk [vmem:[#allocation3 + $0xa0] sm:$0x3] %vm4506, 0.0
        %4526 = vst.msk [vmem:[#allocation3 + $0xa8] sm:$0xff] %vm3596, 0.0
        %4527 = vst.msk [vmem:[#allocation3 + $0xb0] sm:$0xff] %vm3596, 0.0
        %4528 = vst.msk [vmem:[#allocation3 + $0xb8] sm:$0x3] %vm4506, 0.0
        %4529 = vst.msk [vmem:[#allocation3 + $0xc0] sm:$0xff] %vm3596, 0.0
        %4530 = vst.msk [vmem:[#allocation3 + $0xc8] sm:$0xff] %vm3596, 0.0
        %4531 = vst.msk [vmem:[#allocation3 + $0xd0] sm:$0x3] %vm4506, 0.0
        %4532 = vst.msk [vmem:[#allocation3 + $0xd8] sm:$0xff] %vm3596, 0.0
        %4533 = vst.msk [vmem:[#allocation3 + $0xe0] sm:$0xff] %vm3596, 0.0
        %4534 = vst.msk [vmem:[#allocation3 + $0xe8] sm:$0x3] %vm4506, 0.0
        %4535 = vst.msk [vmem:[#allocation3 + $0xf0] sm:$0xff] %vm3596, 0.0
        %4536 = vst.msk [vmem:[#allocation3 + $0xf8] sm:$0xff] %vm3596, 0.0
        %4537 = vst.msk [vmem:[#allocation3 + $0x100] sm:$0x3] %vm4506, 0.0
        %4538 = vst.msk [vmem:[#allocation3 + $0x108] sm:$0xff] %vm3596, 0.0
        %4539 = vst.msk [vmem:[#allocation3 + $0x110] sm:$0xff] %vm3596, 0.0
        %4540 = vst.msk [vmem:[#allocation3 + $0x118] sm:$0x3] %vm4506, 0.0
        %4541 = vst.msk [vmem:[#allocation3 + $0x120] sm:$0xff] %vm3596, 0.0
        %4542 = vst.msk [vmem:[#allocation3 + $0x128] sm:$0xff] %vm3596, 0.0
        %4543 = vst.msk [vmem:[#allocation3 + $0x130] sm:$0x3] %vm4506, 0.0
        %4544 = vst.msk [vmem:[#allocation3 + $0x138] sm:$0xff] %vm3596, 0.0
        %4545 = vst.msk [vmem:[#allocation3 + $0x140] sm:$0xff] %vm3596, 0.0
        %4546 = vst.msk [vmem:[#allocation3 + $0x148] sm:$0x3] %vm4506, 0.0
        %4547 = vst.msk [vmem:[#allocation3 + $0x150] sm:$0xff] %vm3596, 0.0
        %4548 = vst.msk [vmem:[#allocation3 + $0x158] sm:$0xff] %vm3596, 0.0
        %4549 = vst.msk [vmem:[#allocation3 + $0x160] sm:$0x3] %vm4506, 0.0
        %4550 = vst.msk [vmem:[#allocation3 + $0x168] sm:$0xff] %vm3596, 0.0
        %4551 = vst.msk [vmem:[#allocation3 + $0x170] sm:$0xff] %vm3596, 0.0
        %4552 = vst.msk [vmem:[#allocation3 + $0x178] sm:$0x3] %vm4506, 0.0
        %4553 = vst.msk [vmem:[#allocation3 + $0x180] sm:$0xff] %vm3596, 0.0
        %4554 = vst.msk [vmem:[#allocation3 + $0x188] sm:$0xff] %vm3596, 0.0
        %4555 = vst.msk [vmem:[#allocation3 + $0x190] sm:$0x3] %vm4506, 0.0
        %4556 = vst.msk [vmem:[#allocation3 + $0x198] sm:$0xff] %vm3596, 0.0
        %4557 = vst.msk [vmem:[#allocation3 + $0x1a0] sm:$0xff] %vm3596, 0.0
        %4558 = vst.msk [vmem:[#allocation3 + $0x1a8] sm:$0x3] %vm4506, 0.0
        %v4559 = vld [vmem:[%s783] sm:$0x1]
        %v4561 = vperm.slane %v4559, 0
        %v4563 = vmul.f32 %v4472, %v4561
        %v4564 = vmul.f32 %v4473, %v4561
        %v4565 = vmul.f32 %v4474, %v4561
        %v4566 = vmul.f32 %v4475, %v4561
        %v4567 = vmul.f32 %v4476, %v4561
        %v4568 = vmul.f32 %v4477, %v4561
        %v4569 = vmul.f32 %v4478, %v4561
        %v4570 = vmul.f32 %v4479, %v4561
        %v4571 = vmul.f32 %v4480, %v4561
        %v4572 = vmul.f32 %v4481, %v4561
        %v4573 = vmul.f32 %v4482, %v4561
        %v4574 = vmul.f32 %v4483, %v4561
        %v4575 = vmul.f32 %v4484, %v4561
        %v4576 = vmul.f32 %v4485, %v4561
        %v4577 = vmul.f32 %v4486, %v4561
        %v4578 = vmul.f32 %v4487, %v4561
        %v4579 = vmul.f32 %v4488, %v4561
        %v4580 = vmul.f32 %v4489, %v4561
        %v4581 = vmul.f32 %v4490, %v4561
        %v4582 = vmul.f32 %v4491, %v4561
        %v4583 = vmul.f32 %v4492, %v4561
        %v4584 = vmul.f32 %v4493, %v4561
        %v4585 = vmul.f32 %v4494, %v4561
        %v4586 = vmul.f32 %v4495, %v4561
        %v4587 = vmul.f32 %v4496, %v4561
        %v4588 = vmul.f32 %v4497, %v4561
        %v4589 = vmul.f32 %v4498, %v4561
        %v4590 = vmul.f32 %v4499, %v4561
        %v4591 = vmul.f32 %v4500, %v4561
        %v4592 = vmul.f32 %v4501, %v4561
        %v4593 = vmul.f32 %v4502, %v4561
        %v4594 = vmul.f32 %v4503, %v4561
        %s4595 = scalar_lea.vmem [#allocation3], 24
        %4596 = vst.msk [vmem:[%s4595 + $0x1] sm:$0xff] %vm3596, %v4563
        %4597 = vst.msk [vmem:[%s4595 + $0x9] sm:$0xff] %vm3596, %v4564
        %4598 = vst.msk [vmem:[%s4595 + $0x19] sm:$0xff] %vm3596, %v4565
        %4599 = vst.msk [vmem:[%s4595 + $0x21] sm:$0xff] %vm3596, %v4566
        %4600 = vst.msk [vmem:[%s4595 + $0x31] sm:$0xff] %vm3596, %v4567
        %4601 = vst.msk [vmem:[%s4595 + $0x39] sm:$0xff] %vm3596, %v4568
        %4602 = vst.msk [vmem:[%s4595 + $0x49] sm:$0xff] %vm3596, %v4569
        %4603 = vst.msk [vmem:[%s4595 + $0x51] sm:$0xff] %vm3596, %v4570
        %4604 = vst.msk [vmem:[%s4595 + $0x61] sm:$0xff] %vm3596, %v4571
        %4605 = vst.msk [vmem:[%s4595 + $0x69] sm:$0xff] %vm3596, %v4572
        %4606 = vst.msk [vmem:[%s4595 + $0x79] sm:$0xff] %vm3596, %v4573
        %4607 = vst.msk [vmem:[%s4595 + $0x81] sm:$0xff] %vm3596, %v4574
        %4608 = vst.msk [vmem:[%s4595 + $0x91] sm:$0xff] %vm3596, %v4575
        %4609 = vst.msk [vmem:[%s4595 + $0x99] sm:$0xff] %vm3596, %v4576
        %4610 = vst.msk [vmem:[%s4595 + $0xa9] sm:$0xff] %vm3596, %v4577
        %4611 = vst.msk [vmem:[%s4595 + $0xb1] sm:$0xff] %vm3596, %v4578
        %4612 = vst.msk [vmem:[%s4595 + $0xc1] sm:$0xff] %vm3596, %v4579
        %4613 = vst.msk [vmem:[%s4595 + $0xc9] sm:$0xff] %vm3596, %v4580
        %4614 = vst.msk [vmem:[%s4595 + $0xd9] sm:$0xff] %vm3596, %v4581
        %4615 = vst.msk [vmem:[%s4595 + $0xe1] sm:$0xff] %vm3596, %v4582
        %4616 = vst.msk [vmem:[%s4595 + $0xf1] sm:$0xff] %vm3596, %v4583
        %4617 = vst.msk [vmem:[%s4595 + $0xf9] sm:$0xff] %vm3596, %v4584
        %4618 = vst.msk [vmem:[%s4595 + $0x109] sm:$0xff] %vm3596, %v4585
        %4619 = vst.msk [vmem:[%s4595 + $0x111] sm:$0xff] %vm3596, %v4586
        %4620 = vst.msk [vmem:[%s4595 + $0x121] sm:$0xff] %vm3596, %v4587
        %4621 = vst.msk [vmem:[%s4595 + $0x129] sm:$0xff] %vm3596, %v4588
        %4622 = vst.msk [vmem:[%s4595 + $0x139] sm:$0xff] %vm3596, %v4589
        %4623 = vst.msk [vmem:[%s4595 + $0x141] sm:$0xff] %vm3596, %v4590
        %4624 = vst.msk [vmem:[%s4595 + $0x151] sm:$0xff] %vm3596, %v4591
        %4625 = vst.msk [vmem:[%s4595 + $0x159] sm:$0xff] %vm3596, %v4592
        %4626 = vst.msk [vmem:[%s4595 + $0x169] sm:$0xff] %vm3596, %v4593
        %4627 = vst.msk [vmem:[%s4595 + $0x171] sm:$0xff] %vm3596, %v4594
        %v4628 = vld [vmem:[#allocation3] sm:$0xff]
        %v4629 = vld [vmem:[#allocation3 + $0x8] sm:$0xff]
        %v4630 = vld [vmem:[#allocation3 + $0x18] sm:$0xff]
        %v4631 = vld [vmem:[#allocation3 + $0x20] sm:$0xff]
        %v4632 = vld [vmem:[#allocation3 + $0x30] sm:$0xff]
        %v4633 = vld [vmem:[#allocation3 + $0x38] sm:$0xff]
        %v4634 = vld [vmem:[#allocation3 + $0x48] sm:$0xff]
        %v4635 = vld [vmem:[#allocation3 + $0x50] sm:$0xff]
        %v4636 = vld [vmem:[#allocation3 + $0x60] sm:$0xff]
        %v4637 = vld [vmem:[#allocation3 + $0x68] sm:$0xff]
        %v4638 = vld [vmem:[#allocation3 + $0x78] sm:$0xff]
        %v4639 = vld [vmem:[#allocation3 + $0x80] sm:$0xff]
        %v4640 = vld [vmem:[#allocation3 + $0x90] sm:$0xff]
        %v4641 = vld [vmem:[#allocation3 + $0x98] sm:$0xff]
        %v4642 = vld [vmem:[#allocation3 + $0xa8] sm:$0xff]
        %v4643 = vld [vmem:[#allocation3 + $0xb0] sm:$0xff]
        %v4644 = vld [vmem:[#allocation3 + $0xc0] sm:$0xff]
        %v4645 = vld [vmem:[#allocation3 + $0xc8] sm:$0xff]
        %v4646 = vld [vmem:[#allocation3 + $0xd8] sm:$0xff]
        %v4647 = vld [vmem:[#allocation3 + $0xe0] sm:$0xff]
        %v4648 = vld [vmem:[#allocation3 + $0xf0] sm:$0xff]
        %v4649 = vld [vmem:[#allocation3 + $0xf8] sm:$0xff]
        %v4650 = vld [vmem:[#allocation3 + $0x108] sm:$0xff]
        %v4651 = vld [vmem:[#allocation3 + $0x110] sm:$0xff]
        %v4652 = vld [vmem:[#allocation3 + $0x120] sm:$0xff]
        %v4653 = vld [vmem:[#allocation3 + $0x128] sm:$0xff]
        %v4654 = vld [vmem:[#allocation3 + $0x138] sm:$0xff]
        %v4655 = vld [vmem:[#allocation3 + $0x140] sm:$0xff]
        %v4656 = vld [vmem:[#allocation3 + $0x150] sm:$0xff]
        %v4657 = vld [vmem:[#allocation3 + $0x158] sm:$0xff]
        %v4658 = vld [vmem:[#allocation3 + $0x168] sm:$0xff]
        %v4659 = vld [vmem:[#allocation3 + $0x170] sm:$0xff]
        %v4660 = vld [vmem:[#allocation3 + $0x1] sm:$0xff]
        %v4661 = vld [vmem:[#allocation3 + $0x9] sm:$0xff]
        %v4662 = vld [vmem:[#allocation3 + $0x19] sm:$0xff]
        %v4663 = vld [vmem:[#allocation3 + $0x21] sm:$0xff]
        %v4664 = vld [vmem:[#allocation3 + $0x31] sm:$0xff]
        %v4665 = vld [vmem:[#allocation3 + $0x39] sm:$0xff]
        %v4666 = vld [vmem:[#allocation3 + $0x49] sm:$0xff]
        %v4667 = vld [vmem:[#allocation3 + $0x51] sm:$0xff]
        %v4668 = vld [vmem:[#allocation3 + $0x61] sm:$0xff]
        %v4669 = vld [vmem:[#allocation3 + $0x69] sm:$0xff]
        %v4670 = vld [vmem:[#allocation3 + $0x79] sm:$0xff]
        %v4671 = vld [vmem:[#allocation3 + $0x81] sm:$0xff]
        %v4672 = vld [vmem:[#allocation3 + $0x91] sm:$0xff]
        %v4673 = vld [vmem:[#allocation3 + $0x99] sm:$0xff]
        %v4674 = vld [vmem:[#allocation3 + $0xa9] sm:$0xff]
        %v4675 = vld [vmem:[#allocation3 + $0xb1] sm:$0xff]
        %v4676 = vld [vmem:[#allocation3 + $0xc1] sm:$0xff]
        %v4677 = vld [vmem:[#allocation3 + $0xc9] sm:$0xff]
        %v4678 = vld [vmem:[#allocation3 + $0xd9] sm:$0xff]
        %v4679 = vld [vmem:[#allocation3 + $0xe1] sm:$0xff]
        %v4680 = vld [vmem:[#allocation3 + $0xf1] sm:$0xff]
        %v4681 = vld [vmem:[#allocation3 + $0xf9] sm:$0xff]
        %v4682 = vld [vmem:[#allocation3 + $0x109] sm:$0xff]
        %v4683 = vld [vmem:[#allocation3 + $0x111] sm:$0xff]
        %v4684 = vld [vmem:[#allocation3 + $0x121] sm:$0xff]
        %v4685 = vld [vmem:[#allocation3 + $0x129] sm:$0xff]
        %v4686 = vld [vmem:[#allocation3 + $0x139] sm:$0xff]
        %v4687 = vld [vmem:[#allocation3 + $0x141] sm:$0xff]
        %v4688 = vld [vmem:[#allocation3 + $0x151] sm:$0xff]
        %v4689 = vld [vmem:[#allocation3 + $0x159] sm:$0xff]
        %v4690 = vld [vmem:[#allocation3 + $0x169] sm:$0xff]
        %v4691 = vld [vmem:[#allocation3 + $0x171] sm:$0xff]
        %v4692 = vld [vmem:[#allocation3 + $0x2] sm:$0xff]
        %v4693 = vld [vmem:[#allocation3 + $0xa] sm:$0xff]
        %v4694 = vld [vmem:[#allocation3 + $0x1a] sm:$0xff]
        %v4695 = vld [vmem:[#allocation3 + $0x22] sm:$0xff]
        %v4696 = vld [vmem:[#allocation3 + $0x32] sm:$0xff]
        %v4697 = vld [vmem:[#allocation3 + $0x3a] sm:$0xff]
        %v4698 = vld [vmem:[#allocation3 + $0x4a] sm:$0xff]
        %v4699 = vld [vmem:[#allocation3 + $0x52] sm:$0xff]
        %v4700 = vld [vmem:[#allocation3 + $0x62] sm:$0xff]
        %v4701 = vld [vmem:[#allocation3 + $0x6a] sm:$0xff]
        %v4702 = vld [vmem:[#allocation3 + $0x7a] sm:$0xff]
        %v4703 = vld [vmem:[#allocation3 + $0x82] sm:$0xff]
        %v4704 = vld [vmem:[#allocation3 + $0x92] sm:$0xff]
        %v4705 = vld [vmem:[#allocation3 + $0x9a] sm:$0xff]
        %v4706 = vld [vmem:[#allocation3 + $0xaa] sm:$0xff]
        %v4707 = vld [vmem:[#allocation3 + $0xb2] sm:$0xff]
        %v4708 = vld [vmem:[#allocation3 + $0xc2] sm:$0xff]
        %v4709 = vld [vmem:[#allocation3 + $0xca] sm:$0xff]
        %v4710 = vld [vmem:[#allocation3 + $0xda] sm:$0xff]
        %v4711 = vld [vmem:[#allocation3 + $0xe2] sm:$0xff]
        %v4712 = vld [vmem:[#allocation3 + $0xf2] sm:$0xff]
        %v4713 = vld [vmem:[#allocation3 + $0xfa] sm:$0xff]
        %v4714 = vld [vmem:[#allocation3 + $0x10a] sm:$0xff]
        %v4715 = vld [vmem:[#allocation3 + $0x112] sm:$0xff]
        %v4716 = vld [vmem:[#allocation3 + $0x122] sm:$0xff]
        %v4717 = vld [vmem:[#allocation3 + $0x12a] sm:$0xff]
        %v4718 = vld [vmem:[#allocation3 + $0x13a] sm:$0xff]
        %v4719 = vld [vmem:[#allocation3 + $0x142] sm:$0xff]
        %v4720 = vld [vmem:[#allocation3 + $0x152] sm:$0xff]
        %v4721 = vld [vmem:[#allocation3 + $0x15a] sm:$0xff]
        %v4722 = vld [vmem:[#allocation3 + $0x16a] sm:$0xff]
        %v4723 = vld [vmem:[#allocation3 + $0x172] sm:$0xff]
        %v4724 = vld [vmem:[%s4595] sm:$0xff]
        %v4725 = vld [vmem:[%s4595 + $0x8] sm:$0xff]
        %v4726 = vld [vmem:[%s4595 + $0x18] sm:$0xff]
        %v4727 = vld [vmem:[%s4595 + $0x20] sm:$0xff]
        %v4728 = vld [vmem:[%s4595 + $0x30] sm:$0xff]
        %v4729 = vld [vmem:[%s4595 + $0x38] sm:$0xff]
        %v4730 = vld [vmem:[%s4595 + $0x48] sm:$0xff]
        %v4731 = vld [vmem:[%s4595 + $0x50] sm:$0xff]
        %v4732 = vld [vmem:[%s4595 + $0x60] sm:$0xff]
        %v4733 = vld [vmem:[%s4595 + $0x68] sm:$0xff]
        %v4734 = vld [vmem:[%s4595 + $0x78] sm:$0xff]
        %v4735 = vld [vmem:[%s4595 + $0x80] sm:$0xff]
        %v4736 = vld [vmem:[%s4595 + $0x90] sm:$0xff]
        %v4737 = vld [vmem:[%s4595 + $0x98] sm:$0xff]
        %v4738 = vld [vmem:[%s4595 + $0xa8] sm:$0xff]
        %v4739 = vld [vmem:[%s4595 + $0xb0] sm:$0xff]
        %v4740 = vld [vmem:[%s4595 + $0xc0] sm:$0xff]
        %v4741 = vld [vmem:[%s4595 + $0xc8] sm:$0xff]
        %v4742 = vld [vmem:[%s4595 + $0xd8] sm:$0xff]
        %v4743 = vld [vmem:[%s4595 + $0xe0] sm:$0xff]
        %v4744 = vld [vmem:[%s4595 + $0xf0] sm:$0xff]
        %v4745 = vld [vmem:[%s4595 + $0xf8] sm:$0xff]
        %v4746 = vld [vmem:[%s4595 + $0x108] sm:$0xff]
        %v4747 = vld [vmem:[%s4595 + $0x110] sm:$0xff]
        %v4748 = vld [vmem:[%s4595 + $0x120] sm:$0xff]
        %v4749 = vld [vmem:[%s4595 + $0x128] sm:$0xff]
        %v4750 = vld [vmem:[%s4595 + $0x138] sm:$0xff]
        %v4751 = vld [vmem:[%s4595 + $0x140] sm:$0xff]
        %v4752 = vld [vmem:[%s4595 + $0x150] sm:$0xff]
        %v4753 = vld [vmem:[%s4595 + $0x158] sm:$0xff]
        %v4754 = vld [vmem:[%s4595 + $0x168] sm:$0xff]
        %v4755 = vld [vmem:[%s4595 + $0x170] sm:$0xff]
        %v4756 = vld [vmem:[%s4595 + $0x1] sm:$0xff]
        %v4757 = vld [vmem:[%s4595 + $0x9] sm:$0xff]
        %v4758 = vld [vmem:[%s4595 + $0x19] sm:$0xff]
        %v4759 = vld [vmem:[%s4595 + $0x21] sm:$0xff]
        %v4760 = vld [vmem:[%s4595 + $0x31] sm:$0xff]
        %v4761 = vld [vmem:[%s4595 + $0x39] sm:$0xff]
        %v4762 = vld [vmem:[%s4595 + $0x49] sm:$0xff]
        %v4763 = vld [vmem:[%s4595 + $0x51] sm:$0xff]
        %v4764 = vld [vmem:[%s4595 + $0x61] sm:$0xff]
        %v4765 = vld [vmem:[%s4595 + $0x69] sm:$0xff]
        %v4766 = vld [vmem:[%s4595 + $0x79] sm:$0xff]
        %v4767 = vld [vmem:[%s4595 + $0x81] sm:$0xff]
        %v4768 = vld [vmem:[%s4595 + $0x91] sm:$0xff]
        %v4769 = vld [vmem:[%s4595 + $0x99] sm:$0xff]
        %v4770 = vld [vmem:[%s4595 + $0xa9] sm:$0xff]
        %v4771 = vld [vmem:[%s4595 + $0xb1] sm:$0xff]
        %v4772 = vld [vmem:[%s4595 + $0xc1] sm:$0xff]
        %v4773 = vld [vmem:[%s4595 + $0xc9] sm:$0xff]
        %v4774 = vld [vmem:[%s4595 + $0xd9] sm:$0xff]
        %v4775 = vld [vmem:[%s4595 + $0xe1] sm:$0xff]
        %v4776 = vld [vmem:[%s4595 + $0xf1] sm:$0xff]
        %v4777 = vld [vmem:[%s4595 + $0xf9] sm:$0xff]
        %v4778 = vld [vmem:[%s4595 + $0x109] sm:$0xff]
        %v4779 = vld [vmem:[%s4595 + $0x111] sm:$0xff]
        %v4780 = vld [vmem:[%s4595 + $0x121] sm:$0xff]
        %v4781 = vld [vmem:[%s4595 + $0x129] sm:$0xff]
        %v4782 = vld [vmem:[%s4595 + $0x139] sm:$0xff]
        %v4783 = vld [vmem:[%s4595 + $0x141] sm:$0xff]
        %v4784 = vld [vmem:[%s4595 + $0x151] sm:$0xff]
        %v4785 = vld [vmem:[%s4595 + $0x159] sm:$0xff]
        %v4786 = vld [vmem:[%s4595 + $0x169] sm:$0xff]
        %v4787 = vld [vmem:[%s4595 + $0x171] sm:$0xff]
        %v4788 = vld [vmem:[%s4595 + $0x2] sm:$0xff]
        %v4789 = vld [vmem:[%s4595 + $0xa] sm:$0xff]
        %v4790 = vld [vmem:[%s4595 + $0x1a] sm:$0xff]
        %v4791 = vld [vmem:[%s4595 + $0x22] sm:$0xff]
        %v4792 = vld [vmem:[%s4595 + $0x32] sm:$0xff]
        %v4793 = vld [vmem:[%s4595 + $0x3a] sm:$0xff]
        %v4794 = vld [vmem:[%s4595 + $0x4a] sm:$0xff]
        %v4795 = vld [vmem:[%s4595 + $0x52] sm:$0xff]
        %v4796 = vld [vmem:[%s4595 + $0x62] sm:$0xff]
        %v4797 = vld [vmem:[%s4595 + $0x6a] sm:$0xff]
        %v4798 = vld [vmem:[%s4595 + $0x7a] sm:$0xff]
        %v4799 = vld [vmem:[%s4595 + $0x82] sm:$0xff]
        %v4800 = vld [vmem:[%s4595 + $0x92] sm:$0xff]
        %v4801 = vld [vmem:[%s4595 + $0x9a] sm:$0xff]
        %v4802 = vld [vmem:[%s4595 + $0xaa] sm:$0xff]
        %v4803 = vld [vmem:[%s4595 + $0xb2] sm:$0xff]
        %v4804 = vld [vmem:[%s4595 + $0xc2] sm:$0xff]
        %v4805 = vld [vmem:[%s4595 + $0xca] sm:$0xff]
        %v4806 = vld [vmem:[%s4595 + $0xda] sm:$0xff]
        %v4807 = vld [vmem:[%s4595 + $0xe2] sm:$0xff]
        %v4808 = vld [vmem:[%s4595 + $0xf2] sm:$0xff]
        %v4809 = vld [vmem:[%s4595 + $0xfa] sm:$0xff]
        %v4810 = vld [vmem:[%s4595 + $0x10a] sm:$0xff]
        %v4811 = vld [vmem:[%s4595 + $0x112] sm:$0xff]
        %v4812 = vld [vmem:[%s4595 + $0x122] sm:$0xff]
        %v4813 = vld [vmem:[%s4595 + $0x12a] sm:$0xff]
        %v4814 = vld [vmem:[%s4595 + $0x13a] sm:$0xff]
        %v4815 = vld [vmem:[%s4595 + $0x142] sm:$0xff]
        %v4816 = vld [vmem:[%s4595 + $0x152] sm:$0xff]
        %v4817 = vld [vmem:[%s4595 + $0x15a] sm:$0xff]
        %v4818 = vld [vmem:[%s4595 + $0x16a] sm:$0xff]
        %v4819 = vld [vmem:[%s4595 + $0x172] sm:$0xff]
        %s4820 = scalar_lea.vmem [#allocation3], 48
        %v4821 = vld [vmem:[%s4820] sm:$0xff]
        %v4822 = vld [vmem:[%s4820 + $0x8] sm:$0xff]
        %v4823 = vld [vmem:[%s4820 + $0x18] sm:$0xff]
        %v4824 = vld [vmem:[%s4820 + $0x20] sm:$0xff]
        %v4825 = vld [vmem:[%s4820 + $0x30] sm:$0xff]
        %v4826 = vld [vmem:[%s4820 + $0x38] sm:$0xff]
        %v4827 = vld [vmem:[%s4820 + $0x48] sm:$0xff]
        %v4828 = vld [vmem:[%s4820 + $0x50] sm:$0xff]
        %v4829 = vld [vmem:[%s4820 + $0x60] sm:$0xff]
        %v4830 = vld [vmem:[%s4820 + $0x68] sm:$0xff]
        %v4831 = vld [vmem:[%s4820 + $0x78] sm:$0xff]
        %v4832 = vld [vmem:[%s4820 + $0x80] sm:$0xff]
        %v4833 = vld [vmem:[%s4820 + $0x90] sm:$0xff]
        %v4834 = vld [vmem:[%s4820 + $0x98] sm:$0xff]
        %v4835 = vld [vmem:[%s4820 + $0xa8] sm:$0xff]
        %v4836 = vld [vmem:[%s4820 + $0xb0] sm:$0xff]
        %v4837 = vld [vmem:[%s4820 + $0xc0] sm:$0xff]
        %v4838 = vld [vmem:[%s4820 + $0xc8] sm:$0xff]
        %v4839 = vld [vmem:[%s4820 + $0xd8] sm:$0xff]
        %v4840 = vld [vmem:[%s4820 + $0xe0] sm:$0xff]
        %v4841 = vld [vmem:[%s4820 + $0xf0] sm:$0xff]
        %v4842 = vld [vmem:[%s4820 + $0xf8] sm:$0xff]
        %v4843 = vld [vmem:[%s4820 + $0x108] sm:$0xff]
        %v4844 = vld [vmem:[%s4820 + $0x110] sm:$0xff]
        %v4845 = vld [vmem:[%s4820 + $0x120] sm:$0xff]
        %v4846 = vld [vmem:[%s4820 + $0x128] sm:$0xff]
        %v4847 = vld [vmem:[%s4820 + $0x138] sm:$0xff]
        %v4848 = vld [vmem:[%s4820 + $0x140] sm:$0xff]
        %v4849 = vld [vmem:[%s4820 + $0x150] sm:$0xff]
        %v4850 = vld [vmem:[%s4820 + $0x158] sm:$0xff]
        %v4851 = vld [vmem:[%s4820 + $0x168] sm:$0xff]
        %v4852 = vld [vmem:[%s4820 + $0x170] sm:$0xff]
        %v4853 = vld [vmem:[%s4820 + $0x1] sm:$0xff]
        %v4854 = vld [vmem:[%s4820 + $0x9] sm:$0xff]
        %v4855 = vld [vmem:[%s4820 + $0x19] sm:$0xff]
        %v4856 = vld [vmem:[%s4820 + $0x21] sm:$0xff]
        %v4857 = vld [vmem:[%s4820 + $0x31] sm:$0xff]
        %v4858 = vld [vmem:[%s4820 + $0x39] sm:$0xff]
        %v4859 = vld [vmem:[%s4820 + $0x49] sm:$0xff]
        %v4860 = vld [vmem:[%s4820 + $0x51] sm:$0xff]
        %v4861 = vld [vmem:[%s4820 + $0x61] sm:$0xff]
        %v4862 = vld [vmem:[%s4820 + $0x69] sm:$0xff]
        %v4863 = vld [vmem:[%s4820 + $0x79] sm:$0xff]
        %v4864 = vld [vmem:[%s4820 + $0x81] sm:$0xff]
        %v4865 = vld [vmem:[%s4820 + $0x91] sm:$0xff]
        %v4866 = vld [vmem:[%s4820 + $0x99] sm:$0xff]
        %v4867 = vld [vmem:[%s4820 + $0xa9] sm:$0xff]
        %v4868 = vld [vmem:[%s4820 + $0xb1] sm:$0xff]
        %v4869 = vld [vmem:[%s4820 + $0xc1] sm:$0xff]
        %v4870 = vld [vmem:[%s4820 + $0xc9] sm:$0xff]
        %v4871 = vld [vmem:[%s4820 + $0xd9] sm:$0xff]
        %v4872 = vld [vmem:[%s4820 + $0xe1] sm:$0xff]
        %v4873 = vld [vmem:[%s4820 + $0xf1] sm:$0xff]
        %v4874 = vld [vmem:[%s4820 + $0xf9] sm:$0xff]
        %v4875 = vld [vmem:[%s4820 + $0x109] sm:$0xff]
        %v4876 = vld [vmem:[%s4820 + $0x111] sm:$0xff]
        %v4877 = vld [vmem:[%s4820 + $0x121] sm:$0xff]
        %v4878 = vld [vmem:[%s4820 + $0x129] sm:$0xff]
        %v4879 = vld [vmem:[%s4820 + $0x139] sm:$0xff]
        %v4880 = vld [vmem:[%s4820 + $0x141] sm:$0xff]
        %v4881 = vld [vmem:[%s4820 + $0x151] sm:$0xff]
        %v4882 = vld [vmem:[%s4820 + $0x159] sm:$0xff]
        %v4883 = vld [vmem:[%s4820 + $0x169] sm:$0xff]
        %v4884 = vld [vmem:[%s4820 + $0x171] sm:$0xff]
        %v4885 = vld [vmem:[%s4820 + $0x2] sm:$0xff]
        %v4886 = vld [vmem:[%s4820 + $0xa] sm:$0xff]
        %v4887 = vld [vmem:[%s4820 + $0x1a] sm:$0xff]
        %v4888 = vld [vmem:[%s4820 + $0x22] sm:$0xff]
        %v4889 = vld [vmem:[%s4820 + $0x32] sm:$0xff]
        %v4890 = vld [vmem:[%s4820 + $0x3a] sm:$0xff]
        %v4891 = vld [vmem:[%s4820 + $0x4a] sm:$0xff]
        %v4892 = vld [vmem:[%s4820 + $0x52] sm:$0xff]
        %v4893 = vld [vmem:[%s4820 + $0x62] sm:$0xff]
        %v4894 = vld [vmem:[%s4820 + $0x6a] sm:$0xff]
        %v4895 = vld [vmem:[%s4820 + $0x7a] sm:$0xff]
        %v4896 = vld [vmem:[%s4820 + $0x82] sm:$0xff]
        %v4897 = vld [vmem:[%s4820 + $0x92] sm:$0xff]
        %v4898 = vld [vmem:[%s4820 + $0x9a] sm:$0xff]
        %v4899 = vld [vmem:[%s4820 + $0xaa] sm:$0xff]
        %v4900 = vld [vmem:[%s4820 + $0xb2] sm:$0xff]
        %v4901 = vld [vmem:[%s4820 + $0xc2] sm:$0xff]
        %v4902 = vld [vmem:[%s4820 + $0xca] sm:$0xff]
        %v4903 = vld [vmem:[%s4820 + $0xda] sm:$0xff]
        %v4904 = vld [vmem:[%s4820 + $0xe2] sm:$0xff]
        %v4905 = vld [vmem:[%s4820 + $0xf2] sm:$0xff]
        %v4906 = vld [vmem:[%s4820 + $0xfa] sm:$0xff]
        %v4907 = vld [vmem:[%s4820 + $0x10a] sm:$0xff]
        %v4908 = vld [vmem:[%s4820 + $0x112] sm:$0xff]
        %v4909 = vld [vmem:[%s4820 + $0x122] sm:$0xff]
        %v4910 = vld [vmem:[%s4820 + $0x12a] sm:$0xff]
        %v4911 = vld [vmem:[%s4820 + $0x13a] sm:$0xff]
        %v4912 = vld [vmem:[%s4820 + $0x142] sm:$0xff]
        %v4913 = vld [vmem:[%s4820 + $0x152] sm:$0xff]
        %v4914 = vld [vmem:[%s4820 + $0x15a] sm:$0xff]
        %v4915 = vld [vmem:[%s4820 + $0x16a] sm:$0xff]
        %v4916 = vld [vmem:[%s4820 + $0x172] sm:$0xff]
        %4949 = vrot.lane.b32.xlu0 %v4660, 8
        %v4950 = vpop.permute.xlu0 %4949
        %4951 = vrot.lane.b32.xlu0 %v4661, 8
        %v4952 = vpop.permute.xlu0 %4951
        %4953 = vrot.lane.b32.xlu0 %v4662, 8
        %v4954 = vpop.permute.xlu0 %4953
        %4955 = vrot.lane.b32.xlu0 %v4663, 8
        %v4956 = vpop.permute.xlu0 %4955
        %4957 = vrot.lane.b32.xlu0 %v4664, 8
        %v4958 = vpop.permute.xlu0 %4957
        %4959 = vrot.lane.b32.xlu0 %v4665, 8
        %v4960 = vpop.permute.xlu0 %4959
        %4961 = vrot.lane.b32.xlu0 %v4666, 8
        %v4962 = vpop.permute.xlu0 %4961
        %4963 = vrot.lane.b32.xlu0 %v4667, 8
        %v4964 = vpop.permute.xlu0 %4963
        %4965 = vrot.lane.b32.xlu0 %v4668, 8
        %v4966 = vpop.permute.xlu0 %4965
        %4967 = vrot.lane.b32.xlu0 %v4669, 8
        %v4968 = vpop.permute.xlu0 %4967
        %4969 = vrot.lane.b32.xlu0 %v4670, 8
        %v4970 = vpop.permute.xlu0 %4969
        %4971 = vrot.lane.b32.xlu0 %v4671, 8
        %v4972 = vpop.permute.xlu0 %4971
        %4973 = vrot.lane.b32.xlu0 %v4672, 8
        %v4974 = vpop.permute.xlu0 %4973
        %4975 = vrot.lane.b32.xlu0 %v4673, 8
        %v4976 = vpop.permute.xlu0 %4975
        %4977 = vrot.lane.b32.xlu0 %v4674, 8
        %v4978 = vpop.permute.xlu0 %4977
        %4979 = vrot.lane.b32.xlu0 %v4675, 8
        %v4980 = vpop.permute.xlu0 %4979
        %4981 = vrot.lane.b32.xlu0 %v4676, 8
        %v4982 = vpop.permute.xlu0 %4981
        %4983 = vrot.lane.b32.xlu0 %v4677, 8
        %v4984 = vpop.permute.xlu0 %4983
        %4985 = vrot.lane.b32.xlu0 %v4678, 8
        %v4986 = vpop.permute.xlu0 %4985
        %4987 = vrot.lane.b32.xlu0 %v4679, 8
        %v4988 = vpop.permute.xlu0 %4987
        %4989 = vrot.lane.b32.xlu0 %v4680, 8
        %v4990 = vpop.permute.xlu0 %4989
        %4991 = vrot.lane.b32.xlu0 %v4681, 8
        %v4992 = vpop.permute.xlu0 %4991
        %4993 = vrot.lane.b32.xlu0 %v4682, 8
        %v4994 = vpop.permute.xlu0 %4993
        %4995 = vrot.lane.b32.xlu0 %v4683, 8
        %v4996 = vpop.permute.xlu0 %4995
        %4997 = vrot.lane.b32.xlu0 %v4684, 8
        %v4998 = vpop.permute.xlu0 %4997
        %4999 = vrot.lane.b32.xlu0 %v4685, 8
        %v5000 = vpop.permute.xlu0 %4999
        %5001 = vrot.lane.b32.xlu0 %v4686, 8
        %v5002 = vpop.permute.xlu0 %5001
        %5003 = vrot.lane.b32.xlu0 %v4687, 8
        %v5004 = vpop.permute.xlu0 %5003
        %5005 = vrot.lane.b32.xlu0 %v4688, 8
        %v5006 = vpop.permute.xlu0 %5005
        %5007 = vrot.lane.b32.xlu0 %v4689, 8
        %v5008 = vpop.permute.xlu0 %5007
        %5009 = vrot.lane.b32.xlu0 %v4690, 8
        %v5010 = vpop.permute.xlu0 %5009
        %5011 = vrot.lane.b32.xlu0 %v4691, 8
        %v5012 = vpop.permute.xlu0 %5011
        %5077 = vrot.lane.b32.xlu0 %v4692, 16
        %v5078 = vpop.permute.xlu0 %5077
        %5079 = vrot.lane.b32.xlu0 %v4693, 16
        %v5080 = vpop.permute.xlu0 %5079
        %5081 = vrot.lane.b32.xlu0 %v4694, 16
        %v5082 = vpop.permute.xlu0 %5081
        %5083 = vrot.lane.b32.xlu0 %v4695, 16
        %v5084 = vpop.permute.xlu0 %5083
        %5085 = vrot.lane.b32.xlu0 %v4696, 16
        %v5086 = vpop.permute.xlu0 %5085
        %5087 = vrot.lane.b32.xlu0 %v4697, 16
        %v5088 = vpop.permute.xlu0 %5087
        %5089 = vrot.lane.b32.xlu0 %v4698, 16
        %v5090 = vpop.permute.xlu0 %5089
        %5091 = vrot.lane.b32.xlu0 %v4699, 16
        %v5092 = vpop.permute.xlu0 %5091
        %5093 = vrot.lane.b32.xlu0 %v4700, 16
        %v5094 = vpop.permute.xlu0 %5093
        %5095 = vrot.lane.b32.xlu0 %v4701, 16
        %v5096 = vpop.permute.xlu0 %5095
        %5097 = vrot.lane.b32.xlu0 %v4702, 16
        %v5098 = vpop.permute.xlu0 %5097
        %5099 = vrot.lane.b32.xlu0 %v4703, 16
        %v5100 = vpop.permute.xlu0 %5099
        %5101 = vrot.lane.b32.xlu0 %v4704, 16
        %v5102 = vpop.permute.xlu0 %5101
        %5103 = vrot.lane.b32.xlu0 %v4705, 16
        %v5104 = vpop.permute.xlu0 %5103
        %5105 = vrot.lane.b32.xlu0 %v4706, 16
        %v5106 = vpop.permute.xlu0 %5105
        %5107 = vrot.lane.b32.xlu0 %v4707, 16
        %v5108 = vpop.permute.xlu0 %5107
        %5109 = vrot.lane.b32.xlu0 %v4708, 16
        %v5110 = vpop.permute.xlu0 %5109
        %5111 = vrot.lane.b32.xlu0 %v4709, 16
        %v5112 = vpop.permute.xlu0 %5111
        %5113 = vrot.lane.b32.xlu0 %v4710, 16
        %v5114 = vpop.permute.xlu0 %5113
        %5115 = vrot.lane.b32.xlu0 %v4711, 16
        %v5116 = vpop.permute.xlu0 %5115
        %5117 = vrot.lane.b32.xlu0 %v4712, 16
        %v5118 = vpop.permute.xlu0 %5117
        %5119 = vrot.lane.b32.xlu0 %v4713, 16
        %v5120 = vpop.permute.xlu0 %5119
        %5121 = vrot.lane.b32.xlu0 %v4714, 16
        %v5122 = vpop.permute.xlu0 %5121
        %5123 = vrot.lane.b32.xlu0 %v4715, 16
        %v5124 = vpop.permute.xlu0 %5123
        %5125 = vrot.lane.b32.xlu0 %v4716, 16
        %v5126 = vpop.permute.xlu0 %5125
        %5127 = vrot.lane.b32.xlu0 %v4717, 16
        %v5128 = vpop.permute.xlu0 %5127
        %5129 = vrot.lane.b32.xlu0 %v4718, 16
        %v5130 = vpop.permute.xlu0 %5129
        %5131 = vrot.lane.b32.xlu0 %v4719, 16
        %v5132 = vpop.permute.xlu0 %5131
        %5133 = vrot.lane.b32.xlu0 %v4720, 16
        %v5134 = vpop.permute.xlu0 %5133
        %5135 = vrot.lane.b32.xlu0 %v4721, 16
        %v5136 = vpop.permute.xlu0 %5135
        %5137 = vrot.lane.b32.xlu0 %v4722, 16
        %v5138 = vpop.permute.xlu0 %5137
        %5139 = vrot.lane.b32.xlu0 %v4723, 16
        %v5140 = vpop.permute.xlu0 %5139
        %5205 = vrot.lane.b32.xlu0 %v4724, 24
        %v5206 = vpop.permute.xlu0 %5205
        %5207 = vrot.lane.b32.xlu0 %v4725, 24
        %v5208 = vpop.permute.xlu0 %5207
        %5209 = vrot.lane.b32.xlu0 %v4726, 24
        %v5210 = vpop.permute.xlu0 %5209
        %5211 = vrot.lane.b32.xlu0 %v4727, 24
        %v5212 = vpop.permute.xlu0 %5211
        %5213 = vrot.lane.b32.xlu0 %v4728, 24
        %v5214 = vpop.permute.xlu0 %5213
        %5215 = vrot.lane.b32.xlu0 %v4729, 24
        %v5216 = vpop.permute.xlu0 %5215
        %5217 = vrot.lane.b32.xlu0 %v4730, 24
        %v5218 = vpop.permute.xlu0 %5217
        %5219 = vrot.lane.b32.xlu0 %v4731, 24
        %v5220 = vpop.permute.xlu0 %5219
        %5221 = vrot.lane.b32.xlu0 %v4732, 24
        %v5222 = vpop.permute.xlu0 %5221
        %5223 = vrot.lane.b32.xlu0 %v4733, 24
        %v5224 = vpop.permute.xlu0 %5223
        %5225 = vrot.lane.b32.xlu0 %v4734, 24
        %v5226 = vpop.permute.xlu0 %5225
        %5227 = vrot.lane.b32.xlu0 %v4735, 24
        %v5228 = vpop.permute.xlu0 %5227
        %5229 = vrot.lane.b32.xlu0 %v4736, 24
        %v5230 = vpop.permute.xlu0 %5229
        %5231 = vrot.lane.b32.xlu0 %v4737, 24
        %v5232 = vpop.permute.xlu0 %5231
        %5233 = vrot.lane.b32.xlu0 %v4738, 24
        %v5234 = vpop.permute.xlu0 %5233
        %5235 = vrot.lane.b32.xlu0 %v4739, 24
        %v5236 = vpop.permute.xlu0 %5235
        %5237 = vrot.lane.b32.xlu0 %v4740, 24
        %v5238 = vpop.permute.xlu0 %5237
        %5239 = vrot.lane.b32.xlu0 %v4741, 24
        %v5240 = vpop.permute.xlu0 %5239
        %5241 = vrot.lane.b32.xlu0 %v4742, 24
        %v5242 = vpop.permute.xlu0 %5241
        %5243 = vrot.lane.b32.xlu0 %v4743, 24
        %v5244 = vpop.permute.xlu0 %5243
        %5245 = vrot.lane.b32.xlu0 %v4744, 24
        %v5246 = vpop.permute.xlu0 %5245
        %5247 = vrot.lane.b32.xlu0 %v4745, 24
        %v5248 = vpop.permute.xlu0 %5247
        %5249 = vrot.lane.b32.xlu0 %v4746, 24
        %v5250 = vpop.permute.xlu0 %5249
        %5251 = vrot.lane.b32.xlu0 %v4747, 24
        %v5252 = vpop.permute.xlu0 %5251
        %5253 = vrot.lane.b32.xlu0 %v4748, 24
        %v5254 = vpop.permute.xlu0 %5253
        %5255 = vrot.lane.b32.xlu0 %v4749, 24
        %v5256 = vpop.permute.xlu0 %5255
        %5257 = vrot.lane.b32.xlu0 %v4750, 24
        %v5258 = vpop.permute.xlu0 %5257
        %5259 = vrot.lane.b32.xlu0 %v4751, 24
        %v5260 = vpop.permute.xlu0 %5259
        %5261 = vrot.lane.b32.xlu0 %v4752, 24
        %v5262 = vpop.permute.xlu0 %5261
        %5263 = vrot.lane.b32.xlu0 %v4753, 24
        %v5264 = vpop.permute.xlu0 %5263
        %5265 = vrot.lane.b32.xlu0 %v4754, 24
        %v5266 = vpop.permute.xlu0 %5265
        %5267 = vrot.lane.b32.xlu0 %v4755, 24
        %v5268 = vpop.permute.xlu0 %5267
        %5333 = vrot.lane.b32.xlu0 %v4756, 32
        %v5334 = vpop.permute.xlu0 %5333
        %5335 = vrot.lane.b32.xlu0 %v4757, 32
        %v5336 = vpop.permute.xlu0 %5335
        %5337 = vrot.lane.b32.xlu0 %v4758, 32
        %v5338 = vpop.permute.xlu0 %5337
        %5339 = vrot.lane.b32.xlu0 %v4759, 32
        %v5340 = vpop.permute.xlu0 %5339
        %5341 = vrot.lane.b32.xlu0 %v4760, 32
        %v5342 = vpop.permute.xlu0 %5341
        %5343 = vrot.lane.b32.xlu0 %v4761, 32
        %v5344 = vpop.permute.xlu0 %5343
        %5345 = vrot.lane.b32.xlu0 %v4762, 32
        %v5346 = vpop.permute.xlu0 %5345
        %5347 = vrot.lane.b32.xlu0 %v4763, 32
        %v5348 = vpop.permute.xlu0 %5347
        %5349 = vrot.lane.b32.xlu0 %v4764, 32
        %v5350 = vpop.permute.xlu0 %5349
        %5351 = vrot.lane.b32.xlu0 %v4765, 32
        %v5352 = vpop.permute.xlu0 %5351
        %5353 = vrot.lane.b32.xlu0 %v4766, 32
        %v5354 = vpop.permute.xlu0 %5353
        %5355 = vrot.lane.b32.xlu0 %v4767, 32
        %v5356 = vpop.permute.xlu0 %5355
        %5357 = vrot.lane.b32.xlu0 %v4768, 32
        %v5358 = vpop.permute.xlu0 %5357
        %5359 = vrot.lane.b32.xlu0 %v4769, 32
        %v5360 = vpop.permute.xlu0 %5359
        %5361 = vrot.lane.b32.xlu0 %v4770, 32
        %v5362 = vpop.permute.xlu0 %5361
        %5363 = vrot.lane.b32.xlu0 %v4771, 32
        %v5364 = vpop.permute.xlu0 %5363
        %5365 = vrot.lane.b32.xlu0 %v4772, 32
        %v5366 = vpop.permute.xlu0 %5365
        %5367 = vrot.lane.b32.xlu0 %v4773, 32
        %v5368 = vpop.permute.xlu0 %5367
        %5369 = vrot.lane.b32.xlu0 %v4774, 32
        %v5370 = vpop.permute.xlu0 %5369
        %5371 = vrot.lane.b32.xlu0 %v4775, 32
        %v5372 = vpop.permute.xlu0 %5371
        %5373 = vrot.lane.b32.xlu0 %v4776, 32
        %v5374 = vpop.permute.xlu0 %5373
        %5375 = vrot.lane.b32.xlu0 %v4777, 32
        %v5376 = vpop.permute.xlu0 %5375
        %5377 = vrot.lane.b32.xlu0 %v4778, 32
        %v5378 = vpop.permute.xlu0 %5377
        %5379 = vrot.lane.b32.xlu0 %v4779, 32
        %v5380 = vpop.permute.xlu0 %5379
        %5381 = vrot.lane.b32.xlu0 %v4780, 32
        %v5382 = vpop.permute.xlu0 %5381
        %5383 = vrot.lane.b32.xlu0 %v4781, 32
        %v5384 = vpop.permute.xlu0 %5383
        %5385 = vrot.lane.b32.xlu0 %v4782, 32
        %v5386 = vpop.permute.xlu0 %5385
        %5387 = vrot.lane.b32.xlu0 %v4783, 32
        %v5388 = vpop.permute.xlu0 %5387
        %5389 = vrot.lane.b32.xlu0 %v4784, 32
        %v5390 = vpop.permute.xlu0 %5389
        %5391 = vrot.lane.b32.xlu0 %v4785, 32
        %v5392 = vpop.permute.xlu0 %5391
        %5393 = vrot.lane.b32.xlu0 %v4786, 32
        %v5394 = vpop.permute.xlu0 %5393
        %5395 = vrot.lane.b32.xlu0 %v4787, 32
        %v5396 = vpop.permute.xlu0 %5395
        %5461 = vrot.lane.b32.xlu0 %v4788, 40
        %v5462 = vpop.permute.xlu0 %5461
        %5463 = vrot.lane.b32.xlu0 %v4789, 40
        %v5464 = vpop.permute.xlu0 %5463
        %5465 = vrot.lane.b32.xlu0 %v4790, 40
        %v5466 = vpop.permute.xlu0 %5465
        %5467 = vrot.lane.b32.xlu0 %v4791, 40
        %v5468 = vpop.permute.xlu0 %5467
        %5469 = vrot.lane.b32.xlu0 %v4792, 40
        %v5470 = vpop.permute.xlu0 %5469
        %5471 = vrot.lane.b32.xlu0 %v4793, 40
        %v5472 = vpop.permute.xlu0 %5471
        %5473 = vrot.lane.b32.xlu0 %v4794, 40
        %v5474 = vpop.permute.xlu0 %5473
        %5475 = vrot.lane.b32.xlu0 %v4795, 40
        %v5476 = vpop.permute.xlu0 %5475
        %5477 = vrot.lane.b32.xlu0 %v4796, 40
        %v5478 = vpop.permute.xlu0 %5477
        %5479 = vrot.lane.b32.xlu0 %v4797, 40
        %v5480 = vpop.permute.xlu0 %5479
        %5481 = vrot.lane.b32.xlu0 %v4798, 40
        %v5482 = vpop.permute.xlu0 %5481
        %5483 = vrot.lane.b32.xlu0 %v4799, 40
        %v5484 = vpop.permute.xlu0 %5483
        %5485 = vrot.lane.b32.xlu0 %v4800, 40
        %v5486 = vpop.permute.xlu0 %5485
        %5487 = vrot.lane.b32.xlu0 %v4801, 40
        %v5488 = vpop.permute.xlu0 %5487
        %5489 = vrot.lane.b32.xlu0 %v4802, 40
        %v5490 = vpop.permute.xlu0 %5489
        %5491 = vrot.lane.b32.xlu0 %v4803, 40
        %v5492 = vpop.permute.xlu0 %5491
        %5493 = vrot.lane.b32.xlu0 %v4804, 40
        %v5494 = vpop.permute.xlu0 %5493
        %5495 = vrot.lane.b32.xlu0 %v4805, 40
        %v5496 = vpop.permute.xlu0 %5495
        %5497 = vrot.lane.b32.xlu0 %v4806, 40
        %v5498 = vpop.permute.xlu0 %5497
        %5499 = vrot.lane.b32.xlu0 %v4807, 40
        %v5500 = vpop.permute.xlu0 %5499
        %5501 = vrot.lane.b32.xlu0 %v4808, 40
        %v5502 = vpop.permute.xlu0 %5501
        %5503 = vrot.lane.b32.xlu0 %v4809, 40
        %v5504 = vpop.permute.xlu0 %5503
        %5505 = vrot.lane.b32.xlu0 %v4810, 40
        %v5506 = vpop.permute.xlu0 %5505
        %5507 = vrot.lane.b32.xlu0 %v4811, 40
        %v5508 = vpop.permute.xlu0 %5507
        %5509 = vrot.lane.b32.xlu0 %v4812, 40
        %v5510 = vpop.permute.xlu0 %5509
        %5511 = vrot.lane.b32.xlu0 %v4813, 40
        %v5512 = vpop.permute.xlu0 %5511
        %5513 = vrot.lane.b32.xlu0 %v4814, 40
        %v5514 = vpop.permute.xlu0 %5513
        %5515 = vrot.lane.b32.xlu0 %v4815, 40
        %v5516 = vpop.permute.xlu0 %5515
        %5517 = vrot.lane.b32.xlu0 %v4816, 40
        %v5518 = vpop.permute.xlu0 %5517
        %5519 = vrot.lane.b32.xlu0 %v4817, 40
        %v5520 = vpop.permute.xlu0 %5519
        %5521 = vrot.lane.b32.xlu0 %v4818, 40
        %v5522 = vpop.permute.xlu0 %5521
        %5523 = vrot.lane.b32.xlu0 %v4819, 40
        %v5524 = vpop.permute.xlu0 %5523
        %5589 = vrot.lane.b32.xlu0 %v4821, 48
        %v5590 = vpop.permute.xlu0 %5589
        %5591 = vrot.lane.b32.xlu0 %v4822, 48
        %v5592 = vpop.permute.xlu0 %5591
        %5593 = vrot.lane.b32.xlu0 %v4823, 48
        %v5594 = vpop.permute.xlu0 %5593
        %5595 = vrot.lane.b32.xlu0 %v4824, 48
        %v5596 = vpop.permute.xlu0 %5595
        %5597 = vrot.lane.b32.xlu0 %v4825, 48
        %v5598 = vpop.permute.xlu0 %5597
        %5599 = vrot.lane.b32.xlu0 %v4826, 48
        %v5600 = vpop.permute.xlu0 %5599
        %5601 = vrot.lane.b32.xlu0 %v4827, 48
        %v5602 = vpop.permute.xlu0 %5601
        %5603 = vrot.lane.b32.xlu0 %v4828, 48
        %v5604 = vpop.permute.xlu0 %5603
        %5605 = vrot.lane.b32.xlu0 %v4829, 48
        %v5606 = vpop.permute.xlu0 %5605
        %5607 = vrot.lane.b32.xlu0 %v4830, 48
        %v5608 = vpop.permute.xlu0 %5607
        %5609 = vrot.lane.b32.xlu0 %v4831, 48
        %v5610 = vpop.permute.xlu0 %5609
        %5611 = vrot.lane.b32.xlu0 %v4832, 48
        %v5612 = vpop.permute.xlu0 %5611
        %5613 = vrot.lane.b32.xlu0 %v4833, 48
        %v5614 = vpop.permute.xlu0 %5613
        %5615 = vrot.lane.b32.xlu0 %v4834, 48
        %v5616 = vpop.permute.xlu0 %5615
        %5617 = vrot.lane.b32.xlu0 %v4835, 48
        %v5618 = vpop.permute.xlu0 %5617
        %5619 = vrot.lane.b32.xlu0 %v4836, 48
        %v5620 = vpop.permute.xlu0 %5619
        %5621 = vrot.lane.b32.xlu0 %v4837, 48
        %v5622 = vpop.permute.xlu0 %5621
        %5623 = vrot.lane.b32.xlu0 %v4838, 48
        %v5624 = vpop.permute.xlu0 %5623
        %5625 = vrot.lane.b32.xlu0 %v4839, 48
        %v5626 = vpop.permute.xlu0 %5625
        %5627 = vrot.lane.b32.xlu0 %v4840, 48
        %v5628 = vpop.permute.xlu0 %5627
        %5629 = vrot.lane.b32.xlu0 %v4841, 48
        %v5630 = vpop.permute.xlu0 %5629
        %5631 = vrot.lane.b32.xlu0 %v4842, 48
        %v5632 = vpop.permute.xlu0 %5631
        %5633 = vrot.lane.b32.xlu0 %v4843, 48
        %v5634 = vpop.permute.xlu0 %5633
        %5635 = vrot.lane.b32.xlu0 %v4844, 48
        %v5636 = vpop.permute.xlu0 %5635
        %5637 = vrot.lane.b32.xlu0 %v4845, 48
        %v5638 = vpop.permute.xlu0 %5637
        %5639 = vrot.lane.b32.xlu0 %v4846, 48
        %v5640 = vpop.permute.xlu0 %5639
        %5641 = vrot.lane.b32.xlu0 %v4847, 48
        %v5642 = vpop.permute.xlu0 %5641
        %5643 = vrot.lane.b32.xlu0 %v4848, 48
        %v5644 = vpop.permute.xlu0 %5643
        %5645 = vrot.lane.b32.xlu0 %v4849, 48
        %v5646 = vpop.permute.xlu0 %5645
        %5647 = vrot.lane.b32.xlu0 %v4850, 48
        %v5648 = vpop.permute.xlu0 %5647
        %5649 = vrot.lane.b32.xlu0 %v4851, 48
        %v5650 = vpop.permute.xlu0 %5649
        %5651 = vrot.lane.b32.xlu0 %v4852, 48
        %v5652 = vpop.permute.xlu0 %5651
        %5717 = vrot.lane.b32.xlu0 %v4853, 56
        %v5718 = vpop.permute.xlu0 %5717
        %5719 = vrot.lane.b32.xlu0 %v4854, 56
        %v5720 = vpop.permute.xlu0 %5719
        %5721 = vrot.lane.b32.xlu0 %v4855, 56
        %v5722 = vpop.permute.xlu0 %5721
        %5723 = vrot.lane.b32.xlu0 %v4856, 56
        %v5724 = vpop.permute.xlu0 %5723
        %5725 = vrot.lane.b32.xlu0 %v4857, 56
        %v5726 = vpop.permute.xlu0 %5725
        %5727 = vrot.lane.b32.xlu0 %v4858, 56
        %v5728 = vpop.permute.xlu0 %5727
        %5729 = vrot.lane.b32.xlu0 %v4859, 56
        %v5730 = vpop.permute.xlu0 %5729
        %5731 = vrot.lane.b32.xlu0 %v4860, 56
        %v5732 = vpop.permute.xlu0 %5731
        %5733 = vrot.lane.b32.xlu0 %v4861, 56
        %v5734 = vpop.permute.xlu0 %5733
        %5735 = vrot.lane.b32.xlu0 %v4862, 56
        %v5736 = vpop.permute.xlu0 %5735
        %5737 = vrot.lane.b32.xlu0 %v4863, 56
        %v5738 = vpop.permute.xlu0 %5737
        %5739 = vrot.lane.b32.xlu0 %v4864, 56
        %v5740 = vpop.permute.xlu0 %5739
        %5741 = vrot.lane.b32.xlu0 %v4865, 56
        %v5742 = vpop.permute.xlu0 %5741
        %5743 = vrot.lane.b32.xlu0 %v4866, 56
        %v5744 = vpop.permute.xlu0 %5743
        %5745 = vrot.lane.b32.xlu0 %v4867, 56
        %v5746 = vpop.permute.xlu0 %5745
        %5747 = vrot.lane.b32.xlu0 %v4868, 56
        %v5748 = vpop.permute.xlu0 %5747
        %5749 = vrot.lane.b32.xlu0 %v4869, 56
        %v5750 = vpop.permute.xlu0 %5749
        %5751 = vrot.lane.b32.xlu0 %v4870, 56
        %v5752 = vpop.permute.xlu0 %5751
        %5753 = vrot.lane.b32.xlu0 %v4871, 56
        %v5754 = vpop.permute.xlu0 %5753
        %5755 = vrot.lane.b32.xlu0 %v4872, 56
        %v5756 = vpop.permute.xlu0 %5755
        %5757 = vrot.lane.b32.xlu0 %v4873, 56
        %v5758 = vpop.permute.xlu0 %5757
        %5759 = vrot.lane.b32.xlu0 %v4874, 56
        %v5760 = vpop.permute.xlu0 %5759
        %5761 = vrot.lane.b32.xlu0 %v4875, 56
        %v5762 = vpop.permute.xlu0 %5761
        %5763 = vrot.lane.b32.xlu0 %v4876, 56
        %v5764 = vpop.permute.xlu0 %5763
        %5765 = vrot.lane.b32.xlu0 %v4877, 56
        %v5766 = vpop.permute.xlu0 %5765
        %5767 = vrot.lane.b32.xlu0 %v4878, 56
        %v5768 = vpop.permute.xlu0 %5767
        %5769 = vrot.lane.b32.xlu0 %v4879, 56
        %v5770 = vpop.permute.xlu0 %5769
        %5771 = vrot.lane.b32.xlu0 %v4880, 56
        %v5772 = vpop.permute.xlu0 %5771
        %5773 = vrot.lane.b32.xlu0 %v4881, 56
        %v5774 = vpop.permute.xlu0 %5773
        %5775 = vrot.lane.b32.xlu0 %v4882, 56
        %v5776 = vpop.permute.xlu0 %5775
        %5777 = vrot.lane.b32.xlu0 %v4883, 56
        %v5778 = vpop.permute.xlu0 %5777
        %5779 = vrot.lane.b32.xlu0 %v4884, 56
        %v5780 = vpop.permute.xlu0 %5779
        %5845 = vrot.lane.b32.xlu0 %v4885, 64
        %v5846 = vpop.permute.xlu0 %5845
        %5847 = vrot.lane.b32.xlu0 %v4886, 64
        %v5848 = vpop.permute.xlu0 %5847
        %5849 = vrot.lane.b32.xlu0 %v4887, 64
        %v5850 = vpop.permute.xlu0 %5849
        %5851 = vrot.lane.b32.xlu0 %v4888, 64
        %v5852 = vpop.permute.xlu0 %5851
        %5853 = vrot.lane.b32.xlu0 %v4889, 64
        %v5854 = vpop.permute.xlu0 %5853
        %5855 = vrot.lane.b32.xlu0 %v4890, 64
        %v5856 = vpop.permute.xlu0 %5855
        %5857 = vrot.lane.b32.xlu0 %v4891, 64
        %v5858 = vpop.permute.xlu0 %5857
        %5859 = vrot.lane.b32.xlu0 %v4892, 64
        %v5860 = vpop.permute.xlu0 %5859
        %5861 = vrot.lane.b32.xlu0 %v4893, 64
        %v5862 = vpop.permute.xlu0 %5861
        %5863 = vrot.lane.b32.xlu0 %v4894, 64
        %v5864 = vpop.permute.xlu0 %5863
        %5865 = vrot.lane.b32.xlu0 %v4895, 64
        %v5866 = vpop.permute.xlu0 %5865
        %5867 = vrot.lane.b32.xlu0 %v4896, 64
        %v5868 = vpop.permute.xlu0 %5867
        %5869 = vrot.lane.b32.xlu0 %v4897, 64
        %v5870 = vpop.permute.xlu0 %5869
        %5871 = vrot.lane.b32.xlu0 %v4898, 64
        %v5872 = vpop.permute.xlu0 %5871
        %5873 = vrot.lane.b32.xlu0 %v4899, 64
        %v5874 = vpop.permute.xlu0 %5873
        %5875 = vrot.lane.b32.xlu0 %v4900, 64
        %v5876 = vpop.permute.xlu0 %5875
        %5877 = vrot.lane.b32.xlu0 %v4901, 64
        %v5878 = vpop.permute.xlu0 %5877
        %5879 = vrot.lane.b32.xlu0 %v4902, 64
        %v5880 = vpop.permute.xlu0 %5879
        %5881 = vrot.lane.b32.xlu0 %v4903, 64
        %v5882 = vpop.permute.xlu0 %5881
        %5883 = vrot.lane.b32.xlu0 %v4904, 64
        %v5884 = vpop.permute.xlu0 %5883
        %5885 = vrot.lane.b32.xlu0 %v4905, 64
        %v5886 = vpop.permute.xlu0 %5885
        %5887 = vrot.lane.b32.xlu0 %v4906, 64
        %v5888 = vpop.permute.xlu0 %5887
        %5889 = vrot.lane.b32.xlu0 %v4907, 64
        %v5890 = vpop.permute.xlu0 %5889
        %5891 = vrot.lane.b32.xlu0 %v4908, 64
        %v5892 = vpop.permute.xlu0 %5891
        %5893 = vrot.lane.b32.xlu0 %v4909, 64
        %v5894 = vpop.permute.xlu0 %5893
        %5895 = vrot.lane.b32.xlu0 %v4910, 64
        %v5896 = vpop.permute.xlu0 %5895
        %5897 = vrot.lane.b32.xlu0 %v4911, 64
        %v5898 = vpop.permute.xlu0 %5897
        %5899 = vrot.lane.b32.xlu0 %v4912, 64
        %v5900 = vpop.permute.xlu0 %5899
        %5901 = vrot.lane.b32.xlu0 %v4913, 64
        %v5902 = vpop.permute.xlu0 %5901
        %5903 = vrot.lane.b32.xlu0 %v4914, 64
        %v5904 = vpop.permute.xlu0 %5903
        %5905 = vrot.lane.b32.xlu0 %v4915, 64
        %v5906 = vpop.permute.xlu0 %5905
        %5907 = vrot.lane.b32.xlu0 %v4916, 64
        %v5908 = vpop.permute.xlu0 %5907
        %v5941 = vsel %vm3596, %v4628, %v4950
        %v5942 = vsel %vm3596, %v4629, %v4952
        %v5943 = vsel %vm3596, %v4630, %v4954
        %v5944 = vsel %vm3596, %v4631, %v4956
        %v5945 = vsel %vm3596, %v4632, %v4958
        %v5946 = vsel %vm3596, %v4633, %v4960
        %v5947 = vsel %vm3596, %v4634, %v4962
        %v5948 = vsel %vm3596, %v4635, %v4964
        %v5949 = vsel %vm3596, %v4636, %v4966
        %v5950 = vsel %vm3596, %v4637, %v4968
        %v5951 = vsel %vm3596, %v4638, %v4970
        %v5952 = vsel %vm3596, %v4639, %v4972
        %v5953 = vsel %vm3596, %v4640, %v4974
        %v5954 = vsel %vm3596, %v4641, %v4976
        %v5955 = vsel %vm3596, %v4642, %v4978
        %v5956 = vsel %vm3596, %v4643, %v4980
        %v5957 = vsel %vm3596, %v4644, %v4982
        %v5958 = vsel %vm3596, %v4645, %v4984
        %v5959 = vsel %vm3596, %v4646, %v4986
        %v5960 = vsel %vm3596, %v4647, %v4988
        %v5961 = vsel %vm3596, %v4648, %v4990
        %v5962 = vsel %vm3596, %v4649, %v4992
        %v5963 = vsel %vm3596, %v4650, %v4994
        %v5964 = vsel %vm3596, %v4651, %v4996
        %v5965 = vsel %vm3596, %v4652, %v4998
        %v5966 = vsel %vm3596, %v4653, %v5000
        %v5967 = vsel %vm3596, %v4654, %v5002
        %v5968 = vsel %vm3596, %v4655, %v5004
        %v5969 = vsel %vm3596, %v4656, %v5006
        %v5970 = vsel %vm3596, %v4657, %v5008
        %v5971 = vsel %vm3596, %v4658, %v5010
        %v5972 = vsel %vm3596, %v4659, %v5012
        %v5973 = vsel %vm3662, %v5941, %v5078
        %v5974 = vsel %vm3662, %v5942, %v5080
        %v5975 = vsel %vm3662, %v5943, %v5082
        %v5976 = vsel %vm3662, %v5944, %v5084
        %v5977 = vsel %vm3662, %v5945, %v5086
        %v5978 = vsel %vm3662, %v5946, %v5088
        %v5979 = vsel %vm3662, %v5947, %v5090
        %v5980 = vsel %vm3662, %v5948, %v5092
        %v5981 = vsel %vm3662, %v5949, %v5094
        %v5982 = vsel %vm3662, %v5950, %v5096
        %v5983 = vsel %vm3662, %v5951, %v5098
        %v5984 = vsel %vm3662, %v5952, %v5100
        %v5985 = vsel %vm3662, %v5953, %v5102
        %v5986 = vsel %vm3662, %v5954, %v5104
        %v5987 = vsel %vm3662, %v5955, %v5106
        %v5988 = vsel %vm3662, %v5956, %v5108
        %v5989 = vsel %vm3662, %v5957, %v5110
        %v5990 = vsel %vm3662, %v5958, %v5112
        %v5991 = vsel %vm3662, %v5959, %v5114
        %v5992 = vsel %vm3662, %v5960, %v5116
        %v5993 = vsel %vm3662, %v5961, %v5118
        %v5994 = vsel %vm3662, %v5962, %v5120
        %v5995 = vsel %vm3662, %v5963, %v5122
        %v5996 = vsel %vm3662, %v5964, %v5124
        %v5997 = vsel %vm3662, %v5965, %v5126
        %v5998 = vsel %vm3662, %v5966, %v5128
        %v5999 = vsel %vm3662, %v5967, %v5130
        %v6000 = vsel %vm3662, %v5968, %v5132
        %v6001 = vsel %vm3662, %v5969, %v5134
        %v6002 = vsel %vm3662, %v5970, %v5136
        %v6003 = vsel %vm3662, %v5971, %v5138
        %v6004 = vsel %vm3662, %v5972, %v5140
        %v6005 = vsel %vm3728, %v5973, %v5206
        %v6006 = vsel %vm3728, %v5974, %v5208
        %v6007 = vsel %vm3728, %v5975, %v5210
        %v6008 = vsel %vm3728, %v5976, %v5212
        %v6009 = vsel %vm3728, %v5977, %v5214
        %v6010 = vsel %vm3728, %v5978, %v5216
        %v6011 = vsel %vm3728, %v5979, %v5218
        %v6012 = vsel %vm3728, %v5980, %v5220
        %v6013 = vsel %vm3728, %v5981, %v5222
        %v6014 = vsel %vm3728, %v5982, %v5224
        %v6015 = vsel %vm3728, %v5983, %v5226
        %v6016 = vsel %vm3728, %v5984, %v5228
        %v6017 = vsel %vm3728, %v5985, %v5230
        %v6018 = vsel %vm3728, %v5986, %v5232
        %v6019 = vsel %vm3728, %v5987, %v5234
        %v6020 = vsel %vm3728, %v5988, %v5236
        %v6021 = vsel %vm3728, %v5989, %v5238
        %v6022 = vsel %vm3728, %v5990, %v5240
        %v6023 = vsel %vm3728, %v5991, %v5242
        %v6024 = vsel %vm3728, %v5992, %v5244
        %v6025 = vsel %vm3728, %v5993, %v5246
        %v6026 = vsel %vm3728, %v5994, %v5248
        %v6027 = vsel %vm3728, %v5995, %v5250
        %v6028 = vsel %vm3728, %v5996, %v5252
        %v6029 = vsel %vm3728, %v5997, %v5254
        %v6030 = vsel %vm3728, %v5998, %v5256
        %v6031 = vsel %vm3728, %v5999, %v5258
        %v6032 = vsel %vm3728, %v6000, %v5260
        %v6033 = vsel %vm3728, %v6001, %v5262
        %v6034 = vsel %vm3728, %v6002, %v5264
        %v6035 = vsel %vm3728, %v6003, %v5266
        %v6036 = vsel %vm3728, %v6004, %v5268
        %v6037 = vsel %vm3794, %v6005, %v5334
        %v6038 = vsel %vm3794, %v6006, %v5336
        %v6039 = vsel %vm3794, %v6007, %v5338
        %v6040 = vsel %vm3794, %v6008, %v5340
        %v6041 = vsel %vm3794, %v6009, %v5342
        %v6042 = vsel %vm3794, %v6010, %v5344
        %v6043 = vsel %vm3794, %v6011, %v5346
        %v6044 = vsel %vm3794, %v6012, %v5348
        %v6045 = vsel %vm3794, %v6013, %v5350
        %v6046 = vsel %vm3794, %v6014, %v5352
        %v6047 = vsel %vm3794, %v6015, %v5354
        %v6048 = vsel %vm3794, %v6016, %v5356
        %v6049 = vsel %vm3794, %v6017, %v5358
        %v6050 = vsel %vm3794, %v6018, %v5360
        %v6051 = vsel %vm3794, %v6019, %v5362
        %v6052 = vsel %vm3794, %v6020, %v5364
        %v6053 = vsel %vm3794, %v6021, %v5366
        %v6054 = vsel %vm3794, %v6022, %v5368
        %v6055 = vsel %vm3794, %v6023, %v5370
        %v6056 = vsel %vm3794, %v6024, %v5372
        %v6057 = vsel %vm3794, %v6025, %v5374
        %v6058 = vsel %vm3794, %v6026, %v5376
        %v6059 = vsel %vm3794, %v6027, %v5378
        %v6060 = vsel %vm3794, %v6028, %v5380
        %v6061 = vsel %vm3794, %v6029, %v5382
        %v6062 = vsel %vm3794, %v6030, %v5384
        %v6063 = vsel %vm3794, %v6031, %v5386
        %v6064 = vsel %vm3794, %v6032, %v5388
        %v6065 = vsel %vm3794, %v6033, %v5390
        %v6066 = vsel %vm3794, %v6034, %v5392
        %v6067 = vsel %vm3794, %v6035, %v5394
        %v6068 = vsel %vm3794, %v6036, %v5396
        %vm6069 = vcmask 326656
        %v6070 = vsel %vm6069, %v6037, %v5462
        %v6071 = vsel %vm6069, %v6038, %v5464
        %v6072 = vsel %vm6069, %v6039, %v5466
        %v6073 = vsel %vm6069, %v6040, %v5468
        %v6074 = vsel %vm6069, %v6041, %v5470
        %v6075 = vsel %vm6069, %v6042, %v5472
        %v6076 = vsel %vm6069, %v6043, %v5474
        %v6077 = vsel %vm6069, %v6044, %v5476
        %v6078 = vsel %vm6069, %v6045, %v5478
        %v6079 = vsel %vm6069, %v6046, %v5480
        %v6080 = vsel %vm6069, %v6047, %v5482
        %v6081 = vsel %vm6069, %v6048, %v5484
        %v6082 = vsel %vm6069, %v6049, %v5486
        %v6083 = vsel %vm6069, %v6050, %v5488
        %v6084 = vsel %vm6069, %v6051, %v5490
        %v6085 = vsel %vm6069, %v6052, %v5492
        %v6086 = vsel %vm6069, %v6053, %v5494
        %v6087 = vsel %vm6069, %v6054, %v5496
        %v6088 = vsel %vm6069, %v6055, %v5498
        %v6089 = vsel %vm6069, %v6056, %v5500
        %v6090 = vsel %vm6069, %v6057, %v5502
        %v6091 = vsel %vm6069, %v6058, %v5504
        %v6092 = vsel %vm6069, %v6059, %v5506
        %v6093 = vsel %vm6069, %v6060, %v5508
        %v6094 = vsel %vm6069, %v6061, %v5510
        %v6095 = vsel %vm6069, %v6062, %v5512
        %v6096 = vsel %vm6069, %v6063, %v5514
        %v6097 = vsel %vm6069, %v6064, %v5516
        %v6098 = vsel %vm6069, %v6065, %v5518
        %v6099 = vsel %vm6069, %v6066, %v5520
        %v6100 = vsel %vm6069, %v6067, %v5522
        %v6101 = vsel %vm6069, %v6068, %v5524
        %vm6102 = vcmask 392192
        %v6103 = vsel %vm6102, %v6070, %v5590
        %v6104 = vsel %vm6102, %v6071, %v5592
        %v6105 = vsel %vm6102, %v6072, %v5594
        %v6106 = vsel %vm6102, %v6073, %v5596
        %v6107 = vsel %vm6102, %v6074, %v5598
        %v6108 = vsel %vm6102, %v6075, %v5600
        %v6109 = vsel %vm6102, %v6076, %v5602
        %v6110 = vsel %vm6102, %v6077, %v5604
        %v6111 = vsel %vm6102, %v6078, %v5606
        %v6112 = vsel %vm6102, %v6079, %v5608
        %v6113 = vsel %vm6102, %v6080, %v5610
        %v6114 = vsel %vm6102, %v6081, %v5612
        %v6115 = vsel %vm6102, %v6082, %v5614
        %v6116 = vsel %vm6102, %v6083, %v5616
        %v6117 = vsel %vm6102, %v6084, %v5618
        %v6118 = vsel %vm6102, %v6085, %v5620
        %v6119 = vsel %vm6102, %v6086, %v5622
        %v6120 = vsel %vm6102, %v6087, %v5624
        %v6121 = vsel %vm6102, %v6088, %v5626
        %v6122 = vsel %vm6102, %v6089, %v5628
        %v6123 = vsel %vm6102, %v6090, %v5630
        %v6124 = vsel %vm6102, %v6091, %v5632
        %v6125 = vsel %vm6102, %v6092, %v5634
        %v6126 = vsel %vm6102, %v6093, %v5636
        %v6127 = vsel %vm6102, %v6094, %v5638
        %v6128 = vsel %vm6102, %v6095, %v5640
        %v6129 = vsel %vm6102, %v6096, %v5642
        %v6130 = vsel %vm6102, %v6097, %v5644
        %v6131 = vsel %vm6102, %v6098, %v5646
        %v6132 = vsel %vm6102, %v6099, %v5648
        %v6133 = vsel %vm6102, %v6100, %v5650
        %v6134 = vsel %vm6102, %v6101, %v5652
        %vm6135 = vcmask 457728
        %v6136 = vsel %vm6135, %v6103, %v5718
        %v6137 = vsel %vm6135, %v6104, %v5720
        %v6138 = vsel %vm6135, %v6105, %v5722
        %v6139 = vsel %vm6135, %v6106, %v5724
        %v6140 = vsel %vm6135, %v6107, %v5726
        %v6141 = vsel %vm6135, %v6108, %v5728
        %v6142 = vsel %vm6135, %v6109, %v5730
        %v6143 = vsel %vm6135, %v6110, %v5732
        %v6144 = vsel %vm6135, %v6111, %v5734
        %v6145 = vsel %vm6135, %v6112, %v5736
        %v6146 = vsel %vm6135, %v6113, %v5738
        %v6147 = vsel %vm6135, %v6114, %v5740
        %v6148 = vsel %vm6135, %v6115, %v5742
        %v6149 = vsel %vm6135, %v6116, %v5744
        %v6150 = vsel %vm6135, %v6117, %v5746
        %v6151 = vsel %vm6135, %v6118, %v5748
        %v6152 = vsel %vm6135, %v6119, %v5750
        %v6153 = vsel %vm6135, %v6120, %v5752
        %v6154 = vsel %vm6135, %v6121, %v5754
        %v6155 = vsel %vm6135, %v6122, %v5756
        %v6156 = vsel %vm6135, %v6123, %v5758
        %v6157 = vsel %vm6135, %v6124, %v5760
        %v6158 = vsel %vm6135, %v6125, %v5762
        %v6159 = vsel %vm6135, %v6126, %v5764
        %v6160 = vsel %vm6135, %v6127, %v5766
        %v6161 = vsel %vm6135, %v6128, %v5768
        %v6162 = vsel %vm6135, %v6129, %v5770
        %v6163 = vsel %vm6135, %v6130, %v5772
        %v6164 = vsel %vm6135, %v6131, %v5774
        %v6165 = vsel %vm6135, %v6132, %v5776
        %v6166 = vsel %vm6135, %v6133, %v5778
        %v6167 = vsel %vm6135, %v6134, %v5780
        %vm6168 = vcmask 523264
        %v6169 = vsel %vm6168, %v6136, %v5846
        %v6170 = vsel %vm6168, %v6137, %v5848
        %v6171 = vsel %vm6168, %v6138, %v5850
        %v6172 = vsel %vm6168, %v6139, %v5852
        %v6173 = vsel %vm6168, %v6140, %v5854
        %v6174 = vsel %vm6168, %v6141, %v5856
        %v6175 = vsel %vm6168, %v6142, %v5858
        %v6176 = vsel %vm6168, %v6143, %v5860
        %v6177 = vsel %vm6168, %v6144, %v5862
        %v6178 = vsel %vm6168, %v6145, %v5864
        %v6179 = vsel %vm6168, %v6146, %v5866
        %v6180 = vsel %vm6168, %v6147, %v5868
        %v6181 = vsel %vm6168, %v6148, %v5870
        %v6182 = vsel %vm6168, %v6149, %v5872
        %v6183 = vsel %vm6168, %v6150, %v5874
        %v6184 = vsel %vm6168, %v6151, %v5876
        %v6185 = vsel %vm6168, %v6152, %v5878
        %v6186 = vsel %vm6168, %v6153, %v5880
        %v6187 = vsel %vm6168, %v6154, %v5882
        %v6188 = vsel %vm6168, %v6155, %v5884
        %v6189 = vsel %vm6168, %v6156, %v5886
        %v6190 = vsel %vm6168, %v6157, %v5888
        %v6191 = vsel %vm6168, %v6158, %v5890
        %v6192 = vsel %vm6168, %v6159, %v5892
        %v6193 = vsel %vm6168, %v6160, %v5894
        %v6194 = vsel %vm6168, %v6161, %v5896
        %v6195 = vsel %vm6168, %v6162, %v5898
        %v6196 = vsel %vm6168, %v6163, %v5900
        %v6197 = vsel %vm6168, %v6164, %v5902
        %v6198 = vsel %vm6168, %v6165, %v5904
        %v6199 = vsel %vm6168, %v6166, %v5906
        %v6200 = vsel %vm6168, %v6167, %v5908
        %v6201 = vld [vmem:[%s7] sm:$0xff]
        %v6202 = vld [vmem:[%s7 + $0x8] sm:$0xff]
        %v6203 = vld [vmem:[%s7 + $0x10] sm:$0xff]
        %v6204 = vld [vmem:[%s7 + $0x18] sm:$0xff]
        %v6205 = vld [vmem:[%s7 + $0x20] sm:$0xff]
        %v6206 = vld [vmem:[%s7 + $0x28] sm:$0xff]
        %v6207 = vld [vmem:[%s7 + $0x30] sm:$0xff]
        %v6208 = vld [vmem:[%s7 + $0x38] sm:$0xff]
        %v6209 = vld [vmem:[%s7 + $0x40] sm:$0xff]
        %vm6210 = vcmask 588800
        %v6212 = vsel %vm6210, %v6169, 0
        %v6215 = vsel %vm6210, %v6170, 0
        %v6218 = vsel %vm6210, %v6171, 0
        %v6221 = vsel %vm6210, %v6172, 0
        %v6224 = vsel %vm6210, %v6173, 0
        %v6227 = vsel %vm6210, %v6174, 0
        %v6230 = vsel %vm6210, %v6175, 0
        %v6233 = vsel %vm6210, %v6176, 0
        %v6236 = vsel %vm6210, %v6177, 0
        %v6239 = vsel %vm6210, %v6178, 0
        %v6242 = vsel %vm6210, %v6179, 0
        %v6245 = vsel %vm6210, %v6180, 0
        %v6248 = vsel %vm6210, %v6181, 0
        %v6251 = vsel %vm6210, %v6182, 0
        %v6254 = vsel %vm6210, %v6183, 0
        %v6257 = vsel %vm6210, %v6184, 0
        %v6260 = vsel %vm6210, %v6185, 0
        %v6263 = vsel %vm6210, %v6186, 0
        %v6266 = vsel %vm6210, %v6187, 0
        %v6269 = vsel %vm6210, %v6188, 0
        %v6272 = vsel %vm6210, %v6189, 0
        %v6275 = vsel %vm6210, %v6190, 0
        %v6278 = vsel %vm6210, %v6191, 0
        %v6281 = vsel %vm6210, %v6192, 0
        %v6284 = vsel %vm6210, %v6193, 0
        %v6287 = vsel %vm6210, %v6194, 0
        %v6290 = vsel %vm6210, %v6195, 0
        %v6293 = vsel %vm6210, %v6196, 0
        %v6296 = vsel %vm6210, %v6197, 0
        %v6299 = vsel %vm6210, %v6198, 0
        %v6302 = vsel %vm6210, %v6199, 0
        %v6305 = vsel %vm6210, %v6200, 0
        %6307 = vmatpush.msra.mxu0 0.0
        %6308 = vmatpush.msra.mxu0 0.0
        %6309 = vmatpush.msra.mxu0 0.0
        %6310 = vmatpush.msra.mxu0 0.0
        %6311 = vmatpush.msra.mxu0 0.0
        %6312 = vmatpush.msra.mxu0 0.0
        %6313 = vmatpush.msra.mxu0 0.0
        %6314 = vmatpush.msra.mxu0 %v6209
        %6315 = vmatpush.msra.mxu0 %v6208
        %6316 = vmatpush.msra.mxu0 %v6207
        %6317 = vmatpush.msra.mxu0 %v6206
        %6318 = vmatpush.msra.mxu0 %v6205
        %6319 = vmatpush.msra.mxu0 %v6204
        %6320 = vmatpush.msra.mxu0 %v6203
        %6321 = vmatpush.msra.mxu0 %v6202
        %6322 = vmatpush.msra.mxu0 %v6201
        %6323 = vmatmul.f32.gmra.mxu0 %v6212
        %v6324 = vpop.f32.mrf.mxu0
        %v6325 = vadd.f32 0.0, %v6324
        %6326 = vmatmul.f32.gmra.mxu0 %v6215
        %v6327 = vpop.f32.mrf.mxu0
        %v6328 = vadd.f32 0.0, %v6327
        %6329 = vmatmul.f32.gmra.mxu0 %v6218
        %v6330 = vpop.f32.mrf.mxu0
        %v6331 = vadd.f32 0.0, %v6330
        %6332 = vmatmul.f32.gmra.mxu0 %v6221
        %v6333 = vpop.f32.mrf.mxu0
        %v6334 = vadd.f32 0.0, %v6333
        %6335 = vmatmul.f32.gmra.mxu0 %v6224
        %v6336 = vpop.f32.mrf.mxu0
        %v6337 = vadd.f32 0.0, %v6336
        %6338 = vmatmul.f32.gmra.mxu0 %v6227
        %v6339 = vpop.f32.mrf.mxu0
        %v6340 = vadd.f32 0.0, %v6339
        %6341 = vmatmul.f32.gmra.mxu0 %v6230
        %v6342 = vpop.f32.mrf.mxu0
        %v6343 = vadd.f32 0.0, %v6342
        %6344 = vmatmul.f32.gmra.mxu0 %v6233
        %v6345 = vpop.f32.mrf.mxu0
        %v6346 = vadd.f32 0.0, %v6345
        %6347 = vmatmul.f32.gmra.mxu0 %v6236
        %v6348 = vpop.f32.mrf.mxu0
        %v6349 = vadd.f32 0.0, %v6348
        %6350 = vmatmul.f32.gmra.mxu0 %v6239
        %v6351 = vpop.f32.mrf.mxu0
        %v6352 = vadd.f32 0.0, %v6351
        %6353 = vmatmul.f32.gmra.mxu0 %v6242
        %v6354 = vpop.f32.mrf.mxu0
        %v6355 = vadd.f32 0.0, %v6354
        %6356 = vmatmul.f32.gmra.mxu0 %v6245
        %v6357 = vpop.f32.mrf.mxu0
        %v6358 = vadd.f32 0.0, %v6357
        %6359 = vmatmul.f32.gmra.mxu0 %v6248
        %v6360 = vpop.f32.mrf.mxu0
        %v6361 = vadd.f32 0.0, %v6360
        %6362 = vmatmul.f32.gmra.mxu0 %v6251
        %v6363 = vpop.f32.mrf.mxu0
        %v6364 = vadd.f32 0.0, %v6363
        %6365 = vmatmul.f32.gmra.mxu0 %v6254
        %v6366 = vpop.f32.mrf.mxu0
        %v6367 = vadd.f32 0.0, %v6366
        %6368 = vmatmul.f32.gmra.mxu0 %v6257
        %v6369 = vpop.f32.mrf.mxu0
        %v6370 = vadd.f32 0.0, %v6369
        %6371 = vmatmul.f32.gmra.mxu0 %v6260
        %v6372 = vpop.f32.mrf.mxu0
        %v6373 = vadd.f32 0.0, %v6372
        %6374 = vmatmul.f32.gmra.mxu0 %v6263
        %v6375 = vpop.f32.mrf.mxu0
        %v6376 = vadd.f32 0.0, %v6375
        %6377 = vmatmul.f32.gmra.mxu0 %v6266
        %v6378 = vpop.f32.mrf.mxu0
        %v6379 = vadd.f32 0.0, %v6378
        %6380 = vmatmul.f32.gmra.mxu0 %v6269
        %v6381 = vpop.f32.mrf.mxu0
        %v6382 = vadd.f32 0.0, %v6381
        %6383 = vmatmul.f32.gmra.mxu0 %v6272
        %v6384 = vpop.f32.mrf.mxu0
        %v6385 = vadd.f32 0.0, %v6384
        %6386 = vmatmul.f32.gmra.mxu0 %v6275
        %v6387 = vpop.f32.mrf.mxu0
        %v6388 = vadd.f32 0.0, %v6387
        %6389 = vmatmul.f32.gmra.mxu0 %v6278
        %v6390 = vpop.f32.mrf.mxu0
        %v6391 = vadd.f32 0.0, %v6390
        %6392 = vmatmul.f32.gmra.mxu0 %v6281
        %v6393 = vpop.f32.mrf.mxu0
        %v6394 = vadd.f32 0.0, %v6393
        %6395 = vmatmul.f32.gmra.mxu0 %v6284
        %v6396 = vpop.f32.mrf.mxu0
        %v6397 = vadd.f32 0.0, %v6396
        %6398 = vmatmul.f32.gmra.mxu0 %v6287
        %v6399 = vpop.f32.mrf.mxu0
        %v6400 = vadd.f32 0.0, %v6399
        %6401 = vmatmul.f32.gmra.mxu0 %v6290
        %v6402 = vpop.f32.mrf.mxu0
        %v6403 = vadd.f32 0.0, %v6402
        %6404 = vmatmul.f32.gmra.mxu0 %v6293
        %v6405 = vpop.f32.mrf.mxu0
        %v6406 = vadd.f32 0.0, %v6405
        %6407 = vmatmul.f32.gmra.mxu0 %v6296
        %v6408 = vpop.f32.mrf.mxu0
        %v6409 = vadd.f32 0.0, %v6408
        %6410 = vmatmul.f32.gmra.mxu0 %v6299
        %v6411 = vpop.f32.mrf.mxu0
        %v6412 = vadd.f32 0.0, %v6411
        %6413 = vmatmul.f32.gmra.mxu0 %v6302
        %v6414 = vpop.f32.mrf.mxu0
        %v6415 = vadd.f32 0.0, %v6414
        %6416 = vmatmul.f32.gmra.mxu0 %v6305
        %v6417 = vpop.f32.mrf.mxu0
        %v6418 = vadd.f32 0.0, %v6417
        %6419 = vdwg.mxu0
        %v6420 = vld [vmem:[%s786] sm:$0x1]
        %v6422 = vperm.slane %v6420, 0
        %v6424 = vmul.f32 %v6325, %v6422
        %v6425 = vmul.f32 %v6328, %v6422
        %v6426 = vmul.f32 %v6331, %v6422
        %v6427 = vmul.f32 %v6334, %v6422
        %v6428 = vmul.f32 %v6337, %v6422
        %v6429 = vmul.f32 %v6340, %v6422
        %v6430 = vmul.f32 %v6343, %v6422
        %v6431 = vmul.f32 %v6346, %v6422
        %v6432 = vmul.f32 %v6349, %v6422
        %v6433 = vmul.f32 %v6352, %v6422
        %v6434 = vmul.f32 %v6355, %v6422
        %v6435 = vmul.f32 %v6358, %v6422
        %v6436 = vmul.f32 %v6361, %v6422
        %v6437 = vmul.f32 %v6364, %v6422
        %v6438 = vmul.f32 %v6367, %v6422
        %v6439 = vmul.f32 %v6370, %v6422
        %v6440 = vmul.f32 %v6373, %v6422
        %v6441 = vmul.f32 %v6376, %v6422
        %v6442 = vmul.f32 %v6379, %v6422
        %v6443 = vmul.f32 %v6382, %v6422
        %v6444 = vmul.f32 %v6385, %v6422
        %v6445 = vmul.f32 %v6388, %v6422
        %v6446 = vmul.f32 %v6391, %v6422
        %v6447 = vmul.f32 %v6394, %v6422
        %v6448 = vmul.f32 %v6397, %v6422
        %v6449 = vmul.f32 %v6400, %v6422
        %v6450 = vmul.f32 %v6403, %v6422
        %v6451 = vmul.f32 %v6406, %v6422
        %v6452 = vmul.f32 %v6409, %v6422
        %v6453 = vmul.f32 %v6412, %v6422
        %v6454 = vmul.f32 %v6415, %v6422
        %v6455 = vmul.f32 %v6418, %v6422
        %s6456 = sld [smem:[#allocation4 + $0x1]]
        %v6457 = vld [vmem:[%s774] sm:$0xff]
        %v6458 = vld [vmem:[%s774 + $0x8] sm:$0xff]
        %v6459 = vld [vmem:[%s774 + $0x10] sm:$0xff]
        %v6460 = vld [vmem:[%s774 + $0x18] sm:$0xff]
        %v6461 = vld [vmem:[%s774 + $0x20] sm:$0xff]
        %v6462 = vld [vmem:[%s774 + $0x28] sm:$0xff]
        %v6463 = vld [vmem:[%s774 + $0x30] sm:$0xff]
        %v6464 = vld [vmem:[%s774 + $0x38] sm:$0xff]
        %v6465 = vld [vmem:[%s774 + $0x40] sm:$0xff]
        %v6466 = vld [vmem:[%s774 + $0x48] sm:$0xff]
        %v6467 = vld [vmem:[%s774 + $0x50] sm:$0xff]
        %v6468 = vld [vmem:[%s774 + $0x58] sm:$0xff]
        %v6469 = vld [vmem:[%s774 + $0x60] sm:$0xff]
        %v6470 = vld [vmem:[%s774 + $0x68] sm:$0xff]
        %v6471 = vld [vmem:[%s774 + $0x70] sm:$0xff]
        %v6472 = vld [vmem:[%s774 + $0x78] sm:$0xff]
        %v6473 = vld [vmem:[%s774 + $0x80] sm:$0xff]
        %v6474 = vld [vmem:[%s774 + $0x88] sm:$0xff]
        %v6475 = vld [vmem:[%s774 + $0x90] sm:$0xff]
        %v6476 = vld [vmem:[%s774 + $0x98] sm:$0xff]
        %v6477 = vld [vmem:[%s774 + $0xa0] sm:$0xff]
        %v6478 = vld [vmem:[%s774 + $0xa8] sm:$0xff]
        %v6479 = vld [vmem:[%s774 + $0xb0] sm:$0xff]
        %v6480 = vld [vmem:[%s774 + $0xb8] sm:$0xff]
        %v6481 = vld [vmem:[%s774 + $0xc0] sm:$0xff]
        %v6482 = vld [vmem:[%s774 + $0xc8] sm:$0xff]
        %v6483 = vld [vmem:[%s774 + $0xd0] sm:$0xff]
        %v6484 = vld [vmem:[%s774 + $0xd8] sm:$0xff]
        %v6485 = vld [vmem:[%s774 + $0xe0] sm:$0xff]
        %v6486 = vld [vmem:[%s774 + $0xe8] sm:$0xff]
        %v6487 = vld [vmem:[%s774 + $0xf0] sm:$0xff]
        %v6488 = vld [vmem:[%s774 + $0xf8] sm:$0xff]
        %v6489 = vstv %s6456
        %v6490 = vmul.f32 %v6489, %v6457
        %v6491 = vmul.f32 %v6489, %v6458
        %v6492 = vmul.f32 %v6489, %v6459
        %v6493 = vmul.f32 %v6489, %v6460
        %v6494 = vmul.f32 %v6489, %v6461
        %v6495 = vmul.f32 %v6489, %v6462
        %v6496 = vmul.f32 %v6489, %v6463
        %v6497 = vmul.f32 %v6489, %v6464
        %v6498 = vmul.f32 %v6489, %v6465
        %v6499 = vmul.f32 %v6489, %v6466
        %v6500 = vmul.f32 %v6489, %v6467
        %v6501 = vmul.f32 %v6489, %v6468
        %v6502 = vmul.f32 %v6489, %v6469
        %v6503 = vmul.f32 %v6489, %v6470
        %v6504 = vmul.f32 %v6489, %v6471
        %v6505 = vmul.f32 %v6489, %v6472
        %v6506 = vmul.f32 %v6489, %v6473
        %v6507 = vmul.f32 %v6489, %v6474
        %v6508 = vmul.f32 %v6489, %v6475
        %v6509 = vmul.f32 %v6489, %v6476
        %v6510 = vmul.f32 %v6489, %v6477
        %v6511 = vmul.f32 %v6489, %v6478
        %v6512 = vmul.f32 %v6489, %v6479
        %v6513 = vmul.f32 %v6489, %v6480
        %v6514 = vmul.f32 %v6489, %v6481
        %v6515 = vmul.f32 %v6489, %v6482
        %v6516 = vmul.f32 %v6489, %v6483
        %v6517 = vmul.f32 %v6489, %v6484
        %v6518 = vmul.f32 %v6489, %v6485
        %v6519 = vmul.f32 %v6489, %v6486
        %v6520 = vmul.f32 %v6489, %v6487
        %v6521 = vmul.f32 %v6489, %v6488
        %6523 = vset.pattern.permute.xlu0 0
        %6524 = vperm.xlu0 %6523, %v6490
        %v6525 = vpop.permute.xlu0 %6524
        %6528 = vset.pattern.permute.xlu0 0
        %6529 = vperm.xlu0 %6528, %v6491
        %v6530 = vpop.permute.xlu0 %6529
        %6533 = vset.pattern.permute.xlu0 0
        %6534 = vperm.xlu0 %6533, %v6492
        %v6535 = vpop.permute.xlu0 %6534
        %6538 = vset.pattern.permute.xlu0 0
        %6539 = vperm.xlu0 %6538, %v6493
        %v6540 = vpop.permute.xlu0 %6539
        %6543 = vset.pattern.permute.xlu0 0
        %6544 = vperm.xlu0 %6543, %v6494
        %v6545 = vpop.permute.xlu0 %6544
        %6548 = vset.pattern.permute.xlu0 0
        %6549 = vperm.xlu0 %6548, %v6495
        %v6550 = vpop.permute.xlu0 %6549
        %6553 = vset.pattern.permute.xlu0 0
        %6554 = vperm.xlu0 %6553, %v6496
        %v6555 = vpop.permute.xlu0 %6554
        %6558 = vset.pattern.permute.xlu0 0
        %6559 = vperm.xlu0 %6558, %v6497
        %v6560 = vpop.permute.xlu0 %6559
        %6563 = vset.pattern.permute.xlu0 0
        %6564 = vperm.xlu0 %6563, %v6498
        %v6565 = vpop.permute.xlu0 %6564
        %6568 = vset.pattern.permute.xlu0 0
        %6569 = vperm.xlu0 %6568, %v6499
        %v6570 = vpop.permute.xlu0 %6569
        %6573 = vset.pattern.permute.xlu0 0
        %6574 = vperm.xlu0 %6573, %v6500
        %v6575 = vpop.permute.xlu0 %6574
        %6578 = vset.pattern.permute.xlu0 0
        %6579 = vperm.xlu0 %6578, %v6501
        %v6580 = vpop.permute.xlu0 %6579
        %6583 = vset.pattern.permute.xlu0 0
        %6584 = vperm.xlu0 %6583, %v6502
        %v6585 = vpop.permute.xlu0 %6584
        %6588 = vset.pattern.permute.xlu0 0
        %6589 = vperm.xlu0 %6588, %v6503
        %v6590 = vpop.permute.xlu0 %6589
        %6593 = vset.pattern.permute.xlu0 0
        %6594 = vperm.xlu0 %6593, %v6504
        %v6595 = vpop.permute.xlu0 %6594
        %6598 = vset.pattern.permute.xlu0 0
        %6599 = vperm.xlu0 %6598, %v6505
        %v6600 = vpop.permute.xlu0 %6599
        %6603 = vset.pattern.permute.xlu0 0
        %6604 = vperm.xlu0 %6603, %v6506
        %v6605 = vpop.permute.xlu0 %6604
        %6608 = vset.pattern.permute.xlu0 0
        %6609 = vperm.xlu0 %6608, %v6507
        %v6610 = vpop.permute.xlu0 %6609
        %6613 = vset.pattern.permute.xlu0 0
        %6614 = vperm.xlu0 %6613, %v6508
        %v6615 = vpop.permute.xlu0 %6614
        %6618 = vset.pattern.permute.xlu0 0
        %6619 = vperm.xlu0 %6618, %v6509
        %v6620 = vpop.permute.xlu0 %6619
        %6623 = vset.pattern.permute.xlu0 0
        %6624 = vperm.xlu0 %6623, %v6510
        %v6625 = vpop.permute.xlu0 %6624
        %6628 = vset.pattern.permute.xlu0 0
        %6629 = vperm.xlu0 %6628, %v6511
        %v6630 = vpop.permute.xlu0 %6629
        %6633 = vset.pattern.permute.xlu0 0
        %6634 = vperm.xlu0 %6633, %v6512
        %v6635 = vpop.permute.xlu0 %6634
        %6638 = vset.pattern.permute.xlu0 0
        %6639 = vperm.xlu0 %6638, %v6513
        %v6640 = vpop.permute.xlu0 %6639
        %6643 = vset.pattern.permute.xlu0 0
        %6644 = vperm.xlu0 %6643, %v6514
        %v6645 = vpop.permute.xlu0 %6644
        %6648 = vset.pattern.permute.xlu0 0
        %6649 = vperm.xlu0 %6648, %v6515
        %v6650 = vpop.permute.xlu0 %6649
        %6653 = vset.pattern.permute.xlu0 0
        %6654 = vperm.xlu0 %6653, %v6516
        %v6655 = vpop.permute.xlu0 %6654
        %6658 = vset.pattern.permute.xlu0 0
        %6659 = vperm.xlu0 %6658, %v6517
        %v6660 = vpop.permute.xlu0 %6659
        %6663 = vset.pattern.permute.xlu0 0
        %6664 = vperm.xlu0 %6663, %v6518
        %v6665 = vpop.permute.xlu0 %6664
        %6668 = vset.pattern.permute.xlu0 0
        %6669 = vperm.xlu0 %6668, %v6519
        %v6670 = vpop.permute.xlu0 %6669
        %6673 = vset.pattern.permute.xlu0 0
        %6674 = vperm.xlu0 %6673, %v6520
        %v6675 = vpop.permute.xlu0 %6674
        %6678 = vset.pattern.permute.xlu0 0
        %6679 = vperm.xlu0 %6678, %v6521
        %v6680 = vpop.permute.xlu0 %6679
        %v6682 = vadd.f32 %v6424, %v6525
        %v6683 = vadd.f32 %v6425, %v6530
        %v6684 = vadd.f32 %v6426, %v6535
        %v6685 = vadd.f32 %v6427, %v6540
        %v6686 = vadd.f32 %v6428, %v6545
        %v6687 = vadd.f32 %v6429, %v6550
        %v6688 = vadd.f32 %v6430, %v6555
        %v6689 = vadd.f32 %v6431, %v6560
        %v6690 = vadd.f32 %v6432, %v6565
        %v6691 = vadd.f32 %v6433, %v6570
        %v6692 = vadd.f32 %v6434, %v6575
        %v6693 = vadd.f32 %v6435, %v6580
        %v6694 = vadd.f32 %v6436, %v6585
        %v6695 = vadd.f32 %v6437, %v6590
        %v6696 = vadd.f32 %v6438, %v6595
        %v6697 = vadd.f32 %v6439, %v6600
        %v6698 = vadd.f32 %v6440, %v6605
        %v6699 = vadd.f32 %v6441, %v6610
        %v6700 = vadd.f32 %v6442, %v6615
        %v6701 = vadd.f32 %v6443, %v6620
        %v6702 = vadd.f32 %v6444, %v6625
        %v6703 = vadd.f32 %v6445, %v6630
        %v6704 = vadd.f32 %v6446, %v6635
        %v6705 = vadd.f32 %v6447, %v6640
        %v6706 = vadd.f32 %v6448, %v6645
        %v6707 = vadd.f32 %v6449, %v6650
        %v6708 = vadd.f32 %v6450, %v6655
        %v6709 = vadd.f32 %v6451, %v6660
        %v6710 = vadd.f32 %v6452, %v6665
        %v6711 = vadd.f32 %v6453, %v6670
        %v6712 = vadd.f32 %v6454, %v6675
        %v6713 = vadd.f32 %v6455, %v6680
        %v6714 = vld [vmem:[%s15] sm:$0x1]
        %v6716 = vperm.slane %v6714, 0
        %v6718 = vadd.f32 %v6682, %v6716
        %v6719 = vadd.f32 %v6683, %v6716
        %v6720 = vadd.f32 %v6684, %v6716
        %v6721 = vadd.f32 %v6685, %v6716
        %v6722 = vadd.f32 %v6686, %v6716
        %v6723 = vadd.f32 %v6687, %v6716
        %v6724 = vadd.f32 %v6688, %v6716
        %v6725 = vadd.f32 %v6689, %v6716
        %v6726 = vadd.f32 %v6690, %v6716
        %v6727 = vadd.f32 %v6691, %v6716
        %v6728 = vadd.f32 %v6692, %v6716
        %v6729 = vadd.f32 %v6693, %v6716
        %v6730 = vadd.f32 %v6694, %v6716
        %v6731 = vadd.f32 %v6695, %v6716
        %v6732 = vadd.f32 %v6696, %v6716
        %v6733 = vadd.f32 %v6697, %v6716
        %v6734 = vadd.f32 %v6698, %v6716
        %v6735 = vadd.f32 %v6699, %v6716
        %v6736 = vadd.f32 %v6700, %v6716
        %v6737 = vadd.f32 %v6701, %v6716
        %v6738 = vadd.f32 %v6702, %v6716
        %v6739 = vadd.f32 %v6703, %v6716
        %v6740 = vadd.f32 %v6704, %v6716
        %v6741 = vadd.f32 %v6705, %v6716
        %v6742 = vadd.f32 %v6706, %v6716
        %v6743 = vadd.f32 %v6707, %v6716
        %v6744 = vadd.f32 %v6708, %v6716
        %v6745 = vadd.f32 %v6709, %v6716
        %v6746 = vadd.f32 %v6710, %v6716
        %v6747 = vadd.f32 %v6711, %v6716
        %v6748 = vadd.f32 %v6712, %v6716
        %v6749 = vadd.f32 %v6713, %v6716
        %vm6750 = vcmp.ge.f32.partialorder %v6718, 0.0
        %vm6751 = vcmp.ge.f32.partialorder %v6719, 0.0
        %vm6752 = vcmp.ge.f32.partialorder %v6720, 0.0
        %vm6753 = vcmp.ge.f32.partialorder %v6721, 0.0
        %vm6754 = vcmp.ge.f32.partialorder %v6722, 0.0
        %vm6755 = vcmp.ge.f32.partialorder %v6723, 0.0
        %vm6756 = vcmp.ge.f32.partialorder %v6724, 0.0
        %vm6757 = vcmp.ge.f32.partialorder %v6725, 0.0
        %vm6758 = vcmp.ge.f32.partialorder %v6726, 0.0
        %vm6759 = vcmp.ge.f32.partialorder %v6727, 0.0
        %vm6760 = vcmp.ge.f32.partialorder %v6728, 0.0
        %vm6761 = vcmp.ge.f32.partialorder %v6729, 0.0
        %vm6762 = vcmp.ge.f32.partialorder %v6730, 0.0
        %vm6763 = vcmp.ge.f32.partialorder %v6731, 0.0
        %vm6764 = vcmp.ge.f32.partialorder %v6732, 0.0
        %vm6765 = vcmp.ge.f32.partialorder %v6733, 0.0
        %vm6766 = vcmp.ge.f32.partialorder %v6734, 0.0
        %vm6767 = vcmp.ge.f32.partialorder %v6735, 0.0
        %vm6768 = vcmp.ge.f32.partialorder %v6736, 0.0
        %vm6769 = vcmp.ge.f32.partialorder %v6737, 0.0
        %vm6770 = vcmp.ge.f32.partialorder %v6738, 0.0
        %vm6771 = vcmp.ge.f32.partialorder %v6739, 0.0
        %vm6772 = vcmp.ge.f32.partialorder %v6740, 0.0
        %vm6773 = vcmp.ge.f32.partialorder %v6741, 0.0
        %vm6774 = vcmp.ge.f32.partialorder %v6742, 0.0
        %vm6775 = vcmp.ge.f32.partialorder %v6743, 0.0
        %vm6776 = vcmp.ge.f32.partialorder %v6744, 0.0
        %vm6777 = vcmp.ge.f32.partialorder %v6745, 0.0
        %vm6778 = vcmp.ge.f32.partialorder %v6746, 0.0
        %vm6779 = vcmp.ge.f32.partialorder %v6747, 0.0
        %vm6780 = vcmp.ge.f32.partialorder %v6748, 0.0
        %vm6781 = vcmp.ge.f32.partialorder %v6749, 0.0
        %v6782 = vmul.f32 %v6718, 0.2
        %v6783 = vmul.f32 %v6719, 0.2
        %v6784 = vmul.f32 %v6720, 0.2
        %v6785 = vmul.f32 %v6721, 0.2
        %v6786 = vmul.f32 %v6722, 0.2
        %v6787 = vmul.f32 %v6723, 0.2
        %v6788 = vmul.f32 %v6724, 0.2
        %v6789 = vmul.f32 %v6725, 0.2
        %v6790 = vmul.f32 %v6726, 0.2
        %v6791 = vmul.f32 %v6727, 0.2
        %v6792 = vmul.f32 %v6728, 0.2
        %v6793 = vmul.f32 %v6729, 0.2
        %v6794 = vmul.f32 %v6730, 0.2
        %v6795 = vmul.f32 %v6731, 0.2
        %v6796 = vmul.f32 %v6732, 0.2
        %v6797 = vmul.f32 %v6733, 0.2
        %v6798 = vmul.f32 %v6734, 0.2
        %v6799 = vmul.f32 %v6735, 0.2
        %v6800 = vmul.f32 %v6736, 0.2
        %v6801 = vmul.f32 %v6737, 0.2
        %v6802 = vmul.f32 %v6738, 0.2
        %v6803 = vmul.f32 %v6739, 0.2
        %v6804 = vmul.f32 %v6740, 0.2
        %v6805 = vmul.f32 %v6741, 0.2
        %v6806 = vmul.f32 %v6742, 0.2
        %v6807 = vmul.f32 %v6743, 0.2
        %v6808 = vmul.f32 %v6744, 0.2
        %v6809 = vmul.f32 %v6745, 0.2
        %v6810 = vmul.f32 %v6746, 0.2
        %v6811 = vmul.f32 %v6747, 0.2
        %v6812 = vmul.f32 %v6748, 0.2
        %v6813 = vmul.f32 %v6749, 0.2
        %v6814 = vsel %vm6750, %v6718, %v6782
        %v6815 = vsel %vm6751, %v6719, %v6783
        %v6816 = vsel %vm6752, %v6720, %v6784
        %v6817 = vsel %vm6753, %v6721, %v6785
        %v6818 = vsel %vm6754, %v6722, %v6786
        %v6819 = vsel %vm6755, %v6723, %v6787
        %v6820 = vsel %vm6756, %v6724, %v6788
        %v6821 = vsel %vm6757, %v6725, %v6789
        %v6822 = vsel %vm6758, %v6726, %v6790
        %v6823 = vsel %vm6759, %v6727, %v6791
        %v6824 = vsel %vm6760, %v6728, %v6792
        %v6825 = vsel %vm6761, %v6729, %v6793
        %v6826 = vsel %vm6762, %v6730, %v6794
        %v6827 = vsel %vm6763, %v6731, %v6795
        %v6828 = vsel %vm6764, %v6732, %v6796
        %v6829 = vsel %vm6765, %v6733, %v6797
        %v6830 = vsel %vm6766, %v6734, %v6798
        %v6831 = vsel %vm6767, %v6735, %v6799
        %v6832 = vsel %vm6768, %v6736, %v6800
        %v6833 = vsel %vm6769, %v6737, %v6801
        %v6834 = vsel %vm6770, %v6738, %v6802
        %v6835 = vsel %vm6771, %v6739, %v6803
        %v6836 = vsel %vm6772, %v6740, %v6804
        %v6837 = vsel %vm6773, %v6741, %v6805
        %v6838 = vsel %vm6774, %v6742, %v6806
        %v6839 = vsel %vm6775, %v6743, %v6807
        %v6840 = vsel %vm6776, %v6744, %v6808
        %v6841 = vsel %vm6777, %v6745, %v6809
        %v6842 = vsel %vm6778, %v6746, %v6810
        %v6843 = vsel %vm6779, %v6747, %v6811
        %v6844 = vsel %vm6780, %v6748, %v6812
        %v6845 = vsel %vm6781, %v6749, %v6813
        %v6846 = vmul.f32 %v6814, 1.4142135
        %v6847 = vmul.f32 %v6815, 1.4142135
        %v6848 = vmul.f32 %v6816, 1.4142135
        %v6849 = vmul.f32 %v6817, 1.4142135
        %v6850 = vmul.f32 %v6818, 1.4142135
        %v6851 = vmul.f32 %v6819, 1.4142135
        %v6852 = vmul.f32 %v6820, 1.4142135
        %v6853 = vmul.f32 %v6821, 1.4142135
        %v6854 = vmul.f32 %v6822, 1.4142135
        %v6855 = vmul.f32 %v6823, 1.4142135
        %v6856 = vmul.f32 %v6824, 1.4142135
        %v6857 = vmul.f32 %v6825, 1.4142135
        %v6858 = vmul.f32 %v6826, 1.4142135
        %v6859 = vmul.f32 %v6827, 1.4142135
        %v6860 = vmul.f32 %v6828, 1.4142135
        %v6861 = vmul.f32 %v6829, 1.4142135
        %v6862 = vmul.f32 %v6830, 1.4142135
        %v6863 = vmul.f32 %v6831, 1.4142135
        %v6864 = vmul.f32 %v6832, 1.4142135
        %v6865 = vmul.f32 %v6833, 1.4142135
        %v6866 = vmul.f32 %v6834, 1.4142135
        %v6867 = vmul.f32 %v6835, 1.4142135
        %v6868 = vmul.f32 %v6836, 1.4142135
        %v6869 = vmul.f32 %v6837, 1.4142135
        %v6870 = vmul.f32 %v6838, 1.4142135
        %v6871 = vmul.f32 %v6839, 1.4142135
        %v6872 = vmul.f32 %v6840, 1.4142135
        %v6873 = vmul.f32 %v6841, 1.4142135
        %v6874 = vmul.f32 %v6842, 1.4142135
        %v6875 = vmul.f32 %v6843, 1.4142135
        %v6876 = vmul.f32 %v6844, 1.4142135
        %v6877 = vmul.f32 %v6845, 1.4142135
        %6878 = vst.msk [vmem:[%s794] sm:$0xff] %vm3596, %v6846
        %6879 = vst.msk [vmem:[%s794 + $0x8] sm:$0xff] %vm3596, %v6847
        %6880 = vst.msk [vmem:[%s794 + $0x10] sm:$0xff] %vm3596, %v6848
        %6881 = vst.msk [vmem:[%s794 + $0x18] sm:$0xff] %vm3596, %v6849
        %6882 = vst.msk [vmem:[%s794 + $0x20] sm:$0xff] %vm3596, %v6850
        %6883 = vst.msk [vmem:[%s794 + $0x28] sm:$0xff] %vm3596, %v6851
        %6884 = vst.msk [vmem:[%s794 + $0x30] sm:$0xff] %vm3596, %v6852
        %6885 = vst.msk [vmem:[%s794 + $0x38] sm:$0xff] %vm3596, %v6853
        %6886 = vst.msk [vmem:[%s794 + $0x40] sm:$0xff] %vm3596, %v6854
        %6887 = vst.msk [vmem:[%s794 + $0x48] sm:$0xff] %vm3596, %v6855
        %6888 = vst.msk [vmem:[%s794 + $0x50] sm:$0xff] %vm3596, %v6856
        %6889 = vst.msk [vmem:[%s794 + $0x58] sm:$0xff] %vm3596, %v6857
        %6890 = vst.msk [vmem:[%s794 + $0x60] sm:$0xff] %vm3596, %v6858
        %6891 = vst.msk [vmem:[%s794 + $0x68] sm:$0xff] %vm3596, %v6859
        %6892 = vst.msk [vmem:[%s794 + $0x70] sm:$0xff] %vm3596, %v6860
        %6893 = vst.msk [vmem:[%s794 + $0x78] sm:$0xff] %vm3596, %v6861
        %6894 = vst.msk [vmem:[%s794 + $0x80] sm:$0xff] %vm3596, %v6862
        %6895 = vst.msk [vmem:[%s794 + $0x88] sm:$0xff] %vm3596, %v6863
        %6896 = vst.msk [vmem:[%s794 + $0x90] sm:$0xff] %vm3596, %v6864
        %6897 = vst.msk [vmem:[%s794 + $0x98] sm:$0xff] %vm3596, %v6865
        %6898 = vst.msk [vmem:[%s794 + $0xa0] sm:$0xff] %vm3596, %v6866
        %6899 = vst.msk [vmem:[%s794 + $0xa8] sm:$0xff] %vm3596, %v6867
        %6900 = vst.msk [vmem:[%s794 + $0xb0] sm:$0xff] %vm3596, %v6868
        %6901 = vst.msk [vmem:[%s794 + $0xb8] sm:$0xff] %vm3596, %v6869
        %6902 = vst.msk [vmem:[%s794 + $0xc0] sm:$0xff] %vm3596, %v6870
        %6903 = vst.msk [vmem:[%s794 + $0xc8] sm:$0xff] %vm3596, %v6871
        %6904 = vst.msk [vmem:[%s794 + $0xd0] sm:$0xff] %vm3596, %v6872
        %6905 = vst.msk [vmem:[%s794 + $0xd8] sm:$0xff] %vm3596, %v6873
        %6906 = vst.msk [vmem:[%s794 + $0xe0] sm:$0xff] %vm3596, %v6874
        %6907 = vst.msk [vmem:[%s794 + $0xe8] sm:$0xff] %vm3596, %v6875
        %6908 = vst.msk [vmem:[%s794 + $0xf0] sm:$0xff] %vm3596, %v6876
        %6909 = vst.msk [vmem:[%s794 + $0xf8] sm:$0xff] %vm3596, %v6877
        %v6910 = vld [vmem:[%s789] sm:$0x1]
        %v6912 = vperm.slane %v6910, 0
        %v6914 = vmul.f32 %v6846, %v6912
        %v6915 = vmul.f32 %v6847, %v6912
        %v6916 = vmul.f32 %v6848, %v6912
        %v6917 = vmul.f32 %v6849, %v6912
        %v6918 = vmul.f32 %v6850, %v6912
        %v6919 = vmul.f32 %v6851, %v6912
        %v6920 = vmul.f32 %v6852, %v6912
        %v6921 = vmul.f32 %v6853, %v6912
        %v6922 = vmul.f32 %v6854, %v6912
        %v6923 = vmul.f32 %v6855, %v6912
        %v6924 = vmul.f32 %v6856, %v6912
        %v6925 = vmul.f32 %v6857, %v6912
        %v6926 = vmul.f32 %v6858, %v6912
        %v6927 = vmul.f32 %v6859, %v6912
        %v6928 = vmul.f32 %v6860, %v6912
        %v6929 = vmul.f32 %v6861, %v6912
        %v6930 = vmul.f32 %v6862, %v6912
        %v6931 = vmul.f32 %v6863, %v6912
        %v6932 = vmul.f32 %v6864, %v6912
        %v6933 = vmul.f32 %v6865, %v6912
        %v6934 = vmul.f32 %v6866, %v6912
        %v6935 = vmul.f32 %v6867, %v6912
        %v6936 = vmul.f32 %v6868, %v6912
        %v6937 = vmul.f32 %v6869, %v6912
        %v6938 = vmul.f32 %v6870, %v6912
        %v6939 = vmul.f32 %v6871, %v6912
        %v6940 = vmul.f32 %v6872, %v6912
        %v6941 = vmul.f32 %v6873, %v6912
        %v6942 = vmul.f32 %v6874, %v6912
        %v6943 = vmul.f32 %v6875, %v6912
        %v6944 = vmul.f32 %v6876, %v6912
        %v6945 = vmul.f32 %v6877, %v6912
        %v6946 = vld [vmem:[%s8] sm:$0xff]
        %v6947 = vld [vmem:[%s16] sm:$0x1]
        %v6949 = vperm.slane %v6947, 0
        %v6952 = vsel %vm3596, %v6914, 0
        %v6955 = vsel %vm3596, %v6915, 0
        %v6958 = vsel %vm3596, %v6916, 0
        %v6961 = vsel %vm3596, %v6917, 0
        %v6964 = vsel %vm3596, %v6918, 0
        %v6967 = vsel %vm3596, %v6919, 0
        %v6970 = vsel %vm3596, %v6920, 0
        %v6973 = vsel %vm3596, %v6921, 0
        %v6976 = vsel %vm3596, %v6922, 0
        %v6979 = vsel %vm3596, %v6923, 0
        %v6982 = vsel %vm3596, %v6924, 0
        %v6985 = vsel %vm3596, %v6925, 0
        %v6988 = vsel %vm3596, %v6926, 0
        %v6991 = vsel %vm3596, %v6927, 0
        %v6994 = vsel %vm3596, %v6928, 0
        %v6997 = vsel %vm3596, %v6929, 0
        %v7000 = vsel %vm3596, %v6930, 0
        %v7003 = vsel %vm3596, %v6931, 0
        %v7006 = vsel %vm3596, %v6932, 0
        %v7009 = vsel %vm3596, %v6933, 0
        %v7012 = vsel %vm3596, %v6934, 0
        %v7015 = vsel %vm3596, %v6935, 0
        %v7018 = vsel %vm3596, %v6936, 0
        %v7021 = vsel %vm3596, %v6937, 0
        %v7024 = vsel %vm3596, %v6938, 0
        %v7027 = vsel %vm3596, %v6939, 0
        %v7030 = vsel %vm3596, %v6940, 0
        %v7033 = vsel %vm3596, %v6941, 0
        %v7036 = vsel %vm3596, %v6942, 0
        %v7039 = vsel %vm3596, %v6943, 0
        %v7042 = vsel %vm3596, %v6944, 0
        %v7045 = vsel %vm3596, %v6945, 0
        %7047 = vmatpush.msra.mxu0 0.0
        %7048 = vmatpush.msra.mxu0 0.0
        %7049 = vmatpush.msra.mxu0 0.0
        %7050 = vmatpush.msra.mxu0 0.0
        %7051 = vmatpush.msra.mxu0 0.0
        %7052 = vmatpush.msra.mxu0 0.0
        %7053 = vmatpush.msra.mxu0 0.0
        %7054 = vmatpush.msra.mxu0 0.0
        %7055 = vmatpush.msra.mxu0 0.0
        %7056 = vmatpush.msra.mxu0 0.0
        %7057 = vmatpush.msra.mxu0 0.0
        %7058 = vmatpush.msra.mxu0 0.0
        %7059 = vmatpush.msra.mxu0 0.0
        %7060 = vmatpush.msra.mxu0 0.0
        %7061 = vmatpush.msra.mxu0 0.0
        %7062 = vmatpush.msra.mxu0 %v6946
        %7063 = vmatmul.f32.gmra.mxu0 %v6952
        %v7064 = vpop.f32.mrf.mxu0
        %v7065 = vadd.f32 %v6949, %v7064
        %7066 = vmatmul.f32.gmra.mxu0 %v6955
        %v7067 = vpop.f32.mrf.mxu0
        %v7068 = vadd.f32 %v6949, %v7067
        %7069 = vmatmul.f32.gmra.mxu0 %v6958
        %v7070 = vpop.f32.mrf.mxu0
        %v7071 = vadd.f32 %v6949, %v7070
        %7072 = vmatmul.f32.gmra.mxu0 %v6961
        %v7073 = vpop.f32.mrf.mxu0
        %v7074 = vadd.f32 %v6949, %v7073
        %7075 = vmatmul.f32.gmra.mxu0 %v6964
        %v7076 = vpop.f32.mrf.mxu0
        %v7077 = vadd.f32 %v6949, %v7076
        %7078 = vmatmul.f32.gmra.mxu0 %v6967
        %v7079 = vpop.f32.mrf.mxu0
        %v7080 = vadd.f32 %v6949, %v7079
        %7081 = vmatmul.f32.gmra.mxu0 %v6970
        %v7082 = vpop.f32.mrf.mxu0
        %v7083 = vadd.f32 %v6949, %v7082
        %7084 = vmatmul.f32.gmra.mxu0 %v6973
        %v7085 = vpop.f32.mrf.mxu0
        %v7086 = vadd.f32 %v6949, %v7085
        %7087 = vmatmul.f32.gmra.mxu0 %v6976
        %v7088 = vpop.f32.mrf.mxu0
        %v7089 = vadd.f32 %v6949, %v7088
        %7090 = vmatmul.f32.gmra.mxu0 %v6979
        %v7091 = vpop.f32.mrf.mxu0
        %v7092 = vadd.f32 %v6949, %v7091
        %7093 = vmatmul.f32.gmra.mxu0 %v6982
        %v7094 = vpop.f32.mrf.mxu0
        %v7095 = vadd.f32 %v6949, %v7094
        %7096 = vmatmul.f32.gmra.mxu0 %v6985
        %v7097 = vpop.f32.mrf.mxu0
        %v7098 = vadd.f32 %v6949, %v7097
        %7099 = vmatmul.f32.gmra.mxu0 %v6988
        %v7100 = vpop.f32.mrf.mxu0
        %v7101 = vadd.f32 %v6949, %v7100
        %7102 = vmatmul.f32.gmra.mxu0 %v6991
        %v7103 = vpop.f32.mrf.mxu0
        %v7104 = vadd.f32 %v6949, %v7103
        %7105 = vmatmul.f32.gmra.mxu0 %v6994
        %v7106 = vpop.f32.mrf.mxu0
        %v7107 = vadd.f32 %v6949, %v7106
        %7108 = vmatmul.f32.gmra.mxu0 %v6997
        %v7109 = vpop.f32.mrf.mxu0
        %v7110 = vadd.f32 %v6949, %v7109
        %7111 = vmatmul.f32.gmra.mxu0 %v7000
        %v7112 = vpop.f32.mrf.mxu0
        %v7113 = vadd.f32 %v6949, %v7112
        %7114 = vmatmul.f32.gmra.mxu0 %v7003
        %v7115 = vpop.f32.mrf.mxu0
        %v7116 = vadd.f32 %v6949, %v7115
        %7117 = vmatmul.f32.gmra.mxu0 %v7006
        %v7118 = vpop.f32.mrf.mxu0
        %v7119 = vadd.f32 %v6949, %v7118
        %7120 = vmatmul.f32.gmra.mxu0 %v7009
        %v7121 = vpop.f32.mrf.mxu0
        %v7122 = vadd.f32 %v6949, %v7121
        %7123 = vmatmul.f32.gmra.mxu0 %v7012
        %v7124 = vpop.f32.mrf.mxu0
        %v7125 = vadd.f32 %v6949, %v7124
        %7126 = vmatmul.f32.gmra.mxu0 %v7015
        %v7127 = vpop.f32.mrf.mxu0
        %v7128 = vadd.f32 %v6949, %v7127
        %7129 = vmatmul.f32.gmra.mxu0 %v7018
        %v7130 = vpop.f32.mrf.mxu0
        %v7131 = vadd.f32 %v6949, %v7130
        %7132 = vmatmul.f32.gmra.mxu0 %v7021
        %v7133 = vpop.f32.mrf.mxu0
        %v7134 = vadd.f32 %v6949, %v7133
        %7135 = vmatmul.f32.gmra.mxu0 %v7024
        %v7136 = vpop.f32.mrf.mxu0
        %v7137 = vadd.f32 %v6949, %v7136
        %7138 = vmatmul.f32.gmra.mxu0 %v7027
        %v7139 = vpop.f32.mrf.mxu0
        %v7140 = vadd.f32 %v6949, %v7139
        %7141 = vmatmul.f32.gmra.mxu0 %v7030
        %v7142 = vpop.f32.mrf.mxu0
        %v7143 = vadd.f32 %v6949, %v7142
        %7144 = vmatmul.f32.gmra.mxu0 %v7033
        %v7145 = vpop.f32.mrf.mxu0
        %v7146 = vadd.f32 %v6949, %v7145
        %7147 = vmatmul.f32.gmra.mxu0 %v7036
        %v7148 = vpop.f32.mrf.mxu0
        %v7149 = vadd.f32 %v6949, %v7148
        %7150 = vmatmul.f32.gmra.mxu0 %v7039
        %v7151 = vpop.f32.mrf.mxu0
        %v7152 = vadd.f32 %v6949, %v7151
        %7153 = vmatmul.f32.gmra.mxu0 %v7042
        %v7154 = vpop.f32.mrf.mxu0
        %v7155 = vadd.f32 %v6949, %v7154
        %7156 = vmatmul.f32.gmra.mxu0 %v7045
        %v7157 = vpop.f32.mrf.mxu0
        %v7158 = vadd.f32 %v6949, %v7157
        %7159 = vdwg.mxu0
        %7160 = vst.msk [vmem:[%s799] sm:$0xff] %vm3629, %v7065
        %7161 = vst.msk [vmem:[%s799 + $0x8] sm:$0xff] %vm3629, %v7068
        %7162 = vst.msk [vmem:[%s799 + $0x10] sm:$0xff] %vm3629, %v7071
        %7163 = vst.msk [vmem:[%s799 + $0x18] sm:$0xff] %vm3629, %v7074
        %7164 = vst.msk [vmem:[%s799 + $0x20] sm:$0xff] %vm3629, %v7077
        %7165 = vst.msk [vmem:[%s799 + $0x28] sm:$0xff] %vm3629, %v7080
        %7166 = vst.msk [vmem:[%s799 + $0x30] sm:$0xff] %vm3629, %v7083
        %7167 = vst.msk [vmem:[%s799 + $0x38] sm:$0xff] %vm3629, %v7086
        %7168 = vst.msk [vmem:[%s799 + $0x40] sm:$0xff] %vm3629, %v7089
        %7169 = vst.msk [vmem:[%s799 + $0x48] sm:$0xff] %vm3629, %v7092
        %7170 = vst.msk [vmem:[%s799 + $0x50] sm:$0xff] %vm3629, %v7095
        %7171 = vst.msk [vmem:[%s799 + $0x58] sm:$0xff] %vm3629, %v7098
        %7172 = vst.msk [vmem:[%s799 + $0x60] sm:$0xff] %vm3629, %v7101
        %7173 = vst.msk [vmem:[%s799 + $0x68] sm:$0xff] %vm3629, %v7104
        %7174 = vst.msk [vmem:[%s799 + $0x70] sm:$0xff] %vm3629, %v7107
        %7175 = vst.msk [vmem:[%s799 + $0x78] sm:$0xff] %vm3629, %v7110
        %7176 = vst.msk [vmem:[%s799 + $0x80] sm:$0xff] %vm3629, %v7113
        %7177 = vst.msk [vmem:[%s799 + $0x88] sm:$0xff] %vm3629, %v7116
        %7178 = vst.msk [vmem:[%s799 + $0x90] sm:$0xff] %vm3629, %v7119
        %7179 = vst.msk [vmem:[%s799 + $0x98] sm:$0xff] %vm3629, %v7122
        %7180 = vst.msk [vmem:[%s799 + $0xa0] sm:$0xff] %vm3629, %v7125
        %7181 = vst.msk [vmem:[%s799 + $0xa8] sm:$0xff] %vm3629, %v7128
        %7182 = vst.msk [vmem:[%s799 + $0xb0] sm:$0xff] %vm3629, %v7131
        %7183 = vst.msk [vmem:[%s799 + $0xb8] sm:$0xff] %vm3629, %v7134
        %7184 = vst.msk [vmem:[%s799 + $0xc0] sm:$0xff] %vm3629, %v7137
        %7185 = vst.msk [vmem:[%s799 + $0xc8] sm:$0xff] %vm3629, %v7140
        %7186 = vst.msk [vmem:[%s799 + $0xd0] sm:$0xff] %vm3629, %v7143
        %7187 = vst.msk [vmem:[%s799 + $0xd8] sm:$0xff] %vm3629, %v7146
        %7188 = vst.msk [vmem:[%s799 + $0xe0] sm:$0xff] %vm3629, %v7149
        %7189 = vst.msk [vmem:[%s799 + $0xe8] sm:$0xff] %vm3629, %v7152
        %7190 = vst.msk [vmem:[%s799 + $0xf0] sm:$0xff] %vm3629, %v7155
        %7191 = vst.msk [vmem:[%s799 + $0xf8] sm:$0xff] %vm3629, %v7158
        %p7192 = scmp.lt.s32.totalorder %s32, 1
        %s7193 = scalar_select %p7192, %s32, 1
        %s7194 = smul.addr %s7193, 32
        %s7195 = smul.addr %s7194, 8
        %s7196 = scalar_lea.vmem %s18, %s7195
        %p7197 = scmp.lt.s32.totalorder %s32, 1
        %s7198 = scalar_select %p7197, %s32, 1
        %s7199 = smul.addr %s7198, 32
        %s7200 = smul.addr %s7199, 8
        %s7201 = scalar_lea.vmem %s19, %s7200
        // Predicated region
        $region97: #{tpu_custom_call.1} parent=91 // pred_check
          %p7202 = pneg %p483
        $region98: #{tpu_custom_call.1} parent=91 // pred_check_branch
          %7204 = sbr.rel (%p7202) target = $region100
        $region99: #{tpu_custom_call.1} parent=91 // pred_region
          _
        $region100: #{tpu_custom_call.1} parent=91 // pred_fallthru
          _
        // Predicated region
        $region101: #{tpu_custom_call.1} parent=91 // pred_check
          %p7205 = pneg %p509
        $region102: #{tpu_custom_call.1} parent=91 // pred_check_branch
          %7207 = sbr.rel (%p7205) target = $region104
        $region103: #{tpu_custom_call.1} parent=91 // pred_region
          _
        $region104: #{tpu_custom_call.1} parent=91 // pred_fallthru
          _
      $region92: #{tpu_custom_call.1} parent=5 // pred_fallthru
        _
      %p7208 = scmp.le.s32.totalorder 2, %s27
      // Predicated region
      $region105: #{tpu_custom_call.1} parent=5 // pred_check
        %p7209 = pneg %p7208
      $region106: #{tpu_custom_call.1} parent=5 // pred_check_branch
        %7211 = sbr.rel (%p7209) target = $region108
      $region107: #{tpu_custom_call.1} parent=5 // pred_region
        %s7212 = ssub.s32 %s27, 2
        // Predicated region
        $region109: #{tpu_custom_call.1} parent=107 // pred_check
          %p7213 = pneg %p489
        $region110: #{tpu_custom_call.1} parent=107 // pred_check_branch
          %7215 = sbr.rel (%p7213) target = $region112
        $region111: #{tpu_custom_call.1} parent=107 // pred_region
          %p7216 = scmp.lt.s32.totalorder %s33, 1
          %s7217 = scalar_select %p7216, %s33, 1
          %s7218 = smul.addr %s7217, 32
          %s7219 = smul.addr %s7218, 8
          %s7220 = scalar_lea.vmem %s18, %s7219
        $region112: #{tpu_custom_call.1} parent=107 // pred_fallthru
          _
        // Predicated region
        $region113: #{tpu_custom_call.1} parent=107 // pred_check
          %p7221 = pneg %p515
        $region114: #{tpu_custom_call.1} parent=107 // pred_check_branch
          %7223 = sbr.rel (%p7221) target = $region116
        $region115: #{tpu_custom_call.1} parent=107 // pred_region
          %p7224 = scmp.lt.s32.totalorder %s33, 1
          %s7225 = scalar_select %p7224, %s33, 1
          %s7226 = smul.addr %s7225, 32
          %s7227 = smul.addr %s7226, 8
          %s7228 = scalar_lea.vmem %s19, %s7227
        $region116: #{tpu_custom_call.1} parent=107 // pred_fallthru
          _
      $region108: #{tpu_custom_call.1} parent=5 // pred_fallthru
        _
    $region6: #{tpu_custom_call.1} parent=1 // loop_footer
      %s31 = sadd.s32 1, %s27
    $region7: #{tpu_custom_call.1} parent=1 // loop_footer_branch
      %26 = sbr.rel target = $region3
    $region8: #{tpu_custom_call.1} parent=1 // loop_exit
      _
    %7229 = vsyncpa [#allocation5], 1
    %s7230 = scalar_lea.sflag [#allocation5], 1
    %7231 = vsyncpa %s7230, 1

</llo_original>
